<compile_context>
chip_gen: v7x
topology: tpu7x:2x2x1
jax: 0.10.0
libtpu: 0.0.40
codegen_flags: <defaults>
</compile_context>

<pallas_src>
import jax
import jax.numpy as jnp
from jax.experimental import pallas as pl
from jax.experimental.pallas import tpu as pltpu


# (kernel, C_in, H_in, W_in, C_out) for the six conv layers (28x28x1 input).
_CONV_GEOM = (
    (3, 1, 28, 28, 8),    # convblock1: 28 -> 26
    (3, 8, 26, 26, 20),   # convblock2: 26 -> 24
    (1, 20, 12, 12, 10),  # convblock3: 12 -> 12 (after pool1)
    (3, 10, 12, 12, 8),   # convblock4: 12 -> 10
    (3, 8, 10, 10, 20),   # convblock5: 10 -> 8
    (3, 20, 4, 4, 16),    # convblock6: 4  -> 2  (after pool2)
)


# ---------------------------------------------------------------------------
# In-kernel building blocks (traced inside the single fused kernel).
# ---------------------------------------------------------------------------
def _conv_bn_relu(a, b_ref, shift_ref, k, c, h, w, d):
    """a: (h, w*c) activation.  b_ref: (k*k, wo*c, wo*d) block-diag weights."""
    ho, wo = h - k + 1, w - k + 1
    acc = None
    for t in range(k * k):
        i, j = divmod(t, k)
        lhs = a[i:i + ho, j * c:(j + wo) * c]            # (ho, wo*c) static slice
        part = jnp.dot(lhs, b_ref[t], preferred_element_type=jnp.float32)
        acc = part if acc is None else acc + part
    return jnp.maximum(acc + shift_ref[...], 0.0)        # (ho, wo*d)


def _maxpool2x2(a, r_ref, s_ref):
    """a: (h, w*c).  r_ref: (2, h/2, h) row selectors; s_ref: (2, w*c, (w/2)*c)."""
    rmax = jnp.maximum(
        jnp.dot(r_ref[0], a, preferred_element_type=jnp.float32),
        jnp.dot(r_ref[1], a, preferred_element_type=jnp.float32))
    return jnp.maximum(
        jnp.dot(rmax, s_ref[0], preferred_element_type=jnp.float32),
        jnp.dot(rmax, s_ref[1], preferred_element_type=jnp.float32))


def _model4_kernel(x_ref, b1, s1, b2, s2, p1r, p1s, b3, s3, b4, s4,
                   b5, s5, p2r, p2s, b6, s6, fc_ref, o_ref):
    a = x_ref[0, 0]                                      # (28, 28)  C_in = 1
    a = _conv_bn_relu(a, b1, s1, *_CONV_GEOM[0])         # (26, 26*8)
    a = _conv_bn_relu(a, b2, s2, *_CONV_GEOM[1])         # (24, 24*20)
    # dropout(0.1): identity in eval mode
    a = _maxpool2x2(a, p1r, p1s)                         # (12, 12*20)
    a = _conv_bn_relu(a, b3, s3, *_CONV_GEOM[2])         # (12, 12*10)
    a = _conv_bn_relu(a, b4, s4, *_CONV_GEOM[3])         # (10, 10*8)
    a = _conv_bn_relu(a, b5, s5, *_CONV_GEOM[4])         # (8,  8*20)
    # dropout(0.1): identity in eval mode
    a = _maxpool2x2(a, p2r, p2s)                         # (4,  4*20)
    a = _conv_bn_relu(a, b6, s6, *_CONV_GEOM[5])         # (2,  2*16)
    # FC (weight pre-permuted to our NHWC-flatten order) + log_softmax.
    logits = (jnp.dot(a[0:1, :], fc_ref[0:32, :], preferred_element_type=jnp.float32)
              + jnp.dot(a[1:2, :], fc_ref[32:64, :], preferred_element_type=jnp.float32))
    m = jnp.max(logits, axis=-1, keepdims=True)
    shifted = logits - m
    lse = jnp.log(jnp.sum(jnp.exp(shifted), axis=-1, keepdims=True))
    o_ref[0] = shifted - lse                             # (1, 10)


# ---------------------------------------------------------------------------
# Single fused pallas_call, gridded over the batch.
# ---------------------------------------------------------------------------
@jax.jit
def model4_forward(x_nchw, prep):
    n = x_nchw.shape[0]
    in_specs = [pl.BlockSpec((1, 1, 28, 28), lambda i: (i, 0, 0, 0))]
    for arr in prep:  # weights: full-array blocks, constant index maps (resident)
        in_specs.append(pl.BlockSpec(arr.shape, lambda i, _nd=arr.ndim: (0,) * _nd))
    out = pl.pallas_call(
        _model4_kernel,
        out_shape=jax.ShapeDtypeStruct((n, 1, 10), jnp.float32),
        grid=(n,),
        in_specs=in_specs,
        out_specs=pl.BlockSpec((1, 1, 10), lambda i: (i, 0, 0)),
        compiler_params=pltpu.CompilerParams(
            dimension_semantics=("parallel",),
            vmem_limit_bytes=32 * 1024 * 1024),
    )(x_nchw, *prep)
    return out.reshape(n, 10)


# ---------------------------------------------------------------------------
# One-time (off the forward critical path) parameter preprocessing.
# ---------------------------------------------------------------------------
def prepare_inputs(params):
    convs = []
    for idx, (k, c, h, w, d) in enumerate(_CONV_GEOM):
        wt = params[f"w{idx + 1}"]          # (d, c, k, k)  PyTorch OIHW
        sc = params[f"s{idx + 1}"]          # BN scale (d,)
        sh = params[f"b{idx + 1}"]          # BN shift (d,)
        ho, wo = h - k + 1, w - k + 1
        eye = jnp.eye(wo, dtype=jnp.float32)
        mats = [jnp.kron(eye, jnp.transpose(wt[:, :, i, j]) * sc[None, :])
                for i in range(k) for j in range(k)]     # each (wo*c, wo*d)
        b = jnp.stack(mats, axis=0)                       # (k*k, wo*c, wo*d)
        shift_row = jnp.tile(sh, (wo,)).reshape(1, wo * d)
        convs.append((b, shift_row))

    def pool_sel(h, w, c):
        hp, wp = h // 2, w // 2
        rows, prow = jnp.arange(h), jnp.arange(hp)
        r = jnp.stack([
            (rows[None, :] == 2 * prow[:, None]).astype(jnp.float32),
            (rows[None, :] == 2 * prow[:, None] + 1).astype(jnp.float32)], 0)
        cols, pcol = jnp.arange(w), jnp.arange(wp)
        eye_c = jnp.eye(c, dtype=jnp.float32)
        s = jnp.stack([
            jnp.kron((cols[:, None] == 2 * pcol[None, :]).astype(jnp.float32), eye_c),
            jnp.kron((cols[:, None] == 2 * pcol[None, :] + 1).astype(jnp.float32), eye_c)], 0)
        return r, s

    p1r, p1s = pool_sel(24, 24, 20)
    p2r, p2s = pool_sel(8, 8, 20)

    # FC (10, 64) with torch-flatten column order (c*4 + h*2 + w)  ->
    # (64, 10) with row order (h*32 + w*16 + c) matching our (H, W*C) layout.
    fcm = jnp.transpose(params["fc"]).reshape(16, 2, 2, 10)   # (c, h, w, o)
    fcm = jnp.transpose(fcm, (1, 2, 0, 3)).reshape(64, 10)    # (h, w, c, o)

    (b1, s1), (b2, s2), (b3, s3), (b4, s4), (b5, s5), (b6, s6) = convs
    return (b1, s1, b2, s2, p1r, p1s, b3, s3, b4, s4,
            b5, s5, p2r, p2s, b6, s6, fcm)


# ---------------------------------------------------------------------------
# Deterministic synthetic parameters (eval-mode BN folded to scale/shift).
# ---------------------------------------------------------------------------
def _fold_bn(key, cout, eps=1e-5):
    k1, k2, k3, k4 = jax.random.split(key, 4)
    gamma = 1.0 + 0.1 * jax.random.normal(k1, (cout,), jnp.float32)
    beta = 0.1 * jax.random.normal(k2, (cout,), jnp.float32)
    running_mean = 0.1 * jax.random.normal(k3, (cout,), jnp.float32)
    running_var = 0.5 + jax.random.uniform(k4, (cout,), jnp.float32)
    scale = gamma / jnp.sqrt(running_var + eps)
    shift = beta - running_mean * scale
    return scale, shift


def make_params(seed=0):
    key = jax.random.PRNGKey(seed)
    keys = jax.random.split(key, 14)
    conv_shapes = [  # (C_out, C_in, kh, kw) — PyTorch OIHW
        (8, 1, 3, 3), (20, 8, 3, 3), (10, 20, 1, 1),
        (8, 10, 3, 3), (20, 8, 3, 3), (16, 20, 3, 3),
    ]
    params = {}
    for idx, shp in enumerate(conv_shapes):
        fan_in = shp[1] * shp[2] * shp[3]
        w = jax.random.normal(keys[2 * idx], shp, jnp.float32) / jnp.sqrt(fan_in)
        s, b = _fold_bn(keys[2 * idx + 1], shp[0])
        params[f"w{idx + 1}"] = w
        params[f"s{idx + 1}"] = s
        params[f"b{idx + 1}"] = b
    params["fc"] = jax.random.normal(keys[12], (10, 64), jnp.float32) / jnp.sqrt(64.0)
    return params


# ---------------------------------------------------------------------------
# Pure-JAX reference (eval-mode Model4) for correctness checking.
# ---------------------------------------------------------------------------
def model4_reference(x_nchw, params):
    def conv_bn_relu(x, w, s, b):
        y = jax.lax.conv_general_dilated(
            x, w, window_strides=(1, 1), padding="VALID",
            dimension_numbers=("NCHW", "OIHW", "NCHW"),
            precision=jax.lax.Precision.HIGHEST)
        y = y * s[None, :, None, None] + b[None, :, None, None]
        return jnp.maximum(y, 0.0)

    def pool(x):
        return jax.lax.reduce_window(x, -jnp.inf, jax.lax.max,
                                     (1, 1, 2, 2), (1, 1, 2, 2), "VALID")

    x = conv_bn_relu(x_nchw, params["w1"], params["s1"], params["b1"])
    x = conv_bn_relu(x, params["w2"], params["s2"], params["b2"])
    x = pool(x)
    x = conv_bn_relu(x, params["w3"], params["s3"], params["b3"])
    x = conv_bn_relu(x, params["w4"], params["s4"], params["b4"])
    x = conv_bn_relu(x, params["w5"], params["s5"], params["b5"])
    x = pool(x)
    x = conv_bn_relu(x, params["w6"], params["s6"], params["b6"])
    x = x.reshape(x.shape[0], -1)                       # NCHW flatten (= torch)
    logits = jnp.dot(x, params["fc"].T, precision=jax.lax.Precision.HIGHEST)
    return jax.nn.log_softmax(logits, axis=-1)


if __name__ == "__main__":
    key = jax.random.PRNGKey(0)
    # Model4's geometry requires 1x28x28 inputs (MNIST-like); batch = 2.
    x = jax.random.normal(key, (2, 1, 28, 28), jnp.float32)
    params = make_params(seed=0)
    prep = prepare_inputs(params)

    out = model4_forward(x, prep)
    out = jax.block_until_ready(out)

    assert out.shape == (2, 10), out.shape
    # log_softmax rows must sum to ~1 in probability space.
    assert bool(jnp.all(jnp.abs(jnp.sum(jnp.exp(out), axis=-1) - 1.0) < 1e-4))
    # Compare against the pure-JAX reference network.
    ref = model4_reference(x, params)
    max_err = float(jnp.max(jnp.abs(out - ref)))
    assert max_err < 5e-2, f"max |pallas - reference| = {max_err}"
    print("KERNEL_OK")
</pallas_src>

<mosaic_0001>
module attributes {stable_mosaic.version = 11 : i64} {
  func.func @_model4_kernel(%arg0: i32, %arg1: memref<1x1x28x28xf32, #tpu.memory_space<vmem>>, %arg2: memref<9x26x208xf32, #tpu.memory_space<vmem>>, %arg3: memref<1x208xf32, #tpu.memory_space<vmem>>, %arg4: memref<9x192x480xf32, #tpu.memory_space<vmem>>, %arg5: memref<1x480xf32, #tpu.memory_space<vmem>>, %arg6: memref<2x12x24xf32, #tpu.memory_space<vmem>>, %arg7: memref<2x480x240xf32, #tpu.memory_space<vmem>>, %arg8: memref<1x240x120xf32, #tpu.memory_space<vmem>>, %arg9: memref<1x120xf32, #tpu.memory_space<vmem>>, %arg10: memref<9x100x80xf32, #tpu.memory_space<vmem>>, %arg11: memref<1x80xf32, #tpu.memory_space<vmem>>, %arg12: memref<9x64x160xf32, #tpu.memory_space<vmem>>, %arg13: memref<1x160xf32, #tpu.memory_space<vmem>>, %arg14: memref<2x4x8xf32, #tpu.memory_space<vmem>>, %arg15: memref<2x160x80xf32, #tpu.memory_space<vmem>>, %arg16: memref<9x40x32xf32, #tpu.memory_space<vmem>>, %arg17: memref<1x32xf32, #tpu.memory_space<vmem>>, %arg18: memref<64x10xf32, #tpu.memory_space<vmem>>, %arg19: memref<1x1x10xf32, #tpu.memory_space<vmem>>) attributes {dimension_semantics = [#tpu.dimension_semantics<parallel>], iteration_bounds = array<i64: 2>, scalar_prefetch = 0 : i64, scratch_operands = 0 : i64, tpu.core_type = #tpu.core_type<tc>, window_params = [{transform_indices = @transform_0, window_bounds = array<i64: 1, 1, 28, 28>}, {pipeline_mode = #tpu.pipeline_mode<synchronous>, transform_indices = @transform_1, window_bounds = array<i64: 9, 26, 208>}, {pipeline_mode = #tpu.pipeline_mode<synchronous>, transform_indices = @transform_2, window_bounds = array<i64: 1, 208>}, {pipeline_mode = #tpu.pipeline_mode<synchronous>, transform_indices = @transform_3, window_bounds = array<i64: 9, 192, 480>}, {pipeline_mode = #tpu.pipeline_mode<synchronous>, transform_indices = @transform_4, window_bounds = array<i64: 1, 480>}, {pipeline_mode = #tpu.pipeline_mode<synchronous>, transform_indices = @transform_5, window_bounds = array<i64: 2, 12, 24>}, {pipeline_mode = #tpu.pipeline_mode<synchronous>, transform_indices = @transform_6, window_bounds = array<i64: 2, 480, 240>}, {pipeline_mode = #tpu.pipeline_mode<synchronous>, transform_indices = @transform_7, window_bounds = array<i64: 1, 240, 120>}, {pipeline_mode = #tpu.pipeline_mode<synchronous>, transform_indices = @transform_8, window_bounds = array<i64: 1, 120>}, {pipeline_mode = #tpu.pipeline_mode<synchronous>, transform_indices = @transform_9, window_bounds = array<i64: 9, 100, 80>}, {pipeline_mode = #tpu.pipeline_mode<synchronous>, transform_indices = @transform_10, window_bounds = array<i64: 1, 80>}, {pipeline_mode = #tpu.pipeline_mode<synchronous>, transform_indices = @transform_11, window_bounds = array<i64: 9, 64, 160>}, {pipeline_mode = #tpu.pipeline_mode<synchronous>, transform_indices = @transform_12, window_bounds = array<i64: 1, 160>}, {pipeline_mode = #tpu.pipeline_mode<synchronous>, transform_indices = @transform_13, window_bounds = array<i64: 2, 4, 8>}, {pipeline_mode = #tpu.pipeline_mode<synchronous>, transform_indices = @transform_14, window_bounds = array<i64: 2, 160, 80>}, {pipeline_mode = #tpu.pipeline_mode<synchronous>, transform_indices = @transform_15, window_bounds = array<i64: 9, 40, 32>}, {pipeline_mode = #tpu.pipeline_mode<synchronous>, transform_indices = @transform_16, window_bounds = array<i64: 1, 32>}, {pipeline_mode = #tpu.pipeline_mode<synchronous>, transform_indices = @transform_17, window_bounds = array<i64: 64, 10>}, {transform_indices = @transform_18, window_bounds = array<i64: 1, 1, 10>}]} {
    %c0 = arith.constant 0 : index
    %c0_0 = arith.constant 0 : index
    %c0_1 = arith.constant 0 : index
    %c0_2 = arith.constant 0 : index
    %0 = vector.load %arg1[%c0, %c0_0, %c0_1, %c0_2] : memref<1x1x28x28xf32, #tpu.memory_space<vmem>>, vector<1x1x28x28xf32>
    %1 = vector.shape_cast %0 : vector<1x1x28x28xf32> to vector<28x28xf32>
    %2 = vector.extract_strided_slice %1 {offsets = [0, 0], sizes = [26, 26], strides = [1, 1]} : vector<28x28xf32> to vector<26x26xf32>
    %c0_3 = arith.constant 0 : index
    %c0_4 = arith.constant 0 : index
    %c0_5 = arith.constant 0 : index
    %3 = vector.load %arg2[%c0_3, %c0_4, %c0_5] : memref<9x26x208xf32, #tpu.memory_space<vmem>>, vector<1x26x208xf32>
    %4 = vector.shape_cast %3 : vector<1x26x208xf32> to vector<26x208xf32>
    %cst = arith.constant dense<0.000000e+00> : vector<26x208xf32>
    %5 = tpu.matmul %2, %4, %cst {dimension_numbers = #tpu.dot_dimension_numbers<[1], [0], [0], [1], [0, 0, 1, 1], [], []>} : vector<26x26xf32>, vector<26x208xf32>, vector<26x208xf32> -> vector<26x208xf32>
    %6 = vector.extract_strided_slice %1 {offsets = [0, 1], sizes = [26, 26], strides = [1, 1]} : vector<28x28xf32> to vector<26x26xf32>
    %c1 = arith.constant 1 : index
    %c0_6 = arith.constant 0 : index
    %c0_7 = arith.constant 0 : index
    %7 = vector.load %arg2[%c1, %c0_6, %c0_7] : memref<9x26x208xf32, #tpu.memory_space<vmem>>, vector<1x26x208xf32>
    %8 = vector.shape_cast %7 : vector<1x26x208xf32> to vector<26x208xf32>
    %cst_8 = arith.constant dense<0.000000e+00> : vector<26x208xf32>
    %9 = tpu.matmul %6, %8, %cst_8 {dimension_numbers = #tpu.dot_dimension_numbers<[1], [0], [0], [1], [0, 0, 1, 1], [], []>} : vector<26x26xf32>, vector<26x208xf32>, vector<26x208xf32> -> vector<26x208xf32>
    %10 = arith.addf %5, %9 : vector<26x208xf32>
    %11 = vector.extract_strided_slice %1 {offsets = [0, 2], sizes = [26, 26], strides = [1, 1]} : vector<28x28xf32> to vector<26x26xf32>
    %c2 = arith.constant 2 : index
    %c0_9 = arith.constant 0 : index
    %c0_10 = arith.constant 0 : index
    %12 = vector.load %arg2[%c2, %c0_9, %c0_10] : memref<9x26x208xf32, #tpu.memory_space<vmem>>, vector<1x26x208xf32>
    %13 = vector.shape_cast %12 : vector<1x26x208xf32> to vector<26x208xf32>
    %cst_11 = arith.constant dense<0.000000e+00> : vector<26x208xf32>
    %14 = tpu.matmul %11, %13, %cst_11 {dimension_numbers = #tpu.dot_dimension_numbers<[1], [0], [0], [1], [0, 0, 1, 1], [], []>} : vector<26x26xf32>, vector<26x208xf32>, vector<26x208xf32> -> vector<26x208xf32>
    %15 = arith.addf %10, %14 : vector<26x208xf32>
    %16 = vector.extract_strided_slice %1 {offsets = [1, 0], sizes = [26, 26], strides = [1, 1]} : vector<28x28xf32> to vector<26x26xf32>
    %c3 = arith.constant 3 : index
    %c0_12 = arith.constant 0 : index
    %c0_13 = arith.constant 0 : index
    %17 = vector.load %arg2[%c3, %c0_12, %c0_13] : memref<9x26x208xf32, #tpu.memory_space<vmem>>, vector<1x26x208xf32>
    %18 = vector.shape_cast %17 : vector<1x26x208xf32> to vector<26x208xf32>
    %cst_14 = arith.constant dense<0.000000e+00> : vector<26x208xf32>
    %19 = tpu.matmul %16, %18, %cst_14 {dimension_numbers = #tpu.dot_dimension_numbers<[1], [0], [0], [1], [0, 0, 1, 1], [], []>} : vector<26x26xf32>, vector<26x208xf32>, vector<26x208xf32> -> vector<26x208xf32>
    %20 = arith.addf %15, %19 : vector<26x208xf32>
    %21 = vector.extract_strided_slice %1 {offsets = [1, 1], sizes = [26, 26], strides = [1, 1]} : vector<28x28xf32> to vector<26x26xf32>
    %c4 = arith.constant 4 : index
    %c0_15 = arith.constant 0 : index
    %c0_16 = arith.constant 0 : index
    %22 = vector.load %arg2[%c4, %c0_15, %c0_16] : memref<9x26x208xf32, #tpu.memory_space<vmem>>, vector<1x26x208xf32>
    %23 = vector.shape_cast %22 : vector<1x26x208xf32> to vector<26x208xf32>
    %cst_17 = arith.constant dense<0.000000e+00> : vector<26x208xf32>
    %24 = tpu.matmul %21, %23, %cst_17 {dimension_numbers = #tpu.dot_dimension_numbers<[1], [0], [0], [1], [0, 0, 1, 1], [], []>} : vector<26x26xf32>, vector<26x208xf32>, vector<26x208xf32> -> vector<26x208xf32>
    %25 = arith.addf %20, %24 : vector<26x208xf32>
    %26 = vector.extract_strided_slice %1 {offsets = [1, 2], sizes = [26, 26], strides = [1, 1]} : vector<28x28xf32> to vector<26x26xf32>
    %c5 = arith.constant 5 : index
    %c0_18 = arith.constant 0 : index
    %c0_19 = arith.constant 0 : index
    %27 = vector.load %arg2[%c5, %c0_18, %c0_19] : memref<9x26x208xf32, #tpu.memory_space<vmem>>, vector<1x26x208xf32>
    %28 = vector.shape_cast %27 : vector<1x26x208xf32> to vector<26x208xf32>
    %cst_20 = arith.constant dense<0.000000e+00> : vector<26x208xf32>
    %29 = tpu.matmul %26, %28, %cst_20 {dimension_numbers = #tpu.dot_dimension_numbers<[1], [0], [0], [1], [0, 0, 1, 1], [], []>} : vector<26x26xf32>, vector<26x208xf32>, vector<26x208xf32> -> vector<26x208xf32>
    %30 = arith.addf %25, %29 : vector<26x208xf32>
    %31 = vector.extract_strided_slice %1 {offsets = [2, 0], sizes = [26, 26], strides = [1, 1]} : vector<28x28xf32> to vector<26x26xf32>
    %c6 = arith.constant 6 : index
    %c0_21 = arith.constant 0 : index
    %c0_22 = arith.constant 0 : index
    %32 = vector.load %arg2[%c6, %c0_21, %c0_22] : memref<9x26x208xf32, #tpu.memory_space<vmem>>, vector<1x26x208xf32>
    %33 = vector.shape_cast %32 : vector<1x26x208xf32> to vector<26x208xf32>
    %cst_23 = arith.constant dense<0.000000e+00> : vector<26x208xf32>
    %34 = tpu.matmul %31, %33, %cst_23 {dimension_numbers = #tpu.dot_dimension_numbers<[1], [0], [0], [1], [0, 0, 1, 1], [], []>} : vector<26x26xf32>, vector<26x208xf32>, vector<26x208xf32> -> vector<26x208xf32>
    %35 = arith.addf %30, %34 : vector<26x208xf32>
    %36 = vector.extract_strided_slice %1 {offsets = [2, 1], sizes = [26, 26], strides = [1, 1]} : vector<28x28xf32> to vector<26x26xf32>
    %c7 = arith.constant 7 : index
    %c0_24 = arith.constant 0 : index
    %c0_25 = arith.constant 0 : index
    %37 = vector.load %arg2[%c7, %c0_24, %c0_25] : memref<9x26x208xf32, #tpu.memory_space<vmem>>, vector<1x26x208xf32>
    %38 = vector.shape_cast %37 : vector<1x26x208xf32> to vector<26x208xf32>
    %cst_26 = arith.constant dense<0.000000e+00> : vector<26x208xf32>
    %39 = tpu.matmul %36, %38, %cst_26 {dimension_numbers = #tpu.dot_dimension_numbers<[1], [0], [0], [1], [0, 0, 1, 1], [], []>} : vector<26x26xf32>, vector<26x208xf32>, vector<26x208xf32> -> vector<26x208xf32>
    %40 = arith.addf %35, %39 : vector<26x208xf32>
    %41 = vector.extract_strided_slice %1 {offsets = [2, 2], sizes = [26, 26], strides = [1, 1]} : vector<28x28xf32> to vector<26x26xf32>
    %c8 = arith.constant 8 : index
    %c0_27 = arith.constant 0 : index
    %c0_28 = arith.constant 0 : index
    %42 = vector.load %arg2[%c8, %c0_27, %c0_28] : memref<9x26x208xf32, #tpu.memory_space<vmem>>, vector<1x26x208xf32>
    %43 = vector.shape_cast %42 : vector<1x26x208xf32> to vector<26x208xf32>
    %cst_29 = arith.constant dense<0.000000e+00> : vector<26x208xf32>
    %44 = tpu.matmul %41, %43, %cst_29 {dimension_numbers = #tpu.dot_dimension_numbers<[1], [0], [0], [1], [0, 0, 1, 1], [], []>} : vector<26x26xf32>, vector<26x208xf32>, vector<26x208xf32> -> vector<26x208xf32>
    %45 = arith.addf %40, %44 : vector<26x208xf32>
    %c0_30 = arith.constant 0 : index
    %c0_31 = arith.constant 0 : index
    %46 = vector.load %arg3[%c0_30, %c0_31] : memref<1x208xf32, #tpu.memory_space<vmem>>, vector<1x208xf32>
    %47 = vector.broadcast %46 : vector<1x208xf32> to vector<26x208xf32>
    %48 = arith.addf %45, %47 : vector<26x208xf32>
    %cst_32 = arith.constant 0.000000e+00 : f32
    %49 = vector.broadcast %cst_32 : f32 to vector<26x208xf32>
    %50 = arith.maximumf %48, %49 : vector<26x208xf32>
    %51 = vector.extract_strided_slice %50 {offsets = [0, 0], sizes = [24, 192], strides = [1, 1]} : vector<26x208xf32> to vector<24x192xf32>
    %c0_33 = arith.constant 0 : index
    %c0_34 = arith.constant 0 : index
    %c0_35 = arith.constant 0 : index
    %52 = vector.load %arg4[%c0_33, %c0_34, %c0_35] : memref<9x192x480xf32, #tpu.memory_space<vmem>>, vector<1x192x480xf32>
    %53 = vector.shape_cast %52 : vector<1x192x480xf32> to vector<192x480xf32>
    %cst_36 = arith.constant dense<0.000000e+00> : vector<24x480xf32>
    %54 = tpu.matmul %51, %53, %cst_36 {dimension_numbers = #tpu.dot_dimension_numbers<[1], [0], [0], [1], [0, 0, 1, 1], [], []>} : vector<24x192xf32>, vector<192x480xf32>, vector<24x480xf32> -> vector<24x480xf32>
    %55 = vector.extract_strided_slice %50 {offsets = [0, 8], sizes = [24, 192], strides = [1, 1]} : vector<26x208xf32> to vector<24x192xf32>
    %c1_37 = arith.constant 1 : index
    %c0_38 = arith.constant 0 : index
    %c0_39 = arith.constant 0 : index
    %56 = vector.load %arg4[%c1_37, %c0_38, %c0_39] : memref<9x192x480xf32, #tpu.memory_space<vmem>>, vector<1x192x480xf32>
    %57 = vector.shape_cast %56 : vector<1x192x480xf32> to vector<192x480xf32>
    %cst_40 = arith.constant dense<0.000000e+00> : vector<24x480xf32>
    %58 = tpu.matmul %55, %57, %cst_40 {dimension_numbers = #tpu.dot_dimension_numbers<[1], [0], [0], [1], [0, 0, 1, 1], [], []>} : vector<24x192xf32>, vector<192x480xf32>, vector<24x480xf32> -> vector<24x480xf32>
    %59 = arith.addf %54, %58 : vector<24x480xf32>
    %60 = vector.extract_strided_slice %50 {offsets = [0, 16], sizes = [24, 192], strides = [1, 1]} : vector<26x208xf32> to vector<24x192xf32>
    %c2_41 = arith.constant 2 : index
    %c0_42 = arith.constant 0 : index
    %c0_43 = arith.constant 0 : index
    %61 = vector.load %arg4[%c2_41, %c0_42, %c0_43] : memref<9x192x480xf32, #tpu.memory_space<vmem>>, vector<1x192x480xf32>
    %62 = vector.shape_cast %61 : vector<1x192x480xf32> to vector<192x480xf32>
    %cst_44 = arith.constant dense<0.000000e+00> : vector<24x480xf32>
    %63 = tpu.matmul %60, %62, %cst_44 {dimension_numbers = #tpu.dot_dimension_numbers<[1], [0], [0], [1], [0, 0, 1, 1], [], []>} : vector<24x192xf32>, vector<192x480xf32>, vector<24x480xf32> -> vector<24x480xf32>
    %64 = arith.addf %59, %63 : vector<24x480xf32>
    %65 = vector.extract_strided_slice %50 {offsets = [1, 0], sizes = [24, 192], strides = [1, 1]} : vector<26x208xf32> to vector<24x192xf32>
    %c3_45 = arith.constant 3 : index
    %c0_46 = arith.constant 0 : index
    %c0_47 = arith.constant 0 : index
    %66 = vector.load %arg4[%c3_45, %c0_46, %c0_47] : memref<9x192x480xf32, #tpu.memory_space<vmem>>, vector<1x192x480xf32>
    %67 = vector.shape_cast %66 : vector<1x192x480xf32> to vector<192x480xf32>
    %cst_48 = arith.constant dense<0.000000e+00> : vector<24x480xf32>
    %68 = tpu.matmul %65, %67, %cst_48 {dimension_numbers = #tpu.dot_dimension_numbers<[1], [0], [0], [1], [0, 0, 1, 1], [], []>} : vector<24x192xf32>, vector<192x480xf32>, vector<24x480xf32> -> vector<24x480xf32>
    %69 = arith.addf %64, %68 : vector<24x480xf32>
    %70 = vector.extract_strided_slice %50 {offsets = [1, 8], sizes = [24, 192], strides = [1, 1]} : vector<26x208xf32> to vector<24x192xf32>
    %c4_49 = arith.constant 4 : index
    %c0_50 = arith.constant 0 : index
    %c0_51 = arith.constant 0 : index
    %71 = vector.load %arg4[%c4_49, %c0_50, %c0_51] : memref<9x192x480xf32, #tpu.memory_space<vmem>>, vector<1x192x480xf32>
    %72 = vector.shape_cast %71 : vector<1x192x480xf32> to vector<192x480xf32>
    %cst_52 = arith.constant dense<0.000000e+00> : vector<24x480xf32>
    %73 = tpu.matmul %70, %72, %cst_52 {dimension_numbers = #tpu.dot_dimension_numbers<[1], [0], [0], [1], [0, 0, 1, 1], [], []>} : vector<24x192xf32>, vector<192x480xf32>, vector<24x480xf32> -> vector<24x480xf32>
    %74 = arith.addf %69, %73 : vector<24x480xf32>
    %75 = vector.extract_strided_slice %50 {offsets = [1, 16], sizes = [24, 192], strides = [1, 1]} : vector<26x208xf32> to vector<24x192xf32>
    %c5_53 = arith.constant 5 : index
    %c0_54 = arith.constant 0 : index
    %c0_55 = arith.constant 0 : index
    %76 = vector.load %arg4[%c5_53, %c0_54, %c0_55] : memref<9x192x480xf32, #tpu.memory_space<vmem>>, vector<1x192x480xf32>
    %77 = vector.shape_cast %76 : vector<1x192x480xf32> to vector<192x480xf32>
    %cst_56 = arith.constant dense<0.000000e+00> : vector<24x480xf32>
    %78 = tpu.matmul %75, %77, %cst_56 {dimension_numbers = #tpu.dot_dimension_numbers<[1], [0], [0], [1], [0, 0, 1, 1], [], []>} : vector<24x192xf32>, vector<192x480xf32>, vector<24x480xf32> -> vector<24x480xf32>
    %79 = arith.addf %74, %78 : vector<24x480xf32>
    %80 = vector.extract_strided_slice %50 {offsets = [2, 0], sizes = [24, 192], strides = [1, 1]} : vector<26x208xf32> to vector<24x192xf32>
    %c6_57 = arith.constant 6 : index
    %c0_58 = arith.constant 0 : index
    %c0_59 = arith.constant 0 : index
    %81 = vector.load %arg4[%c6_57, %c0_58, %c0_59] : memref<9x192x480xf32, #tpu.memory_space<vmem>>, vector<1x192x480xf32>
    %82 = vector.shape_cast %81 : vector<1x192x480xf32> to vector<192x480xf32>
    %cst_60 = arith.constant dense<0.000000e+00> : vector<24x480xf32>
    %83 = tpu.matmul %80, %82, %cst_60 {dimension_numbers = #tpu.dot_dimension_numbers<[1], [0], [0], [1], [0, 0, 1, 1], [], []>} : vector<24x192xf32>, vector<192x480xf32>, vector<24x480xf32> -> vector<24x480xf32>
    %84 = arith.addf %79, %83 : vector<24x480xf32>
    %85 = vector.extract_strided_slice %50 {offsets = [2, 8], sizes = [24, 192], strides = [1, 1]} : vector<26x208xf32> to vector<24x192xf32>
    %c7_61 = arith.constant 7 : index
    %c0_62 = arith.constant 0 : index
    %c0_63 = arith.constant 0 : index
    %86 = vector.load %arg4[%c7_61, %c0_62, %c0_63] : memref<9x192x480xf32, #tpu.memory_space<vmem>>, vector<1x192x480xf32>
    %87 = vector.shape_cast %86 : vector<1x192x480xf32> to vector<192x480xf32>
    %cst_64 = arith.constant dense<0.000000e+00> : vector<24x480xf32>
    %88 = tpu.matmul %85, %87, %cst_64 {dimension_numbers = #tpu.dot_dimension_numbers<[1], [0], [0], [1], [0, 0, 1, 1], [], []>} : vector<24x192xf32>, vector<192x480xf32>, vector<24x480xf32> -> vector<24x480xf32>
    %89 = arith.addf %84, %88 : vector<24x480xf32>
    %90 = vector.extract_strided_slice %50 {offsets = [2, 16], sizes = [24, 192], strides = [1, 1]} : vector<26x208xf32> to vector<24x192xf32>
    %c8_65 = arith.constant 8 : index
    %c0_66 = arith.constant 0 : index
    %c0_67 = arith.constant 0 : index
    %91 = vector.load %arg4[%c8_65, %c0_66, %c0_67] : memref<9x192x480xf32, #tpu.memory_space<vmem>>, vector<1x192x480xf32>
    %92 = vector.shape_cast %91 : vector<1x192x480xf32> to vector<192x480xf32>
    %cst_68 = arith.constant dense<0.000000e+00> : vector<24x480xf32>
    %93 = tpu.matmul %90, %92, %cst_68 {dimension_numbers = #tpu.dot_dimension_numbers<[1], [0], [0], [1], [0, 0, 1, 1], [], []>} : vector<24x192xf32>, vector<192x480xf32>, vector<24x480xf32> -> vector<24x480xf32>
    %94 = arith.addf %89, %93 : vector<24x480xf32>
    %c0_69 = arith.constant 0 : index
    %c0_70 = arith.constant 0 : index
    %95 = vector.load %arg5[%c0_69, %c0_70] : memref<1x480xf32, #tpu.memory_space<vmem>>, vector<1x480xf32>
    %96 = vector.broadcast %95 : vector<1x480xf32> to vector<24x480xf32>
    %97 = arith.addf %94, %96 : vector<24x480xf32>
    %cst_71 = arith.constant 0.000000e+00 : f32
    %98 = vector.broadcast %cst_71 : f32 to vector<24x480xf32>
    %99 = arith.maximumf %97, %98 : vector<24x480xf32>
    %c0_72 = arith.constant 0 : index
    %c0_73 = arith.constant 0 : index
    %c0_74 = arith.constant 0 : index
    %100 = vector.load %arg6[%c0_72, %c0_73, %c0_74] : memref<2x12x24xf32, #tpu.memory_space<vmem>>, vector<1x12x24xf32>
    %101 = vector.shape_cast %100 : vector<1x12x24xf32> to vector<12x24xf32>
    %cst_75 = arith.constant dense<0.000000e+00> : vector<12x480xf32>
    %102 = tpu.matmul %101, %99, %cst_75 {dimension_numbers = #tpu.dot_dimension_numbers<[1], [0], [0], [1], [0, 0, 1, 1], [], []>} : vector<12x24xf32>, vector<24x480xf32>, vector<12x480xf32> -> vector<12x480xf32>
    %c1_76 = arith.constant 1 : index
    %c0_77 = arith.constant 0 : index
    %c0_78 = arith.constant 0 : index
    %103 = vector.load %arg6[%c1_76, %c0_77, %c0_78] : memref<2x12x24xf32, #tpu.memory_space<vmem>>, vector<1x12x24xf32>
    %104 = vector.shape_cast %103 : vector<1x12x24xf32> to vector<12x24xf32>
    %cst_79 = arith.constant dense<0.000000e+00> : vector<12x480xf32>
    %105 = tpu.matmul %104, %99, %cst_79 {dimension_numbers = #tpu.dot_dimension_numbers<[1], [0], [0], [1], [0, 0, 1, 1], [], []>} : vector<12x24xf32>, vector<24x480xf32>, vector<12x480xf32> -> vector<12x480xf32>
    %106 = arith.maximumf %102, %105 : vector<12x480xf32>
    %c0_80 = arith.constant 0 : index
    %c0_81 = arith.constant 0 : index
    %c0_82 = arith.constant 0 : index
    %107 = vector.load %arg7[%c0_80, %c0_81, %c0_82] : memref<2x480x240xf32, #tpu.memory_space<vmem>>, vector<1x480x240xf32>
    %108 = vector.shape_cast %107 : vector<1x480x240xf32> to vector<480x240xf32>
    %cst_83 = arith.constant dense<0.000000e+00> : vector<12x240xf32>
    %109 = tpu.matmul %106, %108, %cst_83 {dimension_numbers = #tpu.dot_dimension_numbers<[1], [0], [0], [1], [0, 0, 1, 1], [], []>} : vector<12x480xf32>, vector<480x240xf32>, vector<12x240xf32> -> vector<12x240xf32>
    %c1_84 = arith.constant 1 : index
    %c0_85 = arith.constant 0 : index
    %c0_86 = arith.constant 0 : index
    %110 = vector.load %arg7[%c1_84, %c0_85, %c0_86] : memref<2x480x240xf32, #tpu.memory_space<vmem>>, vector<1x480x240xf32>
    %111 = vector.shape_cast %110 : vector<1x480x240xf32> to vector<480x240xf32>
    %cst_87 = arith.constant dense<0.000000e+00> : vector<12x240xf32>
    %112 = tpu.matmul %106, %111, %cst_87 {dimension_numbers = #tpu.dot_dimension_numbers<[1], [0], [0], [1], [0, 0, 1, 1], [], []>} : vector<12x480xf32>, vector<480x240xf32>, vector<12x240xf32> -> vector<12x240xf32>
    %113 = arith.maximumf %109, %112 : vector<12x240xf32>
    %c0_88 = arith.constant 0 : index
    %c0_89 = arith.constant 0 : index
    %c0_90 = arith.constant 0 : index
    %114 = vector.load %arg8[%c0_88, %c0_89, %c0_90] : memref<1x240x120xf32, #tpu.memory_space<vmem>>, vector<1x240x120xf32>
    %115 = vector.shape_cast %114 : vector<1x240x120xf32> to vector<240x120xf32>
    %cst_91 = arith.constant dense<0.000000e+00> : vector<12x120xf32>
    %116 = tpu.matmul %113, %115, %cst_91 {dimension_numbers = #tpu.dot_dimension_numbers<[1], [0], [0], [1], [0, 0, 1, 1], [], []>} : vector<12x240xf32>, vector<240x120xf32>, vector<12x120xf32> -> vector<12x120xf32>
    %c0_92 = arith.constant 0 : index
    %c0_93 = arith.constant 0 : index
    %117 = vector.load %arg9[%c0_92, %c0_93] : memref<1x120xf32, #tpu.memory_space<vmem>>, vector<1x120xf32>
    %118 = vector.broadcast %117 : vector<1x120xf32> to vector<12x120xf32>
    %119 = arith.addf %116, %118 : vector<12x120xf32>
    %cst_94 = arith.constant 0.000000e+00 : f32
    %120 = vector.broadcast %cst_94 : f32 to vector<12x120xf32>
    %121 = arith.maximumf %119, %120 : vector<12x120xf32>
    %122 = vector.extract_strided_slice %121 {offsets = [0, 0], sizes = [10, 100], strides = [1, 1]} : vector<12x120xf32> to vector<10x100xf32>
    %c0_95 = arith.constant 0 : index
    %c0_96 = arith.constant 0 : index
    %c0_97 = arith.constant 0 : index
    %123 = vector.load %arg10[%c0_95, %c0_96, %c0_97] : memref<9x100x80xf32, #tpu.memory_space<vmem>>, vector<1x100x80xf32>
    %124 = vector.shape_cast %123 : vector<1x100x80xf32> to vector<100x80xf32>
    %cst_98 = arith.constant dense<0.000000e+00> : vector<10x80xf32>
    %125 = tpu.matmul %122, %124, %cst_98 {dimension_numbers = #tpu.dot_dimension_numbers<[1], [0], [0], [1], [0, 0, 1, 1], [], []>} : vector<10x100xf32>, vector<100x80xf32>, vector<10x80xf32> -> vector<10x80xf32>
    %126 = vector.extract_strided_slice %121 {offsets = [0, 10], sizes = [10, 100], strides = [1, 1]} : vector<12x120xf32> to vector<10x100xf32>
    %c1_99 = arith.constant 1 : index
    %c0_100 = arith.constant 0 : index
    %c0_101 = arith.constant 0 : index
    %127 = vector.load %arg10[%c1_99, %c0_100, %c0_101] : memref<9x100x80xf32, #tpu.memory_space<vmem>>, vector<1x100x80xf32>
    %128 = vector.shape_cast %127 : vector<1x100x80xf32> to vector<100x80xf32>
    %cst_102 = arith.constant dense<0.000000e+00> : vector<10x80xf32>
    %129 = tpu.matmul %126, %128, %cst_102 {dimension_numbers = #tpu.dot_dimension_numbers<[1], [0], [0], [1], [0, 0, 1, 1], [], []>} : vector<10x100xf32>, vector<100x80xf32>, vector<10x80xf32> -> vector<10x80xf32>
    %130 = arith.addf %125, %129 : vector<10x80xf32>
    %131 = vector.extract_strided_slice %121 {offsets = [0, 20], sizes = [10, 100], strides = [1, 1]} : vector<12x120xf32> to vector<10x100xf32>
    %c2_103 = arith.constant 2 : index
    %c0_104 = arith.constant 0 : index
    %c0_105 = arith.constant 0 : index
    %132 = vector.load %arg10[%c2_103, %c0_104, %c0_105] : memref<9x100x80xf32, #tpu.memory_space<vmem>>, vector<1x100x80xf32>
    %133 = vector.shape_cast %132 : vector<1x100x80xf32> to vector<100x80xf32>
    %cst_106 = arith.constant dense<0.000000e+00> : vector<10x80xf32>
    %134 = tpu.matmul %131, %133, %cst_106 {dimension_numbers = #tpu.dot_dimension_numbers<[1], [0], [0], [1], [0, 0, 1, 1], [], []>} : vector<10x100xf32>, vector<100x80xf32>, vector<10x80xf32> -> vector<10x80xf32>
    %135 = arith.addf %130, %134 : vector<10x80xf32>
    %136 = vector.extract_strided_slice %121 {offsets = [1, 0], sizes = [10, 100], strides = [1, 1]} : vector<12x120xf32> to vector<10x100xf32>
    %c3_107 = arith.constant 3 : index
    %c0_108 = arith.constant 0 : index
    %c0_109 = arith.constant 0 : index
    %137 = vector.load %arg10[%c3_107, %c0_108, %c0_109] : memref<9x100x80xf32, #tpu.memory_space<vmem>>, vector<1x100x80xf32>
    %138 = vector.shape_cast %137 : vector<1x100x80xf32> to vector<100x80xf32>
    %cst_110 = arith.constant dense<0.000000e+00> : vector<10x80xf32>
    %139 = tpu.matmul %136, %138, %cst_110 {dimension_numbers = #tpu.dot_dimension_numbers<[1], [0], [0], [1], [0, 0, 1, 1], [], []>} : vector<10x100xf32>, vector<100x80xf32>, vector<10x80xf32> -> vector<10x80xf32>
    %140 = arith.addf %135, %139 : vector<10x80xf32>
    %141 = vector.extract_strided_slice %121 {offsets = [1, 10], sizes = [10, 100], strides = [1, 1]} : vector<12x120xf32> to vector<10x100xf32>
    %c4_111 = arith.constant 4 : index
    %c0_112 = arith.constant 0 : index
    %c0_113 = arith.constant 0 : index
    %142 = vector.load %arg10[%c4_111, %c0_112, %c0_113] : memref<9x100x80xf32, #tpu.memory_space<vmem>>, vector<1x100x80xf32>
    %143 = vector.shape_cast %142 : vector<1x100x80xf32> to vector<100x80xf32>
    %cst_114 = arith.constant dense<0.000000e+00> : vector<10x80xf32>
    %144 = tpu.matmul %141, %143, %cst_114 {dimension_numbers = #tpu.dot_dimension_numbers<[1], [0], [0], [1], [0, 0, 1, 1], [], []>} : vector<10x100xf32>, vector<100x80xf32>, vector<10x80xf32> -> vector<10x80xf32>
    %145 = arith.addf %140, %144 : vector<10x80xf32>
    %146 = vector.extract_strided_slice %121 {offsets = [1, 20], sizes = [10, 100], strides = [1, 1]} : vector<12x120xf32> to vector<10x100xf32>
    %c5_115 = arith.constant 5 : index
    %c0_116 = arith.constant 0 : index
    %c0_117 = arith.constant 0 : index
    %147 = vector.load %arg10[%c5_115, %c0_116, %c0_117] : memref<9x100x80xf32, #tpu.memory_space<vmem>>, vector<1x100x80xf32>
    %148 = vector.shape_cast %147 : vector<1x100x80xf32> to vector<100x80xf32>
    %cst_118 = arith.constant dense<0.000000e+00> : vector<10x80xf32>
    %149 = tpu.matmul %146, %148, %cst_118 {dimension_numbers = #tpu.dot_dimension_numbers<[1], [0], [0], [1], [0, 0, 1, 1], [], []>} : vector<10x100xf32>, vector<100x80xf32>, vector<10x80xf32> -> vector<10x80xf32>
    %150 = arith.addf %145, %149 : vector<10x80xf32>
    %151 = vector.extract_strided_slice %121 {offsets = [2, 0], sizes = [10, 100], strides = [1, 1]} : vector<12x120xf32> to vector<10x100xf32>
    %c6_119 = arith.constant 6 : index
    %c0_120 = arith.constant 0 : index
    %c0_121 = arith.constant 0 : index
    %152 = vector.load %arg10[%c6_119, %c0_120, %c0_121] : memref<9x100x80xf32, #tpu.memory_space<vmem>>, vector<1x100x80xf32>
    %153 = vector.shape_cast %152 : vector<1x100x80xf32> to vector<100x80xf32>
    %cst_122 = arith.constant dense<0.000000e+00> : vector<10x80xf32>
    %154 = tpu.matmul %151, %153, %cst_122 {dimension_numbers = #tpu.dot_dimension_numbers<[1], [0], [0], [1], [0, 0, 1, 1], [], []>} : vector<10x100xf32>, vector<100x80xf32>, vector<10x80xf32> -> vector<10x80xf32>
    %155 = arith.addf %150, %154 : vector<10x80xf32>
    %156 = vector.extract_strided_slice %121 {offsets = [2, 10], sizes = [10, 100], strides = [1, 1]} : vector<12x120xf32> to vector<10x100xf32>
    %c7_123 = arith.constant 7 : index
    %c0_124 = arith.constant 0 : index
    %c0_125 = arith.constant 0 : index
    %157 = vector.load %arg10[%c7_123, %c0_124, %c0_125] : memref<9x100x80xf32, #tpu.memory_space<vmem>>, vector<1x100x80xf32>
    %158 = vector.shape_cast %157 : vector<1x100x80xf32> to vector<100x80xf32>
    %cst_126 = arith.constant dense<0.000000e+00> : vector<10x80xf32>
    %159 = tpu.matmul %156, %158, %cst_126 {dimension_numbers = #tpu.dot_dimension_numbers<[1], [0], [0], [1], [0, 0, 1, 1], [], []>} : vector<10x100xf32>, vector<100x80xf32>, vector<10x80xf32> -> vector<10x80xf32>
    %160 = arith.addf %155, %159 : vector<10x80xf32>
    %161 = vector.extract_strided_slice %121 {offsets = [2, 20], sizes = [10, 100], strides = [1, 1]} : vector<12x120xf32> to vector<10x100xf32>
    %c8_127 = arith.constant 8 : index
    %c0_128 = arith.constant 0 : index
    %c0_129 = arith.constant 0 : index
    %162 = vector.load %arg10[%c8_127, %c0_128, %c0_129] : memref<9x100x80xf32, #tpu.memory_space<vmem>>, vector<1x100x80xf32>
    %163 = vector.shape_cast %162 : vector<1x100x80xf32> to vector<100x80xf32>
    %cst_130 = arith.constant dense<0.000000e+00> : vector<10x80xf32>
    %164 = tpu.matmul %161, %163, %cst_130 {dimension_numbers = #tpu.dot_dimension_numbers<[1], [0], [0], [1], [0, 0, 1, 1], [], []>} : vector<10x100xf32>, vector<100x80xf32>, vector<10x80xf32> -> vector<10x80xf32>
    %165 = arith.addf %160, %164 : vector<10x80xf32>
    %c0_131 = arith.constant 0 : index
    %c0_132 = arith.constant 0 : index
    %166 = vector.load %arg11[%c0_131, %c0_132] : memref<1x80xf32, #tpu.memory_space<vmem>>, vector<1x80xf32>
    %167 = vector.broadcast %166 : vector<1x80xf32> to vector<10x80xf32>
    %168 = arith.addf %165, %167 : vector<10x80xf32>
    %cst_133 = arith.constant 0.000000e+00 : f32
    %169 = vector.broadcast %cst_133 : f32 to vector<10x80xf32>
    %170 = arith.maximumf %168, %169 : vector<10x80xf32>
    %171 = vector.extract_strided_slice %170 {offsets = [0, 0], sizes = [8, 64], strides = [1, 1]} : vector<10x80xf32> to vector<8x64xf32>
    %c0_134 = arith.constant 0 : index
    %c0_135 = arith.constant 0 : index
    %c0_136 = arith.constant 0 : index
    %172 = vector.load %arg12[%c0_134, %c0_135, %c0_136] : memref<9x64x160xf32, #tpu.memory_space<vmem>>, vector<1x64x160xf32>
    %173 = vector.shape_cast %172 : vector<1x64x160xf32> to vector<64x160xf32>
    %cst_137 = arith.constant dense<0.000000e+00> : vector<8x160xf32>
    %174 = tpu.matmul %171, %173, %cst_137 {dimension_numbers = #tpu.dot_dimension_numbers<[1], [0], [0], [1], [0, 0, 1, 1], [], []>} : vector<8x64xf32>, vector<64x160xf32>, vector<8x160xf32> -> vector<8x160xf32>
    %175 = vector.extract_strided_slice %170 {offsets = [0, 8], sizes = [8, 64], strides = [1, 1]} : vector<10x80xf32> to vector<8x64xf32>
    %c1_138 = arith.constant 1 : index
    %c0_139 = arith.constant 0 : index
    %c0_140 = arith.constant 0 : index
    %176 = vector.load %arg12[%c1_138, %c0_139, %c0_140] : memref<9x64x160xf32, #tpu.memory_space<vmem>>, vector<1x64x160xf32>
    %177 = vector.shape_cast %176 : vector<1x64x160xf32> to vector<64x160xf32>
    %cst_141 = arith.constant dense<0.000000e+00> : vector<8x160xf32>
    %178 = tpu.matmul %175, %177, %cst_141 {dimension_numbers = #tpu.dot_dimension_numbers<[1], [0], [0], [1], [0, 0, 1, 1], [], []>} : vector<8x64xf32>, vector<64x160xf32>, vector<8x160xf32> -> vector<8x160xf32>
    %179 = arith.addf %174, %178 : vector<8x160xf32>
    %180 = vector.extract_strided_slice %170 {offsets = [0, 16], sizes = [8, 64], strides = [1, 1]} : vector<10x80xf32> to vector<8x64xf32>
    %c2_142 = arith.constant 2 : index
    %c0_143 = arith.constant 0 : index
    %c0_144 = arith.constant 0 : index
    %181 = vector.load %arg12[%c2_142, %c0_143, %c0_144] : memref<9x64x160xf32, #tpu.memory_space<vmem>>, vector<1x64x160xf32>
    %182 = vector.shape_cast %181 : vector<1x64x160xf32> to vector<64x160xf32>
    %cst_145 = arith.constant dense<0.000000e+00> : vector<8x160xf32>
    %183 = tpu.matmul %180, %182, %cst_145 {dimension_numbers = #tpu.dot_dimension_numbers<[1], [0], [0], [1], [0, 0, 1, 1], [], []>} : vector<8x64xf32>, vector<64x160xf32>, vector<8x160xf32> -> vector<8x160xf32>
    %184 = arith.addf %179, %183 : vector<8x160xf32>
    %185 = vector.extract_strided_slice %170 {offsets = [1, 0], sizes = [8, 64], strides = [1, 1]} : vector<10x80xf32> to vector<8x64xf32>
    %c3_146 = arith.constant 3 : index
    %c0_147 = arith.constant 0 : index
    %c0_148 = arith.constant 0 : index
    %186 = vector.load %arg12[%c3_146, %c0_147, %c0_148] : memref<9x64x160xf32, #tpu.memory_space<vmem>>, vector<1x64x160xf32>
    %187 = vector.shape_cast %186 : vector<1x64x160xf32> to vector<64x160xf32>
    %cst_149 = arith.constant dense<0.000000e+00> : vector<8x160xf32>
    %188 = tpu.matmul %185, %187, %cst_149 {dimension_numbers = #tpu.dot_dimension_numbers<[1], [0], [0], [1], [0, 0, 1, 1], [], []>} : vector<8x64xf32>, vector<64x160xf32>, vector<8x160xf32> -> vector<8x160xf32>
    %189 = arith.addf %184, %188 : vector<8x160xf32>
    %190 = vector.extract_strided_slice %170 {offsets = [1, 8], sizes = [8, 64], strides = [1, 1]} : vector<10x80xf32> to vector<8x64xf32>
    %c4_150 = arith.constant 4 : index
    %c0_151 = arith.constant 0 : index
    %c0_152 = arith.constant 0 : index
    %191 = vector.load %arg12[%c4_150, %c0_151, %c0_152] : memref<9x64x160xf32, #tpu.memory_space<vmem>>, vector<1x64x160xf32>
    %192 = vector.shape_cast %191 : vector<1x64x160xf32> to vector<64x160xf32>
    %cst_153 = arith.constant dense<0.000000e+00> : vector<8x160xf32>
    %193 = tpu.matmul %190, %192, %cst_153 {dimension_numbers = #tpu.dot_dimension_numbers<[1], [0], [0], [1], [0, 0, 1, 1], [], []>} : vector<8x64xf32>, vector<64x160xf32>, vector<8x160xf32> -> vector<8x160xf32>
    %194 = arith.addf %189, %193 : vector<8x160xf32>
    %195 = vector.extract_strided_slice %170 {offsets = [1, 16], sizes = [8, 64], strides = [1, 1]} : vector<10x80xf32> to vector<8x64xf32>
    %c5_154 = arith.constant 5 : index
    %c0_155 = arith.constant 0 : index
    %c0_156 = arith.constant 0 : index
    %196 = vector.load %arg12[%c5_154, %c0_155, %c0_156] : memref<9x64x160xf32, #tpu.memory_space<vmem>>, vector<1x64x160xf32>
    %197 = vector.shape_cast %196 : vector<1x64x160xf32> to vector<64x160xf32>
    %cst_157 = arith.constant dense<0.000000e+00> : vector<8x160xf32>
    %198 = tpu.matmul %195, %197, %cst_157 {dimension_numbers = #tpu.dot_dimension_numbers<[1], [0], [0], [1], [0, 0, 1, 1], [], []>} : vector<8x64xf32>, vector<64x160xf32>, vector<8x160xf32> -> vector<8x160xf32>
    %199 = arith.addf %194, %198 : vector<8x160xf32>
    %200 = vector.extract_strided_slice %170 {offsets = [2, 0], sizes = [8, 64], strides = [1, 1]} : vector<10x80xf32> to vector<8x64xf32>
    %c6_158 = arith.constant 6 : index
    %c0_159 = arith.constant 0 : index
    %c0_160 = arith.constant 0 : index
    %201 = vector.load %arg12[%c6_158, %c0_159, %c0_160] : memref<9x64x160xf32, #tpu.memory_space<vmem>>, vector<1x64x160xf32>
    %202 = vector.shape_cast %201 : vector<1x64x160xf32> to vector<64x160xf32>
    %cst_161 = arith.constant dense<0.000000e+00> : vector<8x160xf32>
    %203 = tpu.matmul %200, %202, %cst_161 {dimension_numbers = #tpu.dot_dimension_numbers<[1], [0], [0], [1], [0, 0, 1, 1], [], []>} : vector<8x64xf32>, vector<64x160xf32>, vector<8x160xf32> -> vector<8x160xf32>
    %204 = arith.addf %199, %203 : vector<8x160xf32>
    %205 = vector.extract_strided_slice %170 {offsets = [2, 8], sizes = [8, 64], strides = [1, 1]} : vector<10x80xf32> to vector<8x64xf32>
    %c7_162 = arith.constant 7 : index
    %c0_163 = arith.constant 0 : index
    %c0_164 = arith.constant 0 : index
    %206 = vector.load %arg12[%c7_162, %c0_163, %c0_164] : memref<9x64x160xf32, #tpu.memory_space<vmem>>, vector<1x64x160xf32>
    %207 = vector.shape_cast %206 : vector<1x64x160xf32> to vector<64x160xf32>
    %cst_165 = arith.constant dense<0.000000e+00> : vector<8x160xf32>
    %208 = tpu.matmul %205, %207, %cst_165 {dimension_numbers = #tpu.dot_dimension_numbers<[1], [0], [0], [1], [0, 0, 1, 1], [], []>} : vector<8x64xf32>, vector<64x160xf32>, vector<8x160xf32> -> vector<8x160xf32>
    %209 = arith.addf %204, %208 : vector<8x160xf32>
    %210 = vector.extract_strided_slice %170 {offsets = [2, 16], sizes = [8, 64], strides = [1, 1]} : vector<10x80xf32> to vector<8x64xf32>
    %c8_166 = arith.constant 8 : index
    %c0_167 = arith.constant 0 : index
    %c0_168 = arith.constant 0 : index
    %211 = vector.load %arg12[%c8_166, %c0_167, %c0_168] : memref<9x64x160xf32, #tpu.memory_space<vmem>>, vector<1x64x160xf32>
    %212 = vector.shape_cast %211 : vector<1x64x160xf32> to vector<64x160xf32>
    %cst_169 = arith.constant dense<0.000000e+00> : vector<8x160xf32>
    %213 = tpu.matmul %210, %212, %cst_169 {dimension_numbers = #tpu.dot_dimension_numbers<[1], [0], [0], [1], [0, 0, 1, 1], [], []>} : vector<8x64xf32>, vector<64x160xf32>, vector<8x160xf32> -> vector<8x160xf32>
    %214 = arith.addf %209, %213 : vector<8x160xf32>
    %c0_170 = arith.constant 0 : index
    %c0_171 = arith.constant 0 : index
    %215 = vector.load %arg13[%c0_170, %c0_171] : memref<1x160xf32, #tpu.memory_space<vmem>>, vector<1x160xf32>
    %216 = vector.broadcast %215 : vector<1x160xf32> to vector<8x160xf32>
    %217 = arith.addf %214, %216 : vector<8x160xf32>
    %cst_172 = arith.constant 0.000000e+00 : f32
    %218 = vector.broadcast %cst_172 : f32 to vector<8x160xf32>
    %219 = arith.maximumf %217, %218 : vector<8x160xf32>
    %c0_173 = arith.constant 0 : index
    %c0_174 = arith.constant 0 : index
    %c0_175 = arith.constant 0 : index
    %220 = vector.load %arg14[%c0_173, %c0_174, %c0_175] : memref<2x4x8xf32, #tpu.memory_space<vmem>>, vector<1x4x8xf32>
    %221 = vector.shape_cast %220 : vector<1x4x8xf32> to vector<4x8xf32>
    %cst_176 = arith.constant dense<0.000000e+00> : vector<4x160xf32>
    %222 = tpu.matmul %221, %219, %cst_176 {dimension_numbers = #tpu.dot_dimension_numbers<[1], [0], [0], [1], [0, 0, 1, 1], [], []>} : vector<4x8xf32>, vector<8x160xf32>, vector<4x160xf32> -> vector<4x160xf32>
    %c1_177 = arith.constant 1 : index
    %c0_178 = arith.constant 0 : index
    %c0_179 = arith.constant 0 : index
    %223 = vector.load %arg14[%c1_177, %c0_178, %c0_179] : memref<2x4x8xf32, #tpu.memory_space<vmem>>, vector<1x4x8xf32>
    %224 = vector.shape_cast %223 : vector<1x4x8xf32> to vector<4x8xf32>
    %cst_180 = arith.constant dense<0.000000e+00> : vector<4x160xf32>
    %225 = tpu.matmul %224, %219, %cst_180 {dimension_numbers = #tpu.dot_dimension_numbers<[1], [0], [0], [1], [0, 0, 1, 1], [], []>} : vector<4x8xf32>, vector<8x160xf32>, vector<4x160xf32> -> vector<4x160xf32>
    %226 = arith.maximumf %222, %225 : vector<4x160xf32>
    %c0_181 = arith.constant 0 : index
    %c0_182 = arith.constant 0 : index
    %c0_183 = arith.constant 0 : index
    %227 = vector.load %arg15[%c0_181, %c0_182, %c0_183] : memref<2x160x80xf32, #tpu.memory_space<vmem>>, vector<1x160x80xf32>
    %228 = vector.shape_cast %227 : vector<1x160x80xf32> to vector<160x80xf32>
    %cst_184 = arith.constant dense<0.000000e+00> : vector<4x80xf32>
    %229 = tpu.matmul %226, %228, %cst_184 {dimension_numbers = #tpu.dot_dimension_numbers<[1], [0], [0], [1], [0, 0, 1, 1], [], []>} : vector<4x160xf32>, vector<160x80xf32>, vector<4x80xf32> -> vector<4x80xf32>
    %c1_185 = arith.constant 1 : index
    %c0_186 = arith.constant 0 : index
    %c0_187 = arith.constant 0 : index
    %230 = vector.load %arg15[%c1_185, %c0_186, %c0_187] : memref<2x160x80xf32, #tpu.memory_space<vmem>>, vector<1x160x80xf32>
    %231 = vector.shape_cast %230 : vector<1x160x80xf32> to vector<160x80xf32>
    %cst_188 = arith.constant dense<0.000000e+00> : vector<4x80xf32>
    %232 = tpu.matmul %226, %231, %cst_188 {dimension_numbers = #tpu.dot_dimension_numbers<[1], [0], [0], [1], [0, 0, 1, 1], [], []>} : vector<4x160xf32>, vector<160x80xf32>, vector<4x80xf32> -> vector<4x80xf32>
    %233 = arith.maximumf %229, %232 : vector<4x80xf32>
    %234 = vector.extract_strided_slice %233 {offsets = [0, 0], sizes = [2, 40], strides = [1, 1]} : vector<4x80xf32> to vector<2x40xf32>
    %c0_189 = arith.constant 0 : index
    %c0_190 = arith.constant 0 : index
    %c0_191 = arith.constant 0 : index
    %235 = vector.load %arg16[%c0_189, %c0_190, %c0_191] : memref<9x40x32xf32, #tpu.memory_space<vmem>>, vector<1x40x32xf32>
    %236 = vector.shape_cast %235 : vector<1x40x32xf32> to vector<40x32xf32>
    %cst_192 = arith.constant dense<0.000000e+00> : vector<2x32xf32>
    %237 = tpu.matmul %234, %236, %cst_192 {dimension_numbers = #tpu.dot_dimension_numbers<[1], [0], [0], [1], [0, 0, 1, 1], [], []>} : vector<2x40xf32>, vector<40x32xf32>, vector<2x32xf32> -> vector<2x32xf32>
    %238 = vector.extract_strided_slice %233 {offsets = [0, 20], sizes = [2, 40], strides = [1, 1]} : vector<4x80xf32> to vector<2x40xf32>
    %c1_193 = arith.constant 1 : index
    %c0_194 = arith.constant 0 : index
    %c0_195 = arith.constant 0 : index
    %239 = vector.load %arg16[%c1_193, %c0_194, %c0_195] : memref<9x40x32xf32, #tpu.memory_space<vmem>>, vector<1x40x32xf32>
    %240 = vector.shape_cast %239 : vector<1x40x32xf32> to vector<40x32xf32>
    %cst_196 = arith.constant dense<0.000000e+00> : vector<2x32xf32>
    %241 = tpu.matmul %238, %240, %cst_196 {dimension_numbers = #tpu.dot_dimension_numbers<[1], [0], [0], [1], [0, 0, 1, 1], [], []>} : vector<2x40xf32>, vector<40x32xf32>, vector<2x32xf32> -> vector<2x32xf32>
    %242 = arith.addf %237, %241 : vector<2x32xf32>
    %243 = vector.extract_strided_slice %233 {offsets = [0, 40], sizes = [2, 40], strides = [1, 1]} : vector<4x80xf32> to vector<2x40xf32>
    %c2_197 = arith.constant 2 : index
    %c0_198 = arith.constant 0 : index
    %c0_199 = arith.constant 0 : index
    %244 = vector.load %arg16[%c2_197, %c0_198, %c0_199] : memref<9x40x32xf32, #tpu.memory_space<vmem>>, vector<1x40x32xf32>
    %245 = vector.shape_cast %244 : vector<1x40x32xf32> to vector<40x32xf32>
    %cst_200 = arith.constant dense<0.000000e+00> : vector<2x32xf32>
    %246 = tpu.matmul %243, %245, %cst_200 {dimension_numbers = #tpu.dot_dimension_numbers<[1], [0], [0], [1], [0, 0, 1, 1], [], []>} : vector<2x40xf32>, vector<40x32xf32>, vector<2x32xf32> -> vector<2x32xf32>
    %247 = arith.addf %242, %246 : vector<2x32xf32>
    %248 = vector.extract_strided_slice %233 {offsets = [1, 0], sizes = [2, 40], strides = [1, 1]} : vector<4x80xf32> to vector<2x40xf32>
    %c3_201 = arith.constant 3 : index
    %c0_202 = arith.constant 0 : index
    %c0_203 = arith.constant 0 : index
    %249 = vector.load %arg16[%c3_201, %c0_202, %c0_203] : memref<9x40x32xf32, #tpu.memory_space<vmem>>, vector<1x40x32xf32>
    %250 = vector.shape_cast %249 : vector<1x40x32xf32> to vector<40x32xf32>
    %cst_204 = arith.constant dense<0.000000e+00> : vector<2x32xf32>
    %251 = tpu.matmul %248, %250, %cst_204 {dimension_numbers = #tpu.dot_dimension_numbers<[1], [0], [0], [1], [0, 0, 1, 1], [], []>} : vector<2x40xf32>, vector<40x32xf32>, vector<2x32xf32> -> vector<2x32xf32>
    %252 = arith.addf %247, %251 : vector<2x32xf32>
    %253 = vector.extract_strided_slice %233 {offsets = [1, 20], sizes = [2, 40], strides = [1, 1]} : vector<4x80xf32> to vector<2x40xf32>
    %c4_205 = arith.constant 4 : index
    %c0_206 = arith.constant 0 : index
    %c0_207 = arith.constant 0 : index
    %254 = vector.load %arg16[%c4_205, %c0_206, %c0_207] : memref<9x40x32xf32, #tpu.memory_space<vmem>>, vector<1x40x32xf32>
    %255 = vector.shape_cast %254 : vector<1x40x32xf32> to vector<40x32xf32>
    %cst_208 = arith.constant dense<0.000000e+00> : vector<2x32xf32>
    %256 = tpu.matmul %253, %255, %cst_208 {dimension_numbers = #tpu.dot_dimension_numbers<[1], [0], [0], [1], [0, 0, 1, 1], [], []>} : vector<2x40xf32>, vector<40x32xf32>, vector<2x32xf32> -> vector<2x32xf32>
    %257 = arith.addf %252, %256 : vector<2x32xf32>
    %258 = vector.extract_strided_slice %233 {offsets = [1, 40], sizes = [2, 40], strides = [1, 1]} : vector<4x80xf32> to vector<2x40xf32>
    %c5_209 = arith.constant 5 : index
    %c0_210 = arith.constant 0 : index
    %c0_211 = arith.constant 0 : index
    %259 = vector.load %arg16[%c5_209, %c0_210, %c0_211] : memref<9x40x32xf32, #tpu.memory_space<vmem>>, vector<1x40x32xf32>
    %260 = vector.shape_cast %259 : vector<1x40x32xf32> to vector<40x32xf32>
    %cst_212 = arith.constant dense<0.000000e+00> : vector<2x32xf32>
    %261 = tpu.matmul %258, %260, %cst_212 {dimension_numbers = #tpu.dot_dimension_numbers<[1], [0], [0], [1], [0, 0, 1, 1], [], []>} : vector<2x40xf32>, vector<40x32xf32>, vector<2x32xf32> -> vector<2x32xf32>
    %262 = arith.addf %257, %261 : vector<2x32xf32>
    %263 = vector.extract_strided_slice %233 {offsets = [2, 0], sizes = [2, 40], strides = [1, 1]} : vector<4x80xf32> to vector<2x40xf32>
    %c6_213 = arith.constant 6 : index
    %c0_214 = arith.constant 0 : index
    %c0_215 = arith.constant 0 : index
    %264 = vector.load %arg16[%c6_213, %c0_214, %c0_215] : memref<9x40x32xf32, #tpu.memory_space<vmem>>, vector<1x40x32xf32>
    %265 = vector.shape_cast %264 : vector<1x40x32xf32> to vector<40x32xf32>
    %cst_216 = arith.constant dense<0.000000e+00> : vector<2x32xf32>
    %266 = tpu.matmul %263, %265, %cst_216 {dimension_numbers = #tpu.dot_dimension_numbers<[1], [0], [0], [1], [0, 0, 1, 1], [], []>} : vector<2x40xf32>, vector<40x32xf32>, vector<2x32xf32> -> vector<2x32xf32>
    %267 = arith.addf %262, %266 : vector<2x32xf32>
    %268 = vector.extract_strided_slice %233 {offsets = [2, 20], sizes = [2, 40], strides = [1, 1]} : vector<4x80xf32> to vector<2x40xf32>
    %c7_217 = arith.constant 7 : index
    %c0_218 = arith.constant 0 : index
    %c0_219 = arith.constant 0 : index
    %269 = vector.load %arg16[%c7_217, %c0_218, %c0_219] : memref<9x40x32xf32, #tpu.memory_space<vmem>>, vector<1x40x32xf32>
    %270 = vector.shape_cast %269 : vector<1x40x32xf32> to vector<40x32xf32>
    %cst_220 = arith.constant dense<0.000000e+00> : vector<2x32xf32>
    %271 = tpu.matmul %268, %270, %cst_220 {dimension_numbers = #tpu.dot_dimension_numbers<[1], [0], [0], [1], [0, 0, 1, 1], [], []>} : vector<2x40xf32>, vector<40x32xf32>, vector<2x32xf32> -> vector<2x32xf32>
    %272 = arith.addf %267, %271 : vector<2x32xf32>
    %273 = vector.extract_strided_slice %233 {offsets = [2, 40], sizes = [2, 40], strides = [1, 1]} : vector<4x80xf32> to vector<2x40xf32>
    %c8_221 = arith.constant 8 : index
    %c0_222 = arith.constant 0 : index
    %c0_223 = arith.constant 0 : index
    %274 = vector.load %arg16[%c8_221, %c0_222, %c0_223] : memref<9x40x32xf32, #tpu.memory_space<vmem>>, vector<1x40x32xf32>
    %275 = vector.shape_cast %274 : vector<1x40x32xf32> to vector<40x32xf32>
    %cst_224 = arith.constant dense<0.000000e+00> : vector<2x32xf32>
    %276 = tpu.matmul %273, %275, %cst_224 {dimension_numbers = #tpu.dot_dimension_numbers<[1], [0], [0], [1], [0, 0, 1, 1], [], []>} : vector<2x40xf32>, vector<40x32xf32>, vector<2x32xf32> -> vector<2x32xf32>
    %277 = arith.addf %272, %276 : vector<2x32xf32>
    %c0_225 = arith.constant 0 : index
    %c0_226 = arith.constant 0 : index
    %278 = vector.load %arg17[%c0_225, %c0_226] : memref<1x32xf32, #tpu.memory_space<vmem>>, vector<1x32xf32>
    %279 = vector.broadcast %278 : vector<1x32xf32> to vector<2x32xf32>
    %280 = arith.addf %277, %279 : vector<2x32xf32>
    %cst_227 = arith.constant 0.000000e+00 : f32
    %281 = vector.broadcast %cst_227 : f32 to vector<2x32xf32>
    %282 = arith.maximumf %280, %281 : vector<2x32xf32>
    %283 = vector.extract_strided_slice %282 {offsets = [0, 0], sizes = [1, 32], strides = [1, 1]} : vector<2x32xf32> to vector<1x32xf32>
    %c0_228 = arith.constant 0 : index
    %c0_229 = arith.constant 0 : index
    %284 = vector.load %arg18[%c0_228, %c0_229] : memref<64x10xf32, #tpu.memory_space<vmem>>, vector<32x10xf32>
    %cst_230 = arith.constant dense<0.000000e+00> : vector<1x10xf32>
    %285 = tpu.matmul %283, %284, %cst_230 {dimension_numbers = #tpu.dot_dimension_numbers<[1], [0], [0], [1], [0, 0, 1, 1], [], []>} : vector<1x32xf32>, vector<32x10xf32>, vector<1x10xf32> -> vector<1x10xf32>
    %286 = vector.extract_strided_slice %282 {offsets = [1, 0], sizes = [1, 32], strides = [1, 1]} : vector<2x32xf32> to vector<1x32xf32>
    %c32 = arith.constant 32 : index
    %c0_231 = arith.constant 0 : index
    %287 = vector.load %arg18[%c32, %c0_231] : memref<64x10xf32, #tpu.memory_space<vmem>>, vector<32x10xf32>
    %cst_232 = arith.constant dense<0.000000e+00> : vector<1x10xf32>
    %288 = tpu.matmul %286, %287, %cst_232 {dimension_numbers = #tpu.dot_dimension_numbers<[1], [0], [0], [1], [0, 0, 1, 1], [], []>} : vector<1x32xf32>, vector<32x10xf32>, vector<1x10xf32> -> vector<1x10xf32>
    %289 = arith.addf %285, %288 : vector<1x10xf32>
    %cst_233 = arith.constant dense<0xFF800000> : vector<1xf32>
    %290 = vector.multi_reduction <maximumf>, %289, %cst_233 [1] : vector<1x10xf32> to vector<1xf32>
    %291 = vector.shape_cast %290 : vector<1xf32> to vector<1x1xf32>
    %292 = vector.broadcast %291 : vector<1x1xf32> to vector<1x10xf32>
    %293 = arith.subf %289, %292 : vector<1x10xf32>
    %294 = math.exp %293 : vector<1x10xf32>
    %cst_234 = arith.constant dense<0.000000e+00> : vector<1xf32>
    %295 = vector.multi_reduction <add>, %294, %cst_234 [1] : vector<1x10xf32> to vector<1xf32>
    %296 = vector.shape_cast %295 : vector<1xf32> to vector<1x1xf32>
    %297 = math.log %296 : vector<1x1xf32>
    %298 = vector.broadcast %297 : vector<1x1xf32> to vector<1x10xf32>
    %299 = arith.subf %293, %298 : vector<1x10xf32>
    %c0_235 = arith.constant 0 : index
    %c0_236 = arith.constant 0 : index
    %c0_237 = arith.constant 0 : index
    %300 = vector.load %arg19[%c0_235, %c0_236, %c0_237] : memref<1x1x10xf32, #tpu.memory_space<vmem>>, vector<1x1x10xf32>
    %301 = vector.shape_cast %300 : vector<1x1x10xf32> to vector<1x10xf32>
    %302 = vector.shape_cast %299 : vector<1x10xf32> to vector<1x1x10xf32>
    tpu.vector_store %arg19[%c0_235, %c0_236, %c0_237], %302 {strides = array<i32>} : memref<1x1x10xf32, #tpu.memory_space<vmem>>, vector<1x1x10xf32>,
    return
  }
  func.func @transform_0(%arg0: i32) -> (i32, i32, i32, i32) {
    %c0_i32 = arith.constant 0 : i32
    %c0_i32_0 = arith.constant 0 : i32
    %c0_i32_1 = arith.constant 0 : i32
    %c0_i32_2 = arith.constant 0 : i32
    return %arg0, %c0_i32, %c0_i32_0, %c0_i32_1 : i32, i32, i32, i32
  }
  func.func @transform_1(%arg0: i32) -> (i32, i32, i32) {
    %c0_i32 = arith.constant 0 : i32
    %c0_i32_0 = arith.constant 0 : i32
    %c0_i32_1 = arith.constant 0 : i32
    %c0_i32_2 = arith.constant 0 : i32
    return %c0_i32, %c0_i32_0, %c0_i32_1 : i32, i32, i32
  }
  func.func @transform_2(%arg0: i32) -> (i32, i32) {
    %c0_i32 = arith.constant 0 : i32
    %c0_i32_0 = arith.constant 0 : i32
    %c0_i32_1 = arith.constant 0 : i32
    return %c0_i32, %c0_i32_0 : i32, i32
  }
  func.func @transform_3(%arg0: i32) -> (i32, i32, i32) {
    %c0_i32 = arith.constant 0 : i32
    %c0_i32_0 = arith.constant 0 : i32
    %c0_i32_1 = arith.constant 0 : i32
    %c0_i32_2 = arith.constant 0 : i32
    return %c0_i32, %c0_i32_0, %c0_i32_1 : i32, i32, i32
  }
  func.func @transform_4(%arg0: i32) -> (i32, i32) {
    %c0_i32 = arith.constant 0 : i32
    %c0_i32_0 = arith.constant 0 : i32
    %c0_i32_1 = arith.constant 0 : i32
    return %c0_i32, %c0_i32_0 : i32, i32
  }
  func.func @transform_5(%arg0: i32) -> (i32, i32, i32) {
    %c0_i32 = arith.constant 0 : i32
    %c0_i32_0 = arith.constant 0 : i32
    %c0_i32_1 = arith.constant 0 : i32
    %c0_i32_2 = arith.constant 0 : i32
    return %c0_i32, %c0_i32_0, %c0_i32_1 : i32, i32, i32
  }
  func.func @transform_6(%arg0: i32) -> (i32, i32, i32) {
    %c0_i32 = arith.constant 0 : i32
    %c0_i32_0 = arith.constant 0 : i32
    %c0_i32_1 = arith.constant 0 : i32
    %c0_i32_2 = arith.constant 0 : i32
    return %c0_i32, %c0_i32_0, %c0_i32_1 : i32, i32, i32
  }
  func.func @transform_7(%arg0: i32) -> (i32, i32, i32) {
    %c0_i32 = arith.constant 0 : i32
    %c0_i32_0 = arith.constant 0 : i32
    %c0_i32_1 = arith.constant 0 : i32
    %c0_i32_2 = arith.constant 0 : i32
    return %c0_i32, %c0_i32_0, %c0_i32_1 : i32, i32, i32
  }
  func.func @transform_8(%arg0: i32) -> (i32, i32) {
    %c0_i32 = arith.constant 0 : i32
    %c0_i32_0 = arith.constant 0 : i32
    %c0_i32_1 = arith.constant 0 : i32
    return %c0_i32, %c0_i32_0 : i32, i32
  }
  func.func @transform_9(%arg0: i32) -> (i32, i32, i32) {
    %c0_i32 = arith.constant 0 : i32
    %c0_i32_0 = arith.constant 0 : i32
    %c0_i32_1 = arith.constant 0 : i32
    %c0_i32_2 = arith.constant 0 : i32
    return %c0_i32, %c0_i32_0, %c0_i32_1 : i32, i32, i32
  }
  func.func @transform_10(%arg0: i32) -> (i32, i32) {
    %c0_i32 = arith.constant 0 : i32
    %c0_i32_0 = arith.constant 0 : i32
    %c0_i32_1 = arith.constant 0 : i32
    return %c0_i32, %c0_i32_0 : i32, i32
  }
  func.func @transform_11(%arg0: i32) -> (i32, i32, i32) {
    %c0_i32 = arith.constant 0 : i32
    %c0_i32_0 = arith.constant 0 : i32
    %c0_i32_1 = arith.constant 0 : i32
    %c0_i32_2 = arith.constant 0 : i32
    return %c0_i32, %c0_i32_0, %c0_i32_1 : i32, i32, i32
  }
  func.func @transform_12(%arg0: i32) -> (i32, i32) {
    %c0_i32 = arith.constant 0 : i32
    %c0_i32_0 = arith.constant 0 : i32
    %c0_i32_1 = arith.constant 0 : i32
    return %c0_i32, %c0_i32_0 : i32, i32
  }
  func.func @transform_13(%arg0: i32) -> (i32, i32, i32) {
    %c0_i32 = arith.constant 0 : i32
    %c0_i32_0 = arith.constant 0 : i32
    %c0_i32_1 = arith.constant 0 : i32
    %c0_i32_2 = arith.constant 0 : i32
    return %c0_i32, %c0_i32_0, %c0_i32_1 : i32, i32, i32
  }
  func.func @transform_14(%arg0: i32) -> (i32, i32, i32) {
    %c0_i32 = arith.constant 0 : i32
    %c0_i32_0 = arith.constant 0 : i32
    %c0_i32_1 = arith.constant 0 : i32
    %c0_i32_2 = arith.constant 0 : i32
    return %c0_i32, %c0_i32_0, %c0_i32_1 : i32, i32, i32
  }
  func.func @transform_15(%arg0: i32) -> (i32, i32, i32) {
    %c0_i32 = arith.constant 0 : i32
    %c0_i32_0 = arith.constant 0 : i32
    %c0_i32_1 = arith.constant 0 : i32
    %c0_i32_2 = arith.constant 0 : i32
    return %c0_i32, %c0_i32_0, %c0_i32_1 : i32, i32, i32
  }
  func.func @transform_16(%arg0: i32) -> (i32, i32) {
    %c0_i32 = arith.constant 0 : i32
    %c0_i32_0 = arith.constant 0 : i32
    %c0_i32_1 = arith.constant 0 : i32
    return %c0_i32, %c0_i32_0 : i32, i32
  }
  func.func @transform_17(%arg0: i32) -> (i32, i32) {
    %c0_i32 = arith.constant 0 : i32
    %c0_i32_0 = arith.constant 0 : i32
    %c0_i32_1 = arith.constant 0 : i32
    return %c0_i32, %c0_i32_0 : i32, i32
  }
  func.func @transform_18(%arg0: i32) -> (i32, i32, i32) {
    %c0_i32 = arith.constant 0 : i32
    %c0_i32_0 = arith.constant 0 : i32
    %c0_i32_1 = arith.constant 0 : i32
    return %arg0, %c0_i32, %c0_i32_0 : i32, i32, i32
  }
}

</mosaic_0001>

<llo_original>
// kernel: model4_forward.1
$region0: #{model4_forward.1}
  #allocation0 [shape = 'u32[]', space=smem, size = 0x4, offset = 0x4, fixed_abs, tag = 'smem constant byte address 0x4 - core index']
  #allocation1 [shape = 'u32[144,128]{1,0:T(1,128)}', space=vmem, size = 0x12000, scoped, tag = 'internal scratch']
  %s0 = inlined_call_operand.vmem [shape: f32[2,1,28,28], index: 0, kind: input, shape index: {}]
  %s1 = inlined_call_operand.hbm [shape: f32[9,26,208], index: 1, kind: input, shape index: {}]
  %s2 = inlined_call_operand.hbm [shape: f32[1,208], index: 2, kind: input, shape index: {}]
  %s3 = inlined_call_operand.hbm [shape: f32[9,192,480], index: 3, kind: input, shape index: {}]
  %s4 = inlined_call_operand.hbm [shape: f32[1,480], index: 4, kind: input, shape index: {}]
  %s5 = inlined_call_operand.vmem [shape: f32[2,12,24], index: 5, kind: input, shape index: {}]
  %s6 = inlined_call_operand.hbm [shape: f32[2,480,240], index: 6, kind: input, shape index: {}]
  %s7 = inlined_call_operand.hbm [shape: f32[1,240,120], index: 7, kind: input, shape index: {}]
  %s8 = inlined_call_operand.hbm [shape: f32[1,120], index: 8, kind: input, shape index: {}]
  %s9 = inlined_call_operand.vmem [shape: f32[9,100,80], index: 9, kind: input, shape index: {}]
  %s10 = inlined_call_operand.hbm [shape: f32[1,80], index: 10, kind: input, shape index: {}]
  %s11 = inlined_call_operand.hbm [shape: f32[9,64,160], index: 11, kind: input, shape index: {}]
  %s12 = inlined_call_operand.hbm [shape: f32[1,160], index: 12, kind: input, shape index: {}]
  %s13 = inlined_call_operand.hbm [shape: f32[2,4,8], index: 13, kind: input, shape index: {}]
  %s14 = inlined_call_operand.hbm [shape: f32[2,160,80], index: 14, kind: input, shape index: {}]
  %s15 = inlined_call_operand.vmem [shape: f32[9,40,32], index: 15, kind: input, shape index: {}]
  %s16 = inlined_call_operand.hbm [shape: f32[1,32], index: 16, kind: input, shape index: {}]
  %s17 = inlined_call_operand.vmem [shape: f32[64,10], index: 17, kind: input, shape index: {}]
  %s18 = inlined_call_operand.hbm [shape: f32[2,1,10], index: 18, kind: output, shape index: {}]
  %s19 = sld [smem:[#allocation0]]
  $region157: #{model4_forward.1} parent=0
    _
  %s21 = ssub.s32 1, %s19
  %s22 = scalar_select 0, %s21, %s19
  $region1: #{model4_forward.1} parent=0
    #allocation2 [shape = 'u8[294912]{0}', space=vmem, size = 0x48000, scoped, tag = 'input window, operand 1, single buffered']
    #allocation3 [shape = 's32[2]{0}', space=sflag, size = 0x8, scoped, tag = 'scoped memory for model4_forward.1']
    #allocation4 [shape = 's32[2]{0}', space=sflag, size = 0x8, scoped, tag = 'scoped memory for model4_forward.1']
    #allocation5 [shape = 'u8[1024]{0}', space=vmem, size = 0x400, scoped, tag = 'input window, operand 2, single buffered']
    #allocation6 [shape = 's32[1]{0}', space=sflag, size = 0x4, scoped, tag = 'scoped memory for model4_forward.1']
    #allocation7 [shape = 'u8[3538944]{0}', space=vmem, size = 0x360000, scoped, tag = 'input window, operand 3, single buffered']
    #allocation8 [shape = 'u8[2048]{0}', space=vmem, size = 0x800, scoped, tag = 'input window, operand 4, single buffered']
    #allocation9 [shape = 's32[1]{0}', space=sflag, size = 0x4, scoped, tag = 'scoped memory for model4_forward.1']
    #allocation10 [shape = 'u8[983040]{0}', space=vmem, size = 0xf0000, scoped, tag = 'input window, operand 6, single buffered']
    #allocation11 [shape = 'u8[122880]{0}', space=vmem, size = 0x1e000, scoped, tag = 'input window, operand 7, single buffered']
    #allocation12 [shape = 's32[1]{0}', space=sflag, size = 0x4, scoped, tag = 'scoped memory for model4_forward.1']
    #allocation13 [shape = 'u8[512]{0}', space=vmem, size = 0x400, scoped, tag = 'input window, operand 8, single buffered']
    #allocation14 [shape = 'u8[512]{0}', space=vmem, size = 0x400, scoped, tag = 'input window, operand 10, single buffered']
    #allocation15 [shape = 's32[1]{0}', space=sflag, size = 0x4, scoped, tag = 'scoped memory for model4_forward.1']
    #allocation16 [shape = 'u8[589824]{0}', space=vmem, size = 0x90000, scoped, tag = 'input window, operand 11, single buffered']
    #allocation17 [shape = 'u8[1024]{0}', space=vmem, size = 0x400, scoped, tag = 'input window, operand 12, single buffered']
    #allocation18 [shape = 's32[1]{0}', space=sflag, size = 0x4, scoped, tag = 'scoped memory for model4_forward.1']
    #allocation19 [shape = 'u8[4096]{0}', space=vmem, size = 0x1000, scoped, tag = 'input window, operand 13, single buffered']
    #allocation20 [shape = 'u8[163840]{0}', space=vmem, size = 0x28000, scoped, tag = 'input window, operand 14, single buffered']
    #allocation21 [shape = 's32[1]{0}', space=sflag, size = 0x4, scoped, tag = 'scoped memory for model4_forward.1']
    #allocation22 [shape = 'u8[512]{0}', space=vmem, size = 0x400, scoped, tag = 'input window, operand 16, single buffered']
    #allocation23 [shape = 'u8[1024]{0}', space=vmem, size = 0x400, scoped, tag = 'output window, operand 0']
    %23 = vsyncpa [#allocation3], 0
    %24 = vsyncpa [#allocation6], 0
    %25 = vsyncpa [#allocation9], 0
    %26 = vsyncpa [#allocation12], 0
    %27 = vsyncpa [#allocation15], 0
    %28 = vsyncpa [#allocation18], 0
    %29 = vsyncpa [#allocation21], 0
    %30 = vsyncpa [#allocation4], 0
    %s31 = scalar_lea.sflag [#allocation4], 1
    %32 = vsyncpa %s31, 0
    loop: start=0, step=1, limit=4
    $region2: #{model4_forward.1} parent=1 // loop_pre_header
      _
    $region3: #{model4_forward.1} parent=1 // loop_header
      %s34 = sphi 0, %s38
      %p35 = scmp.ge.s32.totalorder %s34, 4
      %s44 = sphi 0, %s46
      %s47 = sphi 0, %s44
      %s48 = sphi 0, %s47
      %s64 = sphi 0, %s48
      %s68 = sphi 0, %s68
      %s70 = sphi 0, %s68
      %s71 = sphi 0, %s70
      %s85 = sphi 0, %s71
      %s89 = sphi 0, %s89
      %s91 = sphi 0, %s89
      %s92 = sphi 0, %s91
      %s106 = sphi 0, %s92
      %s110 = sphi 0, %s110
      %s112 = sphi 0, %s110
      %s113 = sphi 0, %s112
      %s127 = sphi 0, %s113
      %s131 = sphi 0, %s131
      %s133 = sphi 0, %s131
      %s134 = sphi 0, %s133
      %s148 = sphi 0, %s134
      %s152 = sphi 0, %s152
      %s154 = sphi 0, %s152
      %s155 = sphi 0, %s154
      %s169 = sphi 0, %s155
      %s173 = sphi 0, %s173
      %s175 = sphi 0, %s173
      %s176 = sphi 0, %s175
      %s190 = sphi 0, %s176
      %s194 = sphi 0, %s194
      %s196 = sphi 0, %s194
      %s197 = sphi 0, %s196
      %s211 = sphi 0, %s197
      %s215 = sphi 0, %s215
      %s217 = sphi 0, %s215
      %s218 = sphi 0, %s217
      %s232 = sphi 0, %s218
      %s236 = sphi 0, %s236
      %s238 = sphi 0, %s236
      %s239 = sphi 0, %s238
      %s253 = sphi 0, %s239
      %s257 = sphi 0, %s257
      %s259 = sphi 0, %s257
      %s260 = sphi 0, %s259
      %s274 = sphi 0, %s260
      %s278 = sphi 0, %s278
      %s280 = sphi 0, %s278
      %s281 = sphi 0, %s280
      %s295 = sphi 0, %s281
      %s299 = sphi 0, %s299
      %s301 = sphi 0, %s299
      %s302 = sphi 0, %s301
      %s316 = sphi 0, %s302
      %s320 = sphi 0, %s320
      %s322 = sphi 0, %s320
      %s323 = sphi 0, %s322
      %s337 = sphi 0, %s323
      %s341 = sphi 0, %s341
      %s343 = sphi 0, %s341
      %s344 = sphi 0, %s343
      %s358 = sphi 0, %s344
      %s362 = sphi 0, %s362
      %s364 = sphi 0, %s362
      %s365 = sphi 0, %s364
      %s379 = sphi 0, %s365
      %s383 = sphi 0, %s383
      %s385 = sphi 0, %s383
      %s386 = sphi 0, %s385
      %s400 = sphi 0, %s386
      %s404 = sphi 0, %s404
      %s406 = sphi 0, %s404
      %s407 = sphi 0, %s406
      %s421 = sphi 0, %s407
      %s427 = sphi 0, %s429
      %s430 = sphi 0, %s427
      %s431 = sphi 0, %s430
      %s447 = sphi 0, %s431
    $region4: #{model4_forward.1} parent=1 // loop_header_branch
      %37 = sbr.rel (%p35) target = $region8
    $region5: #{model4_forward.1} parent=1 // loop_body
      %s39 = ssub.s32 %s34, 1
      %s40 = ssub.s32 %s34, 2
      %s41 = sadd.s32 %s34, 1
      %s42 = ssub.s32 %s34, %s41
      %p43 = scmp.eq.s32.totalorder %s42, 0
      %s45 = sadd.s32 %s44, 1
      %s46 = scalar_select %p43, %s44, %s45
      %p49 = pneg %p43
      %p50 = scmp.eq.s32.totalorder %s34, 1
      %p51 = por %p49, %p50
      %p52 = scmp.ne.s32.totalorder %s44, %s47
      %p53 = scmp.eq.s32.totalorder %s34, 0
      %p54 = por %p52, %p53
      %p55 = scmp.ne.s32.totalorder %s44, %s47
      %p56 = scmp.eq.s32.totalorder %s39, 1
      %p57 = por %p55, %p56
      %p58 = scmp.ne.s32.totalorder %s47, %s48
      %p59 = scmp.eq.s32.totalorder %s39, 0
      %p60 = por %p58, %p59
      %p61 = scmp.ne.s32.totalorder %s47, %s48
      %p62 = scmp.eq.s32.totalorder %s40, 1
      %p63 = por %p61, %p62
      %p65 = scmp.ne.s32.totalorder %s48, %s64
      %p66 = scmp.eq.s32.totalorder %s40, 0
      %p67 = por %p65, %p66
      %s69 = sadd.s32 %s68, 1
      %p72 = scmp.eq.s32.totalorder %s34, 1
      %p73 = scmp.ne.s32.totalorder %s68, %s70
      %p74 = scmp.eq.s32.totalorder %s34, 0
      %p75 = por %p73, %p74
      %p76 = scmp.ne.s32.totalorder %s68, %s70
      %p77 = scmp.eq.s32.totalorder %s39, 1
      %p78 = por %p76, %p77
      %p79 = scmp.ne.s32.totalorder %s70, %s71
      %p80 = scmp.eq.s32.totalorder %s39, 0
      %p81 = por %p79, %p80
      %p82 = scmp.ne.s32.totalorder %s70, %s71
      %p83 = scmp.eq.s32.totalorder %s40, 1
      %p84 = por %p82, %p83
      %p86 = scmp.ne.s32.totalorder %s71, %s85
      %p87 = scmp.eq.s32.totalorder %s40, 0
      %p88 = por %p86, %p87
      %s90 = sadd.s32 %s89, 1
      %p93 = scmp.eq.s32.totalorder %s34, 1
      %p94 = scmp.ne.s32.totalorder %s89, %s91
      %p95 = scmp.eq.s32.totalorder %s34, 0
      %p96 = por %p94, %p95
      %p97 = scmp.ne.s32.totalorder %s89, %s91
      %p98 = scmp.eq.s32.totalorder %s39, 1
      %p99 = por %p97, %p98
      %p100 = scmp.ne.s32.totalorder %s91, %s92
      %p101 = scmp.eq.s32.totalorder %s39, 0
      %p102 = por %p100, %p101
      %p103 = scmp.ne.s32.totalorder %s91, %s92
      %p104 = scmp.eq.s32.totalorder %s40, 1
      %p105 = por %p103, %p104
      %p107 = scmp.ne.s32.totalorder %s92, %s106
      %p108 = scmp.eq.s32.totalorder %s40, 0
      %p109 = por %p107, %p108
      %s111 = sadd.s32 %s110, 1
      %p114 = scmp.eq.s32.totalorder %s34, 1
      %p115 = scmp.ne.s32.totalorder %s110, %s112
      %p116 = scmp.eq.s32.totalorder %s34, 0
      %p117 = por %p115, %p116
      %p118 = scmp.ne.s32.totalorder %s110, %s112
      %p119 = scmp.eq.s32.totalorder %s39, 1
      %p120 = por %p118, %p119
      %p121 = scmp.ne.s32.totalorder %s112, %s113
      %p122 = scmp.eq.s32.totalorder %s39, 0
      %p123 = por %p121, %p122
      %p124 = scmp.ne.s32.totalorder %s112, %s113
      %p125 = scmp.eq.s32.totalorder %s40, 1
      %p126 = por %p124, %p125
      %p128 = scmp.ne.s32.totalorder %s113, %s127
      %p129 = scmp.eq.s32.totalorder %s40, 0
      %p130 = por %p128, %p129
      %s132 = sadd.s32 %s131, 1
      %p135 = scmp.eq.s32.totalorder %s34, 1
      %p136 = scmp.ne.s32.totalorder %s131, %s133
      %p137 = scmp.eq.s32.totalorder %s34, 0
      %p138 = por %p136, %p137
      %p139 = scmp.ne.s32.totalorder %s131, %s133
      %p140 = scmp.eq.s32.totalorder %s39, 1
      %p141 = por %p139, %p140
      %p142 = scmp.ne.s32.totalorder %s133, %s134
      %p143 = scmp.eq.s32.totalorder %s39, 0
      %p144 = por %p142, %p143
      %p145 = scmp.ne.s32.totalorder %s133, %s134
      %p146 = scmp.eq.s32.totalorder %s40, 1
      %p147 = por %p145, %p146
      %p149 = scmp.ne.s32.totalorder %s134, %s148
      %p150 = scmp.eq.s32.totalorder %s40, 0
      %p151 = por %p149, %p150
      %s153 = sadd.s32 %s152, 1
      %p156 = scmp.eq.s32.totalorder %s34, 1
      %p157 = scmp.ne.s32.totalorder %s152, %s154
      %p158 = scmp.eq.s32.totalorder %s34, 0
      %p159 = por %p157, %p158
      %p160 = scmp.ne.s32.totalorder %s152, %s154
      %p161 = scmp.eq.s32.totalorder %s39, 1
      %p162 = por %p160, %p161
      %p163 = scmp.ne.s32.totalorder %s154, %s155
      %p164 = scmp.eq.s32.totalorder %s39, 0
      %p165 = por %p163, %p164
      %p166 = scmp.ne.s32.totalorder %s154, %s155
      %p167 = scmp.eq.s32.totalorder %s40, 1
      %p168 = por %p166, %p167
      %p170 = scmp.ne.s32.totalorder %s155, %s169
      %p171 = scmp.eq.s32.totalorder %s40, 0
      %p172 = por %p170, %p171
      %s174 = sadd.s32 %s173, 1
      %p177 = scmp.eq.s32.totalorder %s34, 1
      %p178 = scmp.ne.s32.totalorder %s173, %s175
      %p179 = scmp.eq.s32.totalorder %s34, 0
      %p180 = por %p178, %p179
      %p181 = scmp.ne.s32.totalorder %s173, %s175
      %p182 = scmp.eq.s32.totalorder %s39, 1
      %p183 = por %p181, %p182
      %p184 = scmp.ne.s32.totalorder %s175, %s176
      %p185 = scmp.eq.s32.totalorder %s39, 0
      %p186 = por %p184, %p185
      %p187 = scmp.ne.s32.totalorder %s175, %s176
      %p188 = scmp.eq.s32.totalorder %s40, 1
      %p189 = por %p187, %p188
      %p191 = scmp.ne.s32.totalorder %s176, %s190
      %p192 = scmp.eq.s32.totalorder %s40, 0
      %p193 = por %p191, %p192
      %s195 = sadd.s32 %s194, 1
      %p198 = scmp.eq.s32.totalorder %s34, 1
      %p199 = scmp.ne.s32.totalorder %s194, %s196
      %p200 = scmp.eq.s32.totalorder %s34, 0
      %p201 = por %p199, %p200
      %p202 = scmp.ne.s32.totalorder %s194, %s196
      %p203 = scmp.eq.s32.totalorder %s39, 1
      %p204 = por %p202, %p203
      %p205 = scmp.ne.s32.totalorder %s196, %s197
      %p206 = scmp.eq.s32.totalorder %s39, 0
      %p207 = por %p205, %p206
      %p208 = scmp.ne.s32.totalorder %s196, %s197
      %p209 = scmp.eq.s32.totalorder %s40, 1
      %p210 = por %p208, %p209
      %p212 = scmp.ne.s32.totalorder %s197, %s211
      %p213 = scmp.eq.s32.totalorder %s40, 0
      %p214 = por %p212, %p213
      %s216 = sadd.s32 %s215, 1
      %p219 = scmp.eq.s32.totalorder %s34, 1
      %p220 = scmp.ne.s32.totalorder %s215, %s217
      %p221 = scmp.eq.s32.totalorder %s34, 0
      %p222 = por %p220, %p221
      %p223 = scmp.ne.s32.totalorder %s215, %s217
      %p224 = scmp.eq.s32.totalorder %s39, 1
      %p225 = por %p223, %p224
      %p226 = scmp.ne.s32.totalorder %s217, %s218
      %p227 = scmp.eq.s32.totalorder %s39, 0
      %p228 = por %p226, %p227
      %p229 = scmp.ne.s32.totalorder %s217, %s218
      %p230 = scmp.eq.s32.totalorder %s40, 1
      %p231 = por %p229, %p230
      %p233 = scmp.ne.s32.totalorder %s218, %s232
      %p234 = scmp.eq.s32.totalorder %s40, 0
      %p235 = por %p233, %p234
      %s237 = sadd.s32 %s236, 1
      %p240 = scmp.eq.s32.totalorder %s34, 1
      %p241 = scmp.ne.s32.totalorder %s236, %s238
      %p242 = scmp.eq.s32.totalorder %s34, 0
      %p243 = por %p241, %p242
      %p244 = scmp.ne.s32.totalorder %s236, %s238
      %p245 = scmp.eq.s32.totalorder %s39, 1
      %p246 = por %p244, %p245
      %p247 = scmp.ne.s32.totalorder %s238, %s239
      %p248 = scmp.eq.s32.totalorder %s39, 0
      %p249 = por %p247, %p248
      %p250 = scmp.ne.s32.totalorder %s238, %s239
      %p251 = scmp.eq.s32.totalorder %s40, 1
      %p252 = por %p250, %p251
      %p254 = scmp.ne.s32.totalorder %s239, %s253
      %p255 = scmp.eq.s32.totalorder %s40, 0
      %p256 = por %p254, %p255
      %s258 = sadd.s32 %s257, 1
      %p261 = scmp.eq.s32.totalorder %s34, 1
      %p262 = scmp.ne.s32.totalorder %s257, %s259
      %p263 = scmp.eq.s32.totalorder %s34, 0
      %p264 = por %p262, %p263
      %p265 = scmp.ne.s32.totalorder %s257, %s259
      %p266 = scmp.eq.s32.totalorder %s39, 1
      %p267 = por %p265, %p266
      %p268 = scmp.ne.s32.totalorder %s259, %s260
      %p269 = scmp.eq.s32.totalorder %s39, 0
      %p270 = por %p268, %p269
      %p271 = scmp.ne.s32.totalorder %s259, %s260
      %p272 = scmp.eq.s32.totalorder %s40, 1
      %p273 = por %p271, %p272
      %p275 = scmp.ne.s32.totalorder %s260, %s274
      %p276 = scmp.eq.s32.totalorder %s40, 0
      %p277 = por %p275, %p276
      %s279 = sadd.s32 %s278, 1
      %p282 = scmp.eq.s32.totalorder %s34, 1
      %p283 = scmp.ne.s32.totalorder %s278, %s280
      %p284 = scmp.eq.s32.totalorder %s34, 0
      %p285 = por %p283, %p284
      %p286 = scmp.ne.s32.totalorder %s278, %s280
      %p287 = scmp.eq.s32.totalorder %s39, 1
      %p288 = por %p286, %p287
      %p289 = scmp.ne.s32.totalorder %s280, %s281
      %p290 = scmp.eq.s32.totalorder %s39, 0
      %p291 = por %p289, %p290
      %p292 = scmp.ne.s32.totalorder %s280, %s281
      %p293 = scmp.eq.s32.totalorder %s40, 1
      %p294 = por %p292, %p293
      %p296 = scmp.ne.s32.totalorder %s281, %s295
      %p297 = scmp.eq.s32.totalorder %s40, 0
      %p298 = por %p296, %p297
      %s300 = sadd.s32 %s299, 1
      %p303 = scmp.eq.s32.totalorder %s34, 1
      %p304 = scmp.ne.s32.totalorder %s299, %s301
      %p305 = scmp.eq.s32.totalorder %s34, 0
      %p306 = por %p304, %p305
      %p307 = scmp.ne.s32.totalorder %s299, %s301
      %p308 = scmp.eq.s32.totalorder %s39, 1
      %p309 = por %p307, %p308
      %p310 = scmp.ne.s32.totalorder %s301, %s302
      %p311 = scmp.eq.s32.totalorder %s39, 0
      %p312 = por %p310, %p311
      %p313 = scmp.ne.s32.totalorder %s301, %s302
      %p314 = scmp.eq.s32.totalorder %s40, 1
      %p315 = por %p313, %p314
      %p317 = scmp.ne.s32.totalorder %s302, %s316
      %p318 = scmp.eq.s32.totalorder %s40, 0
      %p319 = por %p317, %p318
      %s321 = sadd.s32 %s320, 1
      %p324 = scmp.eq.s32.totalorder %s34, 1
      %p325 = scmp.ne.s32.totalorder %s320, %s322
      %p326 = scmp.eq.s32.totalorder %s34, 0
      %p327 = por %p325, %p326
      %p328 = scmp.ne.s32.totalorder %s320, %s322
      %p329 = scmp.eq.s32.totalorder %s39, 1
      %p330 = por %p328, %p329
      %p331 = scmp.ne.s32.totalorder %s322, %s323
      %p332 = scmp.eq.s32.totalorder %s39, 0
      %p333 = por %p331, %p332
      %p334 = scmp.ne.s32.totalorder %s322, %s323
      %p335 = scmp.eq.s32.totalorder %s40, 1
      %p336 = por %p334, %p335
      %p338 = scmp.ne.s32.totalorder %s323, %s337
      %p339 = scmp.eq.s32.totalorder %s40, 0
      %p340 = por %p338, %p339
      %s342 = sadd.s32 %s341, 1
      %p345 = scmp.eq.s32.totalorder %s34, 1
      %p346 = scmp.ne.s32.totalorder %s341, %s343
      %p347 = scmp.eq.s32.totalorder %s34, 0
      %p348 = por %p346, %p347
      %p349 = scmp.ne.s32.totalorder %s341, %s343
      %p350 = scmp.eq.s32.totalorder %s39, 1
      %p351 = por %p349, %p350
      %p352 = scmp.ne.s32.totalorder %s343, %s344
      %p353 = scmp.eq.s32.totalorder %s39, 0
      %p354 = por %p352, %p353
      %p355 = scmp.ne.s32.totalorder %s343, %s344
      %p356 = scmp.eq.s32.totalorder %s40, 1
      %p357 = por %p355, %p356
      %p359 = scmp.ne.s32.totalorder %s344, %s358
      %p360 = scmp.eq.s32.totalorder %s40, 0
      %p361 = por %p359, %p360
      %s363 = sadd.s32 %s362, 1
      %p366 = scmp.eq.s32.totalorder %s34, 1
      %p367 = scmp.ne.s32.totalorder %s362, %s364
      %p368 = scmp.eq.s32.totalorder %s34, 0
      %p369 = por %p367, %p368
      %p370 = scmp.ne.s32.totalorder %s362, %s364
      %p371 = scmp.eq.s32.totalorder %s39, 1
      %p372 = por %p370, %p371
      %p373 = scmp.ne.s32.totalorder %s364, %s365
      %p374 = scmp.eq.s32.totalorder %s39, 0
      %p375 = por %p373, %p374
      %p376 = scmp.ne.s32.totalorder %s364, %s365
      %p377 = scmp.eq.s32.totalorder %s40, 1
      %p378 = por %p376, %p377
      %p380 = scmp.ne.s32.totalorder %s365, %s379
      %p381 = scmp.eq.s32.totalorder %s40, 0
      %p382 = por %p380, %p381
      %s384 = sadd.s32 %s383, 1
      %p387 = scmp.eq.s32.totalorder %s34, 1
      %p388 = scmp.ne.s32.totalorder %s383, %s385
      %p389 = scmp.eq.s32.totalorder %s34, 0
      %p390 = por %p388, %p389
      %p391 = scmp.ne.s32.totalorder %s383, %s385
      %p392 = scmp.eq.s32.totalorder %s39, 1
      %p393 = por %p391, %p392
      %p394 = scmp.ne.s32.totalorder %s385, %s386
      %p395 = scmp.eq.s32.totalorder %s39, 0
      %p396 = por %p394, %p395
      %p397 = scmp.ne.s32.totalorder %s385, %s386
      %p398 = scmp.eq.s32.totalorder %s40, 1
      %p399 = por %p397, %p398
      %p401 = scmp.ne.s32.totalorder %s386, %s400
      %p402 = scmp.eq.s32.totalorder %s40, 0
      %p403 = por %p401, %p402
      %s405 = sadd.s32 %s404, 1
      %p408 = scmp.eq.s32.totalorder %s34, 1
      %p409 = scmp.ne.s32.totalorder %s404, %s406
      %p410 = scmp.eq.s32.totalorder %s34, 0
      %p411 = por %p409, %p410
      %p412 = scmp.ne.s32.totalorder %s404, %s406
      %p413 = scmp.eq.s32.totalorder %s39, 1
      %p414 = por %p412, %p413
      %p415 = scmp.ne.s32.totalorder %s406, %s407
      %p416 = scmp.eq.s32.totalorder %s39, 0
      %p417 = por %p415, %p416
      %p418 = scmp.ne.s32.totalorder %s406, %s407
      %p419 = scmp.eq.s32.totalorder %s40, 1
      %p420 = por %p418, %p419
      %p422 = scmp.ne.s32.totalorder %s407, %s421
      %p423 = scmp.eq.s32.totalorder %s40, 0
      %p424 = por %p422, %p423
      %s425 = ssub.s32 %s34, %s41
      %p426 = scmp.eq.s32.totalorder %s425, 0
      %s428 = sadd.s32 %s427, 1
      %s429 = scalar_select %p426, %s427, %s428
      %p432 = pneg %p426
      %p433 = scmp.eq.s32.totalorder %s34, 1
      %p434 = por %p432, %p433
      %p435 = scmp.ne.s32.totalorder %s427, %s430
      %p436 = scmp.eq.s32.totalorder %s34, 0
      %p437 = por %p435, %p436
      %p438 = scmp.ne.s32.totalorder %s427, %s430
      %p439 = scmp.eq.s32.totalorder %s39, 1
      %p440 = por %p438, %p439
      %p441 = scmp.ne.s32.totalorder %s430, %s431
      %p442 = scmp.eq.s32.totalorder %s39, 0
      %p443 = por %p441, %p442
      %p444 = scmp.ne.s32.totalorder %s430, %s431
      %p445 = scmp.eq.s32.totalorder %s40, 1
      %p446 = por %p444, %p445
      %p448 = scmp.ne.s32.totalorder %s431, %s447
      %p449 = scmp.eq.s32.totalorder %s40, 0
      %p450 = por %p448, %p449
      %p451 = scmp.le.s32.totalorder 1, %s34
      %p452 = scmp.lt.s32.totalorder %s34, 3
      %p453 = pnand %p451, %p452
      %p454 = pneg %p453
      // Predicated region
      $region9: #{model4_forward.1} parent=5 // pred_check
        _
      $region10: #{model4_forward.1} parent=5 // pred_check_branch
        %456 = sbr.rel (%p453) target = $region12
      $region11: #{model4_forward.1} parent=5 // pred_region
        %s457 = ssub.s32 %s34, 1
        // Predicated region
        $region13: #{model4_forward.1} parent=11 // pred_check
          %p458 = pneg %p81
        $region14: #{model4_forward.1} parent=11 // pred_check_branch
          %460 = sbr.rel (%p458) target = $region16
        $region15: #{model4_forward.1} parent=11 // pred_region
          %s462 = ssub.s32 9216, 9216
          %463 = vsyncadd [#allocation3], %s462
          %s464 = sshll.u32 [#allocation2], 4
          %s465 = int_to_ptr.vmem [resolvable:$true] %s464
          %470 = dma.hbm_to_vmem [thread:$0]  %s1, 9216, %s465, [#allocation3], 256, 256, 16
        $region16: #{model4_forward.1} parent=11 // pred_fallthru
          _
        // Predicated region
        $region17: #{model4_forward.1} parent=11 // pred_check
          %p471 = pneg %p102
        $region18: #{model4_forward.1} parent=11 // pred_check_branch
          %473 = sbr.rel (%p471) target = $region20
        $region19: #{model4_forward.1} parent=11 // pred_region
          %s475 = ssub.s32 32, 32
          %476 = vsyncadd [#allocation6], %s475
          %s478 = sshll.u32 [#allocation5], 4
          %s479 = int_to_ptr.vmem [resolvable:$true] %s478
          %481 = dma.hbm_to_vmem [thread:$0]  %s2, 32, %s479, [#allocation6]
        $region20: #{model4_forward.1} parent=11 // pred_fallthru
          _
        // Predicated region
        $region21: #{model4_forward.1} parent=11 // pred_check
          %p482 = pneg %p123
        $region22: #{model4_forward.1} parent=11 // pred_check_branch
          %484 = sbr.rel (%p482) target = $region24
        $region23: #{model4_forward.1} parent=11 // pred_region
          %s486 = ssub.s32 110592, 110592
          %487 = vsyncadd [#allocation6], %s486
          %s488 = sshll.u32 [#allocation7], 4
          %s489 = int_to_ptr.vmem [resolvable:$true] %s488
          %494 = dma.hbm_to_vmem [thread:$0]  %s3, 110592, %s489, [#allocation6], 512, 512, 32
        $region24: #{model4_forward.1} parent=11 // pred_fallthru
          _
        // Predicated region
        $region25: #{model4_forward.1} parent=11 // pred_check
          %p495 = pneg %p144
        $region26: #{model4_forward.1} parent=11 // pred_check_branch
          %497 = sbr.rel (%p495) target = $region28
        $region27: #{model4_forward.1} parent=11 // pred_region
          %s499 = ssub.s32 64, 64
          %500 = vsyncadd [#allocation9], %s499
          %s502 = sshll.u32 [#allocation8], 4
          %s503 = int_to_ptr.vmem [resolvable:$true] %s502
          %505 = dma.hbm_to_vmem [thread:$0]  %s4, 64, %s503, [#allocation9]
        $region28: #{model4_forward.1} parent=11 // pred_fallthru
          _
        // Predicated region
        $region29: #{model4_forward.1} parent=11 // pred_check
          %p506 = pneg %p165
        $region30: #{model4_forward.1} parent=11 // pred_check_branch
          %508 = sbr.rel (%p506) target = $region32
        $region31: #{model4_forward.1} parent=11 // pred_region
          _
        $region32: #{model4_forward.1} parent=11 // pred_fallthru
          _
        // Predicated region
        $region33: #{model4_forward.1} parent=11 // pred_check
          %p509 = pneg %p186
        $region34: #{model4_forward.1} parent=11 // pred_check_branch
          %511 = sbr.rel (%p509) target = $region36
        $region35: #{model4_forward.1} parent=11 // pred_region
          %s513 = ssub.s32 30720, 30720
          %514 = vsyncadd [#allocation9], %s513
          %s515 = sshll.u32 [#allocation10], 4
          %s516 = int_to_ptr.vmem [resolvable:$true] %s515
          %521 = dma.hbm_to_vmem [thread:$0]  %s6, 30720, %s516, [#allocation9], 256, 256, 16
        $region36: #{model4_forward.1} parent=11 // pred_fallthru
          _
        // Predicated region
        $region37: #{model4_forward.1} parent=11 // pred_check
          %p522 = pneg %p207
        $region38: #{model4_forward.1} parent=11 // pred_check_branch
          %524 = sbr.rel (%p522) target = $region40
        $region39: #{model4_forward.1} parent=11 // pred_region
          %s526 = ssub.s32 3840, 3840
          %527 = vsyncadd [#allocation12], %s526
          %s528 = sshll.u32 [#allocation11], 4
          %s529 = int_to_ptr.vmem [resolvable:$true] %s528
          %534 = dma.hbm_to_vmem [thread:$0]  %s7, 3840, %s529, [#allocation12], 128, 128, 8
        $region40: #{model4_forward.1} parent=11 // pred_fallthru
          _
        // Predicated region
        $region41: #{model4_forward.1} parent=11 // pred_check
          %p535 = pneg %p228
        $region42: #{model4_forward.1} parent=11 // pred_check_branch
          %537 = sbr.rel (%p535) target = $region44
        $region43: #{model4_forward.1} parent=11 // pred_region
          %s539 = ssub.s32 16, 16
          %540 = vsyncadd [#allocation12], %s539
          %s542 = sshll.u32 [#allocation13], 4
          %s543 = int_to_ptr.vmem [resolvable:$true] %s542
          %545 = dma.hbm_to_vmem [thread:$0]  %s8, 16, %s543, [#allocation12]
        $region44: #{model4_forward.1} parent=11 // pred_fallthru
          _
        // Predicated region
        $region45: #{model4_forward.1} parent=11 // pred_check
          %p546 = pneg %p249
        $region46: #{model4_forward.1} parent=11 // pred_check_branch
          %548 = sbr.rel (%p546) target = $region48
        $region47: #{model4_forward.1} parent=11 // pred_region
          _
        $region48: #{model4_forward.1} parent=11 // pred_fallthru
          _
        // Predicated region
        $region49: #{model4_forward.1} parent=11 // pred_check
          %p549 = pneg %p270
        $region50: #{model4_forward.1} parent=11 // pred_check_branch
          %551 = sbr.rel (%p549) target = $region52
        $region51: #{model4_forward.1} parent=11 // pred_region
          %s553 = ssub.s32 16, 16
          %554 = vsyncadd [#allocation15], %s553
          %s556 = sshll.u32 [#allocation14], 4
          %s557 = int_to_ptr.vmem [resolvable:$true] %s556
          %559 = dma.hbm_to_vmem [thread:$0]  %s10, 16, %s557, [#allocation15]
        $region52: #{model4_forward.1} parent=11 // pred_fallthru
          _
        // Predicated region
        $region53: #{model4_forward.1} parent=11 // pred_check
          %p560 = pneg %p291
        $region54: #{model4_forward.1} parent=11 // pred_check_branch
          %562 = sbr.rel (%p560) target = $region56
        $region55: #{model4_forward.1} parent=11 // pred_region
          %s564 = ssub.s32 18432, 18432
          %565 = vsyncadd [#allocation15], %s564
          %s566 = sshll.u32 [#allocation16], 4
          %s567 = int_to_ptr.vmem [resolvable:$true] %s566
          %572 = dma.hbm_to_vmem [thread:$0]  %s11, 18432, %s567, [#allocation15], 256, 256, 16
        $region56: #{model4_forward.1} parent=11 // pred_fallthru
          _
        // Predicated region
        $region57: #{model4_forward.1} parent=11 // pred_check
          %p573 = pneg %p312
        $region58: #{model4_forward.1} parent=11 // pred_check_branch
          %575 = sbr.rel (%p573) target = $region60
        $region59: #{model4_forward.1} parent=11 // pred_region
          %s577 = ssub.s32 32, 32
          %578 = vsyncadd [#allocation18], %s577
          %s580 = sshll.u32 [#allocation17], 4
          %s581 = int_to_ptr.vmem [resolvable:$true] %s580
          %583 = dma.hbm_to_vmem [thread:$0]  %s12, 32, %s581, [#allocation18]
        $region60: #{model4_forward.1} parent=11 // pred_fallthru
          _
        // Predicated region
        $region61: #{model4_forward.1} parent=11 // pred_check
          %p584 = pneg %p333
        $region62: #{model4_forward.1} parent=11 // pred_check_branch
          %586 = sbr.rel (%p584) target = $region64
        $region63: #{model4_forward.1} parent=11 // pred_region
          %s588 = ssub.s32 128, 128
          %589 = vsyncadd [#allocation18], %s588
          %s590 = sshll.u32 [#allocation19], 4
          %s591 = int_to_ptr.vmem [resolvable:$true] %s590
          %596 = dma.hbm_to_vmem [thread:$0]  %s13, 128, %s591, [#allocation18], 64, 64, 4
        $region64: #{model4_forward.1} parent=11 // pred_fallthru
          _
        // Predicated region
        $region65: #{model4_forward.1} parent=11 // pred_check
          %p597 = pneg %p354
        $region66: #{model4_forward.1} parent=11 // pred_check_branch
          %599 = sbr.rel (%p597) target = $region68
        $region67: #{model4_forward.1} parent=11 // pred_region
          %s601 = ssub.s32 5120, 5120
          %602 = vsyncadd [#allocation21], %s601
          %s603 = sshll.u32 [#allocation20], 4
          %s604 = int_to_ptr.vmem [resolvable:$true] %s603
          %609 = dma.hbm_to_vmem [thread:$0]  %s14, 5120, %s604, [#allocation21], 128, 128, 8
        $region68: #{model4_forward.1} parent=11 // pred_fallthru
          _
        // Predicated region
        $region69: #{model4_forward.1} parent=11 // pred_check
          %p610 = pneg %p375
        $region70: #{model4_forward.1} parent=11 // pred_check_branch
          %612 = sbr.rel (%p610) target = $region72
        $region71: #{model4_forward.1} parent=11 // pred_region
          _
        $region72: #{model4_forward.1} parent=11 // pred_fallthru
          _
        // Predicated region
        $region73: #{model4_forward.1} parent=11 // pred_check
          %p613 = pneg %p396
        $region74: #{model4_forward.1} parent=11 // pred_check_branch
          %615 = sbr.rel (%p613) target = $region76
        $region75: #{model4_forward.1} parent=11 // pred_region
          %s617 = ssub.s32 16, 16
          %618 = vsyncadd [#allocation21], %s617
          %s620 = sshll.u32 [#allocation22], 4
          %s621 = int_to_ptr.vmem [resolvable:$true] %s620
          %623 = dma.hbm_to_vmem [thread:$0]  %s16, 16, %s621, [#allocation21]
        $region76: #{model4_forward.1} parent=11 // pred_fallthru
          _
        // Predicated region
        $region77: #{model4_forward.1} parent=11 // pred_check
          %p624 = pneg %p417
        $region78: #{model4_forward.1} parent=11 // pred_check_branch
          %626 = sbr.rel (%p624) target = $region80
        $region79: #{model4_forward.1} parent=11 // pred_region
          _
        $region80: #{model4_forward.1} parent=11 // pred_fallthru
          _
      $region12: #{model4_forward.1} parent=5 // pred_fallthru
        _
      %p627 = scmp.lt.s32.totalorder %s34, 2
      // Predicated region
      $region81: #{model4_forward.1} parent=5 // pred_check
        %p628 = pneg %p627
      $region82: #{model4_forward.1} parent=5 // pred_check_branch
        %630 = sbr.rel (%p628) target = $region84
      $region83: #{model4_forward.1} parent=5 // pred_region
        // Predicated region
        $region85: #{model4_forward.1} parent=83 // pred_check
          %p631 = pneg %p54
        $region86: #{model4_forward.1} parent=83 // pred_check_branch
          %633 = sbr.rel (%p631) target = $region88
        $region87: #{model4_forward.1} parent=83 // pred_region
          %p634 = scmp.lt.s32.totalorder %s34, 1
          %s635 = scalar_select %p634, %s34, 1
          %s636 = smul.addr %s635, 4
          %s637 = smul.addr %s636, 8
          %s638 = scalar_lea.vmem %s0, %s637
        $region88: #{model4_forward.1} parent=83 // pred_fallthru
          _
      $region84: #{model4_forward.1} parent=5 // pred_fallthru
        _
      %p639 = scmp.le.s32.totalorder 1, %s34
      %p640 = scmp.lt.s32.totalorder %s34, 3
      %p641 = pnand %p639, %p640
      %p642 = pneg %p641
      // Predicated region
      $region89: #{model4_forward.1} parent=5 // pred_check
        _
      $region90: #{model4_forward.1} parent=5 // pred_check_branch
        %644 = sbr.rel (%p641) target = $region92
      $region91: #{model4_forward.1} parent=5 // pred_region
        %s645 = ssub.s32 %s34, 1
        // Predicated region
        $region93: #{model4_forward.1} parent=91 // pred_check
          %p646 = pneg %p81
        $region94: #{model4_forward.1} parent=91 // pred_check_branch
          %648 = sbr.rel (%p646) target = $region96
        $region95: #{model4_forward.1} parent=91 // pred_region
          %649 = dma.done [#allocation3], 9216
        $region96: #{model4_forward.1} parent=91 // pred_fallthru
          _
        // Predicated region
        $region97: #{model4_forward.1} parent=91 // pred_check
          %p650 = pneg %p102
        $region98: #{model4_forward.1} parent=91 // pred_check_branch
          %652 = sbr.rel (%p650) target = $region100
        $region99: #{model4_forward.1} parent=91 // pred_region
          %653 = dma.done [#allocation6], 32
        $region100: #{model4_forward.1} parent=91 // pred_fallthru
          _
        // Predicated region
        $region101: #{model4_forward.1} parent=91 // pred_check
          %p654 = pneg %p123
        $region102: #{model4_forward.1} parent=91 // pred_check_branch
          %656 = sbr.rel (%p654) target = $region104
        $region103: #{model4_forward.1} parent=91 // pred_region
          %657 = dma.done [#allocation6], 110592
        $region104: #{model4_forward.1} parent=91 // pred_fallthru
          _
        // Predicated region
        $region105: #{model4_forward.1} parent=91 // pred_check
          %p658 = pneg %p144
        $region106: #{model4_forward.1} parent=91 // pred_check_branch
          %660 = sbr.rel (%p658) target = $region108
        $region107: #{model4_forward.1} parent=91 // pred_region
          %661 = dma.done [#allocation9], 64
        $region108: #{model4_forward.1} parent=91 // pred_fallthru
          _
        // Predicated region
        $region109: #{model4_forward.1} parent=91 // pred_check
          %p662 = pneg %p186
        $region110: #{model4_forward.1} parent=91 // pred_check_branch
          %664 = sbr.rel (%p662) target = $region112
        $region111: #{model4_forward.1} parent=91 // pred_region
          %665 = dma.done [#allocation9], 30720
        $region112: #{model4_forward.1} parent=91 // pred_fallthru
          _
        // Predicated region
        $region113: #{model4_forward.1} parent=91 // pred_check
          %p666 = pneg %p207
        $region114: #{model4_forward.1} parent=91 // pred_check_branch
          %668 = sbr.rel (%p666) target = $region116
        $region115: #{model4_forward.1} parent=91 // pred_region
          %669 = dma.done [#allocation12], 3840
        $region116: #{model4_forward.1} parent=91 // pred_fallthru
          _
        // Predicated region
        $region117: #{model4_forward.1} parent=91 // pred_check
          %p670 = pneg %p228
        $region118: #{model4_forward.1} parent=91 // pred_check_branch
          %672 = sbr.rel (%p670) target = $region120
        $region119: #{model4_forward.1} parent=91 // pred_region
          %673 = dma.done [#allocation12], 16
        $region120: #{model4_forward.1} parent=91 // pred_fallthru
          _
        // Predicated region
        $region121: #{model4_forward.1} parent=91 // pred_check
          %p674 = pneg %p270
        $region122: #{model4_forward.1} parent=91 // pred_check_branch
          %676 = sbr.rel (%p674) target = $region124
        $region123: #{model4_forward.1} parent=91 // pred_region
          %677 = dma.done [#allocation15], 16
        $region124: #{model4_forward.1} parent=91 // pred_fallthru
          _
        // Predicated region
        $region125: #{model4_forward.1} parent=91 // pred_check
          %p678 = pneg %p291
        $region126: #{model4_forward.1} parent=91 // pred_check_branch
          %680 = sbr.rel (%p678) target = $region128
        $region127: #{model4_forward.1} parent=91 // pred_region
          %681 = dma.done [#allocation15], 18432
        $region128: #{model4_forward.1} parent=91 // pred_fallthru
          _
        // Predicated region
        $region129: #{model4_forward.1} parent=91 // pred_check
          %p682 = pneg %p312
        $region130: #{model4_forward.1} parent=91 // pred_check_branch
          %684 = sbr.rel (%p682) target = $region132
        $region131: #{model4_forward.1} parent=91 // pred_region
          %685 = dma.done [#allocation18], 32
        $region132: #{model4_forward.1} parent=91 // pred_fallthru
          _
        // Predicated region
        $region133: #{model4_forward.1} parent=91 // pred_check
          %p686 = pneg %p333
        $region134: #{model4_forward.1} parent=91 // pred_check_branch
          %688 = sbr.rel (%p686) target = $region136
        $region135: #{model4_forward.1} parent=91 // pred_region
          %689 = dma.done [#allocation18], 128
        $region136: #{model4_forward.1} parent=91 // pred_fallthru
          _
        // Predicated region
        $region137: #{model4_forward.1} parent=91 // pred_check
          %p690 = pneg %p354
        $region138: #{model4_forward.1} parent=91 // pred_check_branch
          %692 = sbr.rel (%p690) target = $region140
        $region139: #{model4_forward.1} parent=91 // pred_region
          %693 = dma.done [#allocation21], 5120
        $region140: #{model4_forward.1} parent=91 // pred_fallthru
          _
        // Predicated region
        $region141: #{model4_forward.1} parent=91 // pred_check
          %p694 = pneg %p396
        $region142: #{model4_forward.1} parent=91 // pred_check_branch
          %696 = sbr.rel (%p694) target = $region144
        $region143: #{model4_forward.1} parent=91 // pred_region
          %697 = dma.done [#allocation21], 16
        $region144: #{model4_forward.1} parent=91 // pred_fallthru
          _
        %p698 = scmp.lt.s32.totalorder %s39, 1
        %s699 = scalar_select %p698, %s39, 1
        %s700 = smul.addr %s699, 4
        %s701 = smul.addr %s700, 8
        %s702 = scalar_lea.vmem %s0, %s701
        %p703 = pneg %p60
        %p704 = pneg %p57
        %p705 = pneg %p81
        %p706 = pneg %p78
        %p707 = pneg %p102
        %p708 = pneg %p99
        %p709 = pneg %p123
        %p710 = pneg %p120
        %p711 = pneg %p144
        %p712 = pneg %p141
        %p713 = pneg %p165
        %p714 = pneg %p162
        %p715 = pneg %p186
        %p716 = pneg %p183
        %p717 = pneg %p207
        %p718 = pneg %p204
        %p719 = pneg %p228
        %p720 = pneg %p225
        %p721 = pneg %p249
        %p722 = pneg %p246
        %p723 = pneg %p270
        %p724 = pneg %p267
        %p725 = pneg %p291
        %p726 = pneg %p288
        %p727 = pneg %p312
        %p728 = pneg %p309
        %p729 = pneg %p333
        %p730 = pneg %p330
        %p731 = pneg %p354
        %p732 = pneg %p351
        %p733 = pneg %p375
        %p734 = pneg %p372
        %p735 = pneg %p396
        %p736 = pneg %p393
        %p737 = pneg %p417
        %p738 = pneg %p414
        %p739 = pneg %p443
        %p740 = pneg %p440
        %s741 = sand.u32 %s430, 1
        %s742 = scalar_lea.sflag [#allocation4], %s741
        %s743 = sand.u32 %s430, 1
        %s744 = scalar_lea.vmem [#allocation23], %s743
        %p745 = scmp.lt.s32.totalorder %s39, 1
        %s746 = scalar_select %p745, %s39, 1
        %s747 = smul.addr %s746, 4
        %s748 = smul.addr %s747, 8
        %s749 = scalar_lea.vmem %s0, %s748
        %v750 = vld [vmem:[%s749] sm:$0xff]
        %v751 = vld [vmem:[%s749 + $0x8] sm:$0xff]
        %v752 = vld [vmem:[%s749 + $0x10] sm:$0xff]
        %v753 = vld [vmem:[%s749 + $0x18] sm:$0xf]
        %v754 = vld [vmem:[#allocation2] sm:$0xff]
        %v755 = vld [vmem:[#allocation2 + $0x8] sm:$0xff]
        %v756 = vld [vmem:[#allocation2 + $0x10] sm:$0xff]
        %v757 = vld [vmem:[#allocation2 + $0x18] sm:$0xff]
        %v758 = vld [vmem:[#allocation2 + $0x20] sm:$0xff]
        %v759 = vld [vmem:[#allocation2 + $0x28] sm:$0xff]
        %v760 = vld [vmem:[#allocation2 + $0x30] sm:$0x3]
        %v761 = vld [vmem:[#allocation2 + $0x38] sm:$0x3]
        %s762 = scalar_lea.vmem [#allocation2], 64
        %v763 = vld [vmem:[%s762] sm:$0xff]
        %v764 = vld [vmem:[%s762 + $0x8] sm:$0xff]
        %v765 = vld [vmem:[%s762 + $0x10] sm:$0xff]
        %v766 = vld [vmem:[%s762 + $0x18] sm:$0xff]
        %v767 = vld [vmem:[%s762 + $0x20] sm:$0xff]
        %v768 = vld [vmem:[%s762 + $0x28] sm:$0xff]
        %v769 = vld [vmem:[%s762 + $0x30] sm:$0x3]
        %v770 = vld [vmem:[%s762 + $0x38] sm:$0x3]
        %775 = vrot.lane.b32.xlu0 %v750, 127
        %v776 = vpop.permute.xlu0 %775
        %777 = vrot.lane.b32.xlu0 %v751, 127
        %v778 = vpop.permute.xlu0 %777
        %779 = vrot.lane.b32.xlu0 %v752, 127
        %v780 = vpop.permute.xlu0 %779
        %781 = vrot.lane.b32.xlu0 %v753, 127
        %v782 = vpop.permute.xlu0 %781
        %vm783 = vcmask 211968
        %v784 = vsel %vm783, %v776, 0
        %v786 = vsel %vm783, %v778, 0
        %v788 = vsel %vm783, %v780, 0
        %v790 = vsel %vm783, %v782, 0
        %vm792 = vcmask 1041408
        %v794 = vsel %vm792, %v769, 0
        %v797 = vsel %vm792, %v770, 0
        %799 = vmatprep.subr.mxu0 %v764
        %800 = vmatpush1.msra.mxu0 %v763
        %801 = vmatprep.subr.mxu0 %v766
        %802 = vmatpush1.msra.mxu0 %v765
        %803 = vmatprep.subr.mxu0 %v768
        %804 = vmatpush1.msra.mxu0 %v767
        %805 = vmatprep.subr.mxu0 %v797
        %806 = vmatpush1.msra.mxu0 %v794
        %807 = vmatprep.subr.mxu0 0.0
        %808 = vmatpush1.msra.mxu0 0.0
        %809 = vmatprep.subr.mxu0 0.0
        %810 = vmatpush1.msra.mxu0 0.0
        %811 = vmatprep.subr.mxu0 0.0
        %812 = vmatpush1.msra.mxu0 0.0
        %813 = vmatprep.subr.mxu0 0.0
        %814 = vmatpush1.msra.mxu0 0.0
        %815 = vmatprep.subr.mxu0 0.0
        %816 = vmatpush1.msra.mxu0 0.0
        %817 = vmatprep.subr.mxu0 0.0
        %818 = vmatpush1.msra.mxu0 0.0
        %819 = vmatprep.subr.mxu0 0.0
        %820 = vmatpush1.msra.mxu0 0.0
        %821 = vmatprep.subr.mxu0 0.0
        %822 = vmatpush1.msra.mxu0 0.0
        %823 = vmatprep.subr.mxu0 0.0
        %824 = vmatpush1.msra.mxu0 0.0
        %825 = vmatprep.subr.mxu0 0.0
        %826 = vmatpush1.msra.mxu0 0.0
        %827 = vmatprep.subr.mxu0 0.0
        %828 = vmatpush1.msra.mxu0 0.0
        %829 = vmatprep.subr.mxu0 0.0
        %830 = vmatpush1.msra.mxu0 0.0
        %831 = vmatprep.subr.mxu0 0.0
        %832 = vmatpush1.msra.mxu0 0.0
        %833 = vmatprep.subr.mxu0 0.0
        %834 = vmatpush1.msra.mxu0 0.0
        %835 = vmatprep.subr.mxu0 0.0
        %836 = vmatpush1.msra.mxu0 0.0
        %837 = vmatprep.subr.mxu0 0.0
        %838 = vmatpush1.msra.mxu0 0.0
        %839 = vmatprep.subr.mxu0 0.0
        %840 = vmatpush1.msra.mxu0 0.0
        %841 = vmatprep.subr.mxu0 0.0
        %842 = vmatpush1.msra.mxu0 0.0
        %843 = vmatprep.subr.mxu0 0.0
        %844 = vmatpush1.msra.mxu0 0.0
        %845 = vmatprep.subr.mxu0 0.0
        %846 = vmatpush1.msra.mxu0 0.0
        %847 = vmatprep.subr.mxu0 0.0
        %848 = vmatpush1.msra.mxu0 0.0
        %849 = vmatprep.subr.mxu0 0.0
        %850 = vmatpush1.msra.mxu0 0.0
        %851 = vmatprep.subr.mxu0 0.0
        %852 = vmatpush1.msra.mxu0 0.0
        %853 = vmatprep.subr.mxu0 0.0
        %854 = vmatpush1.msra.mxu0 0.0
        %855 = vmatprep.subr.mxu0 0.0
        %856 = vmatpush1.msra.mxu0 0.0
        %857 = vmatprep.subr.mxu0 0.0
        %858 = vmatpush1.msra.mxu0 0.0
        %859 = vmatprep.subr.mxu0 0.0
        %860 = vmatpush1.msra.mxu0 0.0
        %861 = vmatprep.subr.mxu0 0.0
        %862 = vmatpush1.msra.mxu0 0.0
        %863 = vmatprep.mubr.f32.mxu0 0.0
        %864 = vmatmul.mubr.f32.gmra.mrb[0].mxu0 %v784
        %v865 = vpop.f32.mrb[0].mxu0
        %v866 = vadd.f32 0.0, %v865
        %v867 = vpop.f32.mrb[0].mxu0
        %v868 = vadd.f32 0.0, %v867
        %869 = vmatprep.mubr.f32.mxu0 0.0
        %870 = vmatmul.mubr.f32.gmra.mrb[0].mxu0 %v786
        %v871 = vpop.f32.mrb[0].mxu0
        %v872 = vadd.f32 0.0, %v871
        %v873 = vpop.f32.mrb[0].mxu0
        %v874 = vadd.f32 0.0, %v873
        %875 = vmatprep.mubr.f32.mxu0 0.0
        %876 = vmatmul.mubr.f32.gmra.mrb[0].mxu0 %v788
        %v877 = vpop.f32.mrb[0].mxu0
        %v878 = vadd.f32 0.0, %v877
        %v879 = vpop.f32.mrb[0].mxu0
        %v880 = vadd.f32 0.0, %v879
        %881 = vmatprep.mubr.f32.mxu0 0.0
        %882 = vmatmul.mubr.f32.gmra.mrb[0].mxu0 %v790
        %v883 = vpop.f32.mrb[0].mxu0
        %v884 = vadd.f32 0.0, %v883
        %v885 = vpop.f32.mrb[0].mxu0
        %v886 = vadd.f32 0.0, %v885
        %887 = vdwg.mxu0
        %v888 = vsel %vm783, %v750, 0
        %v890 = vsel %vm783, %v751, 0
        %v892 = vsel %vm783, %v752, 0
        %v894 = vsel %vm783, %v753, 0
        %v897 = vsel %vm792, %v760, 0
        %v900 = vsel %vm792, %v761, 0
        %902 = vmatprep.subr.mxu0 %v755
        %903 = vmatpush1.msra.mxu0 %v754
        %904 = vmatprep.subr.mxu0 %v757
        %905 = vmatpush1.msra.mxu0 %v756
        %906 = vmatprep.subr.mxu0 %v759
        %907 = vmatpush1.msra.mxu0 %v758
        %908 = vmatprep.subr.mxu0 %v900
        %909 = vmatpush1.msra.mxu0 %v897
        %910 = vmatprep.subr.mxu0 0.0
        %911 = vmatpush1.msra.mxu0 0.0
        %912 = vmatprep.subr.mxu0 0.0
        %913 = vmatpush1.msra.mxu0 0.0
        %914 = vmatprep.subr.mxu0 0.0
        %915 = vmatpush1.msra.mxu0 0.0
        %916 = vmatprep.subr.mxu0 0.0
        %917 = vmatpush1.msra.mxu0 0.0
        %918 = vmatprep.subr.mxu0 0.0
        %919 = vmatpush1.msra.mxu0 0.0
        %920 = vmatprep.subr.mxu0 0.0
        %921 = vmatpush1.msra.mxu0 0.0
        %922 = vmatprep.subr.mxu0 0.0
        %923 = vmatpush1.msra.mxu0 0.0
        %924 = vmatprep.subr.mxu0 0.0
        %925 = vmatpush1.msra.mxu0 0.0
        %926 = vmatprep.subr.mxu0 0.0
        %927 = vmatpush1.msra.mxu0 0.0
        %928 = vmatprep.subr.mxu0 0.0
        %929 = vmatpush1.msra.mxu0 0.0
        %930 = vmatprep.subr.mxu0 0.0
        %931 = vmatpush1.msra.mxu0 0.0
        %932 = vmatprep.subr.mxu0 0.0
        %933 = vmatpush1.msra.mxu0 0.0
        %934 = vmatprep.subr.mxu0 0.0
        %935 = vmatpush1.msra.mxu0 0.0
        %936 = vmatprep.subr.mxu0 0.0
        %937 = vmatpush1.msra.mxu0 0.0
        %938 = vmatprep.subr.mxu0 0.0
        %939 = vmatpush1.msra.mxu0 0.0
        %940 = vmatprep.subr.mxu0 0.0
        %941 = vmatpush1.msra.mxu0 0.0
        %942 = vmatprep.subr.mxu0 0.0
        %943 = vmatpush1.msra.mxu0 0.0
        %944 = vmatprep.subr.mxu0 0.0
        %945 = vmatpush1.msra.mxu0 0.0
        %946 = vmatprep.subr.mxu0 0.0
        %947 = vmatpush1.msra.mxu0 0.0
        %948 = vmatprep.subr.mxu0 0.0
        %949 = vmatpush1.msra.mxu0 0.0
        %950 = vmatprep.subr.mxu0 0.0
        %951 = vmatpush1.msra.mxu0 0.0
        %952 = vmatprep.subr.mxu0 0.0
        %953 = vmatpush1.msra.mxu0 0.0
        %954 = vmatprep.subr.mxu0 0.0
        %955 = vmatpush1.msra.mxu0 0.0
        %956 = vmatprep.subr.mxu0 0.0
        %957 = vmatpush1.msra.mxu0 0.0
        %958 = vmatprep.subr.mxu0 0.0
        %959 = vmatpush1.msra.mxu0 0.0
        %960 = vmatprep.subr.mxu0 0.0
        %961 = vmatpush1.msra.mxu0 0.0
        %962 = vmatprep.subr.mxu0 0.0
        %963 = vmatpush1.msra.mxu0 0.0
        %964 = vmatprep.subr.mxu0 0.0
        %965 = vmatpush1.msra.mxu0 0.0
        %966 = vmatprep.mubr.f32.mxu0 0.0
        %967 = vmatmul.mubr.f32.gmra.mrb[0].mxu0 %v888
        %v968 = vpop.f32.mrb[0].mxu0
        %v969 = vadd.f32 %v866, %v968
        %v970 = vpop.f32.mrb[0].mxu0
        %v971 = vadd.f32 %v868, %v970
        %972 = vmatprep.mubr.f32.mxu0 0.0
        %973 = vmatmul.mubr.f32.gmra.mrb[0].mxu0 %v890
        %v974 = vpop.f32.mrb[0].mxu0
        %v975 = vadd.f32 %v872, %v974
        %v976 = vpop.f32.mrb[0].mxu0
        %v977 = vadd.f32 %v874, %v976
        %978 = vmatprep.mubr.f32.mxu0 0.0
        %979 = vmatmul.mubr.f32.gmra.mrb[0].mxu0 %v892
        %v980 = vpop.f32.mrb[0].mxu0
        %v981 = vadd.f32 %v878, %v980
        %v982 = vpop.f32.mrb[0].mxu0
        %v983 = vadd.f32 %v880, %v982
        %984 = vmatprep.mubr.f32.mxu0 0.0
        %985 = vmatmul.mubr.f32.gmra.mrb[0].mxu0 %v894
        %v986 = vpop.f32.mrb[0].mxu0
        %v987 = vadd.f32 %v884, %v986
        %v988 = vpop.f32.mrb[0].mxu0
        %v989 = vadd.f32 %v886, %v988
        %990 = vdwg.mxu0
        %s991 = scalar_lea.vmem [#allocation2], 128
        %v992 = vld [vmem:[%s991] sm:$0xff]
        %v993 = vld [vmem:[%s991 + $0x8] sm:$0xff]
        %v994 = vld [vmem:[%s991 + $0x10] sm:$0xff]
        %v995 = vld [vmem:[%s991 + $0x18] sm:$0xff]
        %v996 = vld [vmem:[%s991 + $0x20] sm:$0xff]
        %v997 = vld [vmem:[%s991 + $0x28] sm:$0xff]
        %v998 = vld [vmem:[%s991 + $0x30] sm:$0x3]
        %v999 = vld [vmem:[%s991 + $0x38] sm:$0x3]
        %1000 = vrot.lane.b32.xlu0 %v750, 126
        %v1001 = vpop.permute.xlu0 %1000
        %1002 = vrot.lane.b32.xlu0 %v751, 126
        %v1003 = vpop.permute.xlu0 %1002
        %1004 = vrot.lane.b32.xlu0 %v752, 126
        %v1005 = vpop.permute.xlu0 %1004
        %1006 = vrot.lane.b32.xlu0 %v753, 126
        %v1007 = vpop.permute.xlu0 %1006
        %v1008 = vsel %vm783, %v1001, 0
        %v1010 = vsel %vm783, %v1003, 0
        %v1012 = vsel %vm783, %v1005, 0
        %v1014 = vsel %vm783, %v1007, 0
        %v1017 = vsel %vm792, %v998, 0
        %v1020 = vsel %vm792, %v999, 0
        %1022 = vmatprep.subr.mxu0 %v993
        %1023 = vmatpush1.msra.mxu0 %v992
        %1024 = vmatprep.subr.mxu0 %v995
        %1025 = vmatpush1.msra.mxu0 %v994
        %1026 = vmatprep.subr.mxu0 %v997
        %1027 = vmatpush1.msra.mxu0 %v996
        %1028 = vmatprep.subr.mxu0 %v1020
        %1029 = vmatpush1.msra.mxu0 %v1017
        %1030 = vmatprep.subr.mxu0 0.0
        %1031 = vmatpush1.msra.mxu0 0.0
        %1032 = vmatprep.subr.mxu0 0.0
        %1033 = vmatpush1.msra.mxu0 0.0
        %1034 = vmatprep.subr.mxu0 0.0
        %1035 = vmatpush1.msra.mxu0 0.0
        %1036 = vmatprep.subr.mxu0 0.0
        %1037 = vmatpush1.msra.mxu0 0.0
        %1038 = vmatprep.subr.mxu0 0.0
        %1039 = vmatpush1.msra.mxu0 0.0
        %1040 = vmatprep.subr.mxu0 0.0
        %1041 = vmatpush1.msra.mxu0 0.0
        %1042 = vmatprep.subr.mxu0 0.0
        %1043 = vmatpush1.msra.mxu0 0.0
        %1044 = vmatprep.subr.mxu0 0.0
        %1045 = vmatpush1.msra.mxu0 0.0
        %1046 = vmatprep.subr.mxu0 0.0
        %1047 = vmatpush1.msra.mxu0 0.0
        %1048 = vmatprep.subr.mxu0 0.0
        %1049 = vmatpush1.msra.mxu0 0.0
        %1050 = vmatprep.subr.mxu0 0.0
        %1051 = vmatpush1.msra.mxu0 0.0
        %1052 = vmatprep.subr.mxu0 0.0
        %1053 = vmatpush1.msra.mxu0 0.0
        %1054 = vmatprep.subr.mxu0 0.0
        %1055 = vmatpush1.msra.mxu0 0.0
        %1056 = vmatprep.subr.mxu0 0.0
        %1057 = vmatpush1.msra.mxu0 0.0
        %1058 = vmatprep.subr.mxu0 0.0
        %1059 = vmatpush1.msra.mxu0 0.0
        %1060 = vmatprep.subr.mxu0 0.0
        %1061 = vmatpush1.msra.mxu0 0.0
        %1062 = vmatprep.subr.mxu0 0.0
        %1063 = vmatpush1.msra.mxu0 0.0
        %1064 = vmatprep.subr.mxu0 0.0
        %1065 = vmatpush1.msra.mxu0 0.0
        %1066 = vmatprep.subr.mxu0 0.0
        %1067 = vmatpush1.msra.mxu0 0.0
        %1068 = vmatprep.subr.mxu0 0.0
        %1069 = vmatpush1.msra.mxu0 0.0
        %1070 = vmatprep.subr.mxu0 0.0
        %1071 = vmatpush1.msra.mxu0 0.0
        %1072 = vmatprep.subr.mxu0 0.0
        %1073 = vmatpush1.msra.mxu0 0.0
        %1074 = vmatprep.subr.mxu0 0.0
        %1075 = vmatpush1.msra.mxu0 0.0
        %1076 = vmatprep.subr.mxu0 0.0
        %1077 = vmatpush1.msra.mxu0 0.0
        %1078 = vmatprep.subr.mxu0 0.0
        %1079 = vmatpush1.msra.mxu0 0.0
        %1080 = vmatprep.subr.mxu0 0.0
        %1081 = vmatpush1.msra.mxu0 0.0
        %1082 = vmatprep.subr.mxu0 0.0
        %1083 = vmatpush1.msra.mxu0 0.0
        %1084 = vmatprep.subr.mxu0 0.0
        %1085 = vmatpush1.msra.mxu0 0.0
        %1086 = vmatprep.mubr.f32.mxu0 0.0
        %1087 = vmatmul.mubr.f32.gmra.mrb[0].mxu0 %v1008
        %v1088 = vpop.f32.mrb[0].mxu0
        %v1089 = vadd.f32 0.0, %v1088
        %v1090 = vpop.f32.mrb[0].mxu0
        %v1091 = vadd.f32 0.0, %v1090
        %1092 = vmatprep.mubr.f32.mxu0 0.0
        %1093 = vmatmul.mubr.f32.gmra.mrb[0].mxu0 %v1010
        %v1094 = vpop.f32.mrb[0].mxu0
        %v1095 = vadd.f32 0.0, %v1094
        %v1096 = vpop.f32.mrb[0].mxu0
        %v1097 = vadd.f32 0.0, %v1096
        %1098 = vmatprep.mubr.f32.mxu0 0.0
        %1099 = vmatmul.mubr.f32.gmra.mrb[0].mxu0 %v1012
        %v1100 = vpop.f32.mrb[0].mxu0
        %v1101 = vadd.f32 0.0, %v1100
        %v1102 = vpop.f32.mrb[0].mxu0
        %v1103 = vadd.f32 0.0, %v1102
        %1104 = vmatprep.mubr.f32.mxu0 0.0
        %1105 = vmatmul.mubr.f32.gmra.mrb[0].mxu0 %v1014
        %v1106 = vpop.f32.mrb[0].mxu0
        %v1107 = vadd.f32 0.0, %v1106
        %v1108 = vpop.f32.mrb[0].mxu0
        %v1109 = vadd.f32 0.0, %v1108
        %1110 = vdwg.mxu0
        %v1111 = vadd.f32 %v969, %v1089
        %v1112 = vadd.f32 %v971, %v1091
        %v1113 = vadd.f32 %v975, %v1095
        %v1114 = vadd.f32 %v977, %v1097
        %v1115 = vadd.f32 %v981, %v1101
        %v1116 = vadd.f32 %v983, %v1103
        %v1117 = vadd.f32 %v987, %v1107
        %v1118 = vadd.f32 %v989, %v1109
        %s1119 = scalar_lea.vmem [#allocation2], 192
        %v1120 = vld [vmem:[%s1119] sm:$0xff]
        %v1121 = vld [vmem:[%s1119 + $0x8] sm:$0xff]
        %v1122 = vld [vmem:[%s1119 + $0x10] sm:$0xff]
        %v1123 = vld [vmem:[%s1119 + $0x18] sm:$0xff]
        %v1124 = vld [vmem:[%s1119 + $0x20] sm:$0xff]
        %v1125 = vld [vmem:[%s1119 + $0x28] sm:$0xff]
        %v1126 = vld [vmem:[%s1119 + $0x30] sm:$0x3]
        %v1127 = vld [vmem:[%s1119 + $0x38] sm:$0x3]
        %vm1128 = vcmask 1046528
        %v1129 = vrot.slane %v750, 1
        %v1130 = vrot.slane %v751, 1
        %v1131 = vsel %vm1128, %v1129, %v1130
        %v1132 = vrot.slane %v752, 1
        %v1133 = vsel %vm1128, %v1130, %v1132
        %v1134 = vrot.slane %v753, 1
        %v1135 = vsel %vm1128, %v1132, %v1134
        %v1136 = vsel %vm783, %v1131, 0
        %v1138 = vsel %vm783, %v1133, 0
        %v1140 = vsel %vm783, %v1135, 0
        %v1142 = vsel %vm783, %v1134, 0
        %v1145 = vsel %vm792, %v1126, 0
        %v1148 = vsel %vm792, %v1127, 0
        %1150 = vmatprep.subr.mxu0 %v1121
        %1151 = vmatpush1.msra.mxu0 %v1120
        %1152 = vmatprep.subr.mxu0 %v1123
        %1153 = vmatpush1.msra.mxu0 %v1122
        %1154 = vmatprep.subr.mxu0 %v1125
        %1155 = vmatpush1.msra.mxu0 %v1124
        %1156 = vmatprep.subr.mxu0 %v1148
        %1157 = vmatpush1.msra.mxu0 %v1145
        %1158 = vmatprep.subr.mxu0 0.0
        %1159 = vmatpush1.msra.mxu0 0.0
        %1160 = vmatprep.subr.mxu0 0.0
        %1161 = vmatpush1.msra.mxu0 0.0
        %1162 = vmatprep.subr.mxu0 0.0
        %1163 = vmatpush1.msra.mxu0 0.0
        %1164 = vmatprep.subr.mxu0 0.0
        %1165 = vmatpush1.msra.mxu0 0.0
        %1166 = vmatprep.subr.mxu0 0.0
        %1167 = vmatpush1.msra.mxu0 0.0
        %1168 = vmatprep.subr.mxu0 0.0
        %1169 = vmatpush1.msra.mxu0 0.0
        %1170 = vmatprep.subr.mxu0 0.0
        %1171 = vmatpush1.msra.mxu0 0.0
        %1172 = vmatprep.subr.mxu0 0.0
        %1173 = vmatpush1.msra.mxu0 0.0
        %1174 = vmatprep.subr.mxu0 0.0
        %1175 = vmatpush1.msra.mxu0 0.0
        %1176 = vmatprep.subr.mxu0 0.0
        %1177 = vmatpush1.msra.mxu0 0.0
        %1178 = vmatprep.subr.mxu0 0.0
        %1179 = vmatpush1.msra.mxu0 0.0
        %1180 = vmatprep.subr.mxu0 0.0
        %1181 = vmatpush1.msra.mxu0 0.0
        %1182 = vmatprep.subr.mxu0 0.0
        %1183 = vmatpush1.msra.mxu0 0.0
        %1184 = vmatprep.subr.mxu0 0.0
        %1185 = vmatpush1.msra.mxu0 0.0
        %1186 = vmatprep.subr.mxu0 0.0
        %1187 = vmatpush1.msra.mxu0 0.0
        %1188 = vmatprep.subr.mxu0 0.0
        %1189 = vmatpush1.msra.mxu0 0.0
        %1190 = vmatprep.subr.mxu0 0.0
        %1191 = vmatpush1.msra.mxu0 0.0
        %1192 = vmatprep.subr.mxu0 0.0
        %1193 = vmatpush1.msra.mxu0 0.0
        %1194 = vmatprep.subr.mxu0 0.0
        %1195 = vmatpush1.msra.mxu0 0.0
        %1196 = vmatprep.subr.mxu0 0.0
        %1197 = vmatpush1.msra.mxu0 0.0
        %1198 = vmatprep.subr.mxu0 0.0
        %1199 = vmatpush1.msra.mxu0 0.0
        %1200 = vmatprep.subr.mxu0 0.0
        %1201 = vmatpush1.msra.mxu0 0.0
        %1202 = vmatprep.subr.mxu0 0.0
        %1203 = vmatpush1.msra.mxu0 0.0
        %1204 = vmatprep.subr.mxu0 0.0
        %1205 = vmatpush1.msra.mxu0 0.0
        %1206 = vmatprep.subr.mxu0 0.0
        %1207 = vmatpush1.msra.mxu0 0.0
        %1208 = vmatprep.subr.mxu0 0.0
        %1209 = vmatpush1.msra.mxu0 0.0
        %1210 = vmatprep.subr.mxu0 0.0
        %1211 = vmatpush1.msra.mxu0 0.0
        %1212 = vmatprep.subr.mxu0 0.0
        %1213 = vmatpush1.msra.mxu0 0.0
        %1214 = vmatprep.mubr.f32.mxu0 0.0
        %1215 = vmatmul.mubr.f32.gmra.mrb[0].mxu0 %v1136
        %v1216 = vpop.f32.mrb[0].mxu0
        %v1217 = vadd.f32 0.0, %v1216
        %v1218 = vpop.f32.mrb[0].mxu0
        %v1219 = vadd.f32 0.0, %v1218
        %1220 = vmatprep.mubr.f32.mxu0 0.0
        %1221 = vmatmul.mubr.f32.gmra.mrb[0].mxu0 %v1138
        %v1222 = vpop.f32.mrb[0].mxu0
        %v1223 = vadd.f32 0.0, %v1222
        %v1224 = vpop.f32.mrb[0].mxu0
        %v1225 = vadd.f32 0.0, %v1224
        %1226 = vmatprep.mubr.f32.mxu0 0.0
        %1227 = vmatmul.mubr.f32.gmra.mrb[0].mxu0 %v1140
        %v1228 = vpop.f32.mrb[0].mxu0
        %v1229 = vadd.f32 0.0, %v1228
        %v1230 = vpop.f32.mrb[0].mxu0
        %v1231 = vadd.f32 0.0, %v1230
        %1232 = vmatprep.mubr.f32.mxu0 0.0
        %1233 = vmatmul.mubr.f32.gmra.mrb[0].mxu0 %v1142
        %v1234 = vpop.f32.mrb[0].mxu0
        %v1235 = vadd.f32 0.0, %v1234
        %v1236 = vpop.f32.mrb[0].mxu0
        %v1237 = vadd.f32 0.0, %v1236
        %1238 = vdwg.mxu0
        %v1239 = vadd.f32 %v1111, %v1217
        %v1240 = vadd.f32 %v1112, %v1219
        %v1241 = vadd.f32 %v1113, %v1223
        %v1242 = vadd.f32 %v1114, %v1225
        %v1243 = vadd.f32 %v1115, %v1229
        %v1244 = vadd.f32 %v1116, %v1231
        %v1245 = vadd.f32 %v1117, %v1235
        %v1246 = vadd.f32 %v1118, %v1237
        %s1247 = scalar_lea.vmem [#allocation2], 256
        %v1248 = vld [vmem:[%s1247] sm:$0xff]
        %v1249 = vld [vmem:[%s1247 + $0x8] sm:$0xff]
        %v1250 = vld [vmem:[%s1247 + $0x10] sm:$0xff]
        %v1251 = vld [vmem:[%s1247 + $0x18] sm:$0xff]
        %v1252 = vld [vmem:[%s1247 + $0x20] sm:$0xff]
        %v1253 = vld [vmem:[%s1247 + $0x28] sm:$0xff]
        %v1254 = vld [vmem:[%s1247 + $0x30] sm:$0x3]
        %v1255 = vld [vmem:[%s1247 + $0x38] sm:$0x3]
        %1256 = vrot.lane.b32.xlu0 %v1131, 127
        %v1257 = vpop.permute.xlu0 %1256
        %1258 = vrot.lane.b32.xlu0 %v1133, 127
        %v1259 = vpop.permute.xlu0 %1258
        %1260 = vrot.lane.b32.xlu0 %v1135, 127
        %v1261 = vpop.permute.xlu0 %1260
        %1262 = vrot.lane.b32.xlu0 %v1134, 127
        %v1263 = vpop.permute.xlu0 %1262
        %v1264 = vsel %vm783, %v1257, 0
        %v1266 = vsel %vm783, %v1259, 0
        %v1268 = vsel %vm783, %v1261, 0
        %v1270 = vsel %vm783, %v1263, 0
        %v1273 = vsel %vm792, %v1254, 0
        %v1276 = vsel %vm792, %v1255, 0
        %1278 = vmatprep.subr.mxu0 %v1249
        %1279 = vmatpush1.msra.mxu0 %v1248
        %1280 = vmatprep.subr.mxu0 %v1251
        %1281 = vmatpush1.msra.mxu0 %v1250
        %1282 = vmatprep.subr.mxu0 %v1253
        %1283 = vmatpush1.msra.mxu0 %v1252
        %1284 = vmatprep.subr.mxu0 %v1276
        %1285 = vmatpush1.msra.mxu0 %v1273
        %1286 = vmatprep.subr.mxu0 0.0
        %1287 = vmatpush1.msra.mxu0 0.0
        %1288 = vmatprep.subr.mxu0 0.0
        %1289 = vmatpush1.msra.mxu0 0.0
        %1290 = vmatprep.subr.mxu0 0.0
        %1291 = vmatpush1.msra.mxu0 0.0
        %1292 = vmatprep.subr.mxu0 0.0
        %1293 = vmatpush1.msra.mxu0 0.0
        %1294 = vmatprep.subr.mxu0 0.0
        %1295 = vmatpush1.msra.mxu0 0.0
        %1296 = vmatprep.subr.mxu0 0.0
        %1297 = vmatpush1.msra.mxu0 0.0
        %1298 = vmatprep.subr.mxu0 0.0
        %1299 = vmatpush1.msra.mxu0 0.0
        %1300 = vmatprep.subr.mxu0 0.0
        %1301 = vmatpush1.msra.mxu0 0.0
        %1302 = vmatprep.subr.mxu0 0.0
        %1303 = vmatpush1.msra.mxu0 0.0
        %1304 = vmatprep.subr.mxu0 0.0
        %1305 = vmatpush1.msra.mxu0 0.0
        %1306 = vmatprep.subr.mxu0 0.0
        %1307 = vmatpush1.msra.mxu0 0.0
        %1308 = vmatprep.subr.mxu0 0.0
        %1309 = vmatpush1.msra.mxu0 0.0
        %1310 = vmatprep.subr.mxu0 0.0
        %1311 = vmatpush1.msra.mxu0 0.0
        %1312 = vmatprep.subr.mxu0 0.0
        %1313 = vmatpush1.msra.mxu0 0.0
        %1314 = vmatprep.subr.mxu0 0.0
        %1315 = vmatpush1.msra.mxu0 0.0
        %1316 = vmatprep.subr.mxu0 0.0
        %1317 = vmatpush1.msra.mxu0 0.0
        %1318 = vmatprep.subr.mxu0 0.0
        %1319 = vmatpush1.msra.mxu0 0.0
        %1320 = vmatprep.subr.mxu0 0.0
        %1321 = vmatpush1.msra.mxu0 0.0
        %1322 = vmatprep.subr.mxu0 0.0
        %1323 = vmatpush1.msra.mxu0 0.0
        %1324 = vmatprep.subr.mxu0 0.0
        %1325 = vmatpush1.msra.mxu0 0.0
        %1326 = vmatprep.subr.mxu0 0.0
        %1327 = vmatpush1.msra.mxu0 0.0
        %1328 = vmatprep.subr.mxu0 0.0
        %1329 = vmatpush1.msra.mxu0 0.0
        %1330 = vmatprep.subr.mxu0 0.0
        %1331 = vmatpush1.msra.mxu0 0.0
        %1332 = vmatprep.subr.mxu0 0.0
        %1333 = vmatpush1.msra.mxu0 0.0
        %1334 = vmatprep.subr.mxu0 0.0
        %1335 = vmatpush1.msra.mxu0 0.0
        %1336 = vmatprep.subr.mxu0 0.0
        %1337 = vmatpush1.msra.mxu0 0.0
        %1338 = vmatprep.subr.mxu0 0.0
        %1339 = vmatpush1.msra.mxu0 0.0
        %1340 = vmatprep.subr.mxu0 0.0
        %1341 = vmatpush1.msra.mxu0 0.0
        %1342 = vmatprep.mubr.f32.mxu0 0.0
        %1343 = vmatmul.mubr.f32.gmra.mrb[0].mxu0 %v1264
        %v1344 = vpop.f32.mrb[0].mxu0
        %v1345 = vadd.f32 0.0, %v1344
        %v1346 = vpop.f32.mrb[0].mxu0
        %v1347 = vadd.f32 0.0, %v1346
        %1348 = vmatprep.mubr.f32.mxu0 0.0
        %1349 = vmatmul.mubr.f32.gmra.mrb[0].mxu0 %v1266
        %v1350 = vpop.f32.mrb[0].mxu0
        %v1351 = vadd.f32 0.0, %v1350
        %v1352 = vpop.f32.mrb[0].mxu0
        %v1353 = vadd.f32 0.0, %v1352
        %1354 = vmatprep.mubr.f32.mxu0 0.0
        %1355 = vmatmul.mubr.f32.gmra.mrb[0].mxu0 %v1268
        %v1356 = vpop.f32.mrb[0].mxu0
        %v1357 = vadd.f32 0.0, %v1356
        %v1358 = vpop.f32.mrb[0].mxu0
        %v1359 = vadd.f32 0.0, %v1358
        %1360 = vmatprep.mubr.f32.mxu0 0.0
        %1361 = vmatmul.mubr.f32.gmra.mrb[0].mxu0 %v1270
        %v1362 = vpop.f32.mrb[0].mxu0
        %v1363 = vadd.f32 0.0, %v1362
        %v1364 = vpop.f32.mrb[0].mxu0
        %v1365 = vadd.f32 0.0, %v1364
        %1366 = vdwg.mxu0
        %v1367 = vadd.f32 %v1239, %v1345
        %v1368 = vadd.f32 %v1240, %v1347
        %v1369 = vadd.f32 %v1241, %v1351
        %v1370 = vadd.f32 %v1242, %v1353
        %v1371 = vadd.f32 %v1243, %v1357
        %v1372 = vadd.f32 %v1244, %v1359
        %v1373 = vadd.f32 %v1245, %v1363
        %v1374 = vadd.f32 %v1246, %v1365
        %s1375 = scalar_lea.vmem [#allocation2], 320
        %v1376 = vld [vmem:[%s1375] sm:$0xff]
        %v1377 = vld [vmem:[%s1375 + $0x8] sm:$0xff]
        %v1378 = vld [vmem:[%s1375 + $0x10] sm:$0xff]
        %v1379 = vld [vmem:[%s1375 + $0x18] sm:$0xff]
        %v1380 = vld [vmem:[%s1375 + $0x20] sm:$0xff]
        %v1381 = vld [vmem:[%s1375 + $0x28] sm:$0xff]
        %v1382 = vld [vmem:[%s1375 + $0x30] sm:$0x3]
        %v1383 = vld [vmem:[%s1375 + $0x38] sm:$0x3]
        %1384 = vrot.lane.b32.xlu0 %v1131, 126
        %v1385 = vpop.permute.xlu0 %1384
        %1386 = vrot.lane.b32.xlu0 %v1133, 126
        %v1387 = vpop.permute.xlu0 %1386
        %1388 = vrot.lane.b32.xlu0 %v1135, 126
        %v1389 = vpop.permute.xlu0 %1388
        %1390 = vrot.lane.b32.xlu0 %v1134, 126
        %v1391 = vpop.permute.xlu0 %1390
        %v1392 = vsel %vm783, %v1385, 0
        %v1394 = vsel %vm783, %v1387, 0
        %v1396 = vsel %vm783, %v1389, 0
        %v1398 = vsel %vm783, %v1391, 0
        %v1401 = vsel %vm792, %v1382, 0
        %v1404 = vsel %vm792, %v1383, 0
        %1406 = vmatprep.subr.mxu0 %v1377
        %1407 = vmatpush1.msra.mxu0 %v1376
        %1408 = vmatprep.subr.mxu0 %v1379
        %1409 = vmatpush1.msra.mxu0 %v1378
        %1410 = vmatprep.subr.mxu0 %v1381
        %1411 = vmatpush1.msra.mxu0 %v1380
        %1412 = vmatprep.subr.mxu0 %v1404
        %1413 = vmatpush1.msra.mxu0 %v1401
        %1414 = vmatprep.subr.mxu0 0.0
        %1415 = vmatpush1.msra.mxu0 0.0
        %1416 = vmatprep.subr.mxu0 0.0
        %1417 = vmatpush1.msra.mxu0 0.0
        %1418 = vmatprep.subr.mxu0 0.0
        %1419 = vmatpush1.msra.mxu0 0.0
        %1420 = vmatprep.subr.mxu0 0.0
        %1421 = vmatpush1.msra.mxu0 0.0
        %1422 = vmatprep.subr.mxu0 0.0
        %1423 = vmatpush1.msra.mxu0 0.0
        %1424 = vmatprep.subr.mxu0 0.0
        %1425 = vmatpush1.msra.mxu0 0.0
        %1426 = vmatprep.subr.mxu0 0.0
        %1427 = vmatpush1.msra.mxu0 0.0
        %1428 = vmatprep.subr.mxu0 0.0
        %1429 = vmatpush1.msra.mxu0 0.0
        %1430 = vmatprep.subr.mxu0 0.0
        %1431 = vmatpush1.msra.mxu0 0.0
        %1432 = vmatprep.subr.mxu0 0.0
        %1433 = vmatpush1.msra.mxu0 0.0
        %1434 = vmatprep.subr.mxu0 0.0
        %1435 = vmatpush1.msra.mxu0 0.0
        %1436 = vmatprep.subr.mxu0 0.0
        %1437 = vmatpush1.msra.mxu0 0.0
        %1438 = vmatprep.subr.mxu0 0.0
        %1439 = vmatpush1.msra.mxu0 0.0
        %1440 = vmatprep.subr.mxu0 0.0
        %1441 = vmatpush1.msra.mxu0 0.0
        %1442 = vmatprep.subr.mxu0 0.0
        %1443 = vmatpush1.msra.mxu0 0.0
        %1444 = vmatprep.subr.mxu0 0.0
        %1445 = vmatpush1.msra.mxu0 0.0
        %1446 = vmatprep.subr.mxu0 0.0
        %1447 = vmatpush1.msra.mxu0 0.0
        %1448 = vmatprep.subr.mxu0 0.0
        %1449 = vmatpush1.msra.mxu0 0.0
        %1450 = vmatprep.subr.mxu0 0.0
        %1451 = vmatpush1.msra.mxu0 0.0
        %1452 = vmatprep.subr.mxu0 0.0
        %1453 = vmatpush1.msra.mxu0 0.0
        %1454 = vmatprep.subr.mxu0 0.0
        %1455 = vmatpush1.msra.mxu0 0.0
        %1456 = vmatprep.subr.mxu0 0.0
        %1457 = vmatpush1.msra.mxu0 0.0
        %1458 = vmatprep.subr.mxu0 0.0
        %1459 = vmatpush1.msra.mxu0 0.0
        %1460 = vmatprep.subr.mxu0 0.0
        %1461 = vmatpush1.msra.mxu0 0.0
        %1462 = vmatprep.subr.mxu0 0.0
        %1463 = vmatpush1.msra.mxu0 0.0
        %1464 = vmatprep.subr.mxu0 0.0
        %1465 = vmatpush1.msra.mxu0 0.0
        %1466 = vmatprep.subr.mxu0 0.0
        %1467 = vmatpush1.msra.mxu0 0.0
        %1468 = vmatprep.subr.mxu0 0.0
        %1469 = vmatpush1.msra.mxu0 0.0
        %1470 = vmatprep.mubr.f32.mxu0 0.0
        %1471 = vmatmul.mubr.f32.gmra.mrb[0].mxu0 %v1392
        %v1472 = vpop.f32.mrb[0].mxu0
        %v1473 = vadd.f32 0.0, %v1472
        %v1474 = vpop.f32.mrb[0].mxu0
        %v1475 = vadd.f32 0.0, %v1474
        %1476 = vmatprep.mubr.f32.mxu0 0.0
        %1477 = vmatmul.mubr.f32.gmra.mrb[0].mxu0 %v1394
        %v1478 = vpop.f32.mrb[0].mxu0
        %v1479 = vadd.f32 0.0, %v1478
        %v1480 = vpop.f32.mrb[0].mxu0
        %v1481 = vadd.f32 0.0, %v1480
        %1482 = vmatprep.mubr.f32.mxu0 0.0
        %1483 = vmatmul.mubr.f32.gmra.mrb[0].mxu0 %v1396
        %v1484 = vpop.f32.mrb[0].mxu0
        %v1485 = vadd.f32 0.0, %v1484
        %v1486 = vpop.f32.mrb[0].mxu0
        %v1487 = vadd.f32 0.0, %v1486
        %1488 = vmatprep.mubr.f32.mxu0 0.0
        %1489 = vmatmul.mubr.f32.gmra.mrb[0].mxu0 %v1398
        %v1490 = vpop.f32.mrb[0].mxu0
        %v1491 = vadd.f32 0.0, %v1490
        %v1492 = vpop.f32.mrb[0].mxu0
        %v1493 = vadd.f32 0.0, %v1492
        %1494 = vdwg.mxu0
        %v1495 = vadd.f32 %v1367, %v1473
        %v1496 = vadd.f32 %v1368, %v1475
        %v1497 = vadd.f32 %v1369, %v1479
        %v1498 = vadd.f32 %v1370, %v1481
        %v1499 = vadd.f32 %v1371, %v1485
        %v1500 = vadd.f32 %v1372, %v1487
        %v1501 = vadd.f32 %v1373, %v1491
        %v1502 = vadd.f32 %v1374, %v1493
        %s1503 = scalar_lea.vmem [#allocation2], 384
        %v1504 = vld [vmem:[%s1503] sm:$0xff]
        %v1505 = vld [vmem:[%s1503 + $0x8] sm:$0xff]
        %v1506 = vld [vmem:[%s1503 + $0x10] sm:$0xff]
        %v1507 = vld [vmem:[%s1503 + $0x18] sm:$0xff]
        %v1508 = vld [vmem:[%s1503 + $0x20] sm:$0xff]
        %v1509 = vld [vmem:[%s1503 + $0x28] sm:$0xff]
        %v1510 = vld [vmem:[%s1503 + $0x30] sm:$0x3]
        %v1511 = vld [vmem:[%s1503 + $0x38] sm:$0x3]
        %vm1512 = vcmask 1045504
        %v1513 = vrot.slane %v750, 2
        %v1514 = vrot.slane %v751, 2
        %v1515 = vsel %vm1512, %v1513, %v1514
        %v1516 = vrot.slane %v752, 2
        %v1517 = vsel %vm1512, %v1514, %v1516
        %v1518 = vrot.slane %v753, 2
        %v1519 = vsel %vm1512, %v1516, %v1518
        %v1520 = vsel %vm783, %v1515, 0
        %v1522 = vsel %vm783, %v1517, 0
        %v1524 = vsel %vm783, %v1519, 0
        %v1526 = vsel %vm783, %v1518, 0
        %v1529 = vsel %vm792, %v1510, 0
        %v1532 = vsel %vm792, %v1511, 0
        %1534 = vmatprep.subr.mxu0 %v1505
        %1535 = vmatpush1.msra.mxu0 %v1504
        %1536 = vmatprep.subr.mxu0 %v1507
        %1537 = vmatpush1.msra.mxu0 %v1506
        %1538 = vmatprep.subr.mxu0 %v1509
        %1539 = vmatpush1.msra.mxu0 %v1508
        %1540 = vmatprep.subr.mxu0 %v1532
        %1541 = vmatpush1.msra.mxu0 %v1529
        %1542 = vmatprep.subr.mxu0 0.0
        %1543 = vmatpush1.msra.mxu0 0.0
        %1544 = vmatprep.subr.mxu0 0.0
        %1545 = vmatpush1.msra.mxu0 0.0
        %1546 = vmatprep.subr.mxu0 0.0
        %1547 = vmatpush1.msra.mxu0 0.0
        %1548 = vmatprep.subr.mxu0 0.0
        %1549 = vmatpush1.msra.mxu0 0.0
        %1550 = vmatprep.subr.mxu0 0.0
        %1551 = vmatpush1.msra.mxu0 0.0
        %1552 = vmatprep.subr.mxu0 0.0
        %1553 = vmatpush1.msra.mxu0 0.0
        %1554 = vmatprep.subr.mxu0 0.0
        %1555 = vmatpush1.msra.mxu0 0.0
        %1556 = vmatprep.subr.mxu0 0.0
        %1557 = vmatpush1.msra.mxu0 0.0
        %1558 = vmatprep.subr.mxu0 0.0
        %1559 = vmatpush1.msra.mxu0 0.0
        %1560 = vmatprep.subr.mxu0 0.0
        %1561 = vmatpush1.msra.mxu0 0.0
        %1562 = vmatprep.subr.mxu0 0.0
        %1563 = vmatpush1.msra.mxu0 0.0
        %1564 = vmatprep.subr.mxu0 0.0
        %1565 = vmatpush1.msra.mxu0 0.0
        %1566 = vmatprep.subr.mxu0 0.0
        %1567 = vmatpush1.msra.mxu0 0.0
        %1568 = vmatprep.subr.mxu0 0.0
        %1569 = vmatpush1.msra.mxu0 0.0
        %1570 = vmatprep.subr.mxu0 0.0
        %1571 = vmatpush1.msra.mxu0 0.0
        %1572 = vmatprep.subr.mxu0 0.0
        %1573 = vmatpush1.msra.mxu0 0.0
        %1574 = vmatprep.subr.mxu0 0.0
        %1575 = vmatpush1.msra.mxu0 0.0
        %1576 = vmatprep.subr.mxu0 0.0
        %1577 = vmatpush1.msra.mxu0 0.0
        %1578 = vmatprep.subr.mxu0 0.0
        %1579 = vmatpush1.msra.mxu0 0.0
        %1580 = vmatprep.subr.mxu0 0.0
        %1581 = vmatpush1.msra.mxu0 0.0
        %1582 = vmatprep.subr.mxu0 0.0
        %1583 = vmatpush1.msra.mxu0 0.0
        %1584 = vmatprep.subr.mxu0 0.0
        %1585 = vmatpush1.msra.mxu0 0.0
        %1586 = vmatprep.subr.mxu0 0.0
        %1587 = vmatpush1.msra.mxu0 0.0
        %1588 = vmatprep.subr.mxu0 0.0
        %1589 = vmatpush1.msra.mxu0 0.0
        %1590 = vmatprep.subr.mxu0 0.0
        %1591 = vmatpush1.msra.mxu0 0.0
        %1592 = vmatprep.subr.mxu0 0.0
        %1593 = vmatpush1.msra.mxu0 0.0
        %1594 = vmatprep.subr.mxu0 0.0
        %1595 = vmatpush1.msra.mxu0 0.0
        %1596 = vmatprep.subr.mxu0 0.0
        %1597 = vmatpush1.msra.mxu0 0.0
        %1598 = vmatprep.mubr.f32.mxu0 0.0
        %1599 = vmatmul.mubr.f32.gmra.mrb[0].mxu0 %v1520
        %v1600 = vpop.f32.mrb[0].mxu0
        %v1601 = vadd.f32 0.0, %v1600
        %v1602 = vpop.f32.mrb[0].mxu0
        %v1603 = vadd.f32 0.0, %v1602
        %1604 = vmatprep.mubr.f32.mxu0 0.0
        %1605 = vmatmul.mubr.f32.gmra.mrb[0].mxu0 %v1522
        %v1606 = vpop.f32.mrb[0].mxu0
        %v1607 = vadd.f32 0.0, %v1606
        %v1608 = vpop.f32.mrb[0].mxu0
        %v1609 = vadd.f32 0.0, %v1608
        %1610 = vmatprep.mubr.f32.mxu0 0.0
        %1611 = vmatmul.mubr.f32.gmra.mrb[0].mxu0 %v1524
        %v1612 = vpop.f32.mrb[0].mxu0
        %v1613 = vadd.f32 0.0, %v1612
        %v1614 = vpop.f32.mrb[0].mxu0
        %v1615 = vadd.f32 0.0, %v1614
        %1616 = vmatprep.mubr.f32.mxu0 0.0
        %1617 = vmatmul.mubr.f32.gmra.mrb[0].mxu0 %v1526
        %v1618 = vpop.f32.mrb[0].mxu0
        %v1619 = vadd.f32 0.0, %v1618
        %v1620 = vpop.f32.mrb[0].mxu0
        %v1621 = vadd.f32 0.0, %v1620
        %1622 = vdwg.mxu0
        %v1623 = vadd.f32 %v1495, %v1601
        %v1624 = vadd.f32 %v1496, %v1603
        %v1625 = vadd.f32 %v1497, %v1607
        %v1626 = vadd.f32 %v1498, %v1609
        %v1627 = vadd.f32 %v1499, %v1613
        %v1628 = vadd.f32 %v1500, %v1615
        %v1629 = vadd.f32 %v1501, %v1619
        %v1630 = vadd.f32 %v1502, %v1621
        %s1631 = scalar_lea.vmem [#allocation2], 448
        %v1632 = vld [vmem:[%s1631] sm:$0xff]
        %v1633 = vld [vmem:[%s1631 + $0x8] sm:$0xff]
        %v1634 = vld [vmem:[%s1631 + $0x10] sm:$0xff]
        %v1635 = vld [vmem:[%s1631 + $0x18] sm:$0xff]
        %v1636 = vld [vmem:[%s1631 + $0x20] sm:$0xff]
        %v1637 = vld [vmem:[%s1631 + $0x28] sm:$0xff]
        %v1638 = vld [vmem:[%s1631 + $0x30] sm:$0x3]
        %v1639 = vld [vmem:[%s1631 + $0x38] sm:$0x3]
        %1640 = vrot.lane.b32.xlu0 %v1515, 127
        %v1641 = vpop.permute.xlu0 %1640
        %1642 = vrot.lane.b32.xlu0 %v1517, 127
        %v1643 = vpop.permute.xlu0 %1642
        %1644 = vrot.lane.b32.xlu0 %v1519, 127
        %v1645 = vpop.permute.xlu0 %1644
        %1646 = vrot.lane.b32.xlu0 %v1518, 127
        %v1647 = vpop.permute.xlu0 %1646
        %v1648 = vsel %vm783, %v1641, 0
        %v1650 = vsel %vm783, %v1643, 0
        %v1652 = vsel %vm783, %v1645, 0
        %v1654 = vsel %vm783, %v1647, 0
        %v1657 = vsel %vm792, %v1638, 0
        %v1660 = vsel %vm792, %v1639, 0
        %1662 = vmatprep.subr.mxu0 %v1633
        %1663 = vmatpush1.msra.mxu0 %v1632
        %1664 = vmatprep.subr.mxu0 %v1635
        %1665 = vmatpush1.msra.mxu0 %v1634
        %1666 = vmatprep.subr.mxu0 %v1637
        %1667 = vmatpush1.msra.mxu0 %v1636
        %1668 = vmatprep.subr.mxu0 %v1660
        %1669 = vmatpush1.msra.mxu0 %v1657
        %1670 = vmatprep.subr.mxu0 0.0
        %1671 = vmatpush1.msra.mxu0 0.0
        %1672 = vmatprep.subr.mxu0 0.0
        %1673 = vmatpush1.msra.mxu0 0.0
        %1674 = vmatprep.subr.mxu0 0.0
        %1675 = vmatpush1.msra.mxu0 0.0
        %1676 = vmatprep.subr.mxu0 0.0
        %1677 = vmatpush1.msra.mxu0 0.0
        %1678 = vmatprep.subr.mxu0 0.0
        %1679 = vmatpush1.msra.mxu0 0.0
        %1680 = vmatprep.subr.mxu0 0.0
        %1681 = vmatpush1.msra.mxu0 0.0
        %1682 = vmatprep.subr.mxu0 0.0
        %1683 = vmatpush1.msra.mxu0 0.0
        %1684 = vmatprep.subr.mxu0 0.0
        %1685 = vmatpush1.msra.mxu0 0.0
        %1686 = vmatprep.subr.mxu0 0.0
        %1687 = vmatpush1.msra.mxu0 0.0
        %1688 = vmatprep.subr.mxu0 0.0
        %1689 = vmatpush1.msra.mxu0 0.0
        %1690 = vmatprep.subr.mxu0 0.0
        %1691 = vmatpush1.msra.mxu0 0.0
        %1692 = vmatprep.subr.mxu0 0.0
        %1693 = vmatpush1.msra.mxu0 0.0
        %1694 = vmatprep.subr.mxu0 0.0
        %1695 = vmatpush1.msra.mxu0 0.0
        %1696 = vmatprep.subr.mxu0 0.0
        %1697 = vmatpush1.msra.mxu0 0.0
        %1698 = vmatprep.subr.mxu0 0.0
        %1699 = vmatpush1.msra.mxu0 0.0
        %1700 = vmatprep.subr.mxu0 0.0
        %1701 = vmatpush1.msra.mxu0 0.0
        %1702 = vmatprep.subr.mxu0 0.0
        %1703 = vmatpush1.msra.mxu0 0.0
        %1704 = vmatprep.subr.mxu0 0.0
        %1705 = vmatpush1.msra.mxu0 0.0
        %1706 = vmatprep.subr.mxu0 0.0
        %1707 = vmatpush1.msra.mxu0 0.0
        %1708 = vmatprep.subr.mxu0 0.0
        %1709 = vmatpush1.msra.mxu0 0.0
        %1710 = vmatprep.subr.mxu0 0.0
        %1711 = vmatpush1.msra.mxu0 0.0
        %1712 = vmatprep.subr.mxu0 0.0
        %1713 = vmatpush1.msra.mxu0 0.0
        %1714 = vmatprep.subr.mxu0 0.0
        %1715 = vmatpush1.msra.mxu0 0.0
        %1716 = vmatprep.subr.mxu0 0.0
        %1717 = vmatpush1.msra.mxu0 0.0
        %1718 = vmatprep.subr.mxu0 0.0
        %1719 = vmatpush1.msra.mxu0 0.0
        %1720 = vmatprep.subr.mxu0 0.0
        %1721 = vmatpush1.msra.mxu0 0.0
        %1722 = vmatprep.subr.mxu0 0.0
        %1723 = vmatpush1.msra.mxu0 0.0
        %1724 = vmatprep.subr.mxu0 0.0
        %1725 = vmatpush1.msra.mxu0 0.0
        %1726 = vmatprep.mubr.f32.mxu0 0.0
        %1727 = vmatmul.mubr.f32.gmra.mrb[0].mxu0 %v1648
        %v1728 = vpop.f32.mrb[0].mxu0
        %v1729 = vadd.f32 0.0, %v1728
        %v1730 = vpop.f32.mrb[0].mxu0
        %v1731 = vadd.f32 0.0, %v1730
        %1732 = vmatprep.mubr.f32.mxu0 0.0
        %1733 = vmatmul.mubr.f32.gmra.mrb[0].mxu0 %v1650
        %v1734 = vpop.f32.mrb[0].mxu0
        %v1735 = vadd.f32 0.0, %v1734
        %v1736 = vpop.f32.mrb[0].mxu0
        %v1737 = vadd.f32 0.0, %v1736
        %1738 = vmatprep.mubr.f32.mxu0 0.0
        %1739 = vmatmul.mubr.f32.gmra.mrb[0].mxu0 %v1652
        %v1740 = vpop.f32.mrb[0].mxu0
        %v1741 = vadd.f32 0.0, %v1740
        %v1742 = vpop.f32.mrb[0].mxu0
        %v1743 = vadd.f32 0.0, %v1742
        %1744 = vmatprep.mubr.f32.mxu0 0.0
        %1745 = vmatmul.mubr.f32.gmra.mrb[0].mxu0 %v1654
        %v1746 = vpop.f32.mrb[0].mxu0
        %v1747 = vadd.f32 0.0, %v1746
        %v1748 = vpop.f32.mrb[0].mxu0
        %v1749 = vadd.f32 0.0, %v1748
        %1750 = vdwg.mxu0
        %v1751 = vadd.f32 %v1623, %v1729
        %v1752 = vadd.f32 %v1624, %v1731
        %v1753 = vadd.f32 %v1625, %v1735
        %v1754 = vadd.f32 %v1626, %v1737
        %v1755 = vadd.f32 %v1627, %v1741
        %v1756 = vadd.f32 %v1628, %v1743
        %v1757 = vadd.f32 %v1629, %v1747
        %v1758 = vadd.f32 %v1630, %v1749
        %s1759 = scalar_lea.vmem [#allocation2], 512
        %v1760 = vld [vmem:[%s1759] sm:$0xff]
        %v1761 = vld [vmem:[%s1759 + $0x8] sm:$0xff]
        %v1762 = vld [vmem:[%s1759 + $0x10] sm:$0xff]
        %v1763 = vld [vmem:[%s1759 + $0x18] sm:$0xff]
        %v1764 = vld [vmem:[%s1759 + $0x20] sm:$0xff]
        %v1765 = vld [vmem:[%s1759 + $0x28] sm:$0xff]
        %v1766 = vld [vmem:[%s1759 + $0x30] sm:$0x3]
        %v1767 = vld [vmem:[%s1759 + $0x38] sm:$0x3]
        %1768 = vrot.lane.b32.xlu0 %v1515, 126
        %v1769 = vpop.permute.xlu0 %1768
        %1770 = vrot.lane.b32.xlu0 %v1517, 126
        %v1771 = vpop.permute.xlu0 %1770
        %1772 = vrot.lane.b32.xlu0 %v1519, 126
        %v1773 = vpop.permute.xlu0 %1772
        %1774 = vrot.lane.b32.xlu0 %v1518, 126
        %v1775 = vpop.permute.xlu0 %1774
        %v1776 = vsel %vm783, %v1769, 0
        %v1778 = vsel %vm783, %v1771, 0
        %v1780 = vsel %vm783, %v1773, 0
        %v1782 = vsel %vm783, %v1775, 0
        %v1785 = vsel %vm792, %v1766, 0
        %v1788 = vsel %vm792, %v1767, 0
        %1790 = vmatprep.subr.mxu0 %v1761
        %1791 = vmatpush1.msra.mxu0 %v1760
        %1792 = vmatprep.subr.mxu0 %v1763
        %1793 = vmatpush1.msra.mxu0 %v1762
        %1794 = vmatprep.subr.mxu0 %v1765
        %1795 = vmatpush1.msra.mxu0 %v1764
        %1796 = vmatprep.subr.mxu0 %v1788
        %1797 = vmatpush1.msra.mxu0 %v1785
        %1798 = vmatprep.subr.mxu0 0.0
        %1799 = vmatpush1.msra.mxu0 0.0
        %1800 = vmatprep.subr.mxu0 0.0
        %1801 = vmatpush1.msra.mxu0 0.0
        %1802 = vmatprep.subr.mxu0 0.0
        %1803 = vmatpush1.msra.mxu0 0.0
        %1804 = vmatprep.subr.mxu0 0.0
        %1805 = vmatpush1.msra.mxu0 0.0
        %1806 = vmatprep.subr.mxu0 0.0
        %1807 = vmatpush1.msra.mxu0 0.0
        %1808 = vmatprep.subr.mxu0 0.0
        %1809 = vmatpush1.msra.mxu0 0.0
        %1810 = vmatprep.subr.mxu0 0.0
        %1811 = vmatpush1.msra.mxu0 0.0
        %1812 = vmatprep.subr.mxu0 0.0
        %1813 = vmatpush1.msra.mxu0 0.0
        %1814 = vmatprep.subr.mxu0 0.0
        %1815 = vmatpush1.msra.mxu0 0.0
        %1816 = vmatprep.subr.mxu0 0.0
        %1817 = vmatpush1.msra.mxu0 0.0
        %1818 = vmatprep.subr.mxu0 0.0
        %1819 = vmatpush1.msra.mxu0 0.0
        %1820 = vmatprep.subr.mxu0 0.0
        %1821 = vmatpush1.msra.mxu0 0.0
        %1822 = vmatprep.subr.mxu0 0.0
        %1823 = vmatpush1.msra.mxu0 0.0
        %1824 = vmatprep.subr.mxu0 0.0
        %1825 = vmatpush1.msra.mxu0 0.0
        %1826 = vmatprep.subr.mxu0 0.0
        %1827 = vmatpush1.msra.mxu0 0.0
        %1828 = vmatprep.subr.mxu0 0.0
        %1829 = vmatpush1.msra.mxu0 0.0
        %1830 = vmatprep.subr.mxu0 0.0
        %1831 = vmatpush1.msra.mxu0 0.0
        %1832 = vmatprep.subr.mxu0 0.0
        %1833 = vmatpush1.msra.mxu0 0.0
        %1834 = vmatprep.subr.mxu0 0.0
        %1835 = vmatpush1.msra.mxu0 0.0
        %1836 = vmatprep.subr.mxu0 0.0
        %1837 = vmatpush1.msra.mxu0 0.0
        %1838 = vmatprep.subr.mxu0 0.0
        %1839 = vmatpush1.msra.mxu0 0.0
        %1840 = vmatprep.subr.mxu0 0.0
        %1841 = vmatpush1.msra.mxu0 0.0
        %1842 = vmatprep.subr.mxu0 0.0
        %1843 = vmatpush1.msra.mxu0 0.0
        %1844 = vmatprep.subr.mxu0 0.0
        %1845 = vmatpush1.msra.mxu0 0.0
        %1846 = vmatprep.subr.mxu0 0.0
        %1847 = vmatpush1.msra.mxu0 0.0
        %1848 = vmatprep.subr.mxu0 0.0
        %1849 = vmatpush1.msra.mxu0 0.0
        %1850 = vmatprep.subr.mxu0 0.0
        %1851 = vmatpush1.msra.mxu0 0.0
        %1852 = vmatprep.subr.mxu0 0.0
        %1853 = vmatpush1.msra.mxu0 0.0
        %1854 = vmatprep.mubr.f32.mxu0 0.0
        %1855 = vmatmul.mubr.f32.gmra.mrb[0].mxu0 %v1776
        %v1856 = vpop.f32.mrb[0].mxu0
        %v1857 = vadd.f32 0.0, %v1856
        %v1858 = vpop.f32.mrb[0].mxu0
        %v1859 = vadd.f32 0.0, %v1858
        %1860 = vmatprep.mubr.f32.mxu0 0.0
        %1861 = vmatmul.mubr.f32.gmra.mrb[0].mxu0 %v1778
        %v1862 = vpop.f32.mrb[0].mxu0
        %v1863 = vadd.f32 0.0, %v1862
        %v1864 = vpop.f32.mrb[0].mxu0
        %v1865 = vadd.f32 0.0, %v1864
        %1866 = vmatprep.mubr.f32.mxu0 0.0
        %1867 = vmatmul.mubr.f32.gmra.mrb[0].mxu0 %v1780
        %v1868 = vpop.f32.mrb[0].mxu0
        %v1869 = vadd.f32 0.0, %v1868
        %v1870 = vpop.f32.mrb[0].mxu0
        %v1871 = vadd.f32 0.0, %v1870
        %1872 = vmatprep.mubr.f32.mxu0 0.0
        %1873 = vmatmul.mubr.f32.gmra.mrb[0].mxu0 %v1782
        %v1874 = vpop.f32.mrb[0].mxu0
        %v1875 = vadd.f32 0.0, %v1874
        %v1876 = vpop.f32.mrb[0].mxu0
        %v1877 = vadd.f32 0.0, %v1876
        %1878 = vdwg.mxu0
        %v1879 = vadd.f32 %v1751, %v1857
        %v1880 = vadd.f32 %v1752, %v1859
        %v1881 = vadd.f32 %v1753, %v1863
        %v1882 = vadd.f32 %v1754, %v1865
        %v1883 = vadd.f32 %v1755, %v1869
        %v1884 = vadd.f32 %v1756, %v1871
        %v1885 = vadd.f32 %v1757, %v1875
        %v1886 = vadd.f32 %v1758, %v1877
        %v1887 = vld [vmem:[#allocation5] sm:$0x3]
        %v1889 = vlaneseq
        %v1890 = vshrl.u32 %v1889, 7
        %v1891 = vsub.s32 0, %v1890
        %v1892 = vrot.slane %v1887, %v1891
        %v1893 = vlaneseq
        %v1894 = vshrl.u32 %v1893, 7
        %v1895 = vsub.s32 1, %v1894
        %v1896 = vrot.slane %v1887, %v1895
        %v1899 = vadd.f32 %v1879, %v1892
        %v1900 = vadd.f32 %v1880, %v1896
        %v1901 = vadd.f32 %v1881, %v1892
        %v1902 = vadd.f32 %v1882, %v1896
        %v1903 = vadd.f32 %v1883, %v1892
        %v1904 = vadd.f32 %v1884, %v1896
        %v1905 = vadd.f32 %v1885, %v1892
        %v1906 = vadd.f32 %v1886, %v1896
        %v1907 = vmax.f32 %v1899, 0.0
        %v1908 = vmax.f32 %v1900, 0.0
        %v1909 = vmax.f32 %v1901, 0.0
        %v1910 = vmax.f32 %v1902, 0.0
        %v1911 = vmax.f32 %v1903, 0.0
        %v1912 = vmax.f32 %v1904, 0.0
        %v1913 = vmax.f32 %v1905, 0.0
        %v1914 = vmax.f32 %v1906, 0.0
        %v1915 = vld [vmem:[#allocation7] sm:$0xff]
        %v1916 = vld [vmem:[#allocation7 + $0x8] sm:$0xff]
        %v1917 = vld [vmem:[#allocation7 + $0x10] sm:$0xff]
        %v1918 = vld [vmem:[#allocation7 + $0x18] sm:$0xff]
        %v1919 = vld [vmem:[#allocation7 + $0x20] sm:$0xff]
        %v1920 = vld [vmem:[#allocation7 + $0x28] sm:$0xff]
        %v1921 = vld [vmem:[#allocation7 + $0x30] sm:$0xff]
        %v1922 = vld [vmem:[#allocation7 + $0x38] sm:$0xff]
        %v1923 = vld [vmem:[#allocation7 + $0x40] sm:$0xff]
        %v1924 = vld [vmem:[#allocation7 + $0x48] sm:$0xff]
        %v1925 = vld [vmem:[#allocation7 + $0x50] sm:$0xff]
        %v1926 = vld [vmem:[#allocation7 + $0x58] sm:$0xff]
        %v1927 = vld [vmem:[#allocation7 + $0x60] sm:$0xff]
        %v1928 = vld [vmem:[#allocation7 + $0x68] sm:$0xff]
        %v1929 = vld [vmem:[#allocation7 + $0x70] sm:$0xff]
        %v1930 = vld [vmem:[#allocation7 + $0x78] sm:$0xff]
        %v1931 = vld [vmem:[#allocation7 + $0x80] sm:$0xff]
        %v1932 = vld [vmem:[#allocation7 + $0x88] sm:$0xff]
        %v1933 = vld [vmem:[#allocation7 + $0x90] sm:$0xff]
        %v1934 = vld [vmem:[#allocation7 + $0x98] sm:$0xff]
        %v1935 = vld [vmem:[#allocation7 + $0xa0] sm:$0xff]
        %v1936 = vld [vmem:[#allocation7 + $0xa8] sm:$0xff]
        %v1937 = vld [vmem:[#allocation7 + $0xb0] sm:$0xff]
        %v1938 = vld [vmem:[#allocation7 + $0xb8] sm:$0xff]
        %v1939 = vld [vmem:[#allocation7 + $0xc0] sm:$0xff]
        %v1940 = vld [vmem:[#allocation7 + $0xc8] sm:$0xff]
        %v1941 = vld [vmem:[#allocation7 + $0xd0] sm:$0xff]
        %v1942 = vld [vmem:[#allocation7 + $0xd8] sm:$0xff]
        %v1943 = vld [vmem:[#allocation7 + $0xe0] sm:$0xff]
        %v1944 = vld [vmem:[#allocation7 + $0xe8] sm:$0xff]
        %v1945 = vld [vmem:[#allocation7 + $0xf0] sm:$0xff]
        %v1946 = vld [vmem:[#allocation7 + $0xf8] sm:$0xff]
        %v1947 = vld [vmem:[#allocation7 + $0x100] sm:$0xff]
        %v1948 = vld [vmem:[#allocation7 + $0x108] sm:$0xff]
        %v1949 = vld [vmem:[#allocation7 + $0x110] sm:$0xff]
        %v1950 = vld [vmem:[#allocation7 + $0x118] sm:$0xff]
        %v1951 = vld [vmem:[#allocation7 + $0x120] sm:$0xff]
        %v1952 = vld [vmem:[#allocation7 + $0x128] sm:$0xff]
        %v1953 = vld [vmem:[#allocation7 + $0x130] sm:$0xff]
        %v1954 = vld [vmem:[#allocation7 + $0x138] sm:$0xff]
        %v1955 = vld [vmem:[#allocation7 + $0x140] sm:$0xff]
        %v1956 = vld [vmem:[#allocation7 + $0x148] sm:$0xff]
        %v1957 = vld [vmem:[#allocation7 + $0x150] sm:$0xff]
        %v1958 = vld [vmem:[#allocation7 + $0x158] sm:$0xff]
        %v1959 = vld [vmem:[#allocation7 + $0x160] sm:$0xff]
        %v1960 = vld [vmem:[#allocation7 + $0x168] sm:$0xff]
        %v1961 = vld [vmem:[#allocation7 + $0x170] sm:$0xff]
        %v1962 = vld [vmem:[#allocation7 + $0x178] sm:$0xff]
        %v1963 = vld [vmem:[#allocation7 + $0x180] sm:$0xff]
        %v1964 = vld [vmem:[#allocation7 + $0x188] sm:$0xff]
        %v1965 = vld [vmem:[#allocation7 + $0x190] sm:$0xff]
        %v1966 = vld [vmem:[#allocation7 + $0x198] sm:$0xff]
        %v1967 = vld [vmem:[#allocation7 + $0x1a0] sm:$0xff]
        %v1968 = vld [vmem:[#allocation7 + $0x1a8] sm:$0xff]
        %v1969 = vld [vmem:[#allocation7 + $0x1b0] sm:$0xff]
        %v1970 = vld [vmem:[#allocation7 + $0x1b8] sm:$0xff]
        %v1971 = vld [vmem:[#allocation7 + $0x1c0] sm:$0xff]
        %v1972 = vld [vmem:[#allocation7 + $0x1c8] sm:$0xff]
        %v1973 = vld [vmem:[#allocation7 + $0x1d0] sm:$0xff]
        %v1974 = vld [vmem:[#allocation7 + $0x1d8] sm:$0xff]
        %v1975 = vld [vmem:[#allocation7 + $0x1e0] sm:$0xff]
        %v1976 = vld [vmem:[#allocation7 + $0x1e8] sm:$0xff]
        %v1977 = vld [vmem:[#allocation7 + $0x1f0] sm:$0xff]
        %v1978 = vld [vmem:[#allocation7 + $0x1f8] sm:$0xff]
        %v1979 = vld [vmem:[#allocation7 + $0x200] sm:$0xff]
        %v1980 = vld [vmem:[#allocation7 + $0x208] sm:$0xff]
        %v1981 = vld [vmem:[#allocation7 + $0x210] sm:$0xff]
        %v1982 = vld [vmem:[#allocation7 + $0x218] sm:$0xff]
        %v1983 = vld [vmem:[#allocation7 + $0x220] sm:$0xff]
        %v1984 = vld [vmem:[#allocation7 + $0x228] sm:$0xff]
        %v1985 = vld [vmem:[#allocation7 + $0x230] sm:$0xff]
        %v1986 = vld [vmem:[#allocation7 + $0x238] sm:$0xff]
        %v1987 = vld [vmem:[#allocation7 + $0x240] sm:$0xff]
        %v1988 = vld [vmem:[#allocation7 + $0x248] sm:$0xff]
        %v1989 = vld [vmem:[#allocation7 + $0x250] sm:$0xff]
        %v1990 = vld [vmem:[#allocation7 + $0x258] sm:$0xff]
        %v1991 = vld [vmem:[#allocation7 + $0x260] sm:$0xff]
        %v1992 = vld [vmem:[#allocation7 + $0x268] sm:$0xff]
        %v1993 = vld [vmem:[#allocation7 + $0x270] sm:$0xff]
        %v1994 = vld [vmem:[#allocation7 + $0x278] sm:$0xff]
        %v1995 = vld [vmem:[#allocation7 + $0x280] sm:$0xff]
        %v1996 = vld [vmem:[#allocation7 + $0x288] sm:$0xff]
        %v1997 = vld [vmem:[#allocation7 + $0x290] sm:$0xff]
        %v1998 = vld [vmem:[#allocation7 + $0x298] sm:$0xff]
        %v1999 = vld [vmem:[#allocation7 + $0x2a0] sm:$0xff]
        %v2000 = vld [vmem:[#allocation7 + $0x2a8] sm:$0xff]
        %v2001 = vld [vmem:[#allocation7 + $0x2b0] sm:$0xff]
        %v2002 = vld [vmem:[#allocation7 + $0x2b8] sm:$0xff]
        %v2003 = vld [vmem:[#allocation7 + $0x2c0] sm:$0xff]
        %v2004 = vld [vmem:[#allocation7 + $0x2c8] sm:$0xff]
        %v2005 = vld [vmem:[#allocation7 + $0x2d0] sm:$0xff]
        %v2006 = vld [vmem:[#allocation7 + $0x2d8] sm:$0xff]
        %v2007 = vld [vmem:[#allocation7 + $0x2e0] sm:$0xff]
        %v2008 = vld [vmem:[#allocation7 + $0x2e8] sm:$0xff]
        %v2009 = vld [vmem:[#allocation7 + $0x2f0] sm:$0xff]
        %v2010 = vld [vmem:[#allocation7 + $0x2f8] sm:$0xff]
        %s2011 = scalar_lea.vmem [#allocation7], 768
        %v2012 = vld [vmem:[%s2011] sm:$0xff]
        %v2013 = vld [vmem:[%s2011 + $0x8] sm:$0xff]
        %v2014 = vld [vmem:[%s2011 + $0x10] sm:$0xff]
        %v2015 = vld [vmem:[%s2011 + $0x18] sm:$0xff]
        %v2016 = vld [vmem:[%s2011 + $0x20] sm:$0xff]
        %v2017 = vld [vmem:[%s2011 + $0x28] sm:$0xff]
        %v2018 = vld [vmem:[%s2011 + $0x30] sm:$0xff]
        %v2019 = vld [vmem:[%s2011 + $0x38] sm:$0xff]
        %v2020 = vld [vmem:[%s2011 + $0x40] sm:$0xff]
        %v2021 = vld [vmem:[%s2011 + $0x48] sm:$0xff]
        %v2022 = vld [vmem:[%s2011 + $0x50] sm:$0xff]
        %v2023 = vld [vmem:[%s2011 + $0x58] sm:$0xff]
        %v2024 = vld [vmem:[%s2011 + $0x60] sm:$0xff]
        %v2025 = vld [vmem:[%s2011 + $0x68] sm:$0xff]
        %v2026 = vld [vmem:[%s2011 + $0x70] sm:$0xff]
        %v2027 = vld [vmem:[%s2011 + $0x78] sm:$0xff]
        %v2028 = vld [vmem:[%s2011 + $0x80] sm:$0xff]
        %v2029 = vld [vmem:[%s2011 + $0x88] sm:$0xff]
        %v2030 = vld [vmem:[%s2011 + $0x90] sm:$0xff]
        %v2031 = vld [vmem:[%s2011 + $0x98] sm:$0xff]
        %v2032 = vld [vmem:[%s2011 + $0xa0] sm:$0xff]
        %v2033 = vld [vmem:[%s2011 + $0xa8] sm:$0xff]
        %v2034 = vld [vmem:[%s2011 + $0xb0] sm:$0xff]
        %v2035 = vld [vmem:[%s2011 + $0xb8] sm:$0xff]
        %v2036 = vld [vmem:[%s2011 + $0xc0] sm:$0xff]
        %v2037 = vld [vmem:[%s2011 + $0xc8] sm:$0xff]
        %v2038 = vld [vmem:[%s2011 + $0xd0] sm:$0xff]
        %v2039 = vld [vmem:[%s2011 + $0xd8] sm:$0xff]
        %v2040 = vld [vmem:[%s2011 + $0xe0] sm:$0xff]
        %v2041 = vld [vmem:[%s2011 + $0xe8] sm:$0xff]
        %v2042 = vld [vmem:[%s2011 + $0xf0] sm:$0xff]
        %v2043 = vld [vmem:[%s2011 + $0xf8] sm:$0xff]
        %v2044 = vld [vmem:[%s2011 + $0x100] sm:$0xff]
        %v2045 = vld [vmem:[%s2011 + $0x108] sm:$0xff]
        %v2046 = vld [vmem:[%s2011 + $0x110] sm:$0xff]
        %v2047 = vld [vmem:[%s2011 + $0x118] sm:$0xff]
        %v2048 = vld [vmem:[%s2011 + $0x120] sm:$0xff]
        %v2049 = vld [vmem:[%s2011 + $0x128] sm:$0xff]
        %v2050 = vld [vmem:[%s2011 + $0x130] sm:$0xff]
        %v2051 = vld [vmem:[%s2011 + $0x138] sm:$0xff]
        %v2052 = vld [vmem:[%s2011 + $0x140] sm:$0xff]
        %v2053 = vld [vmem:[%s2011 + $0x148] sm:$0xff]
        %v2054 = vld [vmem:[%s2011 + $0x150] sm:$0xff]
        %v2055 = vld [vmem:[%s2011 + $0x158] sm:$0xff]
        %v2056 = vld [vmem:[%s2011 + $0x160] sm:$0xff]
        %v2057 = vld [vmem:[%s2011 + $0x168] sm:$0xff]
        %v2058 = vld [vmem:[%s2011 + $0x170] sm:$0xff]
        %v2059 = vld [vmem:[%s2011 + $0x178] sm:$0xff]
        %v2060 = vld [vmem:[%s2011 + $0x180] sm:$0xff]
        %v2061 = vld [vmem:[%s2011 + $0x188] sm:$0xff]
        %v2062 = vld [vmem:[%s2011 + $0x190] sm:$0xff]
        %v2063 = vld [vmem:[%s2011 + $0x198] sm:$0xff]
        %v2064 = vld [vmem:[%s2011 + $0x1a0] sm:$0xff]
        %v2065 = vld [vmem:[%s2011 + $0x1a8] sm:$0xff]
        %v2066 = vld [vmem:[%s2011 + $0x1b0] sm:$0xff]
        %v2067 = vld [vmem:[%s2011 + $0x1b8] sm:$0xff]
        %v2068 = vld [vmem:[%s2011 + $0x1c0] sm:$0xff]
        %v2069 = vld [vmem:[%s2011 + $0x1c8] sm:$0xff]
        %v2070 = vld [vmem:[%s2011 + $0x1d0] sm:$0xff]
        %v2071 = vld [vmem:[%s2011 + $0x1d8] sm:$0xff]
        %v2072 = vld [vmem:[%s2011 + $0x1e0] sm:$0xff]
        %v2073 = vld [vmem:[%s2011 + $0x1e8] sm:$0xff]
        %v2074 = vld [vmem:[%s2011 + $0x1f0] sm:$0xff]
        %v2075 = vld [vmem:[%s2011 + $0x1f8] sm:$0xff]
        %v2076 = vld [vmem:[%s2011 + $0x200] sm:$0xff]
        %v2077 = vld [vmem:[%s2011 + $0x208] sm:$0xff]
        %v2078 = vld [vmem:[%s2011 + $0x210] sm:$0xff]
        %v2079 = vld [vmem:[%s2011 + $0x218] sm:$0xff]
        %v2080 = vld [vmem:[%s2011 + $0x220] sm:$0xff]
        %v2081 = vld [vmem:[%s2011 + $0x228] sm:$0xff]
        %v2082 = vld [vmem:[%s2011 + $0x230] sm:$0xff]
        %v2083 = vld [vmem:[%s2011 + $0x238] sm:$0xff]
        %v2084 = vld [vmem:[%s2011 + $0x240] sm:$0xff]
        %v2085 = vld [vmem:[%s2011 + $0x248] sm:$0xff]
        %v2086 = vld [vmem:[%s2011 + $0x250] sm:$0xff]
        %v2087 = vld [vmem:[%s2011 + $0x258] sm:$0xff]
        %v2088 = vld [vmem:[%s2011 + $0x260] sm:$0xff]
        %v2089 = vld [vmem:[%s2011 + $0x268] sm:$0xff]
        %v2090 = vld [vmem:[%s2011 + $0x270] sm:$0xff]
        %v2091 = vld [vmem:[%s2011 + $0x278] sm:$0xff]
        %v2092 = vld [vmem:[%s2011 + $0x280] sm:$0xff]
        %v2093 = vld [vmem:[%s2011 + $0x288] sm:$0xff]
        %v2094 = vld [vmem:[%s2011 + $0x290] sm:$0xff]
        %v2095 = vld [vmem:[%s2011 + $0x298] sm:$0xff]
        %v2096 = vld [vmem:[%s2011 + $0x2a0] sm:$0xff]
        %v2097 = vld [vmem:[%s2011 + $0x2a8] sm:$0xff]
        %v2098 = vld [vmem:[%s2011 + $0x2b0] sm:$0xff]
        %v2099 = vld [vmem:[%s2011 + $0x2b8] sm:$0xff]
        %v2100 = vld [vmem:[%s2011 + $0x2c0] sm:$0xff]
        %v2101 = vld [vmem:[%s2011 + $0x2c8] sm:$0xff]
        %v2102 = vld [vmem:[%s2011 + $0x2d0] sm:$0xff]
        %v2103 = vld [vmem:[%s2011 + $0x2d8] sm:$0xff]
        %v2104 = vld [vmem:[%s2011 + $0x2e0] sm:$0xff]
        %v2105 = vld [vmem:[%s2011 + $0x2e8] sm:$0xff]
        %v2106 = vld [vmem:[%s2011 + $0x2f0] sm:$0xff]
        %v2107 = vld [vmem:[%s2011 + $0x2f8] sm:$0xff]
        %2114 = vrot.lane.b32.xlu0 %v1907, 120
        %v2115 = vpop.permute.xlu0 %2114
        %2116 = vrot.lane.b32.xlu0 %v1908, 120
        %v2117 = vpop.permute.xlu0 %2116
        %2118 = vrot.lane.b32.xlu0 %v1909, 120
        %v2119 = vpop.permute.xlu0 %2118
        %2120 = vrot.lane.b32.xlu0 %v1910, 120
        %v2121 = vpop.permute.xlu0 %2120
        %2122 = vrot.lane.b32.xlu0 %v1911, 120
        %v2123 = vpop.permute.xlu0 %2122
        %2124 = vrot.lane.b32.xlu0 %v1912, 120
        %v2125 = vpop.permute.xlu0 %2124
        %vm2126 = vcmask 982016
        %v2127 = vsel %vm2126, %v2115, %v2117
        %v2128 = vsel %vm2126, %v2119, %v2121
        %v2129 = vsel %vm2126, %v2123, %v2125
        %vm2133 = vcmask 523264
        %v2134 = vsel %vm2133, %v2117, 0
        %v2136 = vsel %vm2133, %v2121, 0
        %v2138 = vsel %vm2133, %v2125, 0
        %2140 = vmatprep.subr.mxu0 %v2013
        %2141 = vmatpush1.msra.mxu0 %v2012
        %2142 = vmatprep.subr.mxu0 %v2017
        %2143 = vmatpush1.msra.mxu0 %v2016
        %2144 = vmatprep.subr.mxu0 %v2021
        %2145 = vmatpush1.msra.mxu0 %v2020
        %2146 = vmatprep.subr.mxu0 %v2025
        %2147 = vmatpush1.msra.mxu0 %v2024
        %2148 = vmatprep.subr.mxu0 %v2029
        %2149 = vmatpush1.msra.mxu0 %v2028
        %2150 = vmatprep.subr.mxu0 %v2033
        %2151 = vmatpush1.msra.mxu0 %v2032
        %2152 = vmatprep.subr.mxu0 %v2037
        %2153 = vmatpush1.msra.mxu0 %v2036
        %2154 = vmatprep.subr.mxu0 %v2041
        %2155 = vmatpush1.msra.mxu0 %v2040
        %2156 = vmatprep.subr.mxu0 %v2045
        %2157 = vmatpush1.msra.mxu0 %v2044
        %2158 = vmatprep.subr.mxu0 %v2049
        %2159 = vmatpush1.msra.mxu0 %v2048
        %2160 = vmatprep.subr.mxu0 %v2053
        %2161 = vmatpush1.msra.mxu0 %v2052
        %2162 = vmatprep.subr.mxu0 %v2057
        %2163 = vmatpush1.msra.mxu0 %v2056
        %2164 = vmatprep.subr.mxu0 %v2061
        %2165 = vmatpush1.msra.mxu0 %v2060
        %2166 = vmatprep.subr.mxu0 %v2065
        %2167 = vmatpush1.msra.mxu0 %v2064
        %2168 = vmatprep.subr.mxu0 %v2069
        %2169 = vmatpush1.msra.mxu0 %v2068
        %2170 = vmatprep.subr.mxu0 %v2073
        %2171 = vmatpush1.msra.mxu0 %v2072
        %2172 = vmatprep.subr.mxu0 %v2077
        %2173 = vmatpush1.msra.mxu0 %v2076
        %2174 = vmatprep.subr.mxu0 %v2081
        %2175 = vmatpush1.msra.mxu0 %v2080
        %2176 = vmatprep.subr.mxu0 %v2085
        %2177 = vmatpush1.msra.mxu0 %v2084
        %2178 = vmatprep.subr.mxu0 %v2089
        %2179 = vmatpush1.msra.mxu0 %v2088
        %2180 = vmatprep.subr.mxu0 %v2093
        %2181 = vmatpush1.msra.mxu0 %v2092
        %2182 = vmatprep.subr.mxu0 %v2097
        %2183 = vmatpush1.msra.mxu0 %v2096
        %2184 = vmatprep.subr.mxu0 %v2101
        %2185 = vmatpush1.msra.mxu0 %v2100
        %2186 = vmatprep.subr.mxu0 %v2105
        %2187 = vmatpush1.msra.mxu0 %v2104
        %2188 = vmatprep.subr.mxu0 0.0
        %2189 = vmatpush1.msra.mxu0 0.0
        %2190 = vmatprep.subr.mxu0 0.0
        %2191 = vmatpush1.msra.mxu0 0.0
        %2192 = vmatprep.subr.mxu0 0.0
        %2193 = vmatpush1.msra.mxu0 0.0
        %2194 = vmatprep.subr.mxu0 0.0
        %2195 = vmatpush1.msra.mxu0 0.0
        %2196 = vmatprep.subr.mxu0 0.0
        %2197 = vmatpush1.msra.mxu0 0.0
        %2198 = vmatprep.subr.mxu0 0.0
        %2199 = vmatpush1.msra.mxu0 0.0
        %2200 = vmatprep.subr.mxu0 0.0
        %2201 = vmatpush1.msra.mxu0 0.0
        %2202 = vmatprep.subr.mxu0 0.0
        %2203 = vmatpush1.msra.mxu0 0.0
        %2204 = vmatprep.mubr.f32.mxu0 %v2134
        %2205 = vmatmul.mubr.f32.gmra.mrb[0].mxu0 %v2127
        %v2206 = vpop.f32.mrb[0].mxu0
        %v2207 = vadd.f32 0.0, %v2206
        %v2208 = vpop.f32.mrb[0].mxu0
        %v2209 = vadd.f32 0.0, %v2208
        %2210 = vmatprep.mubr.f32.mxu0 %v2136
        %2211 = vmatmul.mubr.f32.gmra.mrb[0].mxu0 %v2128
        %v2212 = vpop.f32.mrb[0].mxu0
        %v2213 = vadd.f32 0.0, %v2212
        %v2214 = vpop.f32.mrb[0].mxu0
        %v2215 = vadd.f32 0.0, %v2214
        %2216 = vmatprep.mubr.f32.mxu0 %v2138
        %2217 = vmatmul.mubr.f32.gmra.mrb[0].mxu0 %v2129
        %v2218 = vpop.f32.mrb[0].mxu0
        %v2219 = vadd.f32 0.0, %v2218
        %v2220 = vpop.f32.mrb[0].mxu0
        %v2221 = vadd.f32 0.0, %v2220
        %2222 = vdwg.mxu0
        %2223 = vmatprep.subr.mxu0 %v2015
        %2224 = vmatpush1.msra.mxu0 %v2014
        %2225 = vmatprep.subr.mxu0 %v2019
        %2226 = vmatpush1.msra.mxu0 %v2018
        %2227 = vmatprep.subr.mxu0 %v2023
        %2228 = vmatpush1.msra.mxu0 %v2022
        %2229 = vmatprep.subr.mxu0 %v2027
        %2230 = vmatpush1.msra.mxu0 %v2026
        %2231 = vmatprep.subr.mxu0 %v2031
        %2232 = vmatpush1.msra.mxu0 %v2030
        %2233 = vmatprep.subr.mxu0 %v2035
        %2234 = vmatpush1.msra.mxu0 %v2034
        %2235 = vmatprep.subr.mxu0 %v2039
        %2236 = vmatpush1.msra.mxu0 %v2038
        %2237 = vmatprep.subr.mxu0 %v2043
        %2238 = vmatpush1.msra.mxu0 %v2042
        %2239 = vmatprep.subr.mxu0 %v2047
        %2240 = vmatpush1.msra.mxu0 %v2046
        %2241 = vmatprep.subr.mxu0 %v2051
        %2242 = vmatpush1.msra.mxu0 %v2050
        %2243 = vmatprep.subr.mxu0 %v2055
        %2244 = vmatpush1.msra.mxu0 %v2054
        %2245 = vmatprep.subr.mxu0 %v2059
        %2246 = vmatpush1.msra.mxu0 %v2058
        %2247 = vmatprep.subr.mxu0 %v2063
        %2248 = vmatpush1.msra.mxu0 %v2062
        %2249 = vmatprep.subr.mxu0 %v2067
        %2250 = vmatpush1.msra.mxu0 %v2066
        %2251 = vmatprep.subr.mxu0 %v2071
        %2252 = vmatpush1.msra.mxu0 %v2070
        %2253 = vmatprep.subr.mxu0 %v2075
        %2254 = vmatpush1.msra.mxu0 %v2074
        %2255 = vmatprep.subr.mxu0 %v2079
        %2256 = vmatpush1.msra.mxu0 %v2078
        %2257 = vmatprep.subr.mxu0 %v2083
        %2258 = vmatpush1.msra.mxu0 %v2082
        %2259 = vmatprep.subr.mxu0 %v2087
        %2260 = vmatpush1.msra.mxu0 %v2086
        %2261 = vmatprep.subr.mxu0 %v2091
        %2262 = vmatpush1.msra.mxu0 %v2090
        %2263 = vmatprep.subr.mxu0 %v2095
        %2264 = vmatpush1.msra.mxu0 %v2094
        %2265 = vmatprep.subr.mxu0 %v2099
        %2266 = vmatpush1.msra.mxu0 %v2098
        %2267 = vmatprep.subr.mxu0 %v2103
        %2268 = vmatpush1.msra.mxu0 %v2102
        %2269 = vmatprep.subr.mxu0 %v2107
        %2270 = vmatpush1.msra.mxu0 %v2106
        %2271 = vmatprep.subr.mxu0 0.0
        %2272 = vmatpush1.msra.mxu0 0.0
        %2273 = vmatprep.subr.mxu0 0.0
        %2274 = vmatpush1.msra.mxu0 0.0
        %2275 = vmatprep.subr.mxu0 0.0
        %2276 = vmatpush1.msra.mxu0 0.0
        %2277 = vmatprep.subr.mxu0 0.0
        %2278 = vmatpush1.msra.mxu0 0.0
        %2279 = vmatprep.subr.mxu0 0.0
        %2280 = vmatpush1.msra.mxu0 0.0
        %2281 = vmatprep.subr.mxu0 0.0
        %2282 = vmatpush1.msra.mxu0 0.0
        %2283 = vmatprep.subr.mxu0 0.0
        %2284 = vmatpush1.msra.mxu0 0.0
        %2285 = vmatprep.subr.mxu0 0.0
        %2286 = vmatpush1.msra.mxu0 0.0
        %2287 = vmatprep.mubr.f32.mxu0 %v2134
        %2288 = vmatmul.mubr.f32.gmra.mrb[0].mxu0 %v2127
        %v2289 = vpop.f32.mrb[0].mxu0
        %v2290 = vadd.f32 0.0, %v2289
        %v2291 = vpop.f32.mrb[0].mxu0
        %v2292 = vadd.f32 0.0, %v2291
        %2293 = vmatprep.mubr.f32.mxu0 %v2136
        %2294 = vmatmul.mubr.f32.gmra.mrb[0].mxu0 %v2128
        %v2295 = vpop.f32.mrb[0].mxu0
        %v2296 = vadd.f32 0.0, %v2295
        %v2297 = vpop.f32.mrb[0].mxu0
        %v2298 = vadd.f32 0.0, %v2297
        %2299 = vmatprep.mubr.f32.mxu0 %v2138
        %2300 = vmatmul.mubr.f32.gmra.mrb[0].mxu0 %v2129
        %v2301 = vpop.f32.mrb[0].mxu0
        %v2302 = vadd.f32 0.0, %v2301
        %v2303 = vpop.f32.mrb[0].mxu0
        %v2304 = vadd.f32 0.0, %v2303
        %2305 = vdwg.mxu0
        %v2306 = vsel %vm2133, %v1908, 0
        %v2308 = vsel %vm2133, %v1910, 0
        %v2310 = vsel %vm2133, %v1912, 0
        %2312 = vmatprep.subr.mxu0 %v1916
        %2313 = vmatpush1.msra.mxu0 %v1915
        %2314 = vmatprep.subr.mxu0 %v1920
        %2315 = vmatpush1.msra.mxu0 %v1919
        %2316 = vmatprep.subr.mxu0 %v1924
        %2317 = vmatpush1.msra.mxu0 %v1923
        %2318 = vmatprep.subr.mxu0 %v1928
        %2319 = vmatpush1.msra.mxu0 %v1927
        %2320 = vmatprep.subr.mxu0 %v1932
        %2321 = vmatpush1.msra.mxu0 %v1931
        %2322 = vmatprep.subr.mxu0 %v1936
        %2323 = vmatpush1.msra.mxu0 %v1935
        %2324 = vmatprep.subr.mxu0 %v1940
        %2325 = vmatpush1.msra.mxu0 %v1939
        %2326 = vmatprep.subr.mxu0 %v1944
        %2327 = vmatpush1.msra.mxu0 %v1943
        %2328 = vmatprep.subr.mxu0 %v1948
        %2329 = vmatpush1.msra.mxu0 %v1947
        %2330 = vmatprep.subr.mxu0 %v1952
        %2331 = vmatpush1.msra.mxu0 %v1951
        %2332 = vmatprep.subr.mxu0 %v1956
        %2333 = vmatpush1.msra.mxu0 %v1955
        %2334 = vmatprep.subr.mxu0 %v1960
        %2335 = vmatpush1.msra.mxu0 %v1959
        %2336 = vmatprep.subr.mxu0 %v1964
        %2337 = vmatpush1.msra.mxu0 %v1963
        %2338 = vmatprep.subr.mxu0 %v1968
        %2339 = vmatpush1.msra.mxu0 %v1967
        %2340 = vmatprep.subr.mxu0 %v1972
        %2341 = vmatpush1.msra.mxu0 %v1971
        %2342 = vmatprep.subr.mxu0 %v1976
        %2343 = vmatpush1.msra.mxu0 %v1975
        %2344 = vmatprep.subr.mxu0 %v1980
        %2345 = vmatpush1.msra.mxu0 %v1979
        %2346 = vmatprep.subr.mxu0 %v1984
        %2347 = vmatpush1.msra.mxu0 %v1983
        %2348 = vmatprep.subr.mxu0 %v1988
        %2349 = vmatpush1.msra.mxu0 %v1987
        %2350 = vmatprep.subr.mxu0 %v1992
        %2351 = vmatpush1.msra.mxu0 %v1991
        %2352 = vmatprep.subr.mxu0 %v1996
        %2353 = vmatpush1.msra.mxu0 %v1995
        %2354 = vmatprep.subr.mxu0 %v2000
        %2355 = vmatpush1.msra.mxu0 %v1999
        %2356 = vmatprep.subr.mxu0 %v2004
        %2357 = vmatpush1.msra.mxu0 %v2003
        %2358 = vmatprep.subr.mxu0 %v2008
        %2359 = vmatpush1.msra.mxu0 %v2007
        %2360 = vmatprep.subr.mxu0 0.0
        %2361 = vmatpush1.msra.mxu0 0.0
        %2362 = vmatprep.subr.mxu0 0.0
        %2363 = vmatpush1.msra.mxu0 0.0
        %2364 = vmatprep.subr.mxu0 0.0
        %2365 = vmatpush1.msra.mxu0 0.0
        %2366 = vmatprep.subr.mxu0 0.0
        %2367 = vmatpush1.msra.mxu0 0.0
        %2368 = vmatprep.subr.mxu0 0.0
        %2369 = vmatpush1.msra.mxu0 0.0
        %2370 = vmatprep.subr.mxu0 0.0
        %2371 = vmatpush1.msra.mxu0 0.0
        %2372 = vmatprep.subr.mxu0 0.0
        %2373 = vmatpush1.msra.mxu0 0.0
        %2374 = vmatprep.subr.mxu0 0.0
        %2375 = vmatpush1.msra.mxu0 0.0
        %2376 = vmatprep.mubr.f32.mxu0 %v2306
        %2377 = vmatmul.mubr.f32.gmra.mrb[0].mxu0 %v1907
        %v2378 = vpop.f32.mrb[0].mxu0
        %v2379 = vadd.f32 %v2207, %v2378
        %v2380 = vpop.f32.mrb[0].mxu0
        %v2381 = vadd.f32 %v2209, %v2380
        %2382 = vmatprep.mubr.f32.mxu0 %v2308
        %2383 = vmatmul.mubr.f32.gmra.mrb[0].mxu0 %v1909
        %v2384 = vpop.f32.mrb[0].mxu0
        %v2385 = vadd.f32 %v2213, %v2384
        %v2386 = vpop.f32.mrb[0].mxu0
        %v2387 = vadd.f32 %v2215, %v2386
        %2388 = vmatprep.mubr.f32.mxu0 %v2310
        %2389 = vmatmul.mubr.f32.gmra.mrb[0].mxu0 %v1911
        %v2390 = vpop.f32.mrb[0].mxu0
        %v2391 = vadd.f32 %v2219, %v2390
        %v2392 = vpop.f32.mrb[0].mxu0
        %v2393 = vadd.f32 %v2221, %v2392
        %2394 = vdwg.mxu0
        %2395 = vmatprep.subr.mxu0 %v1918
        %2396 = vmatpush1.msra.mxu0 %v1917
        %2397 = vmatprep.subr.mxu0 %v1922
        %2398 = vmatpush1.msra.mxu0 %v1921
        %2399 = vmatprep.subr.mxu0 %v1926
        %2400 = vmatpush1.msra.mxu0 %v1925
        %2401 = vmatprep.subr.mxu0 %v1930
        %2402 = vmatpush1.msra.mxu0 %v1929
        %2403 = vmatprep.subr.mxu0 %v1934
        %2404 = vmatpush1.msra.mxu0 %v1933
        %2405 = vmatprep.subr.mxu0 %v1938
        %2406 = vmatpush1.msra.mxu0 %v1937
        %2407 = vmatprep.subr.mxu0 %v1942
        %2408 = vmatpush1.msra.mxu0 %v1941
        %2409 = vmatprep.subr.mxu0 %v1946
        %2410 = vmatpush1.msra.mxu0 %v1945
        %2411 = vmatprep.subr.mxu0 %v1950
        %2412 = vmatpush1.msra.mxu0 %v1949
        %2413 = vmatprep.subr.mxu0 %v1954
        %2414 = vmatpush1.msra.mxu0 %v1953
        %2415 = vmatprep.subr.mxu0 %v1958
        %2416 = vmatpush1.msra.mxu0 %v1957
        %2417 = vmatprep.subr.mxu0 %v1962
        %2418 = vmatpush1.msra.mxu0 %v1961
        %2419 = vmatprep.subr.mxu0 %v1966
        %2420 = vmatpush1.msra.mxu0 %v1965
        %2421 = vmatprep.subr.mxu0 %v1970
        %2422 = vmatpush1.msra.mxu0 %v1969
        %2423 = vmatprep.subr.mxu0 %v1974
        %2424 = vmatpush1.msra.mxu0 %v1973
        %2425 = vmatprep.subr.mxu0 %v1978
        %2426 = vmatpush1.msra.mxu0 %v1977
        %2427 = vmatprep.subr.mxu0 %v1982
        %2428 = vmatpush1.msra.mxu0 %v1981
        %2429 = vmatprep.subr.mxu0 %v1986
        %2430 = vmatpush1.msra.mxu0 %v1985
        %2431 = vmatprep.subr.mxu0 %v1990
        %2432 = vmatpush1.msra.mxu0 %v1989
        %2433 = vmatprep.subr.mxu0 %v1994
        %2434 = vmatpush1.msra.mxu0 %v1993
        %2435 = vmatprep.subr.mxu0 %v1998
        %2436 = vmatpush1.msra.mxu0 %v1997
        %2437 = vmatprep.subr.mxu0 %v2002
        %2438 = vmatpush1.msra.mxu0 %v2001
        %2439 = vmatprep.subr.mxu0 %v2006
        %2440 = vmatpush1.msra.mxu0 %v2005
        %2441 = vmatprep.subr.mxu0 %v2010
        %2442 = vmatpush1.msra.mxu0 %v2009
        %2443 = vmatprep.subr.mxu0 0.0
        %2444 = vmatpush1.msra.mxu0 0.0
        %2445 = vmatprep.subr.mxu0 0.0
        %2446 = vmatpush1.msra.mxu0 0.0
        %2447 = vmatprep.subr.mxu0 0.0
        %2448 = vmatpush1.msra.mxu0 0.0
        %2449 = vmatprep.subr.mxu0 0.0
        %2450 = vmatpush1.msra.mxu0 0.0
        %2451 = vmatprep.subr.mxu0 0.0
        %2452 = vmatpush1.msra.mxu0 0.0
        %2453 = vmatprep.subr.mxu0 0.0
        %2454 = vmatpush1.msra.mxu0 0.0
        %2455 = vmatprep.subr.mxu0 0.0
        %2456 = vmatpush1.msra.mxu0 0.0
        %2457 = vmatprep.subr.mxu0 0.0
        %2458 = vmatpush1.msra.mxu0 0.0
        %2459 = vmatprep.mubr.f32.mxu0 %v2306
        %2460 = vmatmul.mubr.f32.gmra.mrb[0].mxu0 %v1907
        %v2461 = vpop.f32.mrb[0].mxu0
        %v2462 = vadd.f32 %v2290, %v2461
        %v2463 = vpop.f32.mrb[0].mxu0
        %v2464 = vadd.f32 %v2292, %v2463
        %2465 = vmatprep.mubr.f32.mxu0 %v2308
        %2466 = vmatmul.mubr.f32.gmra.mrb[0].mxu0 %v1909
        %v2467 = vpop.f32.mrb[0].mxu0
        %v2468 = vadd.f32 %v2296, %v2467
        %v2469 = vpop.f32.mrb[0].mxu0
        %v2470 = vadd.f32 %v2298, %v2469
        %2471 = vmatprep.mubr.f32.mxu0 %v2310
        %2472 = vmatmul.mubr.f32.gmra.mrb[0].mxu0 %v1911
        %v2473 = vpop.f32.mrb[0].mxu0
        %v2474 = vadd.f32 %v2302, %v2473
        %v2475 = vpop.f32.mrb[0].mxu0
        %v2476 = vadd.f32 %v2304, %v2475
        %2477 = vdwg.mxu0
        %s2478 = scalar_lea.vmem [#allocation7], 1536
        %v2479 = vld [vmem:[%s2478] sm:$0xff]
        %v2480 = vld [vmem:[%s2478 + $0x8] sm:$0xff]
        %v2481 = vld [vmem:[%s2478 + $0x10] sm:$0xff]
        %v2482 = vld [vmem:[%s2478 + $0x18] sm:$0xff]
        %v2483 = vld [vmem:[%s2478 + $0x20] sm:$0xff]
        %v2484 = vld [vmem:[%s2478 + $0x28] sm:$0xff]
        %v2485 = vld [vmem:[%s2478 + $0x30] sm:$0xff]
        %v2486 = vld [vmem:[%s2478 + $0x38] sm:$0xff]
        %v2487 = vld [vmem:[%s2478 + $0x40] sm:$0xff]
        %v2488 = vld [vmem:[%s2478 + $0x48] sm:$0xff]
        %v2489 = vld [vmem:[%s2478 + $0x50] sm:$0xff]
        %v2490 = vld [vmem:[%s2478 + $0x58] sm:$0xff]
        %v2491 = vld [vmem:[%s2478 + $0x60] sm:$0xff]
        %v2492 = vld [vmem:[%s2478 + $0x68] sm:$0xff]
        %v2493 = vld [vmem:[%s2478 + $0x70] sm:$0xff]
        %v2494 = vld [vmem:[%s2478 + $0x78] sm:$0xff]
        %v2495 = vld [vmem:[%s2478 + $0x80] sm:$0xff]
        %v2496 = vld [vmem:[%s2478 + $0x88] sm:$0xff]
        %v2497 = vld [vmem:[%s2478 + $0x90] sm:$0xff]
        %v2498 = vld [vmem:[%s2478 + $0x98] sm:$0xff]
        %v2499 = vld [vmem:[%s2478 + $0xa0] sm:$0xff]
        %v2500 = vld [vmem:[%s2478 + $0xa8] sm:$0xff]
        %v2501 = vld [vmem:[%s2478 + $0xb0] sm:$0xff]
        %v2502 = vld [vmem:[%s2478 + $0xb8] sm:$0xff]
        %v2503 = vld [vmem:[%s2478 + $0xc0] sm:$0xff]
        %v2504 = vld [vmem:[%s2478 + $0xc8] sm:$0xff]
        %v2505 = vld [vmem:[%s2478 + $0xd0] sm:$0xff]
        %v2506 = vld [vmem:[%s2478 + $0xd8] sm:$0xff]
        %v2507 = vld [vmem:[%s2478 + $0xe0] sm:$0xff]
        %v2508 = vld [vmem:[%s2478 + $0xe8] sm:$0xff]
        %v2509 = vld [vmem:[%s2478 + $0xf0] sm:$0xff]
        %v2510 = vld [vmem:[%s2478 + $0xf8] sm:$0xff]
        %v2511 = vld [vmem:[%s2478 + $0x100] sm:$0xff]
        %v2512 = vld [vmem:[%s2478 + $0x108] sm:$0xff]
        %v2513 = vld [vmem:[%s2478 + $0x110] sm:$0xff]
        %v2514 = vld [vmem:[%s2478 + $0x118] sm:$0xff]
        %v2515 = vld [vmem:[%s2478 + $0x120] sm:$0xff]
        %v2516 = vld [vmem:[%s2478 + $0x128] sm:$0xff]
        %v2517 = vld [vmem:[%s2478 + $0x130] sm:$0xff]
        %v2518 = vld [vmem:[%s2478 + $0x138] sm:$0xff]
        %v2519 = vld [vmem:[%s2478 + $0x140] sm:$0xff]
        %v2520 = vld [vmem:[%s2478 + $0x148] sm:$0xff]
        %v2521 = vld [vmem:[%s2478 + $0x150] sm:$0xff]
        %v2522 = vld [vmem:[%s2478 + $0x158] sm:$0xff]
        %v2523 = vld [vmem:[%s2478 + $0x160] sm:$0xff]
        %v2524 = vld [vmem:[%s2478 + $0x168] sm:$0xff]
        %v2525 = vld [vmem:[%s2478 + $0x170] sm:$0xff]
        %v2526 = vld [vmem:[%s2478 + $0x178] sm:$0xff]
        %v2527 = vld [vmem:[%s2478 + $0x180] sm:$0xff]
        %v2528 = vld [vmem:[%s2478 + $0x188] sm:$0xff]
        %v2529 = vld [vmem:[%s2478 + $0x190] sm:$0xff]
        %v2530 = vld [vmem:[%s2478 + $0x198] sm:$0xff]
        %v2531 = vld [vmem:[%s2478 + $0x1a0] sm:$0xff]
        %v2532 = vld [vmem:[%s2478 + $0x1a8] sm:$0xff]
        %v2533 = vld [vmem:[%s2478 + $0x1b0] sm:$0xff]
        %v2534 = vld [vmem:[%s2478 + $0x1b8] sm:$0xff]
        %v2535 = vld [vmem:[%s2478 + $0x1c0] sm:$0xff]
        %v2536 = vld [vmem:[%s2478 + $0x1c8] sm:$0xff]
        %v2537 = vld [vmem:[%s2478 + $0x1d0] sm:$0xff]
        %v2538 = vld [vmem:[%s2478 + $0x1d8] sm:$0xff]
        %v2539 = vld [vmem:[%s2478 + $0x1e0] sm:$0xff]
        %v2540 = vld [vmem:[%s2478 + $0x1e8] sm:$0xff]
        %v2541 = vld [vmem:[%s2478 + $0x1f0] sm:$0xff]
        %v2542 = vld [vmem:[%s2478 + $0x1f8] sm:$0xff]
        %v2543 = vld [vmem:[%s2478 + $0x200] sm:$0xff]
        %v2544 = vld [vmem:[%s2478 + $0x208] sm:$0xff]
        %v2545 = vld [vmem:[%s2478 + $0x210] sm:$0xff]
        %v2546 = vld [vmem:[%s2478 + $0x218] sm:$0xff]
        %v2547 = vld [vmem:[%s2478 + $0x220] sm:$0xff]
        %v2548 = vld [vmem:[%s2478 + $0x228] sm:$0xff]
        %v2549 = vld [vmem:[%s2478 + $0x230] sm:$0xff]
        %v2550 = vld [vmem:[%s2478 + $0x238] sm:$0xff]
        %v2551 = vld [vmem:[%s2478 + $0x240] sm:$0xff]
        %v2552 = vld [vmem:[%s2478 + $0x248] sm:$0xff]
        %v2553 = vld [vmem:[%s2478 + $0x250] sm:$0xff]
        %v2554 = vld [vmem:[%s2478 + $0x258] sm:$0xff]
        %v2555 = vld [vmem:[%s2478 + $0x260] sm:$0xff]
        %v2556 = vld [vmem:[%s2478 + $0x268] sm:$0xff]
        %v2557 = vld [vmem:[%s2478 + $0x270] sm:$0xff]
        %v2558 = vld [vmem:[%s2478 + $0x278] sm:$0xff]
        %v2559 = vld [vmem:[%s2478 + $0x280] sm:$0xff]
        %v2560 = vld [vmem:[%s2478 + $0x288] sm:$0xff]
        %v2561 = vld [vmem:[%s2478 + $0x290] sm:$0xff]
        %v2562 = vld [vmem:[%s2478 + $0x298] sm:$0xff]
        %v2563 = vld [vmem:[%s2478 + $0x2a0] sm:$0xff]
        %v2564 = vld [vmem:[%s2478 + $0x2a8] sm:$0xff]
        %v2565 = vld [vmem:[%s2478 + $0x2b0] sm:$0xff]
        %v2566 = vld [vmem:[%s2478 + $0x2b8] sm:$0xff]
        %v2567 = vld [vmem:[%s2478 + $0x2c0] sm:$0xff]
        %v2568 = vld [vmem:[%s2478 + $0x2c8] sm:$0xff]
        %v2569 = vld [vmem:[%s2478 + $0x2d0] sm:$0xff]
        %v2570 = vld [vmem:[%s2478 + $0x2d8] sm:$0xff]
        %v2571 = vld [vmem:[%s2478 + $0x2e0] sm:$0xff]
        %v2572 = vld [vmem:[%s2478 + $0x2e8] sm:$0xff]
        %v2573 = vld [vmem:[%s2478 + $0x2f0] sm:$0xff]
        %v2574 = vld [vmem:[%s2478 + $0x2f8] sm:$0xff]
        %2575 = vrot.lane.b32.xlu0 %v1907, 112
        %v2576 = vpop.permute.xlu0 %2575
        %2577 = vrot.lane.b32.xlu0 %v1908, 112
        %v2578 = vpop.permute.xlu0 %2577
        %2579 = vrot.lane.b32.xlu0 %v1909, 112
        %v2580 = vpop.permute.xlu0 %2579
        %2581 = vrot.lane.b32.xlu0 %v1910, 112
        %v2582 = vpop.permute.xlu0 %2581
        %2583 = vrot.lane.b32.xlu0 %v1911, 112
        %v2584 = vpop.permute.xlu0 %2583
        %2585 = vrot.lane.b32.xlu0 %v1912, 112
        %v2586 = vpop.permute.xlu0 %2585
        %vm2587 = vcmask 916480
        %v2588 = vsel %vm2587, %v2576, %v2578
        %v2589 = vsel %vm2587, %v2580, %v2582
        %v2590 = vsel %vm2587, %v2584, %v2586
        %v2594 = vsel %vm2133, %v2578, 0
        %v2596 = vsel %vm2133, %v2582, 0
        %v2598 = vsel %vm2133, %v2586, 0
        %2600 = vmatprep.subr.mxu0 %v2480
        %2601 = vmatpush1.msra.mxu0 %v2479
        %2602 = vmatprep.subr.mxu0 %v2484
        %2603 = vmatpush1.msra.mxu0 %v2483
        %2604 = vmatprep.subr.mxu0 %v2488
        %2605 = vmatpush1.msra.mxu0 %v2487
        %2606 = vmatprep.subr.mxu0 %v2492
        %2607 = vmatpush1.msra.mxu0 %v2491
        %2608 = vmatprep.subr.mxu0 %v2496
        %2609 = vmatpush1.msra.mxu0 %v2495
        %2610 = vmatprep.subr.mxu0 %v2500
        %2611 = vmatpush1.msra.mxu0 %v2499
        %2612 = vmatprep.subr.mxu0 %v2504
        %2613 = vmatpush1.msra.mxu0 %v2503
        %2614 = vmatprep.subr.mxu0 %v2508
        %2615 = vmatpush1.msra.mxu0 %v2507
        %2616 = vmatprep.subr.mxu0 %v2512
        %2617 = vmatpush1.msra.mxu0 %v2511
        %2618 = vmatprep.subr.mxu0 %v2516
        %2619 = vmatpush1.msra.mxu0 %v2515
        %2620 = vmatprep.subr.mxu0 %v2520
        %2621 = vmatpush1.msra.mxu0 %v2519
        %2622 = vmatprep.subr.mxu0 %v2524
        %2623 = vmatpush1.msra.mxu0 %v2523
        %2624 = vmatprep.subr.mxu0 %v2528
        %2625 = vmatpush1.msra.mxu0 %v2527
        %2626 = vmatprep.subr.mxu0 %v2532
        %2627 = vmatpush1.msra.mxu0 %v2531
        %2628 = vmatprep.subr.mxu0 %v2536
        %2629 = vmatpush1.msra.mxu0 %v2535
        %2630 = vmatprep.subr.mxu0 %v2540
        %2631 = vmatpush1.msra.mxu0 %v2539
        %2632 = vmatprep.subr.mxu0 %v2544
        %2633 = vmatpush1.msra.mxu0 %v2543
        %2634 = vmatprep.subr.mxu0 %v2548
        %2635 = vmatpush1.msra.mxu0 %v2547
        %2636 = vmatprep.subr.mxu0 %v2552
        %2637 = vmatpush1.msra.mxu0 %v2551
        %2638 = vmatprep.subr.mxu0 %v2556
        %2639 = vmatpush1.msra.mxu0 %v2555
        %2640 = vmatprep.subr.mxu0 %v2560
        %2641 = vmatpush1.msra.mxu0 %v2559
        %2642 = vmatprep.subr.mxu0 %v2564
        %2643 = vmatpush1.msra.mxu0 %v2563
        %2644 = vmatprep.subr.mxu0 %v2568
        %2645 = vmatpush1.msra.mxu0 %v2567
        %2646 = vmatprep.subr.mxu0 %v2572
        %2647 = vmatpush1.msra.mxu0 %v2571
        %2648 = vmatprep.subr.mxu0 0.0
        %2649 = vmatpush1.msra.mxu0 0.0
        %2650 = vmatprep.subr.mxu0 0.0
        %2651 = vmatpush1.msra.mxu0 0.0
        %2652 = vmatprep.subr.mxu0 0.0
        %2653 = vmatpush1.msra.mxu0 0.0
        %2654 = vmatprep.subr.mxu0 0.0
        %2655 = vmatpush1.msra.mxu0 0.0
        %2656 = vmatprep.subr.mxu0 0.0
        %2657 = vmatpush1.msra.mxu0 0.0
        %2658 = vmatprep.subr.mxu0 0.0
        %2659 = vmatpush1.msra.mxu0 0.0
        %2660 = vmatprep.subr.mxu0 0.0
        %2661 = vmatpush1.msra.mxu0 0.0
        %2662 = vmatprep.subr.mxu0 0.0
        %2663 = vmatpush1.msra.mxu0 0.0
        %2664 = vmatprep.mubr.f32.mxu0 %v2594
        %2665 = vmatmul.mubr.f32.gmra.mrb[0].mxu0 %v2588
        %v2666 = vpop.f32.mrb[0].mxu0
        %v2667 = vadd.f32 0.0, %v2666
        %v2668 = vpop.f32.mrb[0].mxu0
        %v2669 = vadd.f32 0.0, %v2668
        %2670 = vmatprep.mubr.f32.mxu0 %v2596
        %2671 = vmatmul.mubr.f32.gmra.mrb[0].mxu0 %v2589
        %v2672 = vpop.f32.mrb[0].mxu0
        %v2673 = vadd.f32 0.0, %v2672
        %v2674 = vpop.f32.mrb[0].mxu0
        %v2675 = vadd.f32 0.0, %v2674
        %2676 = vmatprep.mubr.f32.mxu0 %v2598
        %2677 = vmatmul.mubr.f32.gmra.mrb[0].mxu0 %v2590
        %v2678 = vpop.f32.mrb[0].mxu0
        %v2679 = vadd.f32 0.0, %v2678
        %v2680 = vpop.f32.mrb[0].mxu0
        %v2681 = vadd.f32 0.0, %v2680
        %2682 = vdwg.mxu0
        %2683 = vmatprep.subr.mxu0 %v2482
        %2684 = vmatpush1.msra.mxu0 %v2481
        %2685 = vmatprep.subr.mxu0 %v2486
        %2686 = vmatpush1.msra.mxu0 %v2485
        %2687 = vmatprep.subr.mxu0 %v2490
        %2688 = vmatpush1.msra.mxu0 %v2489
        %2689 = vmatprep.subr.mxu0 %v2494
        %2690 = vmatpush1.msra.mxu0 %v2493
        %2691 = vmatprep.subr.mxu0 %v2498
        %2692 = vmatpush1.msra.mxu0 %v2497
        %2693 = vmatprep.subr.mxu0 %v2502
        %2694 = vmatpush1.msra.mxu0 %v2501
        %2695 = vmatprep.subr.mxu0 %v2506
        %2696 = vmatpush1.msra.mxu0 %v2505
        %2697 = vmatprep.subr.mxu0 %v2510
        %2698 = vmatpush1.msra.mxu0 %v2509
        %2699 = vmatprep.subr.mxu0 %v2514
        %2700 = vmatpush1.msra.mxu0 %v2513
        %2701 = vmatprep.subr.mxu0 %v2518
        %2702 = vmatpush1.msra.mxu0 %v2517
        %2703 = vmatprep.subr.mxu0 %v2522
        %2704 = vmatpush1.msra.mxu0 %v2521
        %2705 = vmatprep.subr.mxu0 %v2526
        %2706 = vmatpush1.msra.mxu0 %v2525
        %2707 = vmatprep.subr.mxu0 %v2530
        %2708 = vmatpush1.msra.mxu0 %v2529
        %2709 = vmatprep.subr.mxu0 %v2534
        %2710 = vmatpush1.msra.mxu0 %v2533
        %2711 = vmatprep.subr.mxu0 %v2538
        %2712 = vmatpush1.msra.mxu0 %v2537
        %2713 = vmatprep.subr.mxu0 %v2542
        %2714 = vmatpush1.msra.mxu0 %v2541
        %2715 = vmatprep.subr.mxu0 %v2546
        %2716 = vmatpush1.msra.mxu0 %v2545
        %2717 = vmatprep.subr.mxu0 %v2550
        %2718 = vmatpush1.msra.mxu0 %v2549
        %2719 = vmatprep.subr.mxu0 %v2554
        %2720 = vmatpush1.msra.mxu0 %v2553
        %2721 = vmatprep.subr.mxu0 %v2558
        %2722 = vmatpush1.msra.mxu0 %v2557
        %2723 = vmatprep.subr.mxu0 %v2562
        %2724 = vmatpush1.msra.mxu0 %v2561
        %2725 = vmatprep.subr.mxu0 %v2566
        %2726 = vmatpush1.msra.mxu0 %v2565
        %2727 = vmatprep.subr.mxu0 %v2570
        %2728 = vmatpush1.msra.mxu0 %v2569
        %2729 = vmatprep.subr.mxu0 %v2574
        %2730 = vmatpush1.msra.mxu0 %v2573
        %2731 = vmatprep.subr.mxu0 0.0
        %2732 = vmatpush1.msra.mxu0 0.0
        %2733 = vmatprep.subr.mxu0 0.0
        %2734 = vmatpush1.msra.mxu0 0.0
        %2735 = vmatprep.subr.mxu0 0.0
        %2736 = vmatpush1.msra.mxu0 0.0
        %2737 = vmatprep.subr.mxu0 0.0
        %2738 = vmatpush1.msra.mxu0 0.0
        %2739 = vmatprep.subr.mxu0 0.0
        %2740 = vmatpush1.msra.mxu0 0.0
        %2741 = vmatprep.subr.mxu0 0.0
        %2742 = vmatpush1.msra.mxu0 0.0
        %2743 = vmatprep.subr.mxu0 0.0
        %2744 = vmatpush1.msra.mxu0 0.0
        %2745 = vmatprep.subr.mxu0 0.0
        %2746 = vmatpush1.msra.mxu0 0.0
        %2747 = vmatprep.mubr.f32.mxu0 %v2594
        %2748 = vmatmul.mubr.f32.gmra.mrb[0].mxu0 %v2588
        %v2749 = vpop.f32.mrb[0].mxu0
        %v2750 = vadd.f32 0.0, %v2749
        %v2751 = vpop.f32.mrb[0].mxu0
        %v2752 = vadd.f32 0.0, %v2751
        %2753 = vmatprep.mubr.f32.mxu0 %v2596
        %2754 = vmatmul.mubr.f32.gmra.mrb[0].mxu0 %v2589
        %v2755 = vpop.f32.mrb[0].mxu0
        %v2756 = vadd.f32 0.0, %v2755
        %v2757 = vpop.f32.mrb[0].mxu0
        %v2758 = vadd.f32 0.0, %v2757
        %2759 = vmatprep.mubr.f32.mxu0 %v2598
        %2760 = vmatmul.mubr.f32.gmra.mrb[0].mxu0 %v2590
        %v2761 = vpop.f32.mrb[0].mxu0
        %v2762 = vadd.f32 0.0, %v2761
        %v2763 = vpop.f32.mrb[0].mxu0
        %v2764 = vadd.f32 0.0, %v2763
        %2765 = vdwg.mxu0
        %v2766 = vadd.f32 %v2379, %v2667
        %v2767 = vadd.f32 %v2381, %v2669
        %v2768 = vadd.f32 %v2462, %v2750
        %v2769 = vadd.f32 %v2464, %v2752
        %v2770 = vadd.f32 %v2385, %v2673
        %v2771 = vadd.f32 %v2387, %v2675
        %v2772 = vadd.f32 %v2468, %v2756
        %v2773 = vadd.f32 %v2470, %v2758
        %v2774 = vadd.f32 %v2391, %v2679
        %v2775 = vadd.f32 %v2393, %v2681
        %v2776 = vadd.f32 %v2474, %v2762
        %v2777 = vadd.f32 %v2476, %v2764
        %s2778 = scalar_lea.vmem [#allocation7], 2304
        %v2779 = vld [vmem:[%s2778] sm:$0xff]
        %v2780 = vld [vmem:[%s2778 + $0x8] sm:$0xff]
        %v2781 = vld [vmem:[%s2778 + $0x10] sm:$0xff]
        %v2782 = vld [vmem:[%s2778 + $0x18] sm:$0xff]
        %v2783 = vld [vmem:[%s2778 + $0x20] sm:$0xff]
        %v2784 = vld [vmem:[%s2778 + $0x28] sm:$0xff]
        %v2785 = vld [vmem:[%s2778 + $0x30] sm:$0xff]
        %v2786 = vld [vmem:[%s2778 + $0x38] sm:$0xff]
        %v2787 = vld [vmem:[%s2778 + $0x40] sm:$0xff]
        %v2788 = vld [vmem:[%s2778 + $0x48] sm:$0xff]
        %v2789 = vld [vmem:[%s2778 + $0x50] sm:$0xff]
        %v2790 = vld [vmem:[%s2778 + $0x58] sm:$0xff]
        %v2791 = vld [vmem:[%s2778 + $0x60] sm:$0xff]
        %v2792 = vld [vmem:[%s2778 + $0x68] sm:$0xff]
        %v2793 = vld [vmem:[%s2778 + $0x70] sm:$0xff]
        %v2794 = vld [vmem:[%s2778 + $0x78] sm:$0xff]
        %v2795 = vld [vmem:[%s2778 + $0x80] sm:$0xff]
        %v2796 = vld [vmem:[%s2778 + $0x88] sm:$0xff]
        %v2797 = vld [vmem:[%s2778 + $0x90] sm:$0xff]
        %v2798 = vld [vmem:[%s2778 + $0x98] sm:$0xff]
        %v2799 = vld [vmem:[%s2778 + $0xa0] sm:$0xff]
        %v2800 = vld [vmem:[%s2778 + $0xa8] sm:$0xff]
        %v2801 = vld [vmem:[%s2778 + $0xb0] sm:$0xff]
        %v2802 = vld [vmem:[%s2778 + $0xb8] sm:$0xff]
        %v2803 = vld [vmem:[%s2778 + $0xc0] sm:$0xff]
        %v2804 = vld [vmem:[%s2778 + $0xc8] sm:$0xff]
        %v2805 = vld [vmem:[%s2778 + $0xd0] sm:$0xff]
        %v2806 = vld [vmem:[%s2778 + $0xd8] sm:$0xff]
        %v2807 = vld [vmem:[%s2778 + $0xe0] sm:$0xff]
        %v2808 = vld [vmem:[%s2778 + $0xe8] sm:$0xff]
        %v2809 = vld [vmem:[%s2778 + $0xf0] sm:$0xff]
        %v2810 = vld [vmem:[%s2778 + $0xf8] sm:$0xff]
        %v2811 = vld [vmem:[%s2778 + $0x100] sm:$0xff]
        %v2812 = vld [vmem:[%s2778 + $0x108] sm:$0xff]
        %v2813 = vld [vmem:[%s2778 + $0x110] sm:$0xff]
        %v2814 = vld [vmem:[%s2778 + $0x118] sm:$0xff]
        %v2815 = vld [vmem:[%s2778 + $0x120] sm:$0xff]
        %v2816 = vld [vmem:[%s2778 + $0x128] sm:$0xff]
        %v2817 = vld [vmem:[%s2778 + $0x130] sm:$0xff]
        %v2818 = vld [vmem:[%s2778 + $0x138] sm:$0xff]
        %v2819 = vld [vmem:[%s2778 + $0x140] sm:$0xff]
        %v2820 = vld [vmem:[%s2778 + $0x148] sm:$0xff]
        %v2821 = vld [vmem:[%s2778 + $0x150] sm:$0xff]
        %v2822 = vld [vmem:[%s2778 + $0x158] sm:$0xff]
        %v2823 = vld [vmem:[%s2778 + $0x160] sm:$0xff]
        %v2824 = vld [vmem:[%s2778 + $0x168] sm:$0xff]
        %v2825 = vld [vmem:[%s2778 + $0x170] sm:$0xff]
        %v2826 = vld [vmem:[%s2778 + $0x178] sm:$0xff]
        %v2827 = vld [vmem:[%s2778 + $0x180] sm:$0xff]
        %v2828 = vld [vmem:[%s2778 + $0x188] sm:$0xff]
        %v2829 = vld [vmem:[%s2778 + $0x190] sm:$0xff]
        %v2830 = vld [vmem:[%s2778 + $0x198] sm:$0xff]
        %v2831 = vld [vmem:[%s2778 + $0x1a0] sm:$0xff]
        %v2832 = vld [vmem:[%s2778 + $0x1a8] sm:$0xff]
        %v2833 = vld [vmem:[%s2778 + $0x1b0] sm:$0xff]
        %v2834 = vld [vmem:[%s2778 + $0x1b8] sm:$0xff]
        %v2835 = vld [vmem:[%s2778 + $0x1c0] sm:$0xff]
        %v2836 = vld [vmem:[%s2778 + $0x1c8] sm:$0xff]
        %v2837 = vld [vmem:[%s2778 + $0x1d0] sm:$0xff]
        %v2838 = vld [vmem:[%s2778 + $0x1d8] sm:$0xff]
        %v2839 = vld [vmem:[%s2778 + $0x1e0] sm:$0xff]
        %v2840 = vld [vmem:[%s2778 + $0x1e8] sm:$0xff]
        %v2841 = vld [vmem:[%s2778 + $0x1f0] sm:$0xff]
        %v2842 = vld [vmem:[%s2778 + $0x1f8] sm:$0xff]
        %v2843 = vld [vmem:[%s2778 + $0x200] sm:$0xff]
        %v2844 = vld [vmem:[%s2778 + $0x208] sm:$0xff]
        %v2845 = vld [vmem:[%s2778 + $0x210] sm:$0xff]
        %v2846 = vld [vmem:[%s2778 + $0x218] sm:$0xff]
        %v2847 = vld [vmem:[%s2778 + $0x220] sm:$0xff]
        %v2848 = vld [vmem:[%s2778 + $0x228] sm:$0xff]
        %v2849 = vld [vmem:[%s2778 + $0x230] sm:$0xff]
        %v2850 = vld [vmem:[%s2778 + $0x238] sm:$0xff]
        %v2851 = vld [vmem:[%s2778 + $0x240] sm:$0xff]
        %v2852 = vld [vmem:[%s2778 + $0x248] sm:$0xff]
        %v2853 = vld [vmem:[%s2778 + $0x250] sm:$0xff]
        %v2854 = vld [vmem:[%s2778 + $0x258] sm:$0xff]
        %v2855 = vld [vmem:[%s2778 + $0x260] sm:$0xff]
        %v2856 = vld [vmem:[%s2778 + $0x268] sm:$0xff]
        %v2857 = vld [vmem:[%s2778 + $0x270] sm:$0xff]
        %v2858 = vld [vmem:[%s2778 + $0x278] sm:$0xff]
        %v2859 = vld [vmem:[%s2778 + $0x280] sm:$0xff]
        %v2860 = vld [vmem:[%s2778 + $0x288] sm:$0xff]
        %v2861 = vld [vmem:[%s2778 + $0x290] sm:$0xff]
        %v2862 = vld [vmem:[%s2778 + $0x298] sm:$0xff]
        %v2863 = vld [vmem:[%s2778 + $0x2a0] sm:$0xff]
        %v2864 = vld [vmem:[%s2778 + $0x2a8] sm:$0xff]
        %v2865 = vld [vmem:[%s2778 + $0x2b0] sm:$0xff]
        %v2866 = vld [vmem:[%s2778 + $0x2b8] sm:$0xff]
        %v2867 = vld [vmem:[%s2778 + $0x2c0] sm:$0xff]
        %v2868 = vld [vmem:[%s2778 + $0x2c8] sm:$0xff]
        %v2869 = vld [vmem:[%s2778 + $0x2d0] sm:$0xff]
        %v2870 = vld [vmem:[%s2778 + $0x2d8] sm:$0xff]
        %v2871 = vld [vmem:[%s2778 + $0x2e0] sm:$0xff]
        %v2872 = vld [vmem:[%s2778 + $0x2e8] sm:$0xff]
        %v2873 = vld [vmem:[%s2778 + $0x2f0] sm:$0xff]
        %v2874 = vld [vmem:[%s2778 + $0x2f8] sm:$0xff]
        %v2877 = vrot.slane %v1907, 1
        %v2878 = vrot.slane %v1909, 1
        %v2879 = vsel %vm1128, %v2877, %v2878
        %v2880 = vrot.slane %v1908, 1
        %v2881 = vrot.slane %v1910, 1
        %v2882 = vsel %vm1128, %v2880, %v2881
        %v2883 = vrot.slane %v1911, 1
        %v2884 = vsel %vm1128, %v2878, %v2883
        %v2885 = vrot.slane %v1912, 1
        %v2886 = vsel %vm1128, %v2881, %v2885
        %v2887 = vrot.slane %v1913, 1
        %v2888 = vsel %vm1128, %v2883, %v2887
        %v2889 = vrot.slane %v1914, 1
        %v2890 = vsel %vm1128, %v2885, %v2889
        %v2894 = vsel %vm2133, %v2882, 0
        %v2896 = vsel %vm2133, %v2886, 0
        %v2898 = vsel %vm2133, %v2890, 0
        %2900 = vmatprep.subr.mxu0 %v2780
        %2901 = vmatpush1.msra.mxu0 %v2779
        %2902 = vmatprep.subr.mxu0 %v2784
        %2903 = vmatpush1.msra.mxu0 %v2783
        %2904 = vmatprep.subr.mxu0 %v2788
        %2905 = vmatpush1.msra.mxu0 %v2787
        %2906 = vmatprep.subr.mxu0 %v2792
        %2907 = vmatpush1.msra.mxu0 %v2791
        %2908 = vmatprep.subr.mxu0 %v2796
        %2909 = vmatpush1.msra.mxu0 %v2795
        %2910 = vmatprep.subr.mxu0 %v2800
        %2911 = vmatpush1.msra.mxu0 %v2799
        %2912 = vmatprep.subr.mxu0 %v2804
        %2913 = vmatpush1.msra.mxu0 %v2803
        %2914 = vmatprep.subr.mxu0 %v2808
        %2915 = vmatpush1.msra.mxu0 %v2807
        %2916 = vmatprep.subr.mxu0 %v2812
        %2917 = vmatpush1.msra.mxu0 %v2811
        %2918 = vmatprep.subr.mxu0 %v2816
        %2919 = vmatpush1.msra.mxu0 %v2815
        %2920 = vmatprep.subr.mxu0 %v2820
        %2921 = vmatpush1.msra.mxu0 %v2819
        %2922 = vmatprep.subr.mxu0 %v2824
        %2923 = vmatpush1.msra.mxu0 %v2823
        %2924 = vmatprep.subr.mxu0 %v2828
        %2925 = vmatpush1.msra.mxu0 %v2827
        %2926 = vmatprep.subr.mxu0 %v2832
        %2927 = vmatpush1.msra.mxu0 %v2831
        %2928 = vmatprep.subr.mxu0 %v2836
        %2929 = vmatpush1.msra.mxu0 %v2835
        %2930 = vmatprep.subr.mxu0 %v2840
        %2931 = vmatpush1.msra.mxu0 %v2839
        %2932 = vmatprep.subr.mxu0 %v2844
        %2933 = vmatpush1.msra.mxu0 %v2843
        %2934 = vmatprep.subr.mxu0 %v2848
        %2935 = vmatpush1.msra.mxu0 %v2847
        %2936 = vmatprep.subr.mxu0 %v2852
        %2937 = vmatpush1.msra.mxu0 %v2851
        %2938 = vmatprep.subr.mxu0 %v2856
        %2939 = vmatpush1.msra.mxu0 %v2855
        %2940 = vmatprep.subr.mxu0 %v2860
        %2941 = vmatpush1.msra.mxu0 %v2859
        %2942 = vmatprep.subr.mxu0 %v2864
        %2943 = vmatpush1.msra.mxu0 %v2863
        %2944 = vmatprep.subr.mxu0 %v2868
        %2945 = vmatpush1.msra.mxu0 %v2867
        %2946 = vmatprep.subr.mxu0 %v2872
        %2947 = vmatpush1.msra.mxu0 %v2871
        %2948 = vmatprep.subr.mxu0 0.0
        %2949 = vmatpush1.msra.mxu0 0.0
        %2950 = vmatprep.subr.mxu0 0.0
        %2951 = vmatpush1.msra.mxu0 0.0
        %2952 = vmatprep.subr.mxu0 0.0
        %2953 = vmatpush1.msra.mxu0 0.0
        %2954 = vmatprep.subr.mxu0 0.0
        %2955 = vmatpush1.msra.mxu0 0.0
        %2956 = vmatprep.subr.mxu0 0.0
        %2957 = vmatpush1.msra.mxu0 0.0
        %2958 = vmatprep.subr.mxu0 0.0
        %2959 = vmatpush1.msra.mxu0 0.0
        %2960 = vmatprep.subr.mxu0 0.0
        %2961 = vmatpush1.msra.mxu0 0.0
        %2962 = vmatprep.subr.mxu0 0.0
        %2963 = vmatpush1.msra.mxu0 0.0
        %2964 = vmatprep.mubr.f32.mxu0 %v2894
        %2965 = vmatmul.mubr.f32.gmra.mrb[0].mxu0 %v2879
        %v2966 = vpop.f32.mrb[0].mxu0
        %v2967 = vadd.f32 0.0, %v2966
        %v2968 = vpop.f32.mrb[0].mxu0
        %v2969 = vadd.f32 0.0, %v2968
        %2970 = vmatprep.mubr.f32.mxu0 %v2896
        %2971 = vmatmul.mubr.f32.gmra.mrb[0].mxu0 %v2884
        %v2972 = vpop.f32.mrb[0].mxu0
        %v2973 = vadd.f32 0.0, %v2972
        %v2974 = vpop.f32.mrb[0].mxu0
        %v2975 = vadd.f32 0.0, %v2974
        %2976 = vmatprep.mubr.f32.mxu0 %v2898
        %2977 = vmatmul.mubr.f32.gmra.mrb[0].mxu0 %v2888
        %v2978 = vpop.f32.mrb[0].mxu0
        %v2979 = vadd.f32 0.0, %v2978
        %v2980 = vpop.f32.mrb[0].mxu0
        %v2981 = vadd.f32 0.0, %v2980
        %2982 = vdwg.mxu0
        %2983 = vmatprep.subr.mxu0 %v2782
        %2984 = vmatpush1.msra.mxu0 %v2781
        %2985 = vmatprep.subr.mxu0 %v2786
        %2986 = vmatpush1.msra.mxu0 %v2785
        %2987 = vmatprep.subr.mxu0 %v2790
        %2988 = vmatpush1.msra.mxu0 %v2789
        %2989 = vmatprep.subr.mxu0 %v2794
        %2990 = vmatpush1.msra.mxu0 %v2793
        %2991 = vmatprep.subr.mxu0 %v2798
        %2992 = vmatpush1.msra.mxu0 %v2797
        %2993 = vmatprep.subr.mxu0 %v2802
        %2994 = vmatpush1.msra.mxu0 %v2801
        %2995 = vmatprep.subr.mxu0 %v2806
        %2996 = vmatpush1.msra.mxu0 %v2805
        %2997 = vmatprep.subr.mxu0 %v2810
        %2998 = vmatpush1.msra.mxu0 %v2809
        %2999 = vmatprep.subr.mxu0 %v2814
        %3000 = vmatpush1.msra.mxu0 %v2813
        %3001 = vmatprep.subr.mxu0 %v2818
        %3002 = vmatpush1.msra.mxu0 %v2817
        %3003 = vmatprep.subr.mxu0 %v2822
        %3004 = vmatpush1.msra.mxu0 %v2821
        %3005 = vmatprep.subr.mxu0 %v2826
        %3006 = vmatpush1.msra.mxu0 %v2825
        %3007 = vmatprep.subr.mxu0 %v2830
        %3008 = vmatpush1.msra.mxu0 %v2829
        %3009 = vmatprep.subr.mxu0 %v2834
        %3010 = vmatpush1.msra.mxu0 %v2833
        %3011 = vmatprep.subr.mxu0 %v2838
        %3012 = vmatpush1.msra.mxu0 %v2837
        %3013 = vmatprep.subr.mxu0 %v2842
        %3014 = vmatpush1.msra.mxu0 %v2841
        %3015 = vmatprep.subr.mxu0 %v2846
        %3016 = vmatpush1.msra.mxu0 %v2845
        %3017 = vmatprep.subr.mxu0 %v2850
        %3018 = vmatpush1.msra.mxu0 %v2849
        %3019 = vmatprep.subr.mxu0 %v2854
        %3020 = vmatpush1.msra.mxu0 %v2853
        %3021 = vmatprep.subr.mxu0 %v2858
        %3022 = vmatpush1.msra.mxu0 %v2857
        %3023 = vmatprep.subr.mxu0 %v2862
        %3024 = vmatpush1.msra.mxu0 %v2861
        %3025 = vmatprep.subr.mxu0 %v2866
        %3026 = vmatpush1.msra.mxu0 %v2865
        %3027 = vmatprep.subr.mxu0 %v2870
        %3028 = vmatpush1.msra.mxu0 %v2869
        %3029 = vmatprep.subr.mxu0 %v2874
        %3030 = vmatpush1.msra.mxu0 %v2873
        %3031 = vmatprep.subr.mxu0 0.0
        %3032 = vmatpush1.msra.mxu0 0.0
        %3033 = vmatprep.subr.mxu0 0.0
        %3034 = vmatpush1.msra.mxu0 0.0
        %3035 = vmatprep.subr.mxu0 0.0
        %3036 = vmatpush1.msra.mxu0 0.0
        %3037 = vmatprep.subr.mxu0 0.0
        %3038 = vmatpush1.msra.mxu0 0.0
        %3039 = vmatprep.subr.mxu0 0.0
        %3040 = vmatpush1.msra.mxu0 0.0
        %3041 = vmatprep.subr.mxu0 0.0
        %3042 = vmatpush1.msra.mxu0 0.0
        %3043 = vmatprep.subr.mxu0 0.0
        %3044 = vmatpush1.msra.mxu0 0.0
        %3045 = vmatprep.subr.mxu0 0.0
        %3046 = vmatpush1.msra.mxu0 0.0
        %3047 = vmatprep.mubr.f32.mxu0 %v2894
        %3048 = vmatmul.mubr.f32.gmra.mrb[0].mxu0 %v2879
        %v3049 = vpop.f32.mrb[0].mxu0
        %v3050 = vadd.f32 0.0, %v3049
        %v3051 = vpop.f32.mrb[0].mxu0
        %v3052 = vadd.f32 0.0, %v3051
        %3053 = vmatprep.mubr.f32.mxu0 %v2896
        %3054 = vmatmul.mubr.f32.gmra.mrb[0].mxu0 %v2884
        %v3055 = vpop.f32.mrb[0].mxu0
        %v3056 = vadd.f32 0.0, %v3055
        %v3057 = vpop.f32.mrb[0].mxu0
        %v3058 = vadd.f32 0.0, %v3057
        %3059 = vmatprep.mubr.f32.mxu0 %v2898
        %3060 = vmatmul.mubr.f32.gmra.mrb[0].mxu0 %v2888
        %v3061 = vpop.f32.mrb[0].mxu0
        %v3062 = vadd.f32 0.0, %v3061
        %v3063 = vpop.f32.mrb[0].mxu0
        %v3064 = vadd.f32 0.0, %v3063
        %3065 = vdwg.mxu0
        %v3066 = vadd.f32 %v2766, %v2967
        %v3067 = vadd.f32 %v2767, %v2969
        %v3068 = vadd.f32 %v2768, %v3050
        %v3069 = vadd.f32 %v2769, %v3052
        %v3070 = vadd.f32 %v2770, %v2973
        %v3071 = vadd.f32 %v2771, %v2975
        %v3072 = vadd.f32 %v2772, %v3056
        %v3073 = vadd.f32 %v2773, %v3058
        %v3074 = vadd.f32 %v2774, %v2979
        %v3075 = vadd.f32 %v2775, %v2981
        %v3076 = vadd.f32 %v2776, %v3062
        %v3077 = vadd.f32 %v2777, %v3064
        %s3078 = scalar_lea.vmem [#allocation7], 3072
        %v3079 = vld [vmem:[%s3078] sm:$0xff]
        %v3080 = vld [vmem:[%s3078 + $0x8] sm:$0xff]
        %v3081 = vld [vmem:[%s3078 + $0x10] sm:$0xff]
        %v3082 = vld [vmem:[%s3078 + $0x18] sm:$0xff]
        %v3083 = vld [vmem:[%s3078 + $0x20] sm:$0xff]
        %v3084 = vld [vmem:[%s3078 + $0x28] sm:$0xff]
        %v3085 = vld [vmem:[%s3078 + $0x30] sm:$0xff]
        %v3086 = vld [vmem:[%s3078 + $0x38] sm:$0xff]
        %v3087 = vld [vmem:[%s3078 + $0x40] sm:$0xff]
        %v3088 = vld [vmem:[%s3078 + $0x48] sm:$0xff]
        %v3089 = vld [vmem:[%s3078 + $0x50] sm:$0xff]
        %v3090 = vld [vmem:[%s3078 + $0x58] sm:$0xff]
        %v3091 = vld [vmem:[%s3078 + $0x60] sm:$0xff]
        %v3092 = vld [vmem:[%s3078 + $0x68] sm:$0xff]
        %v3093 = vld [vmem:[%s3078 + $0x70] sm:$0xff]
        %v3094 = vld [vmem:[%s3078 + $0x78] sm:$0xff]
        %v3095 = vld [vmem:[%s3078 + $0x80] sm:$0xff]
        %v3096 = vld [vmem:[%s3078 + $0x88] sm:$0xff]
        %v3097 = vld [vmem:[%s3078 + $0x90] sm:$0xff]
        %v3098 = vld [vmem:[%s3078 + $0x98] sm:$0xff]
        %v3099 = vld [vmem:[%s3078 + $0xa0] sm:$0xff]
        %v3100 = vld [vmem:[%s3078 + $0xa8] sm:$0xff]
        %v3101 = vld [vmem:[%s3078 + $0xb0] sm:$0xff]
        %v3102 = vld [vmem:[%s3078 + $0xb8] sm:$0xff]
        %v3103 = vld [vmem:[%s3078 + $0xc0] sm:$0xff]
        %v3104 = vld [vmem:[%s3078 + $0xc8] sm:$0xff]
        %v3105 = vld [vmem:[%s3078 + $0xd0] sm:$0xff]
        %v3106 = vld [vmem:[%s3078 + $0xd8] sm:$0xff]
        %v3107 = vld [vmem:[%s3078 + $0xe0] sm:$0xff]
        %v3108 = vld [vmem:[%s3078 + $0xe8] sm:$0xff]
        %v3109 = vld [vmem:[%s3078 + $0xf0] sm:$0xff]
        %v3110 = vld [vmem:[%s3078 + $0xf8] sm:$0xff]
        %v3111 = vld [vmem:[%s3078 + $0x100] sm:$0xff]
        %v3112 = vld [vmem:[%s3078 + $0x108] sm:$0xff]
        %v3113 = vld [vmem:[%s3078 + $0x110] sm:$0xff]
        %v3114 = vld [vmem:[%s3078 + $0x118] sm:$0xff]
        %v3115 = vld [vmem:[%s3078 + $0x120] sm:$0xff]
        %v3116 = vld [vmem:[%s3078 + $0x128] sm:$0xff]
        %v3117 = vld [vmem:[%s3078 + $0x130] sm:$0xff]
        %v3118 = vld [vmem:[%s3078 + $0x138] sm:$0xff]
        %v3119 = vld [vmem:[%s3078 + $0x140] sm:$0xff]
        %v3120 = vld [vmem:[%s3078 + $0x148] sm:$0xff]
        %v3121 = vld [vmem:[%s3078 + $0x150] sm:$0xff]
        %v3122 = vld [vmem:[%s3078 + $0x158] sm:$0xff]
        %v3123 = vld [vmem:[%s3078 + $0x160] sm:$0xff]
        %v3124 = vld [vmem:[%s3078 + $0x168] sm:$0xff]
        %v3125 = vld [vmem:[%s3078 + $0x170] sm:$0xff]
        %v3126 = vld [vmem:[%s3078 + $0x178] sm:$0xff]
        %v3127 = vld [vmem:[%s3078 + $0x180] sm:$0xff]
        %v3128 = vld [vmem:[%s3078 + $0x188] sm:$0xff]
        %v3129 = vld [vmem:[%s3078 + $0x190] sm:$0xff]
        %v3130 = vld [vmem:[%s3078 + $0x198] sm:$0xff]
        %v3131 = vld [vmem:[%s3078 + $0x1a0] sm:$0xff]
        %v3132 = vld [vmem:[%s3078 + $0x1a8] sm:$0xff]
        %v3133 = vld [vmem:[%s3078 + $0x1b0] sm:$0xff]
        %v3134 = vld [vmem:[%s3078 + $0x1b8] sm:$0xff]
        %v3135 = vld [vmem:[%s3078 + $0x1c0] sm:$0xff]
        %v3136 = vld [vmem:[%s3078 + $0x1c8] sm:$0xff]
        %v3137 = vld [vmem:[%s3078 + $0x1d0] sm:$0xff]
        %v3138 = vld [vmem:[%s3078 + $0x1d8] sm:$0xff]
        %v3139 = vld [vmem:[%s3078 + $0x1e0] sm:$0xff]
        %v3140 = vld [vmem:[%s3078 + $0x1e8] sm:$0xff]
        %v3141 = vld [vmem:[%s3078 + $0x1f0] sm:$0xff]
        %v3142 = vld [vmem:[%s3078 + $0x1f8] sm:$0xff]
        %v3143 = vld [vmem:[%s3078 + $0x200] sm:$0xff]
        %v3144 = vld [vmem:[%s3078 + $0x208] sm:$0xff]
        %v3145 = vld [vmem:[%s3078 + $0x210] sm:$0xff]
        %v3146 = vld [vmem:[%s3078 + $0x218] sm:$0xff]
        %v3147 = vld [vmem:[%s3078 + $0x220] sm:$0xff]
        %v3148 = vld [vmem:[%s3078 + $0x228] sm:$0xff]
        %v3149 = vld [vmem:[%s3078 + $0x230] sm:$0xff]
        %v3150 = vld [vmem:[%s3078 + $0x238] sm:$0xff]
        %v3151 = vld [vmem:[%s3078 + $0x240] sm:$0xff]
        %v3152 = vld [vmem:[%s3078 + $0x248] sm:$0xff]
        %v3153 = vld [vmem:[%s3078 + $0x250] sm:$0xff]
        %v3154 = vld [vmem:[%s3078 + $0x258] sm:$0xff]
        %v3155 = vld [vmem:[%s3078 + $0x260] sm:$0xff]
        %v3156 = vld [vmem:[%s3078 + $0x268] sm:$0xff]
        %v3157 = vld [vmem:[%s3078 + $0x270] sm:$0xff]
        %v3158 = vld [vmem:[%s3078 + $0x278] sm:$0xff]
        %v3159 = vld [vmem:[%s3078 + $0x280] sm:$0xff]
        %v3160 = vld [vmem:[%s3078 + $0x288] sm:$0xff]
        %v3161 = vld [vmem:[%s3078 + $0x290] sm:$0xff]
        %v3162 = vld [vmem:[%s3078 + $0x298] sm:$0xff]
        %v3163 = vld [vmem:[%s3078 + $0x2a0] sm:$0xff]
        %v3164 = vld [vmem:[%s3078 + $0x2a8] sm:$0xff]
        %v3165 = vld [vmem:[%s3078 + $0x2b0] sm:$0xff]
        %v3166 = vld [vmem:[%s3078 + $0x2b8] sm:$0xff]
        %v3167 = vld [vmem:[%s3078 + $0x2c0] sm:$0xff]
        %v3168 = vld [vmem:[%s3078 + $0x2c8] sm:$0xff]
        %v3169 = vld [vmem:[%s3078 + $0x2d0] sm:$0xff]
        %v3170 = vld [vmem:[%s3078 + $0x2d8] sm:$0xff]
        %v3171 = vld [vmem:[%s3078 + $0x2e0] sm:$0xff]
        %v3172 = vld [vmem:[%s3078 + $0x2e8] sm:$0xff]
        %v3173 = vld [vmem:[%s3078 + $0x2f0] sm:$0xff]
        %v3174 = vld [vmem:[%s3078 + $0x2f8] sm:$0xff]
        %3175 = vrot.lane.b32.xlu0 %v2879, 120
        %v3176 = vpop.permute.xlu0 %3175
        %3177 = vrot.lane.b32.xlu0 %v2882, 120
        %v3178 = vpop.permute.xlu0 %3177
        %3179 = vrot.lane.b32.xlu0 %v2884, 120
        %v3180 = vpop.permute.xlu0 %3179
        %3181 = vrot.lane.b32.xlu0 %v2886, 120
        %v3182 = vpop.permute.xlu0 %3181
        %3183 = vrot.lane.b32.xlu0 %v2888, 120
        %v3184 = vpop.permute.xlu0 %3183
        %3185 = vrot.lane.b32.xlu0 %v2890, 120
        %v3186 = vpop.permute.xlu0 %3185
        %v3187 = vsel %vm2126, %v3176, %v3178
        %v3188 = vsel %vm2126, %v3180, %v3182
        %v3189 = vsel %vm2126, %v3184, %v3186
        %v3193 = vsel %vm2133, %v3178, 0
        %v3195 = vsel %vm2133, %v3182, 0
        %v3197 = vsel %vm2133, %v3186, 0
        %3199 = vmatprep.subr.mxu0 %v3080
        %3200 = vmatpush1.msra.mxu0 %v3079
        %3201 = vmatprep.subr.mxu0 %v3084
        %3202 = vmatpush1.msra.mxu0 %v3083
        %3203 = vmatprep.subr.mxu0 %v3088
        %3204 = vmatpush1.msra.mxu0 %v3087
        %3205 = vmatprep.subr.mxu0 %v3092
        %3206 = vmatpush1.msra.mxu0 %v3091
        %3207 = vmatprep.subr.mxu0 %v3096
        %3208 = vmatpush1.msra.mxu0 %v3095
        %3209 = vmatprep.subr.mxu0 %v3100
        %3210 = vmatpush1.msra.mxu0 %v3099
        %3211 = vmatprep.subr.mxu0 %v3104
        %3212 = vmatpush1.msra.mxu0 %v3103
        %3213 = vmatprep.subr.mxu0 %v3108
        %3214 = vmatpush1.msra.mxu0 %v3107
        %3215 = vmatprep.subr.mxu0 %v3112
        %3216 = vmatpush1.msra.mxu0 %v3111
        %3217 = vmatprep.subr.mxu0 %v3116
        %3218 = vmatpush1.msra.mxu0 %v3115
        %3219 = vmatprep.subr.mxu0 %v3120
        %3220 = vmatpush1.msra.mxu0 %v3119
        %3221 = vmatprep.subr.mxu0 %v3124
        %3222 = vmatpush1.msra.mxu0 %v3123
        %3223 = vmatprep.subr.mxu0 %v3128
        %3224 = vmatpush1.msra.mxu0 %v3127
        %3225 = vmatprep.subr.mxu0 %v3132
        %3226 = vmatpush1.msra.mxu0 %v3131
        %3227 = vmatprep.subr.mxu0 %v3136
        %3228 = vmatpush1.msra.mxu0 %v3135
        %3229 = vmatprep.subr.mxu0 %v3140
        %3230 = vmatpush1.msra.mxu0 %v3139
        %3231 = vmatprep.subr.mxu0 %v3144
        %3232 = vmatpush1.msra.mxu0 %v3143
        %3233 = vmatprep.subr.mxu0 %v3148
        %3234 = vmatpush1.msra.mxu0 %v3147
        %3235 = vmatprep.subr.mxu0 %v3152
        %3236 = vmatpush1.msra.mxu0 %v3151
        %3237 = vmatprep.subr.mxu0 %v3156
        %3238 = vmatpush1.msra.mxu0 %v3155
        %3239 = vmatprep.subr.mxu0 %v3160
        %3240 = vmatpush1.msra.mxu0 %v3159
        %3241 = vmatprep.subr.mxu0 %v3164
        %3242 = vmatpush1.msra.mxu0 %v3163
        %3243 = vmatprep.subr.mxu0 %v3168
        %3244 = vmatpush1.msra.mxu0 %v3167
        %3245 = vmatprep.subr.mxu0 %v3172
        %3246 = vmatpush1.msra.mxu0 %v3171
        %3247 = vmatprep.subr.mxu0 0.0
        %3248 = vmatpush1.msra.mxu0 0.0
        %3249 = vmatprep.subr.mxu0 0.0
        %3250 = vmatpush1.msra.mxu0 0.0
        %3251 = vmatprep.subr.mxu0 0.0
        %3252 = vmatpush1.msra.mxu0 0.0
        %3253 = vmatprep.subr.mxu0 0.0
        %3254 = vmatpush1.msra.mxu0 0.0
        %3255 = vmatprep.subr.mxu0 0.0
        %3256 = vmatpush1.msra.mxu0 0.0
        %3257 = vmatprep.subr.mxu0 0.0
        %3258 = vmatpush1.msra.mxu0 0.0
        %3259 = vmatprep.subr.mxu0 0.0
        %3260 = vmatpush1.msra.mxu0 0.0
        %3261 = vmatprep.subr.mxu0 0.0
        %3262 = vmatpush1.msra.mxu0 0.0
        %3263 = vmatprep.mubr.f32.mxu0 %v3193
        %3264 = vmatmul.mubr.f32.gmra.mrb[0].mxu0 %v3187
        %v3265 = vpop.f32.mrb[0].mxu0
        %v3266 = vadd.f32 0.0, %v3265
        %v3267 = vpop.f32.mrb[0].mxu0
        %v3268 = vadd.f32 0.0, %v3267
        %3269 = vmatprep.mubr.f32.mxu0 %v3195
        %3270 = vmatmul.mubr.f32.gmra.mrb[0].mxu0 %v3188
        %v3271 = vpop.f32.mrb[0].mxu0
        %v3272 = vadd.f32 0.0, %v3271
        %v3273 = vpop.f32.mrb[0].mxu0
        %v3274 = vadd.f32 0.0, %v3273
        %3275 = vmatprep.mubr.f32.mxu0 %v3197
        %3276 = vmatmul.mubr.f32.gmra.mrb[0].mxu0 %v3189
        %v3277 = vpop.f32.mrb[0].mxu0
        %v3278 = vadd.f32 0.0, %v3277
        %v3279 = vpop.f32.mrb[0].mxu0
        %v3280 = vadd.f32 0.0, %v3279
        %3281 = vdwg.mxu0
        %3282 = vmatprep.subr.mxu0 %v3082
        %3283 = vmatpush1.msra.mxu0 %v3081
        %3284 = vmatprep.subr.mxu0 %v3086
        %3285 = vmatpush1.msra.mxu0 %v3085
        %3286 = vmatprep.subr.mxu0 %v3090
        %3287 = vmatpush1.msra.mxu0 %v3089
        %3288 = vmatprep.subr.mxu0 %v3094
        %3289 = vmatpush1.msra.mxu0 %v3093
        %3290 = vmatprep.subr.mxu0 %v3098
        %3291 = vmatpush1.msra.mxu0 %v3097
        %3292 = vmatprep.subr.mxu0 %v3102
        %3293 = vmatpush1.msra.mxu0 %v3101
        %3294 = vmatprep.subr.mxu0 %v3106
        %3295 = vmatpush1.msra.mxu0 %v3105
        %3296 = vmatprep.subr.mxu0 %v3110
        %3297 = vmatpush1.msra.mxu0 %v3109
        %3298 = vmatprep.subr.mxu0 %v3114
        %3299 = vmatpush1.msra.mxu0 %v3113
        %3300 = vmatprep.subr.mxu0 %v3118
        %3301 = vmatpush1.msra.mxu0 %v3117
        %3302 = vmatprep.subr.mxu0 %v3122
        %3303 = vmatpush1.msra.mxu0 %v3121
        %3304 = vmatprep.subr.mxu0 %v3126
        %3305 = vmatpush1.msra.mxu0 %v3125
        %3306 = vmatprep.subr.mxu0 %v3130
        %3307 = vmatpush1.msra.mxu0 %v3129
        %3308 = vmatprep.subr.mxu0 %v3134
        %3309 = vmatpush1.msra.mxu0 %v3133
        %3310 = vmatprep.subr.mxu0 %v3138
        %3311 = vmatpush1.msra.mxu0 %v3137
        %3312 = vmatprep.subr.mxu0 %v3142
        %3313 = vmatpush1.msra.mxu0 %v3141
        %3314 = vmatprep.subr.mxu0 %v3146
        %3315 = vmatpush1.msra.mxu0 %v3145
        %3316 = vmatprep.subr.mxu0 %v3150
        %3317 = vmatpush1.msra.mxu0 %v3149
        %3318 = vmatprep.subr.mxu0 %v3154
        %3319 = vmatpush1.msra.mxu0 %v3153
        %3320 = vmatprep.subr.mxu0 %v3158
        %3321 = vmatpush1.msra.mxu0 %v3157
        %3322 = vmatprep.subr.mxu0 %v3162
        %3323 = vmatpush1.msra.mxu0 %v3161
        %3324 = vmatprep.subr.mxu0 %v3166
        %3325 = vmatpush1.msra.mxu0 %v3165
        %3326 = vmatprep.subr.mxu0 %v3170
        %3327 = vmatpush1.msra.mxu0 %v3169
        %3328 = vmatprep.subr.mxu0 %v3174
        %3329 = vmatpush1.msra.mxu0 %v3173
        %3330 = vmatprep.subr.mxu0 0.0
        %3331 = vmatpush1.msra.mxu0 0.0
        %3332 = vmatprep.subr.mxu0 0.0
        %3333 = vmatpush1.msra.mxu0 0.0
        %3334 = vmatprep.subr.mxu0 0.0
        %3335 = vmatpush1.msra.mxu0 0.0
        %3336 = vmatprep.subr.mxu0 0.0
        %3337 = vmatpush1.msra.mxu0 0.0
        %3338 = vmatprep.subr.mxu0 0.0
        %3339 = vmatpush1.msra.mxu0 0.0
        %3340 = vmatprep.subr.mxu0 0.0
        %3341 = vmatpush1.msra.mxu0 0.0
        %3342 = vmatprep.subr.mxu0 0.0
        %3343 = vmatpush1.msra.mxu0 0.0
        %3344 = vmatprep.subr.mxu0 0.0
        %3345 = vmatpush1.msra.mxu0 0.0
        %3346 = vmatprep.mubr.f32.mxu0 %v3193
        %3347 = vmatmul.mubr.f32.gmra.mrb[0].mxu0 %v3187
        %v3348 = vpop.f32.mrb[0].mxu0
        %v3349 = vadd.f32 0.0, %v3348
        %v3350 = vpop.f32.mrb[0].mxu0
        %v3351 = vadd.f32 0.0, %v3350
        %3352 = vmatprep.mubr.f32.mxu0 %v3195
        %3353 = vmatmul.mubr.f32.gmra.mrb[0].mxu0 %v3188
        %v3354 = vpop.f32.mrb[0].mxu0
        %v3355 = vadd.f32 0.0, %v3354
        %v3356 = vpop.f32.mrb[0].mxu0
        %v3357 = vadd.f32 0.0, %v3356
        %3358 = vmatprep.mubr.f32.mxu0 %v3197
        %3359 = vmatmul.mubr.f32.gmra.mrb[0].mxu0 %v3189
        %v3360 = vpop.f32.mrb[0].mxu0
        %v3361 = vadd.f32 0.0, %v3360
        %v3362 = vpop.f32.mrb[0].mxu0
        %v3363 = vadd.f32 0.0, %v3362
        %3364 = vdwg.mxu0
        %v3365 = vadd.f32 %v3066, %v3266
        %v3366 = vadd.f32 %v3067, %v3268
        %v3367 = vadd.f32 %v3068, %v3349
        %v3368 = vadd.f32 %v3069, %v3351
        %v3369 = vadd.f32 %v3070, %v3272
        %v3370 = vadd.f32 %v3071, %v3274
        %v3371 = vadd.f32 %v3072, %v3355
        %v3372 = vadd.f32 %v3073, %v3357
        %v3373 = vadd.f32 %v3074, %v3278
        %v3374 = vadd.f32 %v3075, %v3280
        %v3375 = vadd.f32 %v3076, %v3361
        %v3376 = vadd.f32 %v3077, %v3363
        %s3377 = scalar_lea.vmem [#allocation7], 3840
        %v3378 = vld [vmem:[%s3377] sm:$0xff]
        %v3379 = vld [vmem:[%s3377 + $0x8] sm:$0xff]
        %v3380 = vld [vmem:[%s3377 + $0x10] sm:$0xff]
        %v3381 = vld [vmem:[%s3377 + $0x18] sm:$0xff]
        %v3382 = vld [vmem:[%s3377 + $0x20] sm:$0xff]
        %v3383 = vld [vmem:[%s3377 + $0x28] sm:$0xff]
        %v3384 = vld [vmem:[%s3377 + $0x30] sm:$0xff]
        %v3385 = vld [vmem:[%s3377 + $0x38] sm:$0xff]
        %v3386 = vld [vmem:[%s3377 + $0x40] sm:$0xff]
        %v3387 = vld [vmem:[%s3377 + $0x48] sm:$0xff]
        %v3388 = vld [vmem:[%s3377 + $0x50] sm:$0xff]
        %v3389 = vld [vmem:[%s3377 + $0x58] sm:$0xff]
        %v3390 = vld [vmem:[%s3377 + $0x60] sm:$0xff]
        %v3391 = vld [vmem:[%s3377 + $0x68] sm:$0xff]
        %v3392 = vld [vmem:[%s3377 + $0x70] sm:$0xff]
        %v3393 = vld [vmem:[%s3377 + $0x78] sm:$0xff]
        %v3394 = vld [vmem:[%s3377 + $0x80] sm:$0xff]
        %v3395 = vld [vmem:[%s3377 + $0x88] sm:$0xff]
        %v3396 = vld [vmem:[%s3377 + $0x90] sm:$0xff]
        %v3397 = vld [vmem:[%s3377 + $0x98] sm:$0xff]
        %v3398 = vld [vmem:[%s3377 + $0xa0] sm:$0xff]
        %v3399 = vld [vmem:[%s3377 + $0xa8] sm:$0xff]
        %v3400 = vld [vmem:[%s3377 + $0xb0] sm:$0xff]
        %v3401 = vld [vmem:[%s3377 + $0xb8] sm:$0xff]
        %v3402 = vld [vmem:[%s3377 + $0xc0] sm:$0xff]
        %v3403 = vld [vmem:[%s3377 + $0xc8] sm:$0xff]
        %v3404 = vld [vmem:[%s3377 + $0xd0] sm:$0xff]
        %v3405 = vld [vmem:[%s3377 + $0xd8] sm:$0xff]
        %v3406 = vld [vmem:[%s3377 + $0xe0] sm:$0xff]
        %v3407 = vld [vmem:[%s3377 + $0xe8] sm:$0xff]
        %v3408 = vld [vmem:[%s3377 + $0xf0] sm:$0xff]
        %v3409 = vld [vmem:[%s3377 + $0xf8] sm:$0xff]
        %v3410 = vld [vmem:[%s3377 + $0x100] sm:$0xff]
        %v3411 = vld [vmem:[%s3377 + $0x108] sm:$0xff]
        %v3412 = vld [vmem:[%s3377 + $0x110] sm:$0xff]
        %v3413 = vld [vmem:[%s3377 + $0x118] sm:$0xff]
        %v3414 = vld [vmem:[%s3377 + $0x120] sm:$0xff]
        %v3415 = vld [vmem:[%s3377 + $0x128] sm:$0xff]
        %v3416 = vld [vmem:[%s3377 + $0x130] sm:$0xff]
        %v3417 = vld [vmem:[%s3377 + $0x138] sm:$0xff]
        %v3418 = vld [vmem:[%s3377 + $0x140] sm:$0xff]
        %v3419 = vld [vmem:[%s3377 + $0x148] sm:$0xff]
        %v3420 = vld [vmem:[%s3377 + $0x150] sm:$0xff]
        %v3421 = vld [vmem:[%s3377 + $0x158] sm:$0xff]
        %v3422 = vld [vmem:[%s3377 + $0x160] sm:$0xff]
        %v3423 = vld [vmem:[%s3377 + $0x168] sm:$0xff]
        %v3424 = vld [vmem:[%s3377 + $0x170] sm:$0xff]
        %v3425 = vld [vmem:[%s3377 + $0x178] sm:$0xff]
        %v3426 = vld [vmem:[%s3377 + $0x180] sm:$0xff]
        %v3427 = vld [vmem:[%s3377 + $0x188] sm:$0xff]
        %v3428 = vld [vmem:[%s3377 + $0x190] sm:$0xff]
        %v3429 = vld [vmem:[%s3377 + $0x198] sm:$0xff]
        %v3430 = vld [vmem:[%s3377 + $0x1a0] sm:$0xff]
        %v3431 = vld [vmem:[%s3377 + $0x1a8] sm:$0xff]
        %v3432 = vld [vmem:[%s3377 + $0x1b0] sm:$0xff]
        %v3433 = vld [vmem:[%s3377 + $0x1b8] sm:$0xff]
        %v3434 = vld [vmem:[%s3377 + $0x1c0] sm:$0xff]
        %v3435 = vld [vmem:[%s3377 + $0x1c8] sm:$0xff]
        %v3436 = vld [vmem:[%s3377 + $0x1d0] sm:$0xff]
        %v3437 = vld [vmem:[%s3377 + $0x1d8] sm:$0xff]
        %v3438 = vld [vmem:[%s3377 + $0x1e0] sm:$0xff]
        %v3439 = vld [vmem:[%s3377 + $0x1e8] sm:$0xff]
        %v3440 = vld [vmem:[%s3377 + $0x1f0] sm:$0xff]
        %v3441 = vld [vmem:[%s3377 + $0x1f8] sm:$0xff]
        %v3442 = vld [vmem:[%s3377 + $0x200] sm:$0xff]
        %v3443 = vld [vmem:[%s3377 + $0x208] sm:$0xff]
        %v3444 = vld [vmem:[%s3377 + $0x210] sm:$0xff]
        %v3445 = vld [vmem:[%s3377 + $0x218] sm:$0xff]
        %v3446 = vld [vmem:[%s3377 + $0x220] sm:$0xff]
        %v3447 = vld [vmem:[%s3377 + $0x228] sm:$0xff]
        %v3448 = vld [vmem:[%s3377 + $0x230] sm:$0xff]
        %v3449 = vld [vmem:[%s3377 + $0x238] sm:$0xff]
        %v3450 = vld [vmem:[%s3377 + $0x240] sm:$0xff]
        %v3451 = vld [vmem:[%s3377 + $0x248] sm:$0xff]
        %v3452 = vld [vmem:[%s3377 + $0x250] sm:$0xff]
        %v3453 = vld [vmem:[%s3377 + $0x258] sm:$0xff]
        %v3454 = vld [vmem:[%s3377 + $0x260] sm:$0xff]
        %v3455 = vld [vmem:[%s3377 + $0x268] sm:$0xff]
        %v3456 = vld [vmem:[%s3377 + $0x270] sm:$0xff]
        %v3457 = vld [vmem:[%s3377 + $0x278] sm:$0xff]
        %v3458 = vld [vmem:[%s3377 + $0x280] sm:$0xff]
        %v3459 = vld [vmem:[%s3377 + $0x288] sm:$0xff]
        %v3460 = vld [vmem:[%s3377 + $0x290] sm:$0xff]
        %v3461 = vld [vmem:[%s3377 + $0x298] sm:$0xff]
        %v3462 = vld [vmem:[%s3377 + $0x2a0] sm:$0xff]
        %v3463 = vld [vmem:[%s3377 + $0x2a8] sm:$0xff]
        %v3464 = vld [vmem:[%s3377 + $0x2b0] sm:$0xff]
        %v3465 = vld [vmem:[%s3377 + $0x2b8] sm:$0xff]
        %v3466 = vld [vmem:[%s3377 + $0x2c0] sm:$0xff]
        %v3467 = vld [vmem:[%s3377 + $0x2c8] sm:$0xff]
        %v3468 = vld [vmem:[%s3377 + $0x2d0] sm:$0xff]
        %v3469 = vld [vmem:[%s3377 + $0x2d8] sm:$0xff]
        %v3470 = vld [vmem:[%s3377 + $0x2e0] sm:$0xff]
        %v3471 = vld [vmem:[%s3377 + $0x2e8] sm:$0xff]
        %v3472 = vld [vmem:[%s3377 + $0x2f0] sm:$0xff]
        %v3473 = vld [vmem:[%s3377 + $0x2f8] sm:$0xff]
        %3474 = vrot.lane.b32.xlu0 %v2879, 112
        %v3475 = vpop.permute.xlu0 %3474
        %3476 = vrot.lane.b32.xlu0 %v2882, 112
        %v3477 = vpop.permute.xlu0 %3476
        %3478 = vrot.lane.b32.xlu0 %v2884, 112
        %v3479 = vpop.permute.xlu0 %3478
        %3480 = vrot.lane.b32.xlu0 %v2886, 112
        %v3481 = vpop.permute.xlu0 %3480
        %3482 = vrot.lane.b32.xlu0 %v2888, 112
        %v3483 = vpop.permute.xlu0 %3482
        %3484 = vrot.lane.b32.xlu0 %v2890, 112
        %v3485 = vpop.permute.xlu0 %3484
        %v3486 = vsel %vm2587, %v3475, %v3477
        %v3487 = vsel %vm2587, %v3479, %v3481
        %v3488 = vsel %vm2587, %v3483, %v3485
        %v3492 = vsel %vm2133, %v3477, 0
        %v3494 = vsel %vm2133, %v3481, 0
        %v3496 = vsel %vm2133, %v3485, 0
        %3498 = vmatprep.subr.mxu0 %v3379
        %3499 = vmatpush1.msra.mxu0 %v3378
        %3500 = vmatprep.subr.mxu0 %v3383
        %3501 = vmatpush1.msra.mxu0 %v3382
        %3502 = vmatprep.subr.mxu0 %v3387
        %3503 = vmatpush1.msra.mxu0 %v3386
        %3504 = vmatprep.subr.mxu0 %v3391
        %3505 = vmatpush1.msra.mxu0 %v3390
        %3506 = vmatprep.subr.mxu0 %v3395
        %3507 = vmatpush1.msra.mxu0 %v3394
        %3508 = vmatprep.subr.mxu0 %v3399
        %3509 = vmatpush1.msra.mxu0 %v3398
        %3510 = vmatprep.subr.mxu0 %v3403
        %3511 = vmatpush1.msra.mxu0 %v3402
        %3512 = vmatprep.subr.mxu0 %v3407
        %3513 = vmatpush1.msra.mxu0 %v3406
        %3514 = vmatprep.subr.mxu0 %v3411
        %3515 = vmatpush1.msra.mxu0 %v3410
        %3516 = vmatprep.subr.mxu0 %v3415
        %3517 = vmatpush1.msra.mxu0 %v3414
        %3518 = vmatprep.subr.mxu0 %v3419
        %3519 = vmatpush1.msra.mxu0 %v3418
        %3520 = vmatprep.subr.mxu0 %v3423
        %3521 = vmatpush1.msra.mxu0 %v3422
        %3522 = vmatprep.subr.mxu0 %v3427
        %3523 = vmatpush1.msra.mxu0 %v3426
        %3524 = vmatprep.subr.mxu0 %v3431
        %3525 = vmatpush1.msra.mxu0 %v3430
        %3526 = vmatprep.subr.mxu0 %v3435
        %3527 = vmatpush1.msra.mxu0 %v3434
        %3528 = vmatprep.subr.mxu0 %v3439
        %3529 = vmatpush1.msra.mxu0 %v3438
        %3530 = vmatprep.subr.mxu0 %v3443
        %3531 = vmatpush1.msra.mxu0 %v3442
        %3532 = vmatprep.subr.mxu0 %v3447
        %3533 = vmatpush1.msra.mxu0 %v3446
        %3534 = vmatprep.subr.mxu0 %v3451
        %3535 = vmatpush1.msra.mxu0 %v3450
        %3536 = vmatprep.subr.mxu0 %v3455
        %3537 = vmatpush1.msra.mxu0 %v3454
        %3538 = vmatprep.subr.mxu0 %v3459
        %3539 = vmatpush1.msra.mxu0 %v3458
        %3540 = vmatprep.subr.mxu0 %v3463
        %3541 = vmatpush1.msra.mxu0 %v3462
        %3542 = vmatprep.subr.mxu0 %v3467
        %3543 = vmatpush1.msra.mxu0 %v3466
        %3544 = vmatprep.subr.mxu0 %v3471
        %3545 = vmatpush1.msra.mxu0 %v3470
        %3546 = vmatprep.subr.mxu0 0.0
        %3547 = vmatpush1.msra.mxu0 0.0
        %3548 = vmatprep.subr.mxu0 0.0
        %3549 = vmatpush1.msra.mxu0 0.0
        %3550 = vmatprep.subr.mxu0 0.0
        %3551 = vmatpush1.msra.mxu0 0.0
        %3552 = vmatprep.subr.mxu0 0.0
        %3553 = vmatpush1.msra.mxu0 0.0
        %3554 = vmatprep.subr.mxu0 0.0
        %3555 = vmatpush1.msra.mxu0 0.0
        %3556 = vmatprep.subr.mxu0 0.0
        %3557 = vmatpush1.msra.mxu0 0.0
        %3558 = vmatprep.subr.mxu0 0.0
        %3559 = vmatpush1.msra.mxu0 0.0
        %3560 = vmatprep.subr.mxu0 0.0
        %3561 = vmatpush1.msra.mxu0 0.0
        %3562 = vmatprep.mubr.f32.mxu0 %v3492
        %3563 = vmatmul.mubr.f32.gmra.mrb[0].mxu0 %v3486
        %v3564 = vpop.f32.mrb[0].mxu0
        %v3565 = vadd.f32 0.0, %v3564
        %v3566 = vpop.f32.mrb[0].mxu0
        %v3567 = vadd.f32 0.0, %v3566
        %3568 = vmatprep.mubr.f32.mxu0 %v3494
        %3569 = vmatmul.mubr.f32.gmra.mrb[0].mxu0 %v3487
        %v3570 = vpop.f32.mrb[0].mxu0
        %v3571 = vadd.f32 0.0, %v3570
        %v3572 = vpop.f32.mrb[0].mxu0
        %v3573 = vadd.f32 0.0, %v3572
        %3574 = vmatprep.mubr.f32.mxu0 %v3496
        %3575 = vmatmul.mubr.f32.gmra.mrb[0].mxu0 %v3488
        %v3576 = vpop.f32.mrb[0].mxu0
        %v3577 = vadd.f32 0.0, %v3576
        %v3578 = vpop.f32.mrb[0].mxu0
        %v3579 = vadd.f32 0.0, %v3578
        %3580 = vdwg.mxu0
        %3581 = vmatprep.subr.mxu0 %v3381
        %3582 = vmatpush1.msra.mxu0 %v3380
        %3583 = vmatprep.subr.mxu0 %v3385
        %3584 = vmatpush1.msra.mxu0 %v3384
        %3585 = vmatprep.subr.mxu0 %v3389
        %3586 = vmatpush1.msra.mxu0 %v3388
        %3587 = vmatprep.subr.mxu0 %v3393
        %3588 = vmatpush1.msra.mxu0 %v3392
        %3589 = vmatprep.subr.mxu0 %v3397
        %3590 = vmatpush1.msra.mxu0 %v3396
        %3591 = vmatprep.subr.mxu0 %v3401
        %3592 = vmatpush1.msra.mxu0 %v3400
        %3593 = vmatprep.subr.mxu0 %v3405
        %3594 = vmatpush1.msra.mxu0 %v3404
        %3595 = vmatprep.subr.mxu0 %v3409
        %3596 = vmatpush1.msra.mxu0 %v3408
        %3597 = vmatprep.subr.mxu0 %v3413
        %3598 = vmatpush1.msra.mxu0 %v3412
        %3599 = vmatprep.subr.mxu0 %v3417
        %3600 = vmatpush1.msra.mxu0 %v3416
        %3601 = vmatprep.subr.mxu0 %v3421
        %3602 = vmatpush1.msra.mxu0 %v3420
        %3603 = vmatprep.subr.mxu0 %v3425
        %3604 = vmatpush1.msra.mxu0 %v3424
        %3605 = vmatprep.subr.mxu0 %v3429
        %3606 = vmatpush1.msra.mxu0 %v3428
        %3607 = vmatprep.subr.mxu0 %v3433
        %3608 = vmatpush1.msra.mxu0 %v3432
        %3609 = vmatprep.subr.mxu0 %v3437
        %3610 = vmatpush1.msra.mxu0 %v3436
        %3611 = vmatprep.subr.mxu0 %v3441
        %3612 = vmatpush1.msra.mxu0 %v3440
        %3613 = vmatprep.subr.mxu0 %v3445
        %3614 = vmatpush1.msra.mxu0 %v3444
        %3615 = vmatprep.subr.mxu0 %v3449
        %3616 = vmatpush1.msra.mxu0 %v3448
        %3617 = vmatprep.subr.mxu0 %v3453
        %3618 = vmatpush1.msra.mxu0 %v3452
        %3619 = vmatprep.subr.mxu0 %v3457
        %3620 = vmatpush1.msra.mxu0 %v3456
        %3621 = vmatprep.subr.mxu0 %v3461
        %3622 = vmatpush1.msra.mxu0 %v3460
        %3623 = vmatprep.subr.mxu0 %v3465
        %3624 = vmatpush1.msra.mxu0 %v3464
        %3625 = vmatprep.subr.mxu0 %v3469
        %3626 = vmatpush1.msra.mxu0 %v3468
        %3627 = vmatprep.subr.mxu0 %v3473
        %3628 = vmatpush1.msra.mxu0 %v3472
        %3629 = vmatprep.subr.mxu0 0.0
        %3630 = vmatpush1.msra.mxu0 0.0
        %3631 = vmatprep.subr.mxu0 0.0
        %3632 = vmatpush1.msra.mxu0 0.0
        %3633 = vmatprep.subr.mxu0 0.0
        %3634 = vmatpush1.msra.mxu0 0.0
        %3635 = vmatprep.subr.mxu0 0.0
        %3636 = vmatpush1.msra.mxu0 0.0
        %3637 = vmatprep.subr.mxu0 0.0
        %3638 = vmatpush1.msra.mxu0 0.0
        %3639 = vmatprep.subr.mxu0 0.0
        %3640 = vmatpush1.msra.mxu0 0.0
        %3641 = vmatprep.subr.mxu0 0.0
        %3642 = vmatpush1.msra.mxu0 0.0
        %3643 = vmatprep.subr.mxu0 0.0
        %3644 = vmatpush1.msra.mxu0 0.0
        %3645 = vmatprep.mubr.f32.mxu0 %v3492
        %3646 = vmatmul.mubr.f32.gmra.mrb[0].mxu0 %v3486
        %v3647 = vpop.f32.mrb[0].mxu0
        %v3648 = vadd.f32 0.0, %v3647
        %v3649 = vpop.f32.mrb[0].mxu0
        %v3650 = vadd.f32 0.0, %v3649
        %3651 = vmatprep.mubr.f32.mxu0 %v3494
        %3652 = vmatmul.mubr.f32.gmra.mrb[0].mxu0 %v3487
        %v3653 = vpop.f32.mrb[0].mxu0
        %v3654 = vadd.f32 0.0, %v3653
        %v3655 = vpop.f32.mrb[0].mxu0
        %v3656 = vadd.f32 0.0, %v3655
        %3657 = vmatprep.mubr.f32.mxu0 %v3496
        %3658 = vmatmul.mubr.f32.gmra.mrb[0].mxu0 %v3488
        %v3659 = vpop.f32.mrb[0].mxu0
        %v3660 = vadd.f32 0.0, %v3659
        %v3661 = vpop.f32.mrb[0].mxu0
        %v3662 = vadd.f32 0.0, %v3661
        %3663 = vdwg.mxu0
        %v3664 = vadd.f32 %v3365, %v3565
        %v3665 = vadd.f32 %v3366, %v3567
        %v3666 = vadd.f32 %v3367, %v3648
        %v3667 = vadd.f32 %v3368, %v3650
        %v3668 = vadd.f32 %v3369, %v3571
        %v3669 = vadd.f32 %v3370, %v3573
        %v3670 = vadd.f32 %v3371, %v3654
        %v3671 = vadd.f32 %v3372, %v3656
        %v3672 = vadd.f32 %v3373, %v3577
        %v3673 = vadd.f32 %v3374, %v3579
        %v3674 = vadd.f32 %v3375, %v3660
        %v3675 = vadd.f32 %v3376, %v3662
        %s3676 = scalar_lea.vmem [#allocation7], 4608
        %v3677 = vld [vmem:[%s3676] sm:$0xff]
        %v3678 = vld [vmem:[%s3676 + $0x8] sm:$0xff]
        %v3679 = vld [vmem:[%s3676 + $0x10] sm:$0xff]
        %v3680 = vld [vmem:[%s3676 + $0x18] sm:$0xff]
        %v3681 = vld [vmem:[%s3676 + $0x20] sm:$0xff]
        %v3682 = vld [vmem:[%s3676 + $0x28] sm:$0xff]
        %v3683 = vld [vmem:[%s3676 + $0x30] sm:$0xff]
        %v3684 = vld [vmem:[%s3676 + $0x38] sm:$0xff]
        %v3685 = vld [vmem:[%s3676 + $0x40] sm:$0xff]
        %v3686 = vld [vmem:[%s3676 + $0x48] sm:$0xff]
        %v3687 = vld [vmem:[%s3676 + $0x50] sm:$0xff]
        %v3688 = vld [vmem:[%s3676 + $0x58] sm:$0xff]
        %v3689 = vld [vmem:[%s3676 + $0x60] sm:$0xff]
        %v3690 = vld [vmem:[%s3676 + $0x68] sm:$0xff]
        %v3691 = vld [vmem:[%s3676 + $0x70] sm:$0xff]
        %v3692 = vld [vmem:[%s3676 + $0x78] sm:$0xff]
        %v3693 = vld [vmem:[%s3676 + $0x80] sm:$0xff]
        %v3694 = vld [vmem:[%s3676 + $0x88] sm:$0xff]
        %v3695 = vld [vmem:[%s3676 + $0x90] sm:$0xff]
        %v3696 = vld [vmem:[%s3676 + $0x98] sm:$0xff]
        %v3697 = vld [vmem:[%s3676 + $0xa0] sm:$0xff]
        %v3698 = vld [vmem:[%s3676 + $0xa8] sm:$0xff]
        %v3699 = vld [vmem:[%s3676 + $0xb0] sm:$0xff]
        %v3700 = vld [vmem:[%s3676 + $0xb8] sm:$0xff]
        %v3701 = vld [vmem:[%s3676 + $0xc0] sm:$0xff]
        %v3702 = vld [vmem:[%s3676 + $0xc8] sm:$0xff]
        %v3703 = vld [vmem:[%s3676 + $0xd0] sm:$0xff]
        %v3704 = vld [vmem:[%s3676 + $0xd8] sm:$0xff]
        %v3705 = vld [vmem:[%s3676 + $0xe0] sm:$0xff]
        %v3706 = vld [vmem:[%s3676 + $0xe8] sm:$0xff]
        %v3707 = vld [vmem:[%s3676 + $0xf0] sm:$0xff]
        %v3708 = vld [vmem:[%s3676 + $0xf8] sm:$0xff]
        %v3709 = vld [vmem:[%s3676 + $0x100] sm:$0xff]
        %v3710 = vld [vmem:[%s3676 + $0x108] sm:$0xff]
        %v3711 = vld [vmem:[%s3676 + $0x110] sm:$0xff]
        %v3712 = vld [vmem:[%s3676 + $0x118] sm:$0xff]
        %v3713 = vld [vmem:[%s3676 + $0x120] sm:$0xff]
        %v3714 = vld [vmem:[%s3676 + $0x128] sm:$0xff]
        %v3715 = vld [vmem:[%s3676 + $0x130] sm:$0xff]
        %v3716 = vld [vmem:[%s3676 + $0x138] sm:$0xff]
        %v3717 = vld [vmem:[%s3676 + $0x140] sm:$0xff]
        %v3718 = vld [vmem:[%s3676 + $0x148] sm:$0xff]
        %v3719 = vld [vmem:[%s3676 + $0x150] sm:$0xff]
        %v3720 = vld [vmem:[%s3676 + $0x158] sm:$0xff]
        %v3721 = vld [vmem:[%s3676 + $0x160] sm:$0xff]
        %v3722 = vld [vmem:[%s3676 + $0x168] sm:$0xff]
        %v3723 = vld [vmem:[%s3676 + $0x170] sm:$0xff]
        %v3724 = vld [vmem:[%s3676 + $0x178] sm:$0xff]
        %v3725 = vld [vmem:[%s3676 + $0x180] sm:$0xff]
        %v3726 = vld [vmem:[%s3676 + $0x188] sm:$0xff]
        %v3727 = vld [vmem:[%s3676 + $0x190] sm:$0xff]
        %v3728 = vld [vmem:[%s3676 + $0x198] sm:$0xff]
        %v3729 = vld [vmem:[%s3676 + $0x1a0] sm:$0xff]
        %v3730 = vld [vmem:[%s3676 + $0x1a8] sm:$0xff]
        %v3731 = vld [vmem:[%s3676 + $0x1b0] sm:$0xff]
        %v3732 = vld [vmem:[%s3676 + $0x1b8] sm:$0xff]
        %v3733 = vld [vmem:[%s3676 + $0x1c0] sm:$0xff]
        %v3734 = vld [vmem:[%s3676 + $0x1c8] sm:$0xff]
        %v3735 = vld [vmem:[%s3676 + $0x1d0] sm:$0xff]
        %v3736 = vld [vmem:[%s3676 + $0x1d8] sm:$0xff]
        %v3737 = vld [vmem:[%s3676 + $0x1e0] sm:$0xff]
        %v3738 = vld [vmem:[%s3676 + $0x1e8] sm:$0xff]
        %v3739 = vld [vmem:[%s3676 + $0x1f0] sm:$0xff]
        %v3740 = vld [vmem:[%s3676 + $0x1f8] sm:$0xff]
        %v3741 = vld [vmem:[%s3676 + $0x200] sm:$0xff]
        %v3742 = vld [vmem:[%s3676 + $0x208] sm:$0xff]
        %v3743 = vld [vmem:[%s3676 + $0x210] sm:$0xff]
        %v3744 = vld [vmem:[%s3676 + $0x218] sm:$0xff]
        %v3745 = vld [vmem:[%s3676 + $0x220] sm:$0xff]
        %v3746 = vld [vmem:[%s3676 + $0x228] sm:$0xff]
        %v3747 = vld [vmem:[%s3676 + $0x230] sm:$0xff]
        %v3748 = vld [vmem:[%s3676 + $0x238] sm:$0xff]
        %v3749 = vld [vmem:[%s3676 + $0x240] sm:$0xff]
        %v3750 = vld [vmem:[%s3676 + $0x248] sm:$0xff]
        %v3751 = vld [vmem:[%s3676 + $0x250] sm:$0xff]
        %v3752 = vld [vmem:[%s3676 + $0x258] sm:$0xff]
        %v3753 = vld [vmem:[%s3676 + $0x260] sm:$0xff]
        %v3754 = vld [vmem:[%s3676 + $0x268] sm:$0xff]
        %v3755 = vld [vmem:[%s3676 + $0x270] sm:$0xff]
        %v3756 = vld [vmem:[%s3676 + $0x278] sm:$0xff]
        %v3757 = vld [vmem:[%s3676 + $0x280] sm:$0xff]
        %v3758 = vld [vmem:[%s3676 + $0x288] sm:$0xff]
        %v3759 = vld [vmem:[%s3676 + $0x290] sm:$0xff]
        %v3760 = vld [vmem:[%s3676 + $0x298] sm:$0xff]
        %v3761 = vld [vmem:[%s3676 + $0x2a0] sm:$0xff]
        %v3762 = vld [vmem:[%s3676 + $0x2a8] sm:$0xff]
        %v3763 = vld [vmem:[%s3676 + $0x2b0] sm:$0xff]
        %v3764 = vld [vmem:[%s3676 + $0x2b8] sm:$0xff]
        %v3765 = vld [vmem:[%s3676 + $0x2c0] sm:$0xff]
        %v3766 = vld [vmem:[%s3676 + $0x2c8] sm:$0xff]
        %v3767 = vld [vmem:[%s3676 + $0x2d0] sm:$0xff]
        %v3768 = vld [vmem:[%s3676 + $0x2d8] sm:$0xff]
        %v3769 = vld [vmem:[%s3676 + $0x2e0] sm:$0xff]
        %v3770 = vld [vmem:[%s3676 + $0x2e8] sm:$0xff]
        %v3771 = vld [vmem:[%s3676 + $0x2f0] sm:$0xff]
        %v3772 = vld [vmem:[%s3676 + $0x2f8] sm:$0xff]
        %v3773 = vrot.slane %v1907, 2
        %v3774 = vrot.slane %v1909, 2
        %v3775 = vsel %vm1512, %v3773, %v3774
        %v3776 = vrot.slane %v1908, 2
        %v3777 = vrot.slane %v1910, 2
        %v3778 = vsel %vm1512, %v3776, %v3777
        %v3779 = vrot.slane %v1911, 2
        %v3780 = vsel %vm1512, %v3774, %v3779
        %v3781 = vrot.slane %v1912, 2
        %v3782 = vsel %vm1512, %v3777, %v3781
        %v3783 = vrot.slane %v1913, 2
        %v3784 = vsel %vm1512, %v3779, %v3783
        %v3785 = vrot.slane %v1914, 2
        %v3786 = vsel %vm1512, %v3781, %v3785
        %v3790 = vsel %vm2133, %v3778, 0
        %v3792 = vsel %vm2133, %v3782, 0
        %v3794 = vsel %vm2133, %v3786, 0
        %3796 = vmatprep.subr.mxu0 %v3678
        %3797 = vmatpush1.msra.mxu0 %v3677
        %3798 = vmatprep.subr.mxu0 %v3682
        %3799 = vmatpush1.msra.mxu0 %v3681
        %3800 = vmatprep.subr.mxu0 %v3686
        %3801 = vmatpush1.msra.mxu0 %v3685
        %3802 = vmatprep.subr.mxu0 %v3690
        %3803 = vmatpush1.msra.mxu0 %v3689
        %3804 = vmatprep.subr.mxu0 %v3694
        %3805 = vmatpush1.msra.mxu0 %v3693
        %3806 = vmatprep.subr.mxu0 %v3698
        %3807 = vmatpush1.msra.mxu0 %v3697
        %3808 = vmatprep.subr.mxu0 %v3702
        %3809 = vmatpush1.msra.mxu0 %v3701
        %3810 = vmatprep.subr.mxu0 %v3706
        %3811 = vmatpush1.msra.mxu0 %v3705
        %3812 = vmatprep.subr.mxu0 %v3710
        %3813 = vmatpush1.msra.mxu0 %v3709
        %3814 = vmatprep.subr.mxu0 %v3714
        %3815 = vmatpush1.msra.mxu0 %v3713
        %3816 = vmatprep.subr.mxu0 %v3718
        %3817 = vmatpush1.msra.mxu0 %v3717
        %3818 = vmatprep.subr.mxu0 %v3722
        %3819 = vmatpush1.msra.mxu0 %v3721
        %3820 = vmatprep.subr.mxu0 %v3726
        %3821 = vmatpush1.msra.mxu0 %v3725
        %3822 = vmatprep.subr.mxu0 %v3730
        %3823 = vmatpush1.msra.mxu0 %v3729
        %3824 = vmatprep.subr.mxu0 %v3734
        %3825 = vmatpush1.msra.mxu0 %v3733
        %3826 = vmatprep.subr.mxu0 %v3738
        %3827 = vmatpush1.msra.mxu0 %v3737
        %3828 = vmatprep.subr.mxu0 %v3742
        %3829 = vmatpush1.msra.mxu0 %v3741
        %3830 = vmatprep.subr.mxu0 %v3746
        %3831 = vmatpush1.msra.mxu0 %v3745
        %3832 = vmatprep.subr.mxu0 %v3750
        %3833 = vmatpush1.msra.mxu0 %v3749
        %3834 = vmatprep.subr.mxu0 %v3754
        %3835 = vmatpush1.msra.mxu0 %v3753
        %3836 = vmatprep.subr.mxu0 %v3758
        %3837 = vmatpush1.msra.mxu0 %v3757
        %3838 = vmatprep.subr.mxu0 %v3762
        %3839 = vmatpush1.msra.mxu0 %v3761
        %3840 = vmatprep.subr.mxu0 %v3766
        %3841 = vmatpush1.msra.mxu0 %v3765
        %3842 = vmatprep.subr.mxu0 %v3770
        %3843 = vmatpush1.msra.mxu0 %v3769
        %3844 = vmatprep.subr.mxu0 0.0
        %3845 = vmatpush1.msra.mxu0 0.0
        %3846 = vmatprep.subr.mxu0 0.0
        %3847 = vmatpush1.msra.mxu0 0.0
        %3848 = vmatprep.subr.mxu0 0.0
        %3849 = vmatpush1.msra.mxu0 0.0
        %3850 = vmatprep.subr.mxu0 0.0
        %3851 = vmatpush1.msra.mxu0 0.0
        %3852 = vmatprep.subr.mxu0 0.0
        %3853 = vmatpush1.msra.mxu0 0.0
        %3854 = vmatprep.subr.mxu0 0.0
        %3855 = vmatpush1.msra.mxu0 0.0
        %3856 = vmatprep.subr.mxu0 0.0
        %3857 = vmatpush1.msra.mxu0 0.0
        %3858 = vmatprep.subr.mxu0 0.0
        %3859 = vmatpush1.msra.mxu0 0.0
        %3860 = vmatprep.mubr.f32.mxu0 %v3790
        %3861 = vmatmul.mubr.f32.gmra.mrb[0].mxu0 %v3775
        %v3862 = vpop.f32.mrb[0].mxu0
        %v3863 = vadd.f32 0.0, %v3862
        %v3864 = vpop.f32.mrb[0].mxu0
        %v3865 = vadd.f32 0.0, %v3864
        %3866 = vmatprep.mubr.f32.mxu0 %v3792
        %3867 = vmatmul.mubr.f32.gmra.mrb[0].mxu0 %v3780
        %v3868 = vpop.f32.mrb[0].mxu0
        %v3869 = vadd.f32 0.0, %v3868
        %v3870 = vpop.f32.mrb[0].mxu0
        %v3871 = vadd.f32 0.0, %v3870
        %3872 = vmatprep.mubr.f32.mxu0 %v3794
        %3873 = vmatmul.mubr.f32.gmra.mrb[0].mxu0 %v3784
        %v3874 = vpop.f32.mrb[0].mxu0
        %v3875 = vadd.f32 0.0, %v3874
        %v3876 = vpop.f32.mrb[0].mxu0
        %v3877 = vadd.f32 0.0, %v3876
        %3878 = vdwg.mxu0
        %3879 = vmatprep.subr.mxu0 %v3680
        %3880 = vmatpush1.msra.mxu0 %v3679
        %3881 = vmatprep.subr.mxu0 %v3684
        %3882 = vmatpush1.msra.mxu0 %v3683
        %3883 = vmatprep.subr.mxu0 %v3688
        %3884 = vmatpush1.msra.mxu0 %v3687
        %3885 = vmatprep.subr.mxu0 %v3692
        %3886 = vmatpush1.msra.mxu0 %v3691
        %3887 = vmatprep.subr.mxu0 %v3696
        %3888 = vmatpush1.msra.mxu0 %v3695
        %3889 = vmatprep.subr.mxu0 %v3700
        %3890 = vmatpush1.msra.mxu0 %v3699
        %3891 = vmatprep.subr.mxu0 %v3704
        %3892 = vmatpush1.msra.mxu0 %v3703
        %3893 = vmatprep.subr.mxu0 %v3708
        %3894 = vmatpush1.msra.mxu0 %v3707
        %3895 = vmatprep.subr.mxu0 %v3712
        %3896 = vmatpush1.msra.mxu0 %v3711
        %3897 = vmatprep.subr.mxu0 %v3716
        %3898 = vmatpush1.msra.mxu0 %v3715
        %3899 = vmatprep.subr.mxu0 %v3720
        %3900 = vmatpush1.msra.mxu0 %v3719
        %3901 = vmatprep.subr.mxu0 %v3724
        %3902 = vmatpush1.msra.mxu0 %v3723
        %3903 = vmatprep.subr.mxu0 %v3728
        %3904 = vmatpush1.msra.mxu0 %v3727
        %3905 = vmatprep.subr.mxu0 %v3732
        %3906 = vmatpush1.msra.mxu0 %v3731
        %3907 = vmatprep.subr.mxu0 %v3736
        %3908 = vmatpush1.msra.mxu0 %v3735
        %3909 = vmatprep.subr.mxu0 %v3740
        %3910 = vmatpush1.msra.mxu0 %v3739
        %3911 = vmatprep.subr.mxu0 %v3744
        %3912 = vmatpush1.msra.mxu0 %v3743
        %3913 = vmatprep.subr.mxu0 %v3748
        %3914 = vmatpush1.msra.mxu0 %v3747
        %3915 = vmatprep.subr.mxu0 %v3752
        %3916 = vmatpush1.msra.mxu0 %v3751
        %3917 = vmatprep.subr.mxu0 %v3756
        %3918 = vmatpush1.msra.mxu0 %v3755
        %3919 = vmatprep.subr.mxu0 %v3760
        %3920 = vmatpush1.msra.mxu0 %v3759
        %3921 = vmatprep.subr.mxu0 %v3764
        %3922 = vmatpush1.msra.mxu0 %v3763
        %3923 = vmatprep.subr.mxu0 %v3768
        %3924 = vmatpush1.msra.mxu0 %v3767
        %3925 = vmatprep.subr.mxu0 %v3772
        %3926 = vmatpush1.msra.mxu0 %v3771
        %3927 = vmatprep.subr.mxu0 0.0
        %3928 = vmatpush1.msra.mxu0 0.0
        %3929 = vmatprep.subr.mxu0 0.0
        %3930 = vmatpush1.msra.mxu0 0.0
        %3931 = vmatprep.subr.mxu0 0.0
        %3932 = vmatpush1.msra.mxu0 0.0
        %3933 = vmatprep.subr.mxu0 0.0
        %3934 = vmatpush1.msra.mxu0 0.0
        %3935 = vmatprep.subr.mxu0 0.0
        %3936 = vmatpush1.msra.mxu0 0.0
        %3937 = vmatprep.subr.mxu0 0.0
        %3938 = vmatpush1.msra.mxu0 0.0
        %3939 = vmatprep.subr.mxu0 0.0
        %3940 = vmatpush1.msra.mxu0 0.0
        %3941 = vmatprep.subr.mxu0 0.0
        %3942 = vmatpush1.msra.mxu0 0.0
        %3943 = vmatprep.mubr.f32.mxu0 %v3790
        %3944 = vmatmul.mubr.f32.gmra.mrb[0].mxu0 %v3775
        %v3945 = vpop.f32.mrb[0].mxu0
        %v3946 = vadd.f32 0.0, %v3945
        %v3947 = vpop.f32.mrb[0].mxu0
        %v3948 = vadd.f32 0.0, %v3947
        %3949 = vmatprep.mubr.f32.mxu0 %v3792
        %3950 = vmatmul.mubr.f32.gmra.mrb[0].mxu0 %v3780
        %v3951 = vpop.f32.mrb[0].mxu0
        %v3952 = vadd.f32 0.0, %v3951
        %v3953 = vpop.f32.mrb[0].mxu0
        %v3954 = vadd.f32 0.0, %v3953
        %3955 = vmatprep.mubr.f32.mxu0 %v3794
        %3956 = vmatmul.mubr.f32.gmra.mrb[0].mxu0 %v3784
        %v3957 = vpop.f32.mrb[0].mxu0
        %v3958 = vadd.f32 0.0, %v3957
        %v3959 = vpop.f32.mrb[0].mxu0
        %v3960 = vadd.f32 0.0, %v3959
        %3961 = vdwg.mxu0
        %v3962 = vadd.f32 %v3664, %v3863
        %v3963 = vadd.f32 %v3665, %v3865
        %v3964 = vadd.f32 %v3666, %v3946
        %v3965 = vadd.f32 %v3667, %v3948
        %v3966 = vadd.f32 %v3668, %v3869
        %v3967 = vadd.f32 %v3669, %v3871
        %v3968 = vadd.f32 %v3670, %v3952
        %v3969 = vadd.f32 %v3671, %v3954
        %v3970 = vadd.f32 %v3672, %v3875
        %v3971 = vadd.f32 %v3673, %v3877
        %v3972 = vadd.f32 %v3674, %v3958
        %v3973 = vadd.f32 %v3675, %v3960
        %s3974 = scalar_lea.vmem [#allocation7], 5376
        %v3975 = vld [vmem:[%s3974] sm:$0xff]
        %v3976 = vld [vmem:[%s3974 + $0x8] sm:$0xff]
        %v3977 = vld [vmem:[%s3974 + $0x10] sm:$0xff]
        %v3978 = vld [vmem:[%s3974 + $0x18] sm:$0xff]
        %v3979 = vld [vmem:[%s3974 + $0x20] sm:$0xff]
        %v3980 = vld [vmem:[%s3974 + $0x28] sm:$0xff]
        %v3981 = vld [vmem:[%s3974 + $0x30] sm:$0xff]
        %v3982 = vld [vmem:[%s3974 + $0x38] sm:$0xff]
        %v3983 = vld [vmem:[%s3974 + $0x40] sm:$0xff]
        %v3984 = vld [vmem:[%s3974 + $0x48] sm:$0xff]
        %v3985 = vld [vmem:[%s3974 + $0x50] sm:$0xff]
        %v3986 = vld [vmem:[%s3974 + $0x58] sm:$0xff]
        %v3987 = vld [vmem:[%s3974 + $0x60] sm:$0xff]
        %v3988 = vld [vmem:[%s3974 + $0x68] sm:$0xff]
        %v3989 = vld [vmem:[%s3974 + $0x70] sm:$0xff]
        %v3990 = vld [vmem:[%s3974 + $0x78] sm:$0xff]
        %v3991 = vld [vmem:[%s3974 + $0x80] sm:$0xff]
        %v3992 = vld [vmem:[%s3974 + $0x88] sm:$0xff]
        %v3993 = vld [vmem:[%s3974 + $0x90] sm:$0xff]
        %v3994 = vld [vmem:[%s3974 + $0x98] sm:$0xff]
        %v3995 = vld [vmem:[%s3974 + $0xa0] sm:$0xff]
        %v3996 = vld [vmem:[%s3974 + $0xa8] sm:$0xff]
        %v3997 = vld [vmem:[%s3974 + $0xb0] sm:$0xff]
        %v3998 = vld [vmem:[%s3974 + $0xb8] sm:$0xff]
        %v3999 = vld [vmem:[%s3974 + $0xc0] sm:$0xff]
        %v4000 = vld [vmem:[%s3974 + $0xc8] sm:$0xff]
        %v4001 = vld [vmem:[%s3974 + $0xd0] sm:$0xff]
        %v4002 = vld [vmem:[%s3974 + $0xd8] sm:$0xff]
        %v4003 = vld [vmem:[%s3974 + $0xe0] sm:$0xff]
        %v4004 = vld [vmem:[%s3974 + $0xe8] sm:$0xff]
        %v4005 = vld [vmem:[%s3974 + $0xf0] sm:$0xff]
        %v4006 = vld [vmem:[%s3974 + $0xf8] sm:$0xff]
        %v4007 = vld [vmem:[%s3974 + $0x100] sm:$0xff]
        %v4008 = vld [vmem:[%s3974 + $0x108] sm:$0xff]
        %v4009 = vld [vmem:[%s3974 + $0x110] sm:$0xff]
        %v4010 = vld [vmem:[%s3974 + $0x118] sm:$0xff]
        %v4011 = vld [vmem:[%s3974 + $0x120] sm:$0xff]
        %v4012 = vld [vmem:[%s3974 + $0x128] sm:$0xff]
        %v4013 = vld [vmem:[%s3974 + $0x130] sm:$0xff]
        %v4014 = vld [vmem:[%s3974 + $0x138] sm:$0xff]
        %v4015 = vld [vmem:[%s3974 + $0x140] sm:$0xff]
        %v4016 = vld [vmem:[%s3974 + $0x148] sm:$0xff]
        %v4017 = vld [vmem:[%s3974 + $0x150] sm:$0xff]
        %v4018 = vld [vmem:[%s3974 + $0x158] sm:$0xff]
        %v4019 = vld [vmem:[%s3974 + $0x160] sm:$0xff]
        %v4020 = vld [vmem:[%s3974 + $0x168] sm:$0xff]
        %v4021 = vld [vmem:[%s3974 + $0x170] sm:$0xff]
        %v4022 = vld [vmem:[%s3974 + $0x178] sm:$0xff]
        %v4023 = vld [vmem:[%s3974 + $0x180] sm:$0xff]
        %v4024 = vld [vmem:[%s3974 + $0x188] sm:$0xff]
        %v4025 = vld [vmem:[%s3974 + $0x190] sm:$0xff]
        %v4026 = vld [vmem:[%s3974 + $0x198] sm:$0xff]
        %v4027 = vld [vmem:[%s3974 + $0x1a0] sm:$0xff]
        %v4028 = vld [vmem:[%s3974 + $0x1a8] sm:$0xff]
        %v4029 = vld [vmem:[%s3974 + $0x1b0] sm:$0xff]
        %v4030 = vld [vmem:[%s3974 + $0x1b8] sm:$0xff]
        %v4031 = vld [vmem:[%s3974 + $0x1c0] sm:$0xff]
        %v4032 = vld [vmem:[%s3974 + $0x1c8] sm:$0xff]
        %v4033 = vld [vmem:[%s3974 + $0x1d0] sm:$0xff]
        %v4034 = vld [vmem:[%s3974 + $0x1d8] sm:$0xff]
        %v4035 = vld [vmem:[%s3974 + $0x1e0] sm:$0xff]
        %v4036 = vld [vmem:[%s3974 + $0x1e8] sm:$0xff]
        %v4037 = vld [vmem:[%s3974 + $0x1f0] sm:$0xff]
        %v4038 = vld [vmem:[%s3974 + $0x1f8] sm:$0xff]
        %v4039 = vld [vmem:[%s3974 + $0x200] sm:$0xff]
        %v4040 = vld [vmem:[%s3974 + $0x208] sm:$0xff]
        %v4041 = vld [vmem:[%s3974 + $0x210] sm:$0xff]
        %v4042 = vld [vmem:[%s3974 + $0x218] sm:$0xff]
        %v4043 = vld [vmem:[%s3974 + $0x220] sm:$0xff]
        %v4044 = vld [vmem:[%s3974 + $0x228] sm:$0xff]
        %v4045 = vld [vmem:[%s3974 + $0x230] sm:$0xff]
        %v4046 = vld [vmem:[%s3974 + $0x238] sm:$0xff]
        %v4047 = vld [vmem:[%s3974 + $0x240] sm:$0xff]
        %v4048 = vld [vmem:[%s3974 + $0x248] sm:$0xff]
        %v4049 = vld [vmem:[%s3974 + $0x250] sm:$0xff]
        %v4050 = vld [vmem:[%s3974 + $0x258] sm:$0xff]
        %v4051 = vld [vmem:[%s3974 + $0x260] sm:$0xff]
        %v4052 = vld [vmem:[%s3974 + $0x268] sm:$0xff]
        %v4053 = vld [vmem:[%s3974 + $0x270] sm:$0xff]
        %v4054 = vld [vmem:[%s3974 + $0x278] sm:$0xff]
        %v4055 = vld [vmem:[%s3974 + $0x280] sm:$0xff]
        %v4056 = vld [vmem:[%s3974 + $0x288] sm:$0xff]
        %v4057 = vld [vmem:[%s3974 + $0x290] sm:$0xff]
        %v4058 = vld [vmem:[%s3974 + $0x298] sm:$0xff]
        %v4059 = vld [vmem:[%s3974 + $0x2a0] sm:$0xff]
        %v4060 = vld [vmem:[%s3974 + $0x2a8] sm:$0xff]
        %v4061 = vld [vmem:[%s3974 + $0x2b0] sm:$0xff]
        %v4062 = vld [vmem:[%s3974 + $0x2b8] sm:$0xff]
        %v4063 = vld [vmem:[%s3974 + $0x2c0] sm:$0xff]
        %v4064 = vld [vmem:[%s3974 + $0x2c8] sm:$0xff]
        %v4065 = vld [vmem:[%s3974 + $0x2d0] sm:$0xff]
        %v4066 = vld [vmem:[%s3974 + $0x2d8] sm:$0xff]
        %v4067 = vld [vmem:[%s3974 + $0x2e0] sm:$0xff]
        %v4068 = vld [vmem:[%s3974 + $0x2e8] sm:$0xff]
        %v4069 = vld [vmem:[%s3974 + $0x2f0] sm:$0xff]
        %v4070 = vld [vmem:[%s3974 + $0x2f8] sm:$0xff]
        %4071 = vrot.lane.b32.xlu0 %v3775, 120
        %v4072 = vpop.permute.xlu0 %4071
        %4073 = vrot.lane.b32.xlu0 %v3778, 120
        %v4074 = vpop.permute.xlu0 %4073
        %4075 = vrot.lane.b32.xlu0 %v3780, 120
        %v4076 = vpop.permute.xlu0 %4075
        %4077 = vrot.lane.b32.xlu0 %v3782, 120
        %v4078 = vpop.permute.xlu0 %4077
        %4079 = vrot.lane.b32.xlu0 %v3784, 120
        %v4080 = vpop.permute.xlu0 %4079
        %4081 = vrot.lane.b32.xlu0 %v3786, 120
        %v4082 = vpop.permute.xlu0 %4081
        %v4083 = vsel %vm2126, %v4072, %v4074
        %v4084 = vsel %vm2126, %v4076, %v4078
        %v4085 = vsel %vm2126, %v4080, %v4082
        %v4089 = vsel %vm2133, %v4074, 0
        %v4091 = vsel %vm2133, %v4078, 0
        %v4093 = vsel %vm2133, %v4082, 0
        %4095 = vmatprep.subr.mxu0 %v3976
        %4096 = vmatpush1.msra.mxu0 %v3975
        %4097 = vmatprep.subr.mxu0 %v3980
        %4098 = vmatpush1.msra.mxu0 %v3979
        %4099 = vmatprep.subr.mxu0 %v3984
        %4100 = vmatpush1.msra.mxu0 %v3983
        %4101 = vmatprep.subr.mxu0 %v3988
        %4102 = vmatpush1.msra.mxu0 %v3987
        %4103 = vmatprep.subr.mxu0 %v3992
        %4104 = vmatpush1.msra.mxu0 %v3991
        %4105 = vmatprep.subr.mxu0 %v3996
        %4106 = vmatpush1.msra.mxu0 %v3995
        %4107 = vmatprep.subr.mxu0 %v4000
        %4108 = vmatpush1.msra.mxu0 %v3999
        %4109 = vmatprep.subr.mxu0 %v4004
        %4110 = vmatpush1.msra.mxu0 %v4003
        %4111 = vmatprep.subr.mxu0 %v4008
        %4112 = vmatpush1.msra.mxu0 %v4007
        %4113 = vmatprep.subr.mxu0 %v4012
        %4114 = vmatpush1.msra.mxu0 %v4011
        %4115 = vmatprep.subr.mxu0 %v4016
        %4116 = vmatpush1.msra.mxu0 %v4015
        %4117 = vmatprep.subr.mxu0 %v4020
        %4118 = vmatpush1.msra.mxu0 %v4019
        %4119 = vmatprep.subr.mxu0 %v4024
        %4120 = vmatpush1.msra.mxu0 %v4023
        %4121 = vmatprep.subr.mxu0 %v4028
        %4122 = vmatpush1.msra.mxu0 %v4027
        %4123 = vmatprep.subr.mxu0 %v4032
        %4124 = vmatpush1.msra.mxu0 %v4031
        %4125 = vmatprep.subr.mxu0 %v4036
        %4126 = vmatpush1.msra.mxu0 %v4035
        %4127 = vmatprep.subr.mxu0 %v4040
        %4128 = vmatpush1.msra.mxu0 %v4039
        %4129 = vmatprep.subr.mxu0 %v4044
        %4130 = vmatpush1.msra.mxu0 %v4043
        %4131 = vmatprep.subr.mxu0 %v4048
        %4132 = vmatpush1.msra.mxu0 %v4047
        %4133 = vmatprep.subr.mxu0 %v4052
        %4134 = vmatpush1.msra.mxu0 %v4051
        %4135 = vmatprep.subr.mxu0 %v4056
        %4136 = vmatpush1.msra.mxu0 %v4055
        %4137 = vmatprep.subr.mxu0 %v4060
        %4138 = vmatpush1.msra.mxu0 %v4059
        %4139 = vmatprep.subr.mxu0 %v4064
        %4140 = vmatpush1.msra.mxu0 %v4063
        %4141 = vmatprep.subr.mxu0 %v4068
        %4142 = vmatpush1.msra.mxu0 %v4067
        %4143 = vmatprep.subr.mxu0 0.0
        %4144 = vmatpush1.msra.mxu0 0.0
        %4145 = vmatprep.subr.mxu0 0.0
        %4146 = vmatpush1.msra.mxu0 0.0
        %4147 = vmatprep.subr.mxu0 0.0
        %4148 = vmatpush1.msra.mxu0 0.0
        %4149 = vmatprep.subr.mxu0 0.0
        %4150 = vmatpush1.msra.mxu0 0.0
        %4151 = vmatprep.subr.mxu0 0.0
        %4152 = vmatpush1.msra.mxu0 0.0
        %4153 = vmatprep.subr.mxu0 0.0
        %4154 = vmatpush1.msra.mxu0 0.0
        %4155 = vmatprep.subr.mxu0 0.0
        %4156 = vmatpush1.msra.mxu0 0.0
        %4157 = vmatprep.subr.mxu0 0.0
        %4158 = vmatpush1.msra.mxu0 0.0
        %4159 = vmatprep.mubr.f32.mxu0 %v4089
        %4160 = vmatmul.mubr.f32.gmra.mrb[0].mxu0 %v4083
        %v4161 = vpop.f32.mrb[0].mxu0
        %v4162 = vadd.f32 0.0, %v4161
        %v4163 = vpop.f32.mrb[0].mxu0
        %v4164 = vadd.f32 0.0, %v4163
        %4165 = vmatprep.mubr.f32.mxu0 %v4091
        %4166 = vmatmul.mubr.f32.gmra.mrb[0].mxu0 %v4084
        %v4167 = vpop.f32.mrb[0].mxu0
        %v4168 = vadd.f32 0.0, %v4167
        %v4169 = vpop.f32.mrb[0].mxu0
        %v4170 = vadd.f32 0.0, %v4169
        %4171 = vmatprep.mubr.f32.mxu0 %v4093
        %4172 = vmatmul.mubr.f32.gmra.mrb[0].mxu0 %v4085
        %v4173 = vpop.f32.mrb[0].mxu0
        %v4174 = vadd.f32 0.0, %v4173
        %v4175 = vpop.f32.mrb[0].mxu0
        %v4176 = vadd.f32 0.0, %v4175
        %4177 = vdwg.mxu0
        %4178 = vmatprep.subr.mxu0 %v3978
        %4179 = vmatpush1.msra.mxu0 %v3977
        %4180 = vmatprep.subr.mxu0 %v3982
        %4181 = vmatpush1.msra.mxu0 %v3981
        %4182 = vmatprep.subr.mxu0 %v3986
        %4183 = vmatpush1.msra.mxu0 %v3985
        %4184 = vmatprep.subr.mxu0 %v3990
        %4185 = vmatpush1.msra.mxu0 %v3989
        %4186 = vmatprep.subr.mxu0 %v3994
        %4187 = vmatpush1.msra.mxu0 %v3993
        %4188 = vmatprep.subr.mxu0 %v3998
        %4189 = vmatpush1.msra.mxu0 %v3997
        %4190 = vmatprep.subr.mxu0 %v4002
        %4191 = vmatpush1.msra.mxu0 %v4001
        %4192 = vmatprep.subr.mxu0 %v4006
        %4193 = vmatpush1.msra.mxu0 %v4005
        %4194 = vmatprep.subr.mxu0 %v4010
        %4195 = vmatpush1.msra.mxu0 %v4009
        %4196 = vmatprep.subr.mxu0 %v4014
        %4197 = vmatpush1.msra.mxu0 %v4013
        %4198 = vmatprep.subr.mxu0 %v4018
        %4199 = vmatpush1.msra.mxu0 %v4017
        %4200 = vmatprep.subr.mxu0 %v4022
        %4201 = vmatpush1.msra.mxu0 %v4021
        %4202 = vmatprep.subr.mxu0 %v4026
        %4203 = vmatpush1.msra.mxu0 %v4025
        %4204 = vmatprep.subr.mxu0 %v4030
        %4205 = vmatpush1.msra.mxu0 %v4029
        %4206 = vmatprep.subr.mxu0 %v4034
        %4207 = vmatpush1.msra.mxu0 %v4033
        %4208 = vmatprep.subr.mxu0 %v4038
        %4209 = vmatpush1.msra.mxu0 %v4037
        %4210 = vmatprep.subr.mxu0 %v4042
        %4211 = vmatpush1.msra.mxu0 %v4041
        %4212 = vmatprep.subr.mxu0 %v4046
        %4213 = vmatpush1.msra.mxu0 %v4045
        %4214 = vmatprep.subr.mxu0 %v4050
        %4215 = vmatpush1.msra.mxu0 %v4049
        %4216 = vmatprep.subr.mxu0 %v4054
        %4217 = vmatpush1.msra.mxu0 %v4053
        %4218 = vmatprep.subr.mxu0 %v4058
        %4219 = vmatpush1.msra.mxu0 %v4057
        %4220 = vmatprep.subr.mxu0 %v4062
        %4221 = vmatpush1.msra.mxu0 %v4061
        %4222 = vmatprep.subr.mxu0 %v4066
        %4223 = vmatpush1.msra.mxu0 %v4065
        %4224 = vmatprep.subr.mxu0 %v4070
        %4225 = vmatpush1.msra.mxu0 %v4069
        %4226 = vmatprep.subr.mxu0 0.0
        %4227 = vmatpush1.msra.mxu0 0.0
        %4228 = vmatprep.subr.mxu0 0.0
        %4229 = vmatpush1.msra.mxu0 0.0
        %4230 = vmatprep.subr.mxu0 0.0
        %4231 = vmatpush1.msra.mxu0 0.0
        %4232 = vmatprep.subr.mxu0 0.0
        %4233 = vmatpush1.msra.mxu0 0.0
        %4234 = vmatprep.subr.mxu0 0.0
        %4235 = vmatpush1.msra.mxu0 0.0
        %4236 = vmatprep.subr.mxu0 0.0
        %4237 = vmatpush1.msra.mxu0 0.0
        %4238 = vmatprep.subr.mxu0 0.0
        %4239 = vmatpush1.msra.mxu0 0.0
        %4240 = vmatprep.subr.mxu0 0.0
        %4241 = vmatpush1.msra.mxu0 0.0
        %4242 = vmatprep.mubr.f32.mxu0 %v4089
        %4243 = vmatmul.mubr.f32.gmra.mrb[0].mxu0 %v4083
        %v4244 = vpop.f32.mrb[0].mxu0
        %v4245 = vadd.f32 0.0, %v4244
        %v4246 = vpop.f32.mrb[0].mxu0
        %v4247 = vadd.f32 0.0, %v4246
        %4248 = vmatprep.mubr.f32.mxu0 %v4091
        %4249 = vmatmul.mubr.f32.gmra.mrb[0].mxu0 %v4084
        %v4250 = vpop.f32.mrb[0].mxu0
        %v4251 = vadd.f32 0.0, %v4250
        %v4252 = vpop.f32.mrb[0].mxu0
        %v4253 = vadd.f32 0.0, %v4252
        %4254 = vmatprep.mubr.f32.mxu0 %v4093
        %4255 = vmatmul.mubr.f32.gmra.mrb[0].mxu0 %v4085
        %v4256 = vpop.f32.mrb[0].mxu0
        %v4257 = vadd.f32 0.0, %v4256
        %v4258 = vpop.f32.mrb[0].mxu0
        %v4259 = vadd.f32 0.0, %v4258
        %4260 = vdwg.mxu0
        %v4261 = vadd.f32 %v3962, %v4162
        %v4262 = vadd.f32 %v3963, %v4164
        %v4263 = vadd.f32 %v3964, %v4245
        %v4264 = vadd.f32 %v3965, %v4247
        %v4265 = vadd.f32 %v3966, %v4168
        %v4266 = vadd.f32 %v3967, %v4170
        %v4267 = vadd.f32 %v3968, %v4251
        %v4268 = vadd.f32 %v3969, %v4253
        %v4269 = vadd.f32 %v3970, %v4174
        %v4270 = vadd.f32 %v3971, %v4176
        %v4271 = vadd.f32 %v3972, %v4257
        %v4272 = vadd.f32 %v3973, %v4259
        %s4273 = scalar_lea.vmem [#allocation7], 6144
        %v4274 = vld [vmem:[%s4273] sm:$0xff]
        %v4275 = vld [vmem:[%s4273 + $0x8] sm:$0xff]
        %v4276 = vld [vmem:[%s4273 + $0x10] sm:$0xff]
        %v4277 = vld [vmem:[%s4273 + $0x18] sm:$0xff]
        %v4278 = vld [vmem:[%s4273 + $0x20] sm:$0xff]
        %v4279 = vld [vmem:[%s4273 + $0x28] sm:$0xff]
        %v4280 = vld [vmem:[%s4273 + $0x30] sm:$0xff]
        %v4281 = vld [vmem:[%s4273 + $0x38] sm:$0xff]
        %v4282 = vld [vmem:[%s4273 + $0x40] sm:$0xff]
        %v4283 = vld [vmem:[%s4273 + $0x48] sm:$0xff]
        %v4284 = vld [vmem:[%s4273 + $0x50] sm:$0xff]
        %v4285 = vld [vmem:[%s4273 + $0x58] sm:$0xff]
        %v4286 = vld [vmem:[%s4273 + $0x60] sm:$0xff]
        %v4287 = vld [vmem:[%s4273 + $0x68] sm:$0xff]
        %v4288 = vld [vmem:[%s4273 + $0x70] sm:$0xff]
        %v4289 = vld [vmem:[%s4273 + $0x78] sm:$0xff]
        %v4290 = vld [vmem:[%s4273 + $0x80] sm:$0xff]
        %v4291 = vld [vmem:[%s4273 + $0x88] sm:$0xff]
        %v4292 = vld [vmem:[%s4273 + $0x90] sm:$0xff]
        %v4293 = vld [vmem:[%s4273 + $0x98] sm:$0xff]
        %v4294 = vld [vmem:[%s4273 + $0xa0] sm:$0xff]
        %v4295 = vld [vmem:[%s4273 + $0xa8] sm:$0xff]
        %v4296 = vld [vmem:[%s4273 + $0xb0] sm:$0xff]
        %v4297 = vld [vmem:[%s4273 + $0xb8] sm:$0xff]
        %v4298 = vld [vmem:[%s4273 + $0xc0] sm:$0xff]
        %v4299 = vld [vmem:[%s4273 + $0xc8] sm:$0xff]
        %v4300 = vld [vmem:[%s4273 + $0xd0] sm:$0xff]
        %v4301 = vld [vmem:[%s4273 + $0xd8] sm:$0xff]
        %v4302 = vld [vmem:[%s4273 + $0xe0] sm:$0xff]
        %v4303 = vld [vmem:[%s4273 + $0xe8] sm:$0xff]
        %v4304 = vld [vmem:[%s4273 + $0xf0] sm:$0xff]
        %v4305 = vld [vmem:[%s4273 + $0xf8] sm:$0xff]
        %v4306 = vld [vmem:[%s4273 + $0x100] sm:$0xff]
        %v4307 = vld [vmem:[%s4273 + $0x108] sm:$0xff]
        %v4308 = vld [vmem:[%s4273 + $0x110] sm:$0xff]
        %v4309 = vld [vmem:[%s4273 + $0x118] sm:$0xff]
        %v4310 = vld [vmem:[%s4273 + $0x120] sm:$0xff]
        %v4311 = vld [vmem:[%s4273 + $0x128] sm:$0xff]
        %v4312 = vld [vmem:[%s4273 + $0x130] sm:$0xff]
        %v4313 = vld [vmem:[%s4273 + $0x138] sm:$0xff]
        %v4314 = vld [vmem:[%s4273 + $0x140] sm:$0xff]
        %v4315 = vld [vmem:[%s4273 + $0x148] sm:$0xff]
        %v4316 = vld [vmem:[%s4273 + $0x150] sm:$0xff]
        %v4317 = vld [vmem:[%s4273 + $0x158] sm:$0xff]
        %v4318 = vld [vmem:[%s4273 + $0x160] sm:$0xff]
        %v4319 = vld [vmem:[%s4273 + $0x168] sm:$0xff]
        %v4320 = vld [vmem:[%s4273 + $0x170] sm:$0xff]
        %v4321 = vld [vmem:[%s4273 + $0x178] sm:$0xff]
        %v4322 = vld [vmem:[%s4273 + $0x180] sm:$0xff]
        %v4323 = vld [vmem:[%s4273 + $0x188] sm:$0xff]
        %v4324 = vld [vmem:[%s4273 + $0x190] sm:$0xff]
        %v4325 = vld [vmem:[%s4273 + $0x198] sm:$0xff]
        %v4326 = vld [vmem:[%s4273 + $0x1a0] sm:$0xff]
        %v4327 = vld [vmem:[%s4273 + $0x1a8] sm:$0xff]
        %v4328 = vld [vmem:[%s4273 + $0x1b0] sm:$0xff]
        %v4329 = vld [vmem:[%s4273 + $0x1b8] sm:$0xff]
        %v4330 = vld [vmem:[%s4273 + $0x1c0] sm:$0xff]
        %v4331 = vld [vmem:[%s4273 + $0x1c8] sm:$0xff]
        %v4332 = vld [vmem:[%s4273 + $0x1d0] sm:$0xff]
        %v4333 = vld [vmem:[%s4273 + $0x1d8] sm:$0xff]
        %v4334 = vld [vmem:[%s4273 + $0x1e0] sm:$0xff]
        %v4335 = vld [vmem:[%s4273 + $0x1e8] sm:$0xff]
        %v4336 = vld [vmem:[%s4273 + $0x1f0] sm:$0xff]
        %v4337 = vld [vmem:[%s4273 + $0x1f8] sm:$0xff]
        %v4338 = vld [vmem:[%s4273 + $0x200] sm:$0xff]
        %v4339 = vld [vmem:[%s4273 + $0x208] sm:$0xff]
        %v4340 = vld [vmem:[%s4273 + $0x210] sm:$0xff]
        %v4341 = vld [vmem:[%s4273 + $0x218] sm:$0xff]
        %v4342 = vld [vmem:[%s4273 + $0x220] sm:$0xff]
        %v4343 = vld [vmem:[%s4273 + $0x228] sm:$0xff]
        %v4344 = vld [vmem:[%s4273 + $0x230] sm:$0xff]
        %v4345 = vld [vmem:[%s4273 + $0x238] sm:$0xff]
        %v4346 = vld [vmem:[%s4273 + $0x240] sm:$0xff]
        %v4347 = vld [vmem:[%s4273 + $0x248] sm:$0xff]
        %v4348 = vld [vmem:[%s4273 + $0x250] sm:$0xff]
        %v4349 = vld [vmem:[%s4273 + $0x258] sm:$0xff]
        %v4350 = vld [vmem:[%s4273 + $0x260] sm:$0xff]
        %v4351 = vld [vmem:[%s4273 + $0x268] sm:$0xff]
        %v4352 = vld [vmem:[%s4273 + $0x270] sm:$0xff]
        %v4353 = vld [vmem:[%s4273 + $0x278] sm:$0xff]
        %v4354 = vld [vmem:[%s4273 + $0x280] sm:$0xff]
        %v4355 = vld [vmem:[%s4273 + $0x288] sm:$0xff]
        %v4356 = vld [vmem:[%s4273 + $0x290] sm:$0xff]
        %v4357 = vld [vmem:[%s4273 + $0x298] sm:$0xff]
        %v4358 = vld [vmem:[%s4273 + $0x2a0] sm:$0xff]
        %v4359 = vld [vmem:[%s4273 + $0x2a8] sm:$0xff]
        %v4360 = vld [vmem:[%s4273 + $0x2b0] sm:$0xff]
        %v4361 = vld [vmem:[%s4273 + $0x2b8] sm:$0xff]
        %v4362 = vld [vmem:[%s4273 + $0x2c0] sm:$0xff]
        %v4363 = vld [vmem:[%s4273 + $0x2c8] sm:$0xff]
        %v4364 = vld [vmem:[%s4273 + $0x2d0] sm:$0xff]
        %v4365 = vld [vmem:[%s4273 + $0x2d8] sm:$0xff]
        %v4366 = vld [vmem:[%s4273 + $0x2e0] sm:$0xff]
        %v4367 = vld [vmem:[%s4273 + $0x2e8] sm:$0xff]
        %v4368 = vld [vmem:[%s4273 + $0x2f0] sm:$0xff]
        %v4369 = vld [vmem:[%s4273 + $0x2f8] sm:$0xff]
        %4370 = vrot.lane.b32.xlu0 %v3775, 112
        %v4371 = vpop.permute.xlu0 %4370
        %4372 = vrot.lane.b32.xlu0 %v3778, 112
        %v4373 = vpop.permute.xlu0 %4372
        %4374 = vrot.lane.b32.xlu0 %v3780, 112
        %v4375 = vpop.permute.xlu0 %4374
        %4376 = vrot.lane.b32.xlu0 %v3782, 112
        %v4377 = vpop.permute.xlu0 %4376
        %4378 = vrot.lane.b32.xlu0 %v3784, 112
        %v4379 = vpop.permute.xlu0 %4378
        %4380 = vrot.lane.b32.xlu0 %v3786, 112
        %v4381 = vpop.permute.xlu0 %4380
        %v4382 = vsel %vm2587, %v4371, %v4373
        %v4383 = vsel %vm2587, %v4375, %v4377
        %v4384 = vsel %vm2587, %v4379, %v4381
        %v4388 = vsel %vm2133, %v4373, 0
        %v4390 = vsel %vm2133, %v4377, 0
        %v4392 = vsel %vm2133, %v4381, 0
        %4394 = vmatprep.subr.mxu0 %v4275
        %4395 = vmatpush1.msra.mxu0 %v4274
        %4396 = vmatprep.subr.mxu0 %v4279
        %4397 = vmatpush1.msra.mxu0 %v4278
        %4398 = vmatprep.subr.mxu0 %v4283
        %4399 = vmatpush1.msra.mxu0 %v4282
        %4400 = vmatprep.subr.mxu0 %v4287
        %4401 = vmatpush1.msra.mxu0 %v4286
        %4402 = vmatprep.subr.mxu0 %v4291
        %4403 = vmatpush1.msra.mxu0 %v4290
        %4404 = vmatprep.subr.mxu0 %v4295
        %4405 = vmatpush1.msra.mxu0 %v4294
        %4406 = vmatprep.subr.mxu0 %v4299
        %4407 = vmatpush1.msra.mxu0 %v4298
        %4408 = vmatprep.subr.mxu0 %v4303
        %4409 = vmatpush1.msra.mxu0 %v4302
        %4410 = vmatprep.subr.mxu0 %v4307
        %4411 = vmatpush1.msra.mxu0 %v4306
        %4412 = vmatprep.subr.mxu0 %v4311
        %4413 = vmatpush1.msra.mxu0 %v4310
        %4414 = vmatprep.subr.mxu0 %v4315
        %4415 = vmatpush1.msra.mxu0 %v4314
        %4416 = vmatprep.subr.mxu0 %v4319
        %4417 = vmatpush1.msra.mxu0 %v4318
        %4418 = vmatprep.subr.mxu0 %v4323
        %4419 = vmatpush1.msra.mxu0 %v4322
        %4420 = vmatprep.subr.mxu0 %v4327
        %4421 = vmatpush1.msra.mxu0 %v4326
        %4422 = vmatprep.subr.mxu0 %v4331
        %4423 = vmatpush1.msra.mxu0 %v4330
        %4424 = vmatprep.subr.mxu0 %v4335
        %4425 = vmatpush1.msra.mxu0 %v4334
        %4426 = vmatprep.subr.mxu0 %v4339
        %4427 = vmatpush1.msra.mxu0 %v4338
        %4428 = vmatprep.subr.mxu0 %v4343
        %4429 = vmatpush1.msra.mxu0 %v4342
        %4430 = vmatprep.subr.mxu0 %v4347
        %4431 = vmatpush1.msra.mxu0 %v4346
        %4432 = vmatprep.subr.mxu0 %v4351
        %4433 = vmatpush1.msra.mxu0 %v4350
        %4434 = vmatprep.subr.mxu0 %v4355
        %4435 = vmatpush1.msra.mxu0 %v4354
        %4436 = vmatprep.subr.mxu0 %v4359
        %4437 = vmatpush1.msra.mxu0 %v4358
        %4438 = vmatprep.subr.mxu0 %v4363
        %4439 = vmatpush1.msra.mxu0 %v4362
        %4440 = vmatprep.subr.mxu0 %v4367
        %4441 = vmatpush1.msra.mxu0 %v4366
        %4442 = vmatprep.subr.mxu0 0.0
        %4443 = vmatpush1.msra.mxu0 0.0
        %4444 = vmatprep.subr.mxu0 0.0
        %4445 = vmatpush1.msra.mxu0 0.0
        %4446 = vmatprep.subr.mxu0 0.0
        %4447 = vmatpush1.msra.mxu0 0.0
        %4448 = vmatprep.subr.mxu0 0.0
        %4449 = vmatpush1.msra.mxu0 0.0
        %4450 = vmatprep.subr.mxu0 0.0
        %4451 = vmatpush1.msra.mxu0 0.0
        %4452 = vmatprep.subr.mxu0 0.0
        %4453 = vmatpush1.msra.mxu0 0.0
        %4454 = vmatprep.subr.mxu0 0.0
        %4455 = vmatpush1.msra.mxu0 0.0
        %4456 = vmatprep.subr.mxu0 0.0
        %4457 = vmatpush1.msra.mxu0 0.0
        %4458 = vmatprep.mubr.f32.mxu0 %v4388
        %4459 = vmatmul.mubr.f32.gmra.mrb[0].mxu0 %v4382
        %v4460 = vpop.f32.mrb[0].mxu0
        %v4461 = vadd.f32 0.0, %v4460
        %v4462 = vpop.f32.mrb[0].mxu0
        %v4463 = vadd.f32 0.0, %v4462
        %4464 = vmatprep.mubr.f32.mxu0 %v4390
        %4465 = vmatmul.mubr.f32.gmra.mrb[0].mxu0 %v4383
        %v4466 = vpop.f32.mrb[0].mxu0
        %v4467 = vadd.f32 0.0, %v4466
        %v4468 = vpop.f32.mrb[0].mxu0
        %v4469 = vadd.f32 0.0, %v4468
        %4470 = vmatprep.mubr.f32.mxu0 %v4392
        %4471 = vmatmul.mubr.f32.gmra.mrb[0].mxu0 %v4384
        %v4472 = vpop.f32.mrb[0].mxu0
        %v4473 = vadd.f32 0.0, %v4472
        %v4474 = vpop.f32.mrb[0].mxu0
        %v4475 = vadd.f32 0.0, %v4474
        %4476 = vdwg.mxu0
        %4477 = vmatprep.subr.mxu0 %v4277
        %4478 = vmatpush1.msra.mxu0 %v4276
        %4479 = vmatprep.subr.mxu0 %v4281
        %4480 = vmatpush1.msra.mxu0 %v4280
        %4481 = vmatprep.subr.mxu0 %v4285
        %4482 = vmatpush1.msra.mxu0 %v4284
        %4483 = vmatprep.subr.mxu0 %v4289
        %4484 = vmatpush1.msra.mxu0 %v4288
        %4485 = vmatprep.subr.mxu0 %v4293
        %4486 = vmatpush1.msra.mxu0 %v4292
        %4487 = vmatprep.subr.mxu0 %v4297
        %4488 = vmatpush1.msra.mxu0 %v4296
        %4489 = vmatprep.subr.mxu0 %v4301
        %4490 = vmatpush1.msra.mxu0 %v4300
        %4491 = vmatprep.subr.mxu0 %v4305
        %4492 = vmatpush1.msra.mxu0 %v4304
        %4493 = vmatprep.subr.mxu0 %v4309
        %4494 = vmatpush1.msra.mxu0 %v4308
        %4495 = vmatprep.subr.mxu0 %v4313
        %4496 = vmatpush1.msra.mxu0 %v4312
        %4497 = vmatprep.subr.mxu0 %v4317
        %4498 = vmatpush1.msra.mxu0 %v4316
        %4499 = vmatprep.subr.mxu0 %v4321
        %4500 = vmatpush1.msra.mxu0 %v4320
        %4501 = vmatprep.subr.mxu0 %v4325
        %4502 = vmatpush1.msra.mxu0 %v4324
        %4503 = vmatprep.subr.mxu0 %v4329
        %4504 = vmatpush1.msra.mxu0 %v4328
        %4505 = vmatprep.subr.mxu0 %v4333
        %4506 = vmatpush1.msra.mxu0 %v4332
        %4507 = vmatprep.subr.mxu0 %v4337
        %4508 = vmatpush1.msra.mxu0 %v4336
        %4509 = vmatprep.subr.mxu0 %v4341
        %4510 = vmatpush1.msra.mxu0 %v4340
        %4511 = vmatprep.subr.mxu0 %v4345
        %4512 = vmatpush1.msra.mxu0 %v4344
        %4513 = vmatprep.subr.mxu0 %v4349
        %4514 = vmatpush1.msra.mxu0 %v4348
        %4515 = vmatprep.subr.mxu0 %v4353
        %4516 = vmatpush1.msra.mxu0 %v4352
        %4517 = vmatprep.subr.mxu0 %v4357
        %4518 = vmatpush1.msra.mxu0 %v4356
        %4519 = vmatprep.subr.mxu0 %v4361
        %4520 = vmatpush1.msra.mxu0 %v4360
        %4521 = vmatprep.subr.mxu0 %v4365
        %4522 = vmatpush1.msra.mxu0 %v4364
        %4523 = vmatprep.subr.mxu0 %v4369
        %4524 = vmatpush1.msra.mxu0 %v4368
        %4525 = vmatprep.subr.mxu0 0.0
        %4526 = vmatpush1.msra.mxu0 0.0
        %4527 = vmatprep.subr.mxu0 0.0
        %4528 = vmatpush1.msra.mxu0 0.0
        %4529 = vmatprep.subr.mxu0 0.0
        %4530 = vmatpush1.msra.mxu0 0.0
        %4531 = vmatprep.subr.mxu0 0.0
        %4532 = vmatpush1.msra.mxu0 0.0
        %4533 = vmatprep.subr.mxu0 0.0
        %4534 = vmatpush1.msra.mxu0 0.0
        %4535 = vmatprep.subr.mxu0 0.0
        %4536 = vmatpush1.msra.mxu0 0.0
        %4537 = vmatprep.subr.mxu0 0.0
        %4538 = vmatpush1.msra.mxu0 0.0
        %4539 = vmatprep.subr.mxu0 0.0
        %4540 = vmatpush1.msra.mxu0 0.0
        %4541 = vmatprep.mubr.f32.mxu0 %v4388
        %4542 = vmatmul.mubr.f32.gmra.mrb[0].mxu0 %v4382
        %v4543 = vpop.f32.mrb[0].mxu0
        %v4544 = vadd.f32 0.0, %v4543
        %v4545 = vpop.f32.mrb[0].mxu0
        %v4546 = vadd.f32 0.0, %v4545
        %4547 = vmatprep.mubr.f32.mxu0 %v4390
        %4548 = vmatmul.mubr.f32.gmra.mrb[0].mxu0 %v4383
        %v4549 = vpop.f32.mrb[0].mxu0
        %v4550 = vadd.f32 0.0, %v4549
        %v4551 = vpop.f32.mrb[0].mxu0
        %v4552 = vadd.f32 0.0, %v4551
        %4553 = vmatprep.mubr.f32.mxu0 %v4392
        %4554 = vmatmul.mubr.f32.gmra.mrb[0].mxu0 %v4384
        %v4555 = vpop.f32.mrb[0].mxu0
        %v4556 = vadd.f32 0.0, %v4555
        %v4557 = vpop.f32.mrb[0].mxu0
        %v4558 = vadd.f32 0.0, %v4557
        %4559 = vdwg.mxu0
        %v4560 = vadd.f32 %v4261, %v4461
        %v4561 = vadd.f32 %v4262, %v4463
        %v4562 = vadd.f32 %v4263, %v4544
        %v4563 = vadd.f32 %v4264, %v4546
        %v4564 = vadd.f32 %v4265, %v4467
        %v4565 = vadd.f32 %v4266, %v4469
        %v4566 = vadd.f32 %v4267, %v4550
        %v4567 = vadd.f32 %v4268, %v4552
        %v4568 = vadd.f32 %v4269, %v4473
        %v4569 = vadd.f32 %v4270, %v4475
        %v4570 = vadd.f32 %v4271, %v4556
        %v4571 = vadd.f32 %v4272, %v4558
        %v4572 = vld [vmem:[#allocation8] sm:$0xf]
        %v4574 = vlaneseq
        %v4575 = vshrl.u32 %v4574, 7
        %v4576 = vsub.s32 0, %v4575
        %v4577 = vrot.slane %v4572, %v4576
        %v4578 = vlaneseq
        %v4579 = vshrl.u32 %v4578, 7
        %v4580 = vsub.s32 1, %v4579
        %v4581 = vrot.slane %v4572, %v4580
        %v4582 = vlaneseq
        %v4583 = vshrl.u32 %v4582, 7
        %v4584 = vsub.s32 2, %v4583
        %v4585 = vrot.slane %v4572, %v4584
        %v4586 = vlaneseq
        %v4587 = vshrl.u32 %v4586, 7
        %v4588 = vsub.s32 3, %v4587
        %v4589 = vrot.slane %v4572, %v4588
        %v4594 = vadd.f32 %v4560, %v4577
        %v4595 = vadd.f32 %v4561, %v4581
        %v4596 = vadd.f32 %v4562, %v4585
        %v4597 = vadd.f32 %v4563, %v4589
        %v4598 = vadd.f32 %v4564, %v4577
        %v4599 = vadd.f32 %v4565, %v4581
        %v4600 = vadd.f32 %v4566, %v4585
        %v4601 = vadd.f32 %v4567, %v4589
        %v4602 = vadd.f32 %v4568, %v4577
        %v4603 = vadd.f32 %v4569, %v4581
        %v4604 = vadd.f32 %v4570, %v4585
        %v4605 = vadd.f32 %v4571, %v4589
        %v4606 = vmax.f32 %v4594, 0.0
        %v4607 = vmax.f32 %v4595, 0.0
        %v4608 = vmax.f32 %v4596, 0.0
        %v4609 = vmax.f32 %v4597, 0.0
        %v4610 = vmax.f32 %v4598, 0.0
        %v4611 = vmax.f32 %v4599, 0.0
        %v4612 = vmax.f32 %v4600, 0.0
        %v4613 = vmax.f32 %v4601, 0.0
        %v4614 = vmax.f32 %v4602, 0.0
        %v4615 = vmax.f32 %v4603, 0.0
        %v4616 = vmax.f32 %v4604, 0.0
        %v4617 = vmax.f32 %v4605, 0.0
        %v4618 = vld [vmem:[%s5] sm:$0xff]
        %v4619 = vld [vmem:[%s5 + $0x8] sm:$0xf]
        %vm4620 = vcmask 195584
        %v4622 = vsel %vm4620, %v4618, 0
        %v4625 = vsel %vm4620, %v4619, 0
        %4627 = vmatprep.subr.mxu0 %v4607
        %4628 = vmatpush1.msra.mxu0 %v4606
        %4629 = vmatprep.subr.mxu0 %v4611
        %4630 = vmatpush1.msra.mxu0 %v4610
        %4631 = vmatprep.subr.mxu0 %v4615
        %4632 = vmatpush1.msra.mxu0 %v4614
        %4633 = vmatprep.subr.mxu0 0.0
        %4634 = vmatpush1.msra.mxu0 0.0
        %4635 = vmatprep.subr.mxu0 0.0
        %4636 = vmatpush1.msra.mxu0 0.0
        %4637 = vmatprep.subr.mxu0 0.0
        %4638 = vmatpush1.msra.mxu0 0.0
        %4639 = vmatprep.subr.mxu0 0.0
        %4640 = vmatpush1.msra.mxu0 0.0
        %4641 = vmatprep.subr.mxu0 0.0
        %4642 = vmatpush1.msra.mxu0 0.0
        %4643 = vmatprep.subr.mxu0 0.0
        %4644 = vmatpush1.msra.mxu0 0.0
        %4645 = vmatprep.subr.mxu0 0.0
        %4646 = vmatpush1.msra.mxu0 0.0
        %4647 = vmatprep.subr.mxu0 0.0
        %4648 = vmatpush1.msra.mxu0 0.0
        %4649 = vmatprep.subr.mxu0 0.0
        %4650 = vmatpush1.msra.mxu0 0.0
        %4651 = vmatprep.subr.mxu0 0.0
        %4652 = vmatpush1.msra.mxu0 0.0
        %4653 = vmatprep.subr.mxu0 0.0
        %4654 = vmatpush1.msra.mxu0 0.0
        %4655 = vmatprep.subr.mxu0 0.0
        %4656 = vmatpush1.msra.mxu0 0.0
        %4657 = vmatprep.subr.mxu0 0.0
        %4658 = vmatpush1.msra.mxu0 0.0
        %4659 = vmatprep.subr.mxu0 0.0
        %4660 = vmatpush1.msra.mxu0 0.0
        %4661 = vmatprep.subr.mxu0 0.0
        %4662 = vmatpush1.msra.mxu0 0.0
        %4663 = vmatprep.subr.mxu0 0.0
        %4664 = vmatpush1.msra.mxu0 0.0
        %4665 = vmatprep.subr.mxu0 0.0
        %4666 = vmatpush1.msra.mxu0 0.0
        %4667 = vmatprep.subr.mxu0 0.0
        %4668 = vmatpush1.msra.mxu0 0.0
        %4669 = vmatprep.subr.mxu0 0.0
        %4670 = vmatpush1.msra.mxu0 0.0
        %4671 = vmatprep.subr.mxu0 0.0
        %4672 = vmatpush1.msra.mxu0 0.0
        %4673 = vmatprep.subr.mxu0 0.0
        %4674 = vmatpush1.msra.mxu0 0.0
        %4675 = vmatprep.subr.mxu0 0.0
        %4676 = vmatpush1.msra.mxu0 0.0
        %4677 = vmatprep.subr.mxu0 0.0
        %4678 = vmatpush1.msra.mxu0 0.0
        %4679 = vmatprep.subr.mxu0 0.0
        %4680 = vmatpush1.msra.mxu0 0.0
        %4681 = vmatprep.subr.mxu0 0.0
        %4682 = vmatpush1.msra.mxu0 0.0
        %4683 = vmatprep.subr.mxu0 0.0
        %4684 = vmatpush1.msra.mxu0 0.0
        %4685 = vmatprep.subr.mxu0 0.0
        %4686 = vmatpush1.msra.mxu0 0.0
        %4687 = vmatprep.subr.mxu0 0.0
        %4688 = vmatpush1.msra.mxu0 0.0
        %4689 = vmatprep.subr.mxu0 0.0
        %4690 = vmatpush1.msra.mxu0 0.0
        %4691 = vmatprep.mubr.f32.mxu0 0.0
        %4692 = vmatmul.mubr.f32.gmra.mrb[0].mxu0 %v4622
        %v4693 = vpop.f32.mrb[0].mxu0
        %v4694 = vadd.f32 0.0, %v4693
        %v4695 = vpop.f32.mrb[0].mxu0
        %v4696 = vadd.f32 0.0, %v4695
        %4697 = vmatprep.mubr.f32.mxu0 0.0
        %4698 = vmatmul.mubr.f32.gmra.mrb[0].mxu0 %v4625
        %v4699 = vpop.f32.mrb[0].mxu0
        %v4700 = vadd.f32 0.0, %v4699
        %v4701 = vpop.f32.mrb[0].mxu0
        %v4702 = vadd.f32 0.0, %v4701
        %4703 = vdwg.mxu0
        %4704 = vmatprep.subr.mxu0 %v4609
        %4705 = vmatpush1.msra.mxu0 %v4608
        %4706 = vmatprep.subr.mxu0 %v4613
        %4707 = vmatpush1.msra.mxu0 %v4612
        %4708 = vmatprep.subr.mxu0 %v4617
        %4709 = vmatpush1.msra.mxu0 %v4616
        %4710 = vmatprep.subr.mxu0 0.0
        %4711 = vmatpush1.msra.mxu0 0.0
        %4712 = vmatprep.subr.mxu0 0.0
        %4713 = vmatpush1.msra.mxu0 0.0
        %4714 = vmatprep.subr.mxu0 0.0
        %4715 = vmatpush1.msra.mxu0 0.0
        %4716 = vmatprep.subr.mxu0 0.0
        %4717 = vmatpush1.msra.mxu0 0.0
        %4718 = vmatprep.subr.mxu0 0.0
        %4719 = vmatpush1.msra.mxu0 0.0
        %4720 = vmatprep.subr.mxu0 0.0
        %4721 = vmatpush1.msra.mxu0 0.0
        %4722 = vmatprep.subr.mxu0 0.0
        %4723 = vmatpush1.msra.mxu0 0.0
        %4724 = vmatprep.subr.mxu0 0.0
        %4725 = vmatpush1.msra.mxu0 0.0
        %4726 = vmatprep.subr.mxu0 0.0
        %4727 = vmatpush1.msra.mxu0 0.0
        %4728 = vmatprep.subr.mxu0 0.0
        %4729 = vmatpush1.msra.mxu0 0.0
        %4730 = vmatprep.subr.mxu0 0.0
        %4731 = vmatpush1.msra.mxu0 0.0
        %4732 = vmatprep.subr.mxu0 0.0
        %4733 = vmatpush1.msra.mxu0 0.0
        %4734 = vmatprep.subr.mxu0 0.0
        %4735 = vmatpush1.msra.mxu0 0.0
        %4736 = vmatprep.subr.mxu0 0.0
        %4737 = vmatpush1.msra.mxu0 0.0
        %4738 = vmatprep.subr.mxu0 0.0
        %4739 = vmatpush1.msra.mxu0 0.0
        %4740 = vmatprep.subr.mxu0 0.0
        %4741 = vmatpush1.msra.mxu0 0.0
        %4742 = vmatprep.subr.mxu0 0.0
        %4743 = vmatpush1.msra.mxu0 0.0
        %4744 = vmatprep.subr.mxu0 0.0
        %4745 = vmatpush1.msra.mxu0 0.0
        %4746 = vmatprep.subr.mxu0 0.0
        %4747 = vmatpush1.msra.mxu0 0.0
        %4748 = vmatprep.subr.mxu0 0.0
        %4749 = vmatpush1.msra.mxu0 0.0
        %4750 = vmatprep.subr.mxu0 0.0
        %4751 = vmatpush1.msra.mxu0 0.0
        %4752 = vmatprep.subr.mxu0 0.0
        %4753 = vmatpush1.msra.mxu0 0.0
        %4754 = vmatprep.subr.mxu0 0.0
        %4755 = vmatpush1.msra.mxu0 0.0
        %4756 = vmatprep.subr.mxu0 0.0
        %4757 = vmatpush1.msra.mxu0 0.0
        %4758 = vmatprep.subr.mxu0 0.0
        %4759 = vmatpush1.msra.mxu0 0.0
        %4760 = vmatprep.subr.mxu0 0.0
        %4761 = vmatpush1.msra.mxu0 0.0
        %4762 = vmatprep.subr.mxu0 0.0
        %4763 = vmatpush1.msra.mxu0 0.0
        %4764 = vmatprep.subr.mxu0 0.0
        %4765 = vmatpush1.msra.mxu0 0.0
        %4766 = vmatprep.subr.mxu0 0.0
        %4767 = vmatpush1.msra.mxu0 0.0
        %4768 = vmatprep.mubr.f32.mxu0 0.0
        %4769 = vmatmul.mubr.f32.gmra.mrb[0].mxu0 %v4622
        %v4770 = vpop.f32.mrb[0].mxu0
        %v4771 = vadd.f32 0.0, %v4770
        %v4772 = vpop.f32.mrb[0].mxu0
        %v4773 = vadd.f32 0.0, %v4772
        %4774 = vmatprep.mubr.f32.mxu0 0.0
        %4775 = vmatmul.mubr.f32.gmra.mrb[0].mxu0 %v4625
        %v4776 = vpop.f32.mrb[0].mxu0
        %v4777 = vadd.f32 0.0, %v4776
        %v4778 = vpop.f32.mrb[0].mxu0
        %v4779 = vadd.f32 0.0, %v4778
        %4780 = vdwg.mxu0
        %s4781 = scalar_lea.vmem %s5, 16
        %v4782 = vld [vmem:[%s4781] sm:$0xff]
        %v4783 = vld [vmem:[%s4781 + $0x8] sm:$0xf]
        %v4785 = vsel %vm4620, %v4782, 0
        %v4788 = vsel %vm4620, %v4783, 0
        %4790 = vmatprep.subr.mxu0 %v4607
        %4791 = vmatpush1.msra.mxu0 %v4606
        %4792 = vmatprep.subr.mxu0 %v4611
        %4793 = vmatpush1.msra.mxu0 %v4610
        %4794 = vmatprep.subr.mxu0 %v4615
        %4795 = vmatpush1.msra.mxu0 %v4614
        %4796 = vmatprep.subr.mxu0 0.0
        %4797 = vmatpush1.msra.mxu0 0.0
        %4798 = vmatprep.subr.mxu0 0.0
        %4799 = vmatpush1.msra.mxu0 0.0
        %4800 = vmatprep.subr.mxu0 0.0
        %4801 = vmatpush1.msra.mxu0 0.0
        %4802 = vmatprep.subr.mxu0 0.0
        %4803 = vmatpush1.msra.mxu0 0.0
        %4804 = vmatprep.subr.mxu0 0.0
        %4805 = vmatpush1.msra.mxu0 0.0
        %4806 = vmatprep.subr.mxu0 0.0
        %4807 = vmatpush1.msra.mxu0 0.0
        %4808 = vmatprep.subr.mxu0 0.0
        %4809 = vmatpush1.msra.mxu0 0.0
        %4810 = vmatprep.subr.mxu0 0.0
        %4811 = vmatpush1.msra.mxu0 0.0
        %4812 = vmatprep.subr.mxu0 0.0
        %4813 = vmatpush1.msra.mxu0 0.0
        %4814 = vmatprep.subr.mxu0 0.0
        %4815 = vmatpush1.msra.mxu0 0.0
        %4816 = vmatprep.subr.mxu0 0.0
        %4817 = vmatpush1.msra.mxu0 0.0
        %4818 = vmatprep.subr.mxu0 0.0
        %4819 = vmatpush1.msra.mxu0 0.0
        %4820 = vmatprep.subr.mxu0 0.0
        %4821 = vmatpush1.msra.mxu0 0.0
        %4822 = vmatprep.subr.mxu0 0.0
        %4823 = vmatpush1.msra.mxu0 0.0
        %4824 = vmatprep.subr.mxu0 0.0
        %4825 = vmatpush1.msra.mxu0 0.0
        %4826 = vmatprep.subr.mxu0 0.0
        %4827 = vmatpush1.msra.mxu0 0.0
        %4828 = vmatprep.subr.mxu0 0.0
        %4829 = vmatpush1.msra.mxu0 0.0
        %4830 = vmatprep.subr.mxu0 0.0
        %4831 = vmatpush1.msra.mxu0 0.0
        %4832 = vmatprep.subr.mxu0 0.0
        %4833 = vmatpush1.msra.mxu0 0.0
        %4834 = vmatprep.subr.mxu0 0.0
        %4835 = vmatpush1.msra.mxu0 0.0
        %4836 = vmatprep.subr.mxu0 0.0
        %4837 = vmatpush1.msra.mxu0 0.0
        %4838 = vmatprep.subr.mxu0 0.0
        %4839 = vmatpush1.msra.mxu0 0.0
        %4840 = vmatprep.subr.mxu0 0.0
        %4841 = vmatpush1.msra.mxu0 0.0
        %4842 = vmatprep.subr.mxu0 0.0
        %4843 = vmatpush1.msra.mxu0 0.0
        %4844 = vmatprep.subr.mxu0 0.0
        %4845 = vmatpush1.msra.mxu0 0.0
        %4846 = vmatprep.subr.mxu0 0.0
        %4847 = vmatpush1.msra.mxu0 0.0
        %4848 = vmatprep.subr.mxu0 0.0
        %4849 = vmatpush1.msra.mxu0 0.0
        %4850 = vmatprep.subr.mxu0 0.0
        %4851 = vmatpush1.msra.mxu0 0.0
        %4852 = vmatprep.subr.mxu0 0.0
        %4853 = vmatpush1.msra.mxu0 0.0
        %4854 = vmatprep.mubr.f32.mxu0 0.0
        %4855 = vmatmul.mubr.f32.gmra.mrb[0].mxu0 %v4785
        %v4856 = vpop.f32.mrb[0].mxu0
        %v4857 = vadd.f32 0.0, %v4856
        %v4858 = vpop.f32.mrb[0].mxu0
        %v4859 = vadd.f32 0.0, %v4858
        %4860 = vmatprep.mubr.f32.mxu0 0.0
        %4861 = vmatmul.mubr.f32.gmra.mrb[0].mxu0 %v4788
        %v4862 = vpop.f32.mrb[0].mxu0
        %v4863 = vadd.f32 0.0, %v4862
        %v4864 = vpop.f32.mrb[0].mxu0
        %v4865 = vadd.f32 0.0, %v4864
        %4866 = vdwg.mxu0
        %4867 = vmatprep.subr.mxu0 %v4609
        %4868 = vmatpush1.msra.mxu0 %v4608
        %4869 = vmatprep.subr.mxu0 %v4613
        %4870 = vmatpush1.msra.mxu0 %v4612
        %4871 = vmatprep.subr.mxu0 %v4617
        %4872 = vmatpush1.msra.mxu0 %v4616
        %4873 = vmatprep.subr.mxu0 0.0
        %4874 = vmatpush1.msra.mxu0 0.0
        %4875 = vmatprep.subr.mxu0 0.0
        %4876 = vmatpush1.msra.mxu0 0.0
        %4877 = vmatprep.subr.mxu0 0.0
        %4878 = vmatpush1.msra.mxu0 0.0
        %4879 = vmatprep.subr.mxu0 0.0
        %4880 = vmatpush1.msra.mxu0 0.0
        %4881 = vmatprep.subr.mxu0 0.0
        %4882 = vmatpush1.msra.mxu0 0.0
        %4883 = vmatprep.subr.mxu0 0.0
        %4884 = vmatpush1.msra.mxu0 0.0
        %4885 = vmatprep.subr.mxu0 0.0
        %4886 = vmatpush1.msra.mxu0 0.0
        %4887 = vmatprep.subr.mxu0 0.0
        %4888 = vmatpush1.msra.mxu0 0.0
        %4889 = vmatprep.subr.mxu0 0.0
        %4890 = vmatpush1.msra.mxu0 0.0
        %4891 = vmatprep.subr.mxu0 0.0
        %4892 = vmatpush1.msra.mxu0 0.0
        %4893 = vmatprep.subr.mxu0 0.0
        %4894 = vmatpush1.msra.mxu0 0.0
        %4895 = vmatprep.subr.mxu0 0.0
        %4896 = vmatpush1.msra.mxu0 0.0
        %4897 = vmatprep.subr.mxu0 0.0
        %4898 = vmatpush1.msra.mxu0 0.0
        %4899 = vmatprep.subr.mxu0 0.0
        %4900 = vmatpush1.msra.mxu0 0.0
        %4901 = vmatprep.subr.mxu0 0.0
        %4902 = vmatpush1.msra.mxu0 0.0
        %4903 = vmatprep.subr.mxu0 0.0
        %4904 = vmatpush1.msra.mxu0 0.0
        %4905 = vmatprep.subr.mxu0 0.0
        %4906 = vmatpush1.msra.mxu0 0.0
        %4907 = vmatprep.subr.mxu0 0.0
        %4908 = vmatpush1.msra.mxu0 0.0
        %4909 = vmatprep.subr.mxu0 0.0
        %4910 = vmatpush1.msra.mxu0 0.0
        %4911 = vmatprep.subr.mxu0 0.0
        %4912 = vmatpush1.msra.mxu0 0.0
        %4913 = vmatprep.subr.mxu0 0.0
        %4914 = vmatpush1.msra.mxu0 0.0
        %4915 = vmatprep.subr.mxu0 0.0
        %4916 = vmatpush1.msra.mxu0 0.0
        %4917 = vmatprep.subr.mxu0 0.0
        %4918 = vmatpush1.msra.mxu0 0.0
        %4919 = vmatprep.subr.mxu0 0.0
        %4920 = vmatpush1.msra.mxu0 0.0
        %4921 = vmatprep.subr.mxu0 0.0
        %4922 = vmatpush1.msra.mxu0 0.0
        %4923 = vmatprep.subr.mxu0 0.0
        %4924 = vmatpush1.msra.mxu0 0.0
        %4925 = vmatprep.subr.mxu0 0.0
        %4926 = vmatpush1.msra.mxu0 0.0
        %4927 = vmatprep.subr.mxu0 0.0
        %4928 = vmatpush1.msra.mxu0 0.0
        %4929 = vmatprep.subr.mxu0 0.0
        %4930 = vmatpush1.msra.mxu0 0.0
        %4931 = vmatprep.mubr.f32.mxu0 0.0
        %4932 = vmatmul.mubr.f32.gmra.mrb[0].mxu0 %v4785
        %v4933 = vpop.f32.mrb[0].mxu0
        %v4934 = vadd.f32 0.0, %v4933
        %v4935 = vpop.f32.mrb[0].mxu0
        %v4936 = vadd.f32 0.0, %v4935
        %4937 = vmatprep.mubr.f32.mxu0 0.0
        %4938 = vmatmul.mubr.f32.gmra.mrb[0].mxu0 %v4788
        %v4939 = vpop.f32.mrb[0].mxu0
        %v4940 = vadd.f32 0.0, %v4939
        %v4941 = vpop.f32.mrb[0].mxu0
        %v4942 = vadd.f32 0.0, %v4941
        %4943 = vdwg.mxu0
        %v4944 = vmax.f32 %v4694, %v4857
        %v4945 = vmax.f32 %v4696, %v4859
        %v4946 = vmax.f32 %v4771, %v4934
        %v4947 = vmax.f32 %v4773, %v4936
        %v4948 = vmax.f32 %v4700, %v4863
        %v4949 = vmax.f32 %v4702, %v4865
        %v4950 = vmax.f32 %v4777, %v4940
        %v4951 = vmax.f32 %v4779, %v4942
        %v4952 = vld [vmem:[#allocation10] sm:$0xff]
        %v4953 = vld [vmem:[#allocation10 + $0x8] sm:$0xff]
        %v4954 = vld [vmem:[#allocation10 + $0x10] sm:$0xff]
        %v4955 = vld [vmem:[#allocation10 + $0x18] sm:$0xff]
        %v4956 = vld [vmem:[#allocation10 + $0x20] sm:$0xff]
        %v4957 = vld [vmem:[#allocation10 + $0x28] sm:$0xff]
        %v4958 = vld [vmem:[#allocation10 + $0x30] sm:$0xff]
        %v4959 = vld [vmem:[#allocation10 + $0x38] sm:$0xff]
        %v4960 = vld [vmem:[#allocation10 + $0x40] sm:$0xff]
        %v4961 = vld [vmem:[#allocation10 + $0x48] sm:$0xff]
        %v4962 = vld [vmem:[#allocation10 + $0x50] sm:$0xff]
        %v4963 = vld [vmem:[#allocation10 + $0x58] sm:$0xff]
        %v4964 = vld [vmem:[#allocation10 + $0x60] sm:$0xff]
        %v4965 = vld [vmem:[#allocation10 + $0x68] sm:$0xff]
        %v4966 = vld [vmem:[#allocation10 + $0x70] sm:$0xff]
        %v4967 = vld [vmem:[#allocation10 + $0x78] sm:$0xff]
        %v4968 = vld [vmem:[#allocation10 + $0x80] sm:$0xff]
        %v4969 = vld [vmem:[#allocation10 + $0x88] sm:$0xff]
        %v4970 = vld [vmem:[#allocation10 + $0x90] sm:$0xff]
        %v4971 = vld [vmem:[#allocation10 + $0x98] sm:$0xff]
        %v4972 = vld [vmem:[#allocation10 + $0xa0] sm:$0xff]
        %v4973 = vld [vmem:[#allocation10 + $0xa8] sm:$0xff]
        %v4974 = vld [vmem:[#allocation10 + $0xb0] sm:$0xff]
        %v4975 = vld [vmem:[#allocation10 + $0xb8] sm:$0xff]
        %v4976 = vld [vmem:[#allocation10 + $0xc0] sm:$0xff]
        %v4977 = vld [vmem:[#allocation10 + $0xc8] sm:$0xff]
        %v4978 = vld [vmem:[#allocation10 + $0xd0] sm:$0xff]
        %v4979 = vld [vmem:[#allocation10 + $0xd8] sm:$0xff]
        %v4980 = vld [vmem:[#allocation10 + $0xe0] sm:$0xff]
        %v4981 = vld [vmem:[#allocation10 + $0xe8] sm:$0xff]
        %v4982 = vld [vmem:[#allocation10 + $0xf0] sm:$0xff]
        %v4983 = vld [vmem:[#allocation10 + $0xf8] sm:$0xff]
        %v4984 = vld [vmem:[#allocation10 + $0x100] sm:$0xff]
        %v4985 = vld [vmem:[#allocation10 + $0x108] sm:$0xff]
        %v4986 = vld [vmem:[#allocation10 + $0x110] sm:$0xff]
        %v4987 = vld [vmem:[#allocation10 + $0x118] sm:$0xff]
        %v4988 = vld [vmem:[#allocation10 + $0x120] sm:$0xff]
        %v4989 = vld [vmem:[#allocation10 + $0x128] sm:$0xff]
        %v4990 = vld [vmem:[#allocation10 + $0x130] sm:$0xff]
        %v4991 = vld [vmem:[#allocation10 + $0x138] sm:$0xff]
        %v4992 = vld [vmem:[#allocation10 + $0x140] sm:$0xff]
        %v4993 = vld [vmem:[#allocation10 + $0x148] sm:$0xff]
        %v4994 = vld [vmem:[#allocation10 + $0x150] sm:$0xff]
        %v4995 = vld [vmem:[#allocation10 + $0x158] sm:$0xff]
        %v4996 = vld [vmem:[#allocation10 + $0x160] sm:$0xff]
        %v4997 = vld [vmem:[#allocation10 + $0x168] sm:$0xff]
        %v4998 = vld [vmem:[#allocation10 + $0x170] sm:$0xff]
        %v4999 = vld [vmem:[#allocation10 + $0x178] sm:$0xff]
        %v5000 = vld [vmem:[#allocation10 + $0x180] sm:$0xff]
        %v5001 = vld [vmem:[#allocation10 + $0x188] sm:$0xff]
        %v5002 = vld [vmem:[#allocation10 + $0x190] sm:$0xff]
        %v5003 = vld [vmem:[#allocation10 + $0x198] sm:$0xff]
        %v5004 = vld [vmem:[#allocation10 + $0x1a0] sm:$0xff]
        %v5005 = vld [vmem:[#allocation10 + $0x1a8] sm:$0xff]
        %v5006 = vld [vmem:[#allocation10 + $0x1b0] sm:$0xff]
        %v5007 = vld [vmem:[#allocation10 + $0x1b8] sm:$0xff]
        %v5008 = vld [vmem:[#allocation10 + $0x1c0] sm:$0xff]
        %v5009 = vld [vmem:[#allocation10 + $0x1c8] sm:$0xff]
        %v5010 = vld [vmem:[#allocation10 + $0x1d0] sm:$0xff]
        %v5011 = vld [vmem:[#allocation10 + $0x1d8] sm:$0xff]
        %v5012 = vld [vmem:[#allocation10 + $0x1e0] sm:$0xff]
        %v5013 = vld [vmem:[#allocation10 + $0x1e8] sm:$0xff]
        %v5014 = vld [vmem:[#allocation10 + $0x1f0] sm:$0xff]
        %v5015 = vld [vmem:[#allocation10 + $0x1f8] sm:$0xff]
        %v5016 = vld [vmem:[#allocation10 + $0x200] sm:$0xff]
        %v5017 = vld [vmem:[#allocation10 + $0x208] sm:$0xff]
        %v5018 = vld [vmem:[#allocation10 + $0x210] sm:$0xff]
        %v5019 = vld [vmem:[#allocation10 + $0x218] sm:$0xff]
        %v5020 = vld [vmem:[#allocation10 + $0x220] sm:$0xff]
        %v5021 = vld [vmem:[#allocation10 + $0x228] sm:$0xff]
        %v5022 = vld [vmem:[#allocation10 + $0x230] sm:$0xff]
        %v5023 = vld [vmem:[#allocation10 + $0x238] sm:$0xff]
        %v5024 = vld [vmem:[#allocation10 + $0x240] sm:$0xff]
        %v5025 = vld [vmem:[#allocation10 + $0x248] sm:$0xff]
        %v5026 = vld [vmem:[#allocation10 + $0x250] sm:$0xff]
        %v5027 = vld [vmem:[#allocation10 + $0x258] sm:$0xff]
        %v5028 = vld [vmem:[#allocation10 + $0x260] sm:$0xff]
        %v5029 = vld [vmem:[#allocation10 + $0x268] sm:$0xff]
        %v5030 = vld [vmem:[#allocation10 + $0x270] sm:$0xff]
        %v5031 = vld [vmem:[#allocation10 + $0x278] sm:$0xff]
        %v5032 = vld [vmem:[#allocation10 + $0x280] sm:$0xff]
        %v5033 = vld [vmem:[#allocation10 + $0x288] sm:$0xff]
        %v5034 = vld [vmem:[#allocation10 + $0x290] sm:$0xff]
        %v5035 = vld [vmem:[#allocation10 + $0x298] sm:$0xff]
        %v5036 = vld [vmem:[#allocation10 + $0x2a0] sm:$0xff]
        %v5037 = vld [vmem:[#allocation10 + $0x2a8] sm:$0xff]
        %v5038 = vld [vmem:[#allocation10 + $0x2b0] sm:$0xff]
        %v5039 = vld [vmem:[#allocation10 + $0x2b8] sm:$0xff]
        %v5040 = vld [vmem:[#allocation10 + $0x2c0] sm:$0xff]
        %v5041 = vld [vmem:[#allocation10 + $0x2c8] sm:$0xff]
        %v5042 = vld [vmem:[#allocation10 + $0x2d0] sm:$0xff]
        %v5043 = vld [vmem:[#allocation10 + $0x2d8] sm:$0xff]
        %v5044 = vld [vmem:[#allocation10 + $0x2e0] sm:$0xff]
        %v5045 = vld [vmem:[#allocation10 + $0x2e8] sm:$0xff]
        %v5046 = vld [vmem:[#allocation10 + $0x2f0] sm:$0xff]
        %v5047 = vld [vmem:[#allocation10 + $0x2f8] sm:$0xff]
        %v5048 = vld [vmem:[#allocation10 + $0x300] sm:$0xff]
        %v5049 = vld [vmem:[#allocation10 + $0x308] sm:$0xff]
        %v5050 = vld [vmem:[#allocation10 + $0x310] sm:$0xff]
        %v5051 = vld [vmem:[#allocation10 + $0x318] sm:$0xff]
        %v5052 = vld [vmem:[#allocation10 + $0x320] sm:$0xff]
        %v5053 = vld [vmem:[#allocation10 + $0x328] sm:$0xff]
        %v5054 = vld [vmem:[#allocation10 + $0x330] sm:$0xff]
        %v5055 = vld [vmem:[#allocation10 + $0x338] sm:$0xff]
        %v5056 = vld [vmem:[#allocation10 + $0x340] sm:$0xff]
        %v5057 = vld [vmem:[#allocation10 + $0x348] sm:$0xff]
        %v5058 = vld [vmem:[#allocation10 + $0x350] sm:$0xff]
        %v5059 = vld [vmem:[#allocation10 + $0x358] sm:$0xff]
        %v5060 = vld [vmem:[#allocation10 + $0x360] sm:$0xff]
        %v5061 = vld [vmem:[#allocation10 + $0x368] sm:$0xff]
        %v5062 = vld [vmem:[#allocation10 + $0x370] sm:$0xff]
        %v5063 = vld [vmem:[#allocation10 + $0x378] sm:$0xff]
        %v5064 = vld [vmem:[#allocation10 + $0x380] sm:$0xff]
        %v5065 = vld [vmem:[#allocation10 + $0x388] sm:$0xff]
        %v5066 = vld [vmem:[#allocation10 + $0x390] sm:$0xff]
        %v5067 = vld [vmem:[#allocation10 + $0x398] sm:$0xff]
        %v5068 = vld [vmem:[#allocation10 + $0x3a0] sm:$0xff]
        %v5069 = vld [vmem:[#allocation10 + $0x3a8] sm:$0xff]
        %v5070 = vld [vmem:[#allocation10 + $0x3b0] sm:$0xff]
        %v5071 = vld [vmem:[#allocation10 + $0x3b8] sm:$0xff]
        %vm5072 = vcmask 785408
        %v5074 = vsel %vm5072, %v4947, 0
        %v5077 = vsel %vm5072, %v4951, 0
        %5079 = vmatprep.subr.mxu0 %v4953
        %5080 = vmatpush1.msra.mxu0 %v4952
        %5081 = vmatprep.subr.mxu0 %v4955
        %5082 = vmatpush1.msra.mxu0 %v4954
        %5083 = vmatprep.subr.mxu0 %v4957
        %5084 = vmatpush1.msra.mxu0 %v4956
        %5085 = vmatprep.subr.mxu0 %v4959
        %5086 = vmatpush1.msra.mxu0 %v4958
        %5087 = vmatprep.subr.mxu0 %v4961
        %5088 = vmatpush1.msra.mxu0 %v4960
        %5089 = vmatprep.subr.mxu0 %v4963
        %5090 = vmatpush1.msra.mxu0 %v4962
        %5091 = vmatprep.subr.mxu0 %v4965
        %5092 = vmatpush1.msra.mxu0 %v4964
        %5093 = vmatprep.subr.mxu0 %v4967
        %5094 = vmatpush1.msra.mxu0 %v4966
        %5095 = vmatprep.subr.mxu0 %v4969
        %5096 = vmatpush1.msra.mxu0 %v4968
        %5097 = vmatprep.subr.mxu0 %v4971
        %5098 = vmatpush1.msra.mxu0 %v4970
        %5099 = vmatprep.subr.mxu0 %v4973
        %5100 = vmatpush1.msra.mxu0 %v4972
        %5101 = vmatprep.subr.mxu0 %v4975
        %5102 = vmatpush1.msra.mxu0 %v4974
        %5103 = vmatprep.subr.mxu0 %v4977
        %5104 = vmatpush1.msra.mxu0 %v4976
        %5105 = vmatprep.subr.mxu0 %v4979
        %5106 = vmatpush1.msra.mxu0 %v4978
        %5107 = vmatprep.subr.mxu0 %v4981
        %5108 = vmatpush1.msra.mxu0 %v4980
        %5109 = vmatprep.subr.mxu0 %v4983
        %5110 = vmatpush1.msra.mxu0 %v4982
        %5111 = vmatprep.subr.mxu0 %v4985
        %5112 = vmatpush1.msra.mxu0 %v4984
        %5113 = vmatprep.subr.mxu0 %v4987
        %5114 = vmatpush1.msra.mxu0 %v4986
        %5115 = vmatprep.subr.mxu0 %v4989
        %5116 = vmatpush1.msra.mxu0 %v4988
        %5117 = vmatprep.subr.mxu0 %v4991
        %5118 = vmatpush1.msra.mxu0 %v4990
        %5119 = vmatprep.subr.mxu0 %v4993
        %5120 = vmatpush1.msra.mxu0 %v4992
        %5121 = vmatprep.subr.mxu0 %v4995
        %5122 = vmatpush1.msra.mxu0 %v4994
        %5123 = vmatprep.subr.mxu0 %v4997
        %5124 = vmatpush1.msra.mxu0 %v4996
        %5125 = vmatprep.subr.mxu0 %v4999
        %5126 = vmatpush1.msra.mxu0 %v4998
        %5127 = vmatprep.subr.mxu0 %v5001
        %5128 = vmatpush1.msra.mxu0 %v5000
        %5129 = vmatprep.subr.mxu0 %v5003
        %5130 = vmatpush1.msra.mxu0 %v5002
        %5131 = vmatprep.subr.mxu0 %v5005
        %5132 = vmatpush1.msra.mxu0 %v5004
        %5133 = vmatprep.subr.mxu0 %v5007
        %5134 = vmatpush1.msra.mxu0 %v5006
        %5135 = vmatprep.subr.mxu0 %v5009
        %5136 = vmatpush1.msra.mxu0 %v5008
        %5137 = vmatprep.subr.mxu0 %v5011
        %5138 = vmatpush1.msra.mxu0 %v5010
        %5139 = vmatprep.subr.mxu0 %v5013
        %5140 = vmatpush1.msra.mxu0 %v5012
        %5141 = vmatprep.subr.mxu0 %v5015
        %5142 = vmatpush1.msra.mxu0 %v5014
        %5143 = vmatprep.mubr.f32.mxu0 %v4945
        %5144 = vmatmul.mubr.f32.gmra.mrb[0].mxu0 %v4944
        %v5145 = vpop.f32.mrb[0].mxu0
        %v5146 = vadd.f32 0.0, %v5145
        %v5147 = vpop.f32.mrb[0].mxu0
        %v5148 = vadd.f32 0.0, %v5147
        %5149 = vmatprep.mubr.f32.mxu0 %v4949
        %5150 = vmatmul.mubr.f32.gmra.mrb[0].mxu0 %v4948
        %v5151 = vpop.f32.mrb[0].mxu0
        %v5152 = vadd.f32 0.0, %v5151
        %v5153 = vpop.f32.mrb[0].mxu0
        %v5154 = vadd.f32 0.0, %v5153
        %5155 = vdwg.mxu0
        %5156 = vmatprep.subr.mxu0 %v5017
        %5157 = vmatpush1.msra.mxu0 %v5016
        %5158 = vmatprep.subr.mxu0 %v5019
        %5159 = vmatpush1.msra.mxu0 %v5018
        %5160 = vmatprep.subr.mxu0 %v5021
        %5161 = vmatpush1.msra.mxu0 %v5020
        %5162 = vmatprep.subr.mxu0 %v5023
        %5163 = vmatpush1.msra.mxu0 %v5022
        %5164 = vmatprep.subr.mxu0 %v5025
        %5165 = vmatpush1.msra.mxu0 %v5024
        %5166 = vmatprep.subr.mxu0 %v5027
        %5167 = vmatpush1.msra.mxu0 %v5026
        %5168 = vmatprep.subr.mxu0 %v5029
        %5169 = vmatpush1.msra.mxu0 %v5028
        %5170 = vmatprep.subr.mxu0 %v5031
        %5171 = vmatpush1.msra.mxu0 %v5030
        %5172 = vmatprep.subr.mxu0 %v5033
        %5173 = vmatpush1.msra.mxu0 %v5032
        %5174 = vmatprep.subr.mxu0 %v5035
        %5175 = vmatpush1.msra.mxu0 %v5034
        %5176 = vmatprep.subr.mxu0 %v5037
        %5177 = vmatpush1.msra.mxu0 %v5036
        %5178 = vmatprep.subr.mxu0 %v5039
        %5179 = vmatpush1.msra.mxu0 %v5038
        %5180 = vmatprep.subr.mxu0 %v5041
        %5181 = vmatpush1.msra.mxu0 %v5040
        %5182 = vmatprep.subr.mxu0 %v5043
        %5183 = vmatpush1.msra.mxu0 %v5042
        %5184 = vmatprep.subr.mxu0 %v5045
        %5185 = vmatpush1.msra.mxu0 %v5044
        %5186 = vmatprep.subr.mxu0 %v5047
        %5187 = vmatpush1.msra.mxu0 %v5046
        %5188 = vmatprep.subr.mxu0 %v5049
        %5189 = vmatpush1.msra.mxu0 %v5048
        %5190 = vmatprep.subr.mxu0 %v5051
        %5191 = vmatpush1.msra.mxu0 %v5050
        %5192 = vmatprep.subr.mxu0 %v5053
        %5193 = vmatpush1.msra.mxu0 %v5052
        %5194 = vmatprep.subr.mxu0 %v5055
        %5195 = vmatpush1.msra.mxu0 %v5054
        %5196 = vmatprep.subr.mxu0 %v5057
        %5197 = vmatpush1.msra.mxu0 %v5056
        %5198 = vmatprep.subr.mxu0 %v5059
        %5199 = vmatpush1.msra.mxu0 %v5058
        %5200 = vmatprep.subr.mxu0 %v5061
        %5201 = vmatpush1.msra.mxu0 %v5060
        %5202 = vmatprep.subr.mxu0 %v5063
        %5203 = vmatpush1.msra.mxu0 %v5062
        %5204 = vmatprep.subr.mxu0 %v5065
        %5205 = vmatpush1.msra.mxu0 %v5064
        %5206 = vmatprep.subr.mxu0 %v5067
        %5207 = vmatpush1.msra.mxu0 %v5066
        %5208 = vmatprep.subr.mxu0 %v5069
        %5209 = vmatpush1.msra.mxu0 %v5068
        %5210 = vmatprep.subr.mxu0 %v5071
        %5211 = vmatpush1.msra.mxu0 %v5070
        %5212 = vmatprep.subr.mxu0 0.0
        %5213 = vmatpush1.msra.mxu0 0.0
        %5214 = vmatprep.subr.mxu0 0.0
        %5215 = vmatpush1.msra.mxu0 0.0
        %5216 = vmatprep.subr.mxu0 0.0
        %5217 = vmatpush1.msra.mxu0 0.0
        %5218 = vmatprep.subr.mxu0 0.0
        %5219 = vmatpush1.msra.mxu0 0.0
        %5220 = vmatprep.mubr.f32.mxu0 %v5074
        %5221 = vmatmul.mubr.f32.gmra.mrb[0].mxu0 %v4946
        %v5222 = vpop.f32.mrb[0].mxu0
        %v5223 = vadd.f32 %v5146, %v5222
        %v5224 = vpop.f32.mrb[0].mxu0
        %v5225 = vadd.f32 %v5148, %v5224
        %5226 = vmatprep.mubr.f32.mxu0 %v5077
        %5227 = vmatmul.mubr.f32.gmra.mrb[0].mxu0 %v4950
        %v5228 = vpop.f32.mrb[0].mxu0
        %v5229 = vadd.f32 %v5152, %v5228
        %v5230 = vpop.f32.mrb[0].mxu0
        %v5231 = vadd.f32 %v5154, %v5230
        %5232 = vdwg.mxu0
        %s5233 = scalar_lea.vmem [#allocation10], 960
        %v5234 = vld [vmem:[%s5233] sm:$0xff]
        %v5235 = vld [vmem:[%s5233 + $0x8] sm:$0xff]
        %v5236 = vld [vmem:[%s5233 + $0x10] sm:$0xff]
        %v5237 = vld [vmem:[%s5233 + $0x18] sm:$0xff]
        %v5238 = vld [vmem:[%s5233 + $0x20] sm:$0xff]
        %v5239 = vld [vmem:[%s5233 + $0x28] sm:$0xff]
        %v5240 = vld [vmem:[%s5233 + $0x30] sm:$0xff]
        %v5241 = vld [vmem:[%s5233 + $0x38] sm:$0xff]
        %v5242 = vld [vmem:[%s5233 + $0x40] sm:$0xff]
        %v5243 = vld [vmem:[%s5233 + $0x48] sm:$0xff]
        %v5244 = vld [vmem:[%s5233 + $0x50] sm:$0xff]
        %v5245 = vld [vmem:[%s5233 + $0x58] sm:$0xff]
        %v5246 = vld [vmem:[%s5233 + $0x60] sm:$0xff]
        %v5247 = vld [vmem:[%s5233 + $0x68] sm:$0xff]
        %v5248 = vld [vmem:[%s5233 + $0x70] sm:$0xff]
        %v5249 = vld [vmem:[%s5233 + $0x78] sm:$0xff]
        %v5250 = vld [vmem:[%s5233 + $0x80] sm:$0xff]
        %v5251 = vld [vmem:[%s5233 + $0x88] sm:$0xff]
        %v5252 = vld [vmem:[%s5233 + $0x90] sm:$0xff]
        %v5253 = vld [vmem:[%s5233 + $0x98] sm:$0xff]
        %v5254 = vld [vmem:[%s5233 + $0xa0] sm:$0xff]
        %v5255 = vld [vmem:[%s5233 + $0xa8] sm:$0xff]
        %v5256 = vld [vmem:[%s5233 + $0xb0] sm:$0xff]
        %v5257 = vld [vmem:[%s5233 + $0xb8] sm:$0xff]
        %v5258 = vld [vmem:[%s5233 + $0xc0] sm:$0xff]
        %v5259 = vld [vmem:[%s5233 + $0xc8] sm:$0xff]
        %v5260 = vld [vmem:[%s5233 + $0xd0] sm:$0xff]
        %v5261 = vld [vmem:[%s5233 + $0xd8] sm:$0xff]
        %v5262 = vld [vmem:[%s5233 + $0xe0] sm:$0xff]
        %v5263 = vld [vmem:[%s5233 + $0xe8] sm:$0xff]
        %v5264 = vld [vmem:[%s5233 + $0xf0] sm:$0xff]
        %v5265 = vld [vmem:[%s5233 + $0xf8] sm:$0xff]
        %v5266 = vld [vmem:[%s5233 + $0x100] sm:$0xff]
        %v5267 = vld [vmem:[%s5233 + $0x108] sm:$0xff]
        %v5268 = vld [vmem:[%s5233 + $0x110] sm:$0xff]
        %v5269 = vld [vmem:[%s5233 + $0x118] sm:$0xff]
        %v5270 = vld [vmem:[%s5233 + $0x120] sm:$0xff]
        %v5271 = vld [vmem:[%s5233 + $0x128] sm:$0xff]
        %v5272 = vld [vmem:[%s5233 + $0x130] sm:$0xff]
        %v5273 = vld [vmem:[%s5233 + $0x138] sm:$0xff]
        %v5274 = vld [vmem:[%s5233 + $0x140] sm:$0xff]
        %v5275 = vld [vmem:[%s5233 + $0x148] sm:$0xff]
        %v5276 = vld [vmem:[%s5233 + $0x150] sm:$0xff]
        %v5277 = vld [vmem:[%s5233 + $0x158] sm:$0xff]
        %v5278 = vld [vmem:[%s5233 + $0x160] sm:$0xff]
        %v5279 = vld [vmem:[%s5233 + $0x168] sm:$0xff]
        %v5280 = vld [vmem:[%s5233 + $0x170] sm:$0xff]
        %v5281 = vld [vmem:[%s5233 + $0x178] sm:$0xff]
        %v5282 = vld [vmem:[%s5233 + $0x180] sm:$0xff]
        %v5283 = vld [vmem:[%s5233 + $0x188] sm:$0xff]
        %v5284 = vld [vmem:[%s5233 + $0x190] sm:$0xff]
        %v5285 = vld [vmem:[%s5233 + $0x198] sm:$0xff]
        %v5286 = vld [vmem:[%s5233 + $0x1a0] sm:$0xff]
        %v5287 = vld [vmem:[%s5233 + $0x1a8] sm:$0xff]
        %v5288 = vld [vmem:[%s5233 + $0x1b0] sm:$0xff]
        %v5289 = vld [vmem:[%s5233 + $0x1b8] sm:$0xff]
        %v5290 = vld [vmem:[%s5233 + $0x1c0] sm:$0xff]
        %v5291 = vld [vmem:[%s5233 + $0x1c8] sm:$0xff]
        %v5292 = vld [vmem:[%s5233 + $0x1d0] sm:$0xff]
        %v5293 = vld [vmem:[%s5233 + $0x1d8] sm:$0xff]
        %v5294 = vld [vmem:[%s5233 + $0x1e0] sm:$0xff]
        %v5295 = vld [vmem:[%s5233 + $0x1e8] sm:$0xff]
        %v5296 = vld [vmem:[%s5233 + $0x1f0] sm:$0xff]
        %v5297 = vld [vmem:[%s5233 + $0x1f8] sm:$0xff]
        %v5298 = vld [vmem:[%s5233 + $0x200] sm:$0xff]
        %v5299 = vld [vmem:[%s5233 + $0x208] sm:$0xff]
        %v5300 = vld [vmem:[%s5233 + $0x210] sm:$0xff]
        %v5301 = vld [vmem:[%s5233 + $0x218] sm:$0xff]
        %v5302 = vld [vmem:[%s5233 + $0x220] sm:$0xff]
        %v5303 = vld [vmem:[%s5233 + $0x228] sm:$0xff]
        %v5304 = vld [vmem:[%s5233 + $0x230] sm:$0xff]
        %v5305 = vld [vmem:[%s5233 + $0x238] sm:$0xff]
        %v5306 = vld [vmem:[%s5233 + $0x240] sm:$0xff]
        %v5307 = vld [vmem:[%s5233 + $0x248] sm:$0xff]
        %v5308 = vld [vmem:[%s5233 + $0x250] sm:$0xff]
        %v5309 = vld [vmem:[%s5233 + $0x258] sm:$0xff]
        %v5310 = vld [vmem:[%s5233 + $0x260] sm:$0xff]
        %v5311 = vld [vmem:[%s5233 + $0x268] sm:$0xff]
        %v5312 = vld [vmem:[%s5233 + $0x270] sm:$0xff]
        %v5313 = vld [vmem:[%s5233 + $0x278] sm:$0xff]
        %v5314 = vld [vmem:[%s5233 + $0x280] sm:$0xff]
        %v5315 = vld [vmem:[%s5233 + $0x288] sm:$0xff]
        %v5316 = vld [vmem:[%s5233 + $0x290] sm:$0xff]
        %v5317 = vld [vmem:[%s5233 + $0x298] sm:$0xff]
        %v5318 = vld [vmem:[%s5233 + $0x2a0] sm:$0xff]
        %v5319 = vld [vmem:[%s5233 + $0x2a8] sm:$0xff]
        %v5320 = vld [vmem:[%s5233 + $0x2b0] sm:$0xff]
        %v5321 = vld [vmem:[%s5233 + $0x2b8] sm:$0xff]
        %v5322 = vld [vmem:[%s5233 + $0x2c0] sm:$0xff]
        %v5323 = vld [vmem:[%s5233 + $0x2c8] sm:$0xff]
        %v5324 = vld [vmem:[%s5233 + $0x2d0] sm:$0xff]
        %v5325 = vld [vmem:[%s5233 + $0x2d8] sm:$0xff]
        %v5326 = vld [vmem:[%s5233 + $0x2e0] sm:$0xff]
        %v5327 = vld [vmem:[%s5233 + $0x2e8] sm:$0xff]
        %v5328 = vld [vmem:[%s5233 + $0x2f0] sm:$0xff]
        %v5329 = vld [vmem:[%s5233 + $0x2f8] sm:$0xff]
        %v5330 = vld [vmem:[%s5233 + $0x300] sm:$0xff]
        %v5331 = vld [vmem:[%s5233 + $0x308] sm:$0xff]
        %v5332 = vld [vmem:[%s5233 + $0x310] sm:$0xff]
        %v5333 = vld [vmem:[%s5233 + $0x318] sm:$0xff]
        %v5334 = vld [vmem:[%s5233 + $0x320] sm:$0xff]
        %v5335 = vld [vmem:[%s5233 + $0x328] sm:$0xff]
        %v5336 = vld [vmem:[%s5233 + $0x330] sm:$0xff]
        %v5337 = vld [vmem:[%s5233 + $0x338] sm:$0xff]
        %v5338 = vld [vmem:[%s5233 + $0x340] sm:$0xff]
        %v5339 = vld [vmem:[%s5233 + $0x348] sm:$0xff]
        %v5340 = vld [vmem:[%s5233 + $0x350] sm:$0xff]
        %v5341 = vld [vmem:[%s5233 + $0x358] sm:$0xff]
        %v5342 = vld [vmem:[%s5233 + $0x360] sm:$0xff]
        %v5343 = vld [vmem:[%s5233 + $0x368] sm:$0xff]
        %v5344 = vld [vmem:[%s5233 + $0x370] sm:$0xff]
        %v5345 = vld [vmem:[%s5233 + $0x378] sm:$0xff]
        %v5346 = vld [vmem:[%s5233 + $0x380] sm:$0xff]
        %v5347 = vld [vmem:[%s5233 + $0x388] sm:$0xff]
        %v5348 = vld [vmem:[%s5233 + $0x390] sm:$0xff]
        %v5349 = vld [vmem:[%s5233 + $0x398] sm:$0xff]
        %v5350 = vld [vmem:[%s5233 + $0x3a0] sm:$0xff]
        %v5351 = vld [vmem:[%s5233 + $0x3a8] sm:$0xff]
        %v5352 = vld [vmem:[%s5233 + $0x3b0] sm:$0xff]
        %v5353 = vld [vmem:[%s5233 + $0x3b8] sm:$0xff]
        %5354 = vmatprep.subr.mxu0 %v5235
        %5355 = vmatpush1.msra.mxu0 %v5234
        %5356 = vmatprep.subr.mxu0 %v5237
        %5357 = vmatpush1.msra.mxu0 %v5236
        %5358 = vmatprep.subr.mxu0 %v5239
        %5359 = vmatpush1.msra.mxu0 %v5238
        %5360 = vmatprep.subr.mxu0 %v5241
        %5361 = vmatpush1.msra.mxu0 %v5240
        %5362 = vmatprep.subr.mxu0 %v5243
        %5363 = vmatpush1.msra.mxu0 %v5242
        %5364 = vmatprep.subr.mxu0 %v5245
        %5365 = vmatpush1.msra.mxu0 %v5244
        %5366 = vmatprep.subr.mxu0 %v5247
        %5367 = vmatpush1.msra.mxu0 %v5246
        %5368 = vmatprep.subr.mxu0 %v5249
        %5369 = vmatpush1.msra.mxu0 %v5248
        %5370 = vmatprep.subr.mxu0 %v5251
        %5371 = vmatpush1.msra.mxu0 %v5250
        %5372 = vmatprep.subr.mxu0 %v5253
        %5373 = vmatpush1.msra.mxu0 %v5252
        %5374 = vmatprep.subr.mxu0 %v5255
        %5375 = vmatpush1.msra.mxu0 %v5254
        %5376 = vmatprep.subr.mxu0 %v5257
        %5377 = vmatpush1.msra.mxu0 %v5256
        %5378 = vmatprep.subr.mxu0 %v5259
        %5379 = vmatpush1.msra.mxu0 %v5258
        %5380 = vmatprep.subr.mxu0 %v5261
        %5381 = vmatpush1.msra.mxu0 %v5260
        %5382 = vmatprep.subr.mxu0 %v5263
        %5383 = vmatpush1.msra.mxu0 %v5262
        %5384 = vmatprep.subr.mxu0 %v5265
        %5385 = vmatpush1.msra.mxu0 %v5264
        %5386 = vmatprep.subr.mxu0 %v5267
        %5387 = vmatpush1.msra.mxu0 %v5266
        %5388 = vmatprep.subr.mxu0 %v5269
        %5389 = vmatpush1.msra.mxu0 %v5268
        %5390 = vmatprep.subr.mxu0 %v5271
        %5391 = vmatpush1.msra.mxu0 %v5270
        %5392 = vmatprep.subr.mxu0 %v5273
        %5393 = vmatpush1.msra.mxu0 %v5272
        %5394 = vmatprep.subr.mxu0 %v5275
        %5395 = vmatpush1.msra.mxu0 %v5274
        %5396 = vmatprep.subr.mxu0 %v5277
        %5397 = vmatpush1.msra.mxu0 %v5276
        %5398 = vmatprep.subr.mxu0 %v5279
        %5399 = vmatpush1.msra.mxu0 %v5278
        %5400 = vmatprep.subr.mxu0 %v5281
        %5401 = vmatpush1.msra.mxu0 %v5280
        %5402 = vmatprep.subr.mxu0 %v5283
        %5403 = vmatpush1.msra.mxu0 %v5282
        %5404 = vmatprep.subr.mxu0 %v5285
        %5405 = vmatpush1.msra.mxu0 %v5284
        %5406 = vmatprep.subr.mxu0 %v5287
        %5407 = vmatpush1.msra.mxu0 %v5286
        %5408 = vmatprep.subr.mxu0 %v5289
        %5409 = vmatpush1.msra.mxu0 %v5288
        %5410 = vmatprep.subr.mxu0 %v5291
        %5411 = vmatpush1.msra.mxu0 %v5290
        %5412 = vmatprep.subr.mxu0 %v5293
        %5413 = vmatpush1.msra.mxu0 %v5292
        %5414 = vmatprep.subr.mxu0 %v5295
        %5415 = vmatpush1.msra.mxu0 %v5294
        %5416 = vmatprep.subr.mxu0 %v5297
        %5417 = vmatpush1.msra.mxu0 %v5296
        %5418 = vmatprep.mubr.f32.mxu0 %v4945
        %5419 = vmatmul.mubr.f32.gmra.mrb[0].mxu0 %v4944
        %v5420 = vpop.f32.mrb[0].mxu0
        %v5421 = vadd.f32 0.0, %v5420
        %v5422 = vpop.f32.mrb[0].mxu0
        %v5423 = vadd.f32 0.0, %v5422
        %5424 = vmatprep.mubr.f32.mxu0 %v4949
        %5425 = vmatmul.mubr.f32.gmra.mrb[0].mxu0 %v4948
        %v5426 = vpop.f32.mrb[0].mxu0
        %v5427 = vadd.f32 0.0, %v5426
        %v5428 = vpop.f32.mrb[0].mxu0
        %v5429 = vadd.f32 0.0, %v5428
        %5430 = vdwg.mxu0
        %5431 = vmatprep.subr.mxu0 %v5299
        %5432 = vmatpush1.msra.mxu0 %v5298
        %5433 = vmatprep.subr.mxu0 %v5301
        %5434 = vmatpush1.msra.mxu0 %v5300
        %5435 = vmatprep.subr.mxu0 %v5303
        %5436 = vmatpush1.msra.mxu0 %v5302
        %5437 = vmatprep.subr.mxu0 %v5305
        %5438 = vmatpush1.msra.mxu0 %v5304
        %5439 = vmatprep.subr.mxu0 %v5307
        %5440 = vmatpush1.msra.mxu0 %v5306
        %5441 = vmatprep.subr.mxu0 %v5309
        %5442 = vmatpush1.msra.mxu0 %v5308
        %5443 = vmatprep.subr.mxu0 %v5311
        %5444 = vmatpush1.msra.mxu0 %v5310
        %5445 = vmatprep.subr.mxu0 %v5313
        %5446 = vmatpush1.msra.mxu0 %v5312
        %5447 = vmatprep.subr.mxu0 %v5315
        %5448 = vmatpush1.msra.mxu0 %v5314
        %5449 = vmatprep.subr.mxu0 %v5317
        %5450 = vmatpush1.msra.mxu0 %v5316
        %5451 = vmatprep.subr.mxu0 %v5319
        %5452 = vmatpush1.msra.mxu0 %v5318
        %5453 = vmatprep.subr.mxu0 %v5321
        %5454 = vmatpush1.msra.mxu0 %v5320
        %5455 = vmatprep.subr.mxu0 %v5323
        %5456 = vmatpush1.msra.mxu0 %v5322
        %5457 = vmatprep.subr.mxu0 %v5325
        %5458 = vmatpush1.msra.mxu0 %v5324
        %5459 = vmatprep.subr.mxu0 %v5327
        %5460 = vmatpush1.msra.mxu0 %v5326
        %5461 = vmatprep.subr.mxu0 %v5329
        %5462 = vmatpush1.msra.mxu0 %v5328
        %5463 = vmatprep.subr.mxu0 %v5331
        %5464 = vmatpush1.msra.mxu0 %v5330
        %5465 = vmatprep.subr.mxu0 %v5333
        %5466 = vmatpush1.msra.mxu0 %v5332
        %5467 = vmatprep.subr.mxu0 %v5335
        %5468 = vmatpush1.msra.mxu0 %v5334
        %5469 = vmatprep.subr.mxu0 %v5337
        %5470 = vmatpush1.msra.mxu0 %v5336
        %5471 = vmatprep.subr.mxu0 %v5339
        %5472 = vmatpush1.msra.mxu0 %v5338
        %5473 = vmatprep.subr.mxu0 %v5341
        %5474 = vmatpush1.msra.mxu0 %v5340
        %5475 = vmatprep.subr.mxu0 %v5343
        %5476 = vmatpush1.msra.mxu0 %v5342
        %5477 = vmatprep.subr.mxu0 %v5345
        %5478 = vmatpush1.msra.mxu0 %v5344
        %5479 = vmatprep.subr.mxu0 %v5347
        %5480 = vmatpush1.msra.mxu0 %v5346
        %5481 = vmatprep.subr.mxu0 %v5349
        %5482 = vmatpush1.msra.mxu0 %v5348
        %5483 = vmatprep.subr.mxu0 %v5351
        %5484 = vmatpush1.msra.mxu0 %v5350
        %5485 = vmatprep.subr.mxu0 %v5353
        %5486 = vmatpush1.msra.mxu0 %v5352
        %5487 = vmatprep.subr.mxu0 0.0
        %5488 = vmatpush1.msra.mxu0 0.0
        %5489 = vmatprep.subr.mxu0 0.0
        %5490 = vmatpush1.msra.mxu0 0.0
        %5491 = vmatprep.subr.mxu0 0.0
        %5492 = vmatpush1.msra.mxu0 0.0
        %5493 = vmatprep.subr.mxu0 0.0
        %5494 = vmatpush1.msra.mxu0 0.0
        %5495 = vmatprep.mubr.f32.mxu0 %v5074
        %5496 = vmatmul.mubr.f32.gmra.mrb[0].mxu0 %v4946
        %v5497 = vpop.f32.mrb[0].mxu0
        %v5498 = vadd.f32 %v5421, %v5497
        %v5499 = vpop.f32.mrb[0].mxu0
        %v5500 = vadd.f32 %v5423, %v5499
        %5501 = vmatprep.mubr.f32.mxu0 %v5077
        %5502 = vmatmul.mubr.f32.gmra.mrb[0].mxu0 %v4950
        %v5503 = vpop.f32.mrb[0].mxu0
        %v5504 = vadd.f32 %v5427, %v5503
        %v5505 = vpop.f32.mrb[0].mxu0
        %v5506 = vadd.f32 %v5429, %v5505
        %5507 = vdwg.mxu0
        %v5508 = vmax.f32 %v5223, %v5498
        %v5509 = vmax.f32 %v5225, %v5500
        %v5510 = vmax.f32 %v5229, %v5504
        %v5511 = vmax.f32 %v5231, %v5506
        %v5512 = vld [vmem:[#allocation11] sm:$0xff]
        %v5513 = vld [vmem:[#allocation11 + $0x8] sm:$0xff]
        %v5514 = vld [vmem:[#allocation11 + $0x10] sm:$0xff]
        %v5515 = vld [vmem:[#allocation11 + $0x18] sm:$0xff]
        %v5516 = vld [vmem:[#allocation11 + $0x20] sm:$0xff]
        %v5517 = vld [vmem:[#allocation11 + $0x28] sm:$0xff]
        %v5518 = vld [vmem:[#allocation11 + $0x30] sm:$0xff]
        %v5519 = vld [vmem:[#allocation11 + $0x38] sm:$0xff]
        %v5520 = vld [vmem:[#allocation11 + $0x40] sm:$0xff]
        %v5521 = vld [vmem:[#allocation11 + $0x48] sm:$0xff]
        %v5522 = vld [vmem:[#allocation11 + $0x50] sm:$0xff]
        %v5523 = vld [vmem:[#allocation11 + $0x58] sm:$0xff]
        %v5524 = vld [vmem:[#allocation11 + $0x60] sm:$0xff]
        %v5525 = vld [vmem:[#allocation11 + $0x68] sm:$0xff]
        %v5526 = vld [vmem:[#allocation11 + $0x70] sm:$0xff]
        %v5527 = vld [vmem:[#allocation11 + $0x78] sm:$0xff]
        %v5528 = vld [vmem:[#allocation11 + $0x80] sm:$0xff]
        %v5529 = vld [vmem:[#allocation11 + $0x88] sm:$0xff]
        %v5530 = vld [vmem:[#allocation11 + $0x90] sm:$0xff]
        %v5531 = vld [vmem:[#allocation11 + $0x98] sm:$0xff]
        %v5532 = vld [vmem:[#allocation11 + $0xa0] sm:$0xff]
        %v5533 = vld [vmem:[#allocation11 + $0xa8] sm:$0xff]
        %v5534 = vld [vmem:[#allocation11 + $0xb0] sm:$0xff]
        %v5535 = vld [vmem:[#allocation11 + $0xb8] sm:$0xff]
        %v5536 = vld [vmem:[#allocation11 + $0xc0] sm:$0xff]
        %v5537 = vld [vmem:[#allocation11 + $0xc8] sm:$0xff]
        %v5538 = vld [vmem:[#allocation11 + $0xd0] sm:$0xff]
        %v5539 = vld [vmem:[#allocation11 + $0xd8] sm:$0xff]
        %v5540 = vld [vmem:[#allocation11 + $0xe0] sm:$0xff]
        %v5541 = vld [vmem:[#allocation11 + $0xe8] sm:$0xff]
        %v5542 = vld [vmem:[#allocation13] sm:$0x1]
        %v5544 = vlaneseq
        %v5545 = vshrl.u32 %v5544, 7
        %v5546 = vsub.s32 0, %v5545
        %v5547 = vrot.slane %v5542, %v5546
        %v5550 = vsel %vm2587, %v5509, 0
        %v5553 = vsel %vm2587, %v5511, 0
        %5555 = vmatprep.subr.mxu0 0.0
        %5556 = vmatpush1.msra.mxu0 %v5512
        %5557 = vmatprep.subr.mxu0 0.0
        %5558 = vmatpush1.msra.mxu0 %v5513
        %5559 = vmatprep.subr.mxu0 0.0
        %5560 = vmatpush1.msra.mxu0 %v5514
        %5561 = vmatprep.subr.mxu0 0.0
        %5562 = vmatpush1.msra.mxu0 %v5515
        %5563 = vmatprep.subr.mxu0 0.0
        %5564 = vmatpush1.msra.mxu0 %v5516
        %5565 = vmatprep.subr.mxu0 0.0
        %5566 = vmatpush1.msra.mxu0 %v5517
        %5567 = vmatprep.subr.mxu0 0.0
        %5568 = vmatpush1.msra.mxu0 %v5518
        %5569 = vmatprep.subr.mxu0 0.0
        %5570 = vmatpush1.msra.mxu0 %v5519
        %5571 = vmatprep.subr.mxu0 0.0
        %5572 = vmatpush1.msra.mxu0 %v5520
        %5573 = vmatprep.subr.mxu0 0.0
        %5574 = vmatpush1.msra.mxu0 %v5521
        %5575 = vmatprep.subr.mxu0 0.0
        %5576 = vmatpush1.msra.mxu0 %v5522
        %5577 = vmatprep.subr.mxu0 0.0
        %5578 = vmatpush1.msra.mxu0 %v5523
        %5579 = vmatprep.subr.mxu0 0.0
        %5580 = vmatpush1.msra.mxu0 %v5524
        %5581 = vmatprep.subr.mxu0 0.0
        %5582 = vmatpush1.msra.mxu0 %v5525
        %5583 = vmatprep.subr.mxu0 0.0
        %5584 = vmatpush1.msra.mxu0 %v5526
        %5585 = vmatprep.subr.mxu0 0.0
        %5586 = vmatpush1.msra.mxu0 %v5527
        %5587 = vmatprep.subr.mxu0 0.0
        %5588 = vmatpush1.msra.mxu0 %v5528
        %5589 = vmatprep.subr.mxu0 0.0
        %5590 = vmatpush1.msra.mxu0 %v5529
        %5591 = vmatprep.subr.mxu0 0.0
        %5592 = vmatpush1.msra.mxu0 %v5530
        %5593 = vmatprep.subr.mxu0 0.0
        %5594 = vmatpush1.msra.mxu0 %v5531
        %5595 = vmatprep.subr.mxu0 0.0
        %5596 = vmatpush1.msra.mxu0 %v5532
        %5597 = vmatprep.subr.mxu0 0.0
        %5598 = vmatpush1.msra.mxu0 %v5533
        %5599 = vmatprep.subr.mxu0 0.0
        %5600 = vmatpush1.msra.mxu0 %v5534
        %5601 = vmatprep.subr.mxu0 0.0
        %5602 = vmatpush1.msra.mxu0 %v5535
        %5603 = vmatprep.subr.mxu0 0.0
        %5604 = vmatpush1.msra.mxu0 %v5536
        %5605 = vmatprep.subr.mxu0 0.0
        %5606 = vmatpush1.msra.mxu0 %v5537
        %5607 = vmatprep.subr.mxu0 0.0
        %5608 = vmatpush1.msra.mxu0 %v5538
        %5609 = vmatprep.subr.mxu0 0.0
        %5610 = vmatpush1.msra.mxu0 %v5539
        %5611 = vmatprep.subr.mxu0 0.0
        %5612 = vmatpush1.msra.mxu0 %v5540
        %5613 = vmatprep.subr.mxu0 0.0
        %5614 = vmatpush1.msra.mxu0 %v5541
        %5615 = vmatprep.subr.mxu0 0.0
        %5616 = vmatpush1.msra.mxu0 0.0
        %5617 = vmatprep.subr.mxu0 0.0
        %5618 = vmatpush1.msra.mxu0 0.0
        %5619 = vmatprep.mubr.f32.mxu0 %v5550
        %5620 = vmatmul.mubr.f32.gmra.mrb[0].mxu0 %v5508
        %v5621 = vpop.f32.mrb[0].mxu0
        %v5622 = vadd.f32 %v5547, %v5621
        %v5623 = vpop.f32.mrb[0].mxu0
        %5624 = vmatprep.mubr.f32.mxu0 %v5553
        %5625 = vmatmul.mubr.f32.gmra.mrb[0].mxu0 %v5510
        %v5626 = vpop.f32.mrb[0].mxu0
        %v5627 = vadd.f32 %v5547, %v5626
        %v5628 = vpop.f32.mrb[0].mxu0
        %5629 = vdwg.mxu0
        %v5630 = vmax.f32 %v5622, 0.0
        %v5631 = vmax.f32 %v5627, 0.0
        %v5632 = vld [vmem:[%s9] sm:$0xff]
        %v5633 = vld [vmem:[%s9 + $0x8] sm:$0xff]
        %v5634 = vld [vmem:[%s9 + $0x10] sm:$0xff]
        %v5635 = vld [vmem:[%s9 + $0x18] sm:$0xff]
        %v5636 = vld [vmem:[%s9 + $0x20] sm:$0xff]
        %v5637 = vld [vmem:[%s9 + $0x28] sm:$0xff]
        %v5638 = vld [vmem:[%s9 + $0x30] sm:$0xff]
        %v5639 = vld [vmem:[%s9 + $0x38] sm:$0xff]
        %v5640 = vld [vmem:[%s9 + $0x40] sm:$0xff]
        %v5641 = vld [vmem:[%s9 + $0x48] sm:$0xff]
        %v5642 = vld [vmem:[%s9 + $0x50] sm:$0xff]
        %v5643 = vld [vmem:[%s9 + $0x58] sm:$0xff]
        %v5644 = vld [vmem:[%s9 + $0x60] sm:$0xf]
        %s5645 = scalar_lea.vmem %s9, 104
        %v5646 = vld [vmem:[%s5645] sm:$0xff]
        %v5647 = vld [vmem:[%s5645 + $0x8] sm:$0xff]
        %v5648 = vld [vmem:[%s5645 + $0x10] sm:$0xff]
        %v5649 = vld [vmem:[%s5645 + $0x18] sm:$0xff]
        %v5650 = vld [vmem:[%s5645 + $0x20] sm:$0xff]
        %v5651 = vld [vmem:[%s5645 + $0x28] sm:$0xff]
        %v5652 = vld [vmem:[%s5645 + $0x30] sm:$0xff]
        %v5653 = vld [vmem:[%s5645 + $0x38] sm:$0xff]
        %v5654 = vld [vmem:[%s5645 + $0x40] sm:$0xff]
        %v5655 = vld [vmem:[%s5645 + $0x48] sm:$0xff]
        %v5656 = vld [vmem:[%s5645 + $0x50] sm:$0xff]
        %v5657 = vld [vmem:[%s5645 + $0x58] sm:$0xff]
        %v5658 = vld [vmem:[%s5645 + $0x60] sm:$0xf]
        %5661 = vrot.lane.b32.xlu0 %v5630, 118
        %v5662 = vpop.permute.xlu0 %5661
        %5663 = vrot.lane.b32.xlu0 %v5631, 118
        %v5664 = vpop.permute.xlu0 %5663
        %vm5665 = vcmask 818176
        %v5666 = vsel %vm5665, %v5662, 0
        %v5668 = vsel %vm5665, %v5664, 0
        %vm5670 = vcmask 1043456
        %v5672 = vsel %vm5670, %v5658, 0
        %5674 = vmatprep.subr.mxu0 0.0
        %5675 = vmatpush1.msra.mxu0 %v5646
        %5676 = vmatprep.subr.mxu0 0.0
        %5677 = vmatpush1.msra.mxu0 %v5647
        %5678 = vmatprep.subr.mxu0 0.0
        %5679 = vmatpush1.msra.mxu0 %v5648
        %5680 = vmatprep.subr.mxu0 0.0
        %5681 = vmatpush1.msra.mxu0 %v5649
        %5682 = vmatprep.subr.mxu0 0.0
        %5683 = vmatpush1.msra.mxu0 %v5650
        %5684 = vmatprep.subr.mxu0 0.0
        %5685 = vmatpush1.msra.mxu0 %v5651
        %5686 = vmatprep.subr.mxu0 0.0
        %5687 = vmatpush1.msra.mxu0 %v5652
        %5688 = vmatprep.subr.mxu0 0.0
        %5689 = vmatpush1.msra.mxu0 %v5653
        %5690 = vmatprep.subr.mxu0 0.0
        %5691 = vmatpush1.msra.mxu0 %v5654
        %5692 = vmatprep.subr.mxu0 0.0
        %5693 = vmatpush1.msra.mxu0 %v5655
        %5694 = vmatprep.subr.mxu0 0.0
        %5695 = vmatpush1.msra.mxu0 %v5656
        %5696 = vmatprep.subr.mxu0 0.0
        %5697 = vmatpush1.msra.mxu0 %v5657
        %5698 = vmatprep.subr.mxu0 0.0
        %5699 = vmatpush1.msra.mxu0 %v5672
        %5700 = vmatprep.subr.mxu0 0.0
        %5701 = vmatpush1.msra.mxu0 0.0
        %5702 = vmatprep.subr.mxu0 0.0
        %5703 = vmatpush1.msra.mxu0 0.0
        %5704 = vmatprep.subr.mxu0 0.0
        %5705 = vmatpush1.msra.mxu0 0.0
        %5706 = vmatprep.subr.mxu0 0.0
        %5707 = vmatpush1.msra.mxu0 0.0
        %5708 = vmatprep.subr.mxu0 0.0
        %5709 = vmatpush1.msra.mxu0 0.0
        %5710 = vmatprep.subr.mxu0 0.0
        %5711 = vmatpush1.msra.mxu0 0.0
        %5712 = vmatprep.subr.mxu0 0.0
        %5713 = vmatpush1.msra.mxu0 0.0
        %5714 = vmatprep.subr.mxu0 0.0
        %5715 = vmatpush1.msra.mxu0 0.0
        %5716 = vmatprep.subr.mxu0 0.0
        %5717 = vmatpush1.msra.mxu0 0.0
        %5718 = vmatprep.subr.mxu0 0.0
        %5719 = vmatpush1.msra.mxu0 0.0
        %5720 = vmatprep.subr.mxu0 0.0
        %5721 = vmatpush1.msra.mxu0 0.0
        %5722 = vmatprep.subr.mxu0 0.0
        %5723 = vmatpush1.msra.mxu0 0.0
        %5724 = vmatprep.subr.mxu0 0.0
        %5725 = vmatpush1.msra.mxu0 0.0
        %5726 = vmatprep.subr.mxu0 0.0
        %5727 = vmatpush1.msra.mxu0 0.0
        %5728 = vmatprep.subr.mxu0 0.0
        %5729 = vmatpush1.msra.mxu0 0.0
        %5730 = vmatprep.subr.mxu0 0.0
        %5731 = vmatpush1.msra.mxu0 0.0
        %5732 = vmatprep.subr.mxu0 0.0
        %5733 = vmatpush1.msra.mxu0 0.0
        %5734 = vmatprep.subr.mxu0 0.0
        %5735 = vmatpush1.msra.mxu0 0.0
        %5736 = vmatprep.subr.mxu0 0.0
        %5737 = vmatpush1.msra.mxu0 0.0
        %5738 = vmatprep.mubr.f32.mxu0 0.0
        %5739 = vmatmul.mubr.f32.gmra.mrb[0].mxu0 %v5666
        %v5740 = vpop.f32.mrb[0].mxu0
        %v5741 = vadd.f32 0.0, %v5740
        %v5742 = vpop.f32.mrb[0].mxu0
        %5743 = vmatprep.mubr.f32.mxu0 0.0
        %5744 = vmatmul.mubr.f32.gmra.mrb[0].mxu0 %v5668
        %v5745 = vpop.f32.mrb[0].mxu0
        %v5746 = vadd.f32 0.0, %v5745
        %v5747 = vpop.f32.mrb[0].mxu0
        %5748 = vdwg.mxu0
        %v5749 = vsel %vm5665, %v5630, 0
        %v5751 = vsel %vm5665, %v5631, 0
        %v5754 = vsel %vm5670, %v5644, 0
        %5756 = vmatprep.subr.mxu0 0.0
        %5757 = vmatpush1.msra.mxu0 %v5632
        %5758 = vmatprep.subr.mxu0 0.0
        %5759 = vmatpush1.msra.mxu0 %v5633
        %5760 = vmatprep.subr.mxu0 0.0
        %5761 = vmatpush1.msra.mxu0 %v5634
        %5762 = vmatprep.subr.mxu0 0.0
        %5763 = vmatpush1.msra.mxu0 %v5635
        %5764 = vmatprep.subr.mxu0 0.0
        %5765 = vmatpush1.msra.mxu0 %v5636
        %5766 = vmatprep.subr.mxu0 0.0
        %5767 = vmatpush1.msra.mxu0 %v5637
        %5768 = vmatprep.subr.mxu0 0.0
        %5769 = vmatpush1.msra.mxu0 %v5638
        %5770 = vmatprep.subr.mxu0 0.0
        %5771 = vmatpush1.msra.mxu0 %v5639
        %5772 = vmatprep.subr.mxu0 0.0
        %5773 = vmatpush1.msra.mxu0 %v5640
        %5774 = vmatprep.subr.mxu0 0.0
        %5775 = vmatpush1.msra.mxu0 %v5641
        %5776 = vmatprep.subr.mxu0 0.0
        %5777 = vmatpush1.msra.mxu0 %v5642
        %5778 = vmatprep.subr.mxu0 0.0
        %5779 = vmatpush1.msra.mxu0 %v5643
        %5780 = vmatprep.subr.mxu0 0.0
        %5781 = vmatpush1.msra.mxu0 %v5754
        %5782 = vmatprep.subr.mxu0 0.0
        %5783 = vmatpush1.msra.mxu0 0.0
        %5784 = vmatprep.subr.mxu0 0.0
        %5785 = vmatpush1.msra.mxu0 0.0
        %5786 = vmatprep.subr.mxu0 0.0
        %5787 = vmatpush1.msra.mxu0 0.0
        %5788 = vmatprep.subr.mxu0 0.0
        %5789 = vmatpush1.msra.mxu0 0.0
        %5790 = vmatprep.subr.mxu0 0.0
        %5791 = vmatpush1.msra.mxu0 0.0
        %5792 = vmatprep.subr.mxu0 0.0
        %5793 = vmatpush1.msra.mxu0 0.0
        %5794 = vmatprep.subr.mxu0 0.0
        %5795 = vmatpush1.msra.mxu0 0.0
        %5796 = vmatprep.subr.mxu0 0.0
        %5797 = vmatpush1.msra.mxu0 0.0
        %5798 = vmatprep.subr.mxu0 0.0
        %5799 = vmatpush1.msra.mxu0 0.0
        %5800 = vmatprep.subr.mxu0 0.0
        %5801 = vmatpush1.msra.mxu0 0.0
        %5802 = vmatprep.subr.mxu0 0.0
        %5803 = vmatpush1.msra.mxu0 0.0
        %5804 = vmatprep.subr.mxu0 0.0
        %5805 = vmatpush1.msra.mxu0 0.0
        %5806 = vmatprep.subr.mxu0 0.0
        %5807 = vmatpush1.msra.mxu0 0.0
        %5808 = vmatprep.subr.mxu0 0.0
        %5809 = vmatpush1.msra.mxu0 0.0
        %5810 = vmatprep.subr.mxu0 0.0
        %5811 = vmatpush1.msra.mxu0 0.0
        %5812 = vmatprep.subr.mxu0 0.0
        %5813 = vmatpush1.msra.mxu0 0.0
        %5814 = vmatprep.subr.mxu0 0.0
        %5815 = vmatpush1.msra.mxu0 0.0
        %5816 = vmatprep.subr.mxu0 0.0
        %5817 = vmatpush1.msra.mxu0 0.0
        %5818 = vmatprep.subr.mxu0 0.0
        %5819 = vmatpush1.msra.mxu0 0.0
        %5820 = vmatprep.mubr.f32.mxu0 0.0
        %5821 = vmatmul.mubr.f32.gmra.mrb[0].mxu0 %v5749
        %v5822 = vpop.f32.mrb[0].mxu0
        %v5823 = vadd.f32 %v5741, %v5822
        %v5824 = vpop.f32.mrb[0].mxu0
        %5825 = vmatprep.mubr.f32.mxu0 0.0
        %5826 = vmatmul.mubr.f32.gmra.mrb[0].mxu0 %v5751
        %v5827 = vpop.f32.mrb[0].mxu0
        %v5828 = vadd.f32 %v5746, %v5827
        %v5829 = vpop.f32.mrb[0].mxu0
        %5830 = vdwg.mxu0
        %s5831 = scalar_lea.vmem %s9, 208
        %v5832 = vld [vmem:[%s5831] sm:$0xff]
        %v5833 = vld [vmem:[%s5831 + $0x8] sm:$0xff]
        %v5834 = vld [vmem:[%s5831 + $0x10] sm:$0xff]
        %v5835 = vld [vmem:[%s5831 + $0x18] sm:$0xff]
        %v5836 = vld [vmem:[%s5831 + $0x20] sm:$0xff]
        %v5837 = vld [vmem:[%s5831 + $0x28] sm:$0xff]
        %v5838 = vld [vmem:[%s5831 + $0x30] sm:$0xff]
        %v5839 = vld [vmem:[%s5831 + $0x38] sm:$0xff]
        %v5840 = vld [vmem:[%s5831 + $0x40] sm:$0xff]
        %v5841 = vld [vmem:[%s5831 + $0x48] sm:$0xff]
        %v5842 = vld [vmem:[%s5831 + $0x50] sm:$0xff]
        %v5843 = vld [vmem:[%s5831 + $0x58] sm:$0xff]
        %v5844 = vld [vmem:[%s5831 + $0x60] sm:$0xf]
        %5845 = vrot.lane.b32.xlu0 %v5630, 108
        %v5846 = vpop.permute.xlu0 %5845
        %5847 = vrot.lane.b32.xlu0 %v5631, 108
        %v5848 = vpop.permute.xlu0 %5847
        %v5849 = vsel %vm5665, %v5846, 0
        %v5851 = vsel %vm5665, %v5848, 0
        %v5854 = vsel %vm5670, %v5844, 0
        %5856 = vmatprep.subr.mxu0 0.0
        %5857 = vmatpush1.msra.mxu0 %v5832
        %5858 = vmatprep.subr.mxu0 0.0
        %5859 = vmatpush1.msra.mxu0 %v5833
        %5860 = vmatprep.subr.mxu0 0.0
        %5861 = vmatpush1.msra.mxu0 %v5834
        %5862 = vmatprep.subr.mxu0 0.0
        %5863 = vmatpush1.msra.mxu0 %v5835
        %5864 = vmatprep.subr.mxu0 0.0
        %5865 = vmatpush1.msra.mxu0 %v5836
        %5866 = vmatprep.subr.mxu0 0.0
        %5867 = vmatpush1.msra.mxu0 %v5837
        %5868 = vmatprep.subr.mxu0 0.0
        %5869 = vmatpush1.msra.mxu0 %v5838
        %5870 = vmatprep.subr.mxu0 0.0
        %5871 = vmatpush1.msra.mxu0 %v5839
        %5872 = vmatprep.subr.mxu0 0.0
        %5873 = vmatpush1.msra.mxu0 %v5840
        %5874 = vmatprep.subr.mxu0 0.0
        %5875 = vmatpush1.msra.mxu0 %v5841
        %5876 = vmatprep.subr.mxu0 0.0
        %5877 = vmatpush1.msra.mxu0 %v5842
        %5878 = vmatprep.subr.mxu0 0.0
        %5879 = vmatpush1.msra.mxu0 %v5843
        %5880 = vmatprep.subr.mxu0 0.0
        %5881 = vmatpush1.msra.mxu0 %v5854
        %5882 = vmatprep.subr.mxu0 0.0
        %5883 = vmatpush1.msra.mxu0 0.0
        %5884 = vmatprep.subr.mxu0 0.0
        %5885 = vmatpush1.msra.mxu0 0.0
        %5886 = vmatprep.subr.mxu0 0.0
        %5887 = vmatpush1.msra.mxu0 0.0
        %5888 = vmatprep.subr.mxu0 0.0
        %5889 = vmatpush1.msra.mxu0 0.0
        %5890 = vmatprep.subr.mxu0 0.0
        %5891 = vmatpush1.msra.mxu0 0.0
        %5892 = vmatprep.subr.mxu0 0.0
        %5893 = vmatpush1.msra.mxu0 0.0
        %5894 = vmatprep.subr.mxu0 0.0
        %5895 = vmatpush1.msra.mxu0 0.0
        %5896 = vmatprep.subr.mxu0 0.0
        %5897 = vmatpush1.msra.mxu0 0.0
        %5898 = vmatprep.subr.mxu0 0.0
        %5899 = vmatpush1.msra.mxu0 0.0
        %5900 = vmatprep.subr.mxu0 0.0
        %5901 = vmatpush1.msra.mxu0 0.0
        %5902 = vmatprep.subr.mxu0 0.0
        %5903 = vmatpush1.msra.mxu0 0.0
        %5904 = vmatprep.subr.mxu0 0.0
        %5905 = vmatpush1.msra.mxu0 0.0
        %5906 = vmatprep.subr.mxu0 0.0
        %5907 = vmatpush1.msra.mxu0 0.0
        %5908 = vmatprep.subr.mxu0 0.0
        %5909 = vmatpush1.msra.mxu0 0.0
        %5910 = vmatprep.subr.mxu0 0.0
        %5911 = vmatpush1.msra.mxu0 0.0
        %5912 = vmatprep.subr.mxu0 0.0
        %5913 = vmatpush1.msra.mxu0 0.0
        %5914 = vmatprep.subr.mxu0 0.0
        %5915 = vmatpush1.msra.mxu0 0.0
        %5916 = vmatprep.subr.mxu0 0.0
        %5917 = vmatpush1.msra.mxu0 0.0
        %5918 = vmatprep.subr.mxu0 0.0
        %5919 = vmatpush1.msra.mxu0 0.0
        %5920 = vmatprep.mubr.f32.mxu0 0.0
        %5921 = vmatmul.mubr.f32.gmra.mrb[0].mxu0 %v5849
        %v5922 = vpop.f32.mrb[0].mxu0
        %v5923 = vadd.f32 0.0, %v5922
        %v5924 = vpop.f32.mrb[0].mxu0
        %5925 = vmatprep.mubr.f32.mxu0 0.0
        %5926 = vmatmul.mubr.f32.gmra.mrb[0].mxu0 %v5851
        %v5927 = vpop.f32.mrb[0].mxu0
        %v5928 = vadd.f32 0.0, %v5927
        %v5929 = vpop.f32.mrb[0].mxu0
        %5930 = vdwg.mxu0
        %v5931 = vadd.f32 %v5823, %v5923
        %v5932 = vadd.f32 %v5828, %v5928
        %s5933 = scalar_lea.vmem %s9, 312
        %v5934 = vld [vmem:[%s5933] sm:$0xff]
        %v5935 = vld [vmem:[%s5933 + $0x8] sm:$0xff]
        %v5936 = vld [vmem:[%s5933 + $0x10] sm:$0xff]
        %v5937 = vld [vmem:[%s5933 + $0x18] sm:$0xff]
        %v5938 = vld [vmem:[%s5933 + $0x20] sm:$0xff]
        %v5939 = vld [vmem:[%s5933 + $0x28] sm:$0xff]
        %v5940 = vld [vmem:[%s5933 + $0x30] sm:$0xff]
        %v5941 = vld [vmem:[%s5933 + $0x38] sm:$0xff]
        %v5942 = vld [vmem:[%s5933 + $0x40] sm:$0xff]
        %v5943 = vld [vmem:[%s5933 + $0x48] sm:$0xff]
        %v5944 = vld [vmem:[%s5933 + $0x50] sm:$0xff]
        %v5945 = vld [vmem:[%s5933 + $0x58] sm:$0xff]
        %v5946 = vld [vmem:[%s5933 + $0x60] sm:$0xf]
        %v5947 = vrot.slane %v5630, 1
        %v5948 = vrot.slane %v5631, 1
        %v5949 = vsel %vm1128, %v5947, %v5948
        %v5950 = vsel %vm5665, %v5949, 0
        %v5952 = vsel %vm5665, %v5948, 0
        %v5955 = vsel %vm5670, %v5946, 0
        %5957 = vmatprep.subr.mxu0 0.0
        %5958 = vmatpush1.msra.mxu0 %v5934
        %5959 = vmatprep.subr.mxu0 0.0
        %5960 = vmatpush1.msra.mxu0 %v5935
        %5961 = vmatprep.subr.mxu0 0.0
        %5962 = vmatpush1.msra.mxu0 %v5936
        %5963 = vmatprep.subr.mxu0 0.0
        %5964 = vmatpush1.msra.mxu0 %v5937
        %5965 = vmatprep.subr.mxu0 0.0
        %5966 = vmatpush1.msra.mxu0 %v5938
        %5967 = vmatprep.subr.mxu0 0.0
        %5968 = vmatpush1.msra.mxu0 %v5939
        %5969 = vmatprep.subr.mxu0 0.0
        %5970 = vmatpush1.msra.mxu0 %v5940
        %5971 = vmatprep.subr.mxu0 0.0
        %5972 = vmatpush1.msra.mxu0 %v5941
        %5973 = vmatprep.subr.mxu0 0.0
        %5974 = vmatpush1.msra.mxu0 %v5942
        %5975 = vmatprep.subr.mxu0 0.0
        %5976 = vmatpush1.msra.mxu0 %v5943
        %5977 = vmatprep.subr.mxu0 0.0
        %5978 = vmatpush1.msra.mxu0 %v5944
        %5979 = vmatprep.subr.mxu0 0.0
        %5980 = vmatpush1.msra.mxu0 %v5945
        %5981 = vmatprep.subr.mxu0 0.0
        %5982 = vmatpush1.msra.mxu0 %v5955
        %5983 = vmatprep.subr.mxu0 0.0
        %5984 = vmatpush1.msra.mxu0 0.0
        %5985 = vmatprep.subr.mxu0 0.0
        %5986 = vmatpush1.msra.mxu0 0.0
        %5987 = vmatprep.subr.mxu0 0.0
        %5988 = vmatpush1.msra.mxu0 0.0
        %5989 = vmatprep.subr.mxu0 0.0
        %5990 = vmatpush1.msra.mxu0 0.0
        %5991 = vmatprep.subr.mxu0 0.0
        %5992 = vmatpush1.msra.mxu0 0.0
        %5993 = vmatprep.subr.mxu0 0.0
        %5994 = vmatpush1.msra.mxu0 0.0
        %5995 = vmatprep.subr.mxu0 0.0
        %5996 = vmatpush1.msra.mxu0 0.0
        %5997 = vmatprep.subr.mxu0 0.0
        %5998 = vmatpush1.msra.mxu0 0.0
        %5999 = vmatprep.subr.mxu0 0.0
        %6000 = vmatpush1.msra.mxu0 0.0
        %6001 = vmatprep.subr.mxu0 0.0
        %6002 = vmatpush1.msra.mxu0 0.0
        %6003 = vmatprep.subr.mxu0 0.0
        %6004 = vmatpush1.msra.mxu0 0.0
        %6005 = vmatprep.subr.mxu0 0.0
        %6006 = vmatpush1.msra.mxu0 0.0
        %6007 = vmatprep.subr.mxu0 0.0
        %6008 = vmatpush1.msra.mxu0 0.0
        %6009 = vmatprep.subr.mxu0 0.0
        %6010 = vmatpush1.msra.mxu0 0.0
        %6011 = vmatprep.subr.mxu0 0.0
        %6012 = vmatpush1.msra.mxu0 0.0
        %6013 = vmatprep.subr.mxu0 0.0
        %6014 = vmatpush1.msra.mxu0 0.0
        %6015 = vmatprep.subr.mxu0 0.0
        %6016 = vmatpush1.msra.mxu0 0.0
        %6017 = vmatprep.subr.mxu0 0.0
        %6018 = vmatpush1.msra.mxu0 0.0
        %6019 = vmatprep.subr.mxu0 0.0
        %6020 = vmatpush1.msra.mxu0 0.0
        %6021 = vmatprep.mubr.f32.mxu0 0.0
        %6022 = vmatmul.mubr.f32.gmra.mrb[0].mxu0 %v5950
        %v6023 = vpop.f32.mrb[0].mxu0
        %v6024 = vadd.f32 0.0, %v6023
        %v6025 = vpop.f32.mrb[0].mxu0
        %6026 = vmatprep.mubr.f32.mxu0 0.0
        %6027 = vmatmul.mubr.f32.gmra.mrb[0].mxu0 %v5952
        %v6028 = vpop.f32.mrb[0].mxu0
        %v6029 = vadd.f32 0.0, %v6028
        %v6030 = vpop.f32.mrb[0].mxu0
        %6031 = vdwg.mxu0
        %v6032 = vadd.f32 %v5931, %v6024
        %v6033 = vadd.f32 %v5932, %v6029
        %s6034 = scalar_lea.vmem %s9, 416
        %v6035 = vld [vmem:[%s6034] sm:$0xff]
        %v6036 = vld [vmem:[%s6034 + $0x8] sm:$0xff]
        %v6037 = vld [vmem:[%s6034 + $0x10] sm:$0xff]
        %v6038 = vld [vmem:[%s6034 + $0x18] sm:$0xff]
        %v6039 = vld [vmem:[%s6034 + $0x20] sm:$0xff]
        %v6040 = vld [vmem:[%s6034 + $0x28] sm:$0xff]
        %v6041 = vld [vmem:[%s6034 + $0x30] sm:$0xff]
        %v6042 = vld [vmem:[%s6034 + $0x38] sm:$0xff]
        %v6043 = vld [vmem:[%s6034 + $0x40] sm:$0xff]
        %v6044 = vld [vmem:[%s6034 + $0x48] sm:$0xff]
        %v6045 = vld [vmem:[%s6034 + $0x50] sm:$0xff]
        %v6046 = vld [vmem:[%s6034 + $0x58] sm:$0xff]
        %v6047 = vld [vmem:[%s6034 + $0x60] sm:$0xf]
        %6048 = vrot.lane.b32.xlu0 %v5949, 118
        %v6049 = vpop.permute.xlu0 %6048
        %6050 = vrot.lane.b32.xlu0 %v5948, 118
        %v6051 = vpop.permute.xlu0 %6050
        %v6052 = vsel %vm5665, %v6049, 0
        %v6054 = vsel %vm5665, %v6051, 0
        %v6057 = vsel %vm5670, %v6047, 0
        %6059 = vmatprep.subr.mxu0 0.0
        %6060 = vmatpush1.msra.mxu0 %v6035
        %6061 = vmatprep.subr.mxu0 0.0
        %6062 = vmatpush1.msra.mxu0 %v6036
        %6063 = vmatprep.subr.mxu0 0.0
        %6064 = vmatpush1.msra.mxu0 %v6037
        %6065 = vmatprep.subr.mxu0 0.0
        %6066 = vmatpush1.msra.mxu0 %v6038
        %6067 = vmatprep.subr.mxu0 0.0
        %6068 = vmatpush1.msra.mxu0 %v6039
        %6069 = vmatprep.subr.mxu0 0.0
        %6070 = vmatpush1.msra.mxu0 %v6040
        %6071 = vmatprep.subr.mxu0 0.0
        %6072 = vmatpush1.msra.mxu0 %v6041
        %6073 = vmatprep.subr.mxu0 0.0
        %6074 = vmatpush1.msra.mxu0 %v6042
        %6075 = vmatprep.subr.mxu0 0.0
        %6076 = vmatpush1.msra.mxu0 %v6043
        %6077 = vmatprep.subr.mxu0 0.0
        %6078 = vmatpush1.msra.mxu0 %v6044
        %6079 = vmatprep.subr.mxu0 0.0
        %6080 = vmatpush1.msra.mxu0 %v6045
        %6081 = vmatprep.subr.mxu0 0.0
        %6082 = vmatpush1.msra.mxu0 %v6046
        %6083 = vmatprep.subr.mxu0 0.0
        %6084 = vmatpush1.msra.mxu0 %v6057
        %6085 = vmatprep.subr.mxu0 0.0
        %6086 = vmatpush1.msra.mxu0 0.0
        %6087 = vmatprep.subr.mxu0 0.0
        %6088 = vmatpush1.msra.mxu0 0.0
        %6089 = vmatprep.subr.mxu0 0.0
        %6090 = vmatpush1.msra.mxu0 0.0
        %6091 = vmatprep.subr.mxu0 0.0
        %6092 = vmatpush1.msra.mxu0 0.0
        %6093 = vmatprep.subr.mxu0 0.0
        %6094 = vmatpush1.msra.mxu0 0.0
        %6095 = vmatprep.subr.mxu0 0.0
        %6096 = vmatpush1.msra.mxu0 0.0
        %6097 = vmatprep.subr.mxu0 0.0
        %6098 = vmatpush1.msra.mxu0 0.0
        %6099 = vmatprep.subr.mxu0 0.0
        %6100 = vmatpush1.msra.mxu0 0.0
        %6101 = vmatprep.subr.mxu0 0.0
        %6102 = vmatpush1.msra.mxu0 0.0
        %6103 = vmatprep.subr.mxu0 0.0
        %6104 = vmatpush1.msra.mxu0 0.0
        %6105 = vmatprep.subr.mxu0 0.0
        %6106 = vmatpush1.msra.mxu0 0.0
        %6107 = vmatprep.subr.mxu0 0.0
        %6108 = vmatpush1.msra.mxu0 0.0
        %6109 = vmatprep.subr.mxu0 0.0
        %6110 = vmatpush1.msra.mxu0 0.0
        %6111 = vmatprep.subr.mxu0 0.0
        %6112 = vmatpush1.msra.mxu0 0.0
        %6113 = vmatprep.subr.mxu0 0.0
        %6114 = vmatpush1.msra.mxu0 0.0
        %6115 = vmatprep.subr.mxu0 0.0
        %6116 = vmatpush1.msra.mxu0 0.0
        %6117 = vmatprep.subr.mxu0 0.0
        %6118 = vmatpush1.msra.mxu0 0.0
        %6119 = vmatprep.subr.mxu0 0.0
        %6120 = vmatpush1.msra.mxu0 0.0
        %6121 = vmatprep.subr.mxu0 0.0
        %6122 = vmatpush1.msra.mxu0 0.0
        %6123 = vmatprep.mubr.f32.mxu0 0.0
        %6124 = vmatmul.mubr.f32.gmra.mrb[0].mxu0 %v6052
        %v6125 = vpop.f32.mrb[0].mxu0
        %v6126 = vadd.f32 0.0, %v6125
        %v6127 = vpop.f32.mrb[0].mxu0
        %6128 = vmatprep.mubr.f32.mxu0 0.0
        %6129 = vmatmul.mubr.f32.gmra.mrb[0].mxu0 %v6054
        %v6130 = vpop.f32.mrb[0].mxu0
        %v6131 = vadd.f32 0.0, %v6130
        %v6132 = vpop.f32.mrb[0].mxu0
        %6133 = vdwg.mxu0
        %v6134 = vadd.f32 %v6032, %v6126
        %v6135 = vadd.f32 %v6033, %v6131
        %s6136 = scalar_lea.vmem %s9, 520
        %v6137 = vld [vmem:[%s6136] sm:$0xff]
        %v6138 = vld [vmem:[%s6136 + $0x8] sm:$0xff]
        %v6139 = vld [vmem:[%s6136 + $0x10] sm:$0xff]
        %v6140 = vld [vmem:[%s6136 + $0x18] sm:$0xff]
        %v6141 = vld [vmem:[%s6136 + $0x20] sm:$0xff]
        %v6142 = vld [vmem:[%s6136 + $0x28] sm:$0xff]
        %v6143 = vld [vmem:[%s6136 + $0x30] sm:$0xff]
        %v6144 = vld [vmem:[%s6136 + $0x38] sm:$0xff]
        %v6145 = vld [vmem:[%s6136 + $0x40] sm:$0xff]
        %v6146 = vld [vmem:[%s6136 + $0x48] sm:$0xff]
        %v6147 = vld [vmem:[%s6136 + $0x50] sm:$0xff]
        %v6148 = vld [vmem:[%s6136 + $0x58] sm:$0xff]
        %v6149 = vld [vmem:[%s6136 + $0x60] sm:$0xf]
        %6150 = vrot.lane.b32.xlu0 %v5949, 108
        %v6151 = vpop.permute.xlu0 %6150
        %6152 = vrot.lane.b32.xlu0 %v5948, 108
        %v6153 = vpop.permute.xlu0 %6152
        %v6154 = vsel %vm5665, %v6151, 0
        %v6156 = vsel %vm5665, %v6153, 0
        %v6159 = vsel %vm5670, %v6149, 0
        %6161 = vmatprep.subr.mxu0 0.0
        %6162 = vmatpush1.msra.mxu0 %v6137
        %6163 = vmatprep.subr.mxu0 0.0
        %6164 = vmatpush1.msra.mxu0 %v6138
        %6165 = vmatprep.subr.mxu0 0.0
        %6166 = vmatpush1.msra.mxu0 %v6139
        %6167 = vmatprep.subr.mxu0 0.0
        %6168 = vmatpush1.msra.mxu0 %v6140
        %6169 = vmatprep.subr.mxu0 0.0
        %6170 = vmatpush1.msra.mxu0 %v6141
        %6171 = vmatprep.subr.mxu0 0.0
        %6172 = vmatpush1.msra.mxu0 %v6142
        %6173 = vmatprep.subr.mxu0 0.0
        %6174 = vmatpush1.msra.mxu0 %v6143
        %6175 = vmatprep.subr.mxu0 0.0
        %6176 = vmatpush1.msra.mxu0 %v6144
        %6177 = vmatprep.subr.mxu0 0.0
        %6178 = vmatpush1.msra.mxu0 %v6145
        %6179 = vmatprep.subr.mxu0 0.0
        %6180 = vmatpush1.msra.mxu0 %v6146
        %6181 = vmatprep.subr.mxu0 0.0
        %6182 = vmatpush1.msra.mxu0 %v6147
        %6183 = vmatprep.subr.mxu0 0.0
        %6184 = vmatpush1.msra.mxu0 %v6148
        %6185 = vmatprep.subr.mxu0 0.0
        %6186 = vmatpush1.msra.mxu0 %v6159
        %6187 = vmatprep.subr.mxu0 0.0
        %6188 = vmatpush1.msra.mxu0 0.0
        %6189 = vmatprep.subr.mxu0 0.0
        %6190 = vmatpush1.msra.mxu0 0.0
        %6191 = vmatprep.subr.mxu0 0.0
        %6192 = vmatpush1.msra.mxu0 0.0
        %6193 = vmatprep.subr.mxu0 0.0
        %6194 = vmatpush1.msra.mxu0 0.0
        %6195 = vmatprep.subr.mxu0 0.0
        %6196 = vmatpush1.msra.mxu0 0.0
        %6197 = vmatprep.subr.mxu0 0.0
        %6198 = vmatpush1.msra.mxu0 0.0
        %6199 = vmatprep.subr.mxu0 0.0
        %6200 = vmatpush1.msra.mxu0 0.0
        %6201 = vmatprep.subr.mxu0 0.0
        %6202 = vmatpush1.msra.mxu0 0.0
        %6203 = vmatprep.subr.mxu0 0.0
        %6204 = vmatpush1.msra.mxu0 0.0
        %6205 = vmatprep.subr.mxu0 0.0
        %6206 = vmatpush1.msra.mxu0 0.0
        %6207 = vmatprep.subr.mxu0 0.0
        %6208 = vmatpush1.msra.mxu0 0.0
        %6209 = vmatprep.subr.mxu0 0.0
        %6210 = vmatpush1.msra.mxu0 0.0
        %6211 = vmatprep.subr.mxu0 0.0
        %6212 = vmatpush1.msra.mxu0 0.0
        %6213 = vmatprep.subr.mxu0 0.0
        %6214 = vmatpush1.msra.mxu0 0.0
        %6215 = vmatprep.subr.mxu0 0.0
        %6216 = vmatpush1.msra.mxu0 0.0
        %6217 = vmatprep.subr.mxu0 0.0
        %6218 = vmatpush1.msra.mxu0 0.0
        %6219 = vmatprep.subr.mxu0 0.0
        %6220 = vmatpush1.msra.mxu0 0.0
        %6221 = vmatprep.subr.mxu0 0.0
        %6222 = vmatpush1.msra.mxu0 0.0
        %6223 = vmatprep.subr.mxu0 0.0
        %6224 = vmatpush1.msra.mxu0 0.0
        %6225 = vmatprep.mubr.f32.mxu0 0.0
        %6226 = vmatmul.mubr.f32.gmra.mrb[0].mxu0 %v6154
        %v6227 = vpop.f32.mrb[0].mxu0
        %v6228 = vadd.f32 0.0, %v6227
        %v6229 = vpop.f32.mrb[0].mxu0
        %6230 = vmatprep.mubr.f32.mxu0 0.0
        %6231 = vmatmul.mubr.f32.gmra.mrb[0].mxu0 %v6156
        %v6232 = vpop.f32.mrb[0].mxu0
        %v6233 = vadd.f32 0.0, %v6232
        %v6234 = vpop.f32.mrb[0].mxu0
        %6235 = vdwg.mxu0
        %v6236 = vadd.f32 %v6134, %v6228
        %v6237 = vadd.f32 %v6135, %v6233
        %s6238 = scalar_lea.vmem %s9, 624
        %v6239 = vld [vmem:[%s6238] sm:$0xff]
        %v6240 = vld [vmem:[%s6238 + $0x8] sm:$0xff]
        %v6241 = vld [vmem:[%s6238 + $0x10] sm:$0xff]
        %v6242 = vld [vmem:[%s6238 + $0x18] sm:$0xff]
        %v6243 = vld [vmem:[%s6238 + $0x20] sm:$0xff]
        %v6244 = vld [vmem:[%s6238 + $0x28] sm:$0xff]
        %v6245 = vld [vmem:[%s6238 + $0x30] sm:$0xff]
        %v6246 = vld [vmem:[%s6238 + $0x38] sm:$0xff]
        %v6247 = vld [vmem:[%s6238 + $0x40] sm:$0xff]
        %v6248 = vld [vmem:[%s6238 + $0x48] sm:$0xff]
        %v6249 = vld [vmem:[%s6238 + $0x50] sm:$0xff]
        %v6250 = vld [vmem:[%s6238 + $0x58] sm:$0xff]
        %v6251 = vld [vmem:[%s6238 + $0x60] sm:$0xf]
        %v6252 = vrot.slane %v5630, 2
        %v6253 = vrot.slane %v5631, 2
        %v6254 = vsel %vm1512, %v6252, %v6253
        %v6255 = vsel %vm5665, %v6254, 0
        %v6257 = vsel %vm5665, %v6253, 0
        %v6260 = vsel %vm5670, %v6251, 0
        %6262 = vmatprep.subr.mxu0 0.0
        %6263 = vmatpush1.msra.mxu0 %v6239
        %6264 = vmatprep.subr.mxu0 0.0
        %6265 = vmatpush1.msra.mxu0 %v6240
        %6266 = vmatprep.subr.mxu0 0.0
        %6267 = vmatpush1.msra.mxu0 %v6241
        %6268 = vmatprep.subr.mxu0 0.0
        %6269 = vmatpush1.msra.mxu0 %v6242
        %6270 = vmatprep.subr.mxu0 0.0
        %6271 = vmatpush1.msra.mxu0 %v6243
        %6272 = vmatprep.subr.mxu0 0.0
        %6273 = vmatpush1.msra.mxu0 %v6244
        %6274 = vmatprep.subr.mxu0 0.0
        %6275 = vmatpush1.msra.mxu0 %v6245
        %6276 = vmatprep.subr.mxu0 0.0
        %6277 = vmatpush1.msra.mxu0 %v6246
        %6278 = vmatprep.subr.mxu0 0.0
        %6279 = vmatpush1.msra.mxu0 %v6247
        %6280 = vmatprep.subr.mxu0 0.0
        %6281 = vmatpush1.msra.mxu0 %v6248
        %6282 = vmatprep.subr.mxu0 0.0
        %6283 = vmatpush1.msra.mxu0 %v6249
        %6284 = vmatprep.subr.mxu0 0.0
        %6285 = vmatpush1.msra.mxu0 %v6250
        %6286 = vmatprep.subr.mxu0 0.0
        %6287 = vmatpush1.msra.mxu0 %v6260
        %6288 = vmatprep.subr.mxu0 0.0
        %6289 = vmatpush1.msra.mxu0 0.0
        %6290 = vmatprep.subr.mxu0 0.0
        %6291 = vmatpush1.msra.mxu0 0.0
        %6292 = vmatprep.subr.mxu0 0.0
        %6293 = vmatpush1.msra.mxu0 0.0
        %6294 = vmatprep.subr.mxu0 0.0
        %6295 = vmatpush1.msra.mxu0 0.0
        %6296 = vmatprep.subr.mxu0 0.0
        %6297 = vmatpush1.msra.mxu0 0.0
        %6298 = vmatprep.subr.mxu0 0.0
        %6299 = vmatpush1.msra.mxu0 0.0
        %6300 = vmatprep.subr.mxu0 0.0
        %6301 = vmatpush1.msra.mxu0 0.0
        %6302 = vmatprep.subr.mxu0 0.0
        %6303 = vmatpush1.msra.mxu0 0.0
        %6304 = vmatprep.subr.mxu0 0.0
        %6305 = vmatpush1.msra.mxu0 0.0
        %6306 = vmatprep.subr.mxu0 0.0
        %6307 = vmatpush1.msra.mxu0 0.0
        %6308 = vmatprep.subr.mxu0 0.0
        %6309 = vmatpush1.msra.mxu0 0.0
        %6310 = vmatprep.subr.mxu0 0.0
        %6311 = vmatpush1.msra.mxu0 0.0
        %6312 = vmatprep.subr.mxu0 0.0
        %6313 = vmatpush1.msra.mxu0 0.0
        %6314 = vmatprep.subr.mxu0 0.0
        %6315 = vmatpush1.msra.mxu0 0.0
        %6316 = vmatprep.subr.mxu0 0.0
        %6317 = vmatpush1.msra.mxu0 0.0
        %6318 = vmatprep.subr.mxu0 0.0
        %6319 = vmatpush1.msra.mxu0 0.0
        %6320 = vmatprep.subr.mxu0 0.0
        %6321 = vmatpush1.msra.mxu0 0.0
        %6322 = vmatprep.subr.mxu0 0.0
        %6323 = vmatpush1.msra.mxu0 0.0
        %6324 = vmatprep.subr.mxu0 0.0
        %6325 = vmatpush1.msra.mxu0 0.0
        %6326 = vmatprep.mubr.f32.mxu0 0.0
        %6327 = vmatmul.mubr.f32.gmra.mrb[0].mxu0 %v6255
        %v6328 = vpop.f32.mrb[0].mxu0
        %v6329 = vadd.f32 0.0, %v6328
        %v6330 = vpop.f32.mrb[0].mxu0
        %6331 = vmatprep.mubr.f32.mxu0 0.0
        %6332 = vmatmul.mubr.f32.gmra.mrb[0].mxu0 %v6257
        %v6333 = vpop.f32.mrb[0].mxu0
        %v6334 = vadd.f32 0.0, %v6333
        %v6335 = vpop.f32.mrb[0].mxu0
        %6336 = vdwg.mxu0
        %v6337 = vadd.f32 %v6236, %v6329
        %v6338 = vadd.f32 %v6237, %v6334
        %s6339 = scalar_lea.vmem %s9, 728
        %v6340 = vld [vmem:[%s6339] sm:$0xff]
        %v6341 = vld [vmem:[%s6339 + $0x8] sm:$0xff]
        %v6342 = vld [vmem:[%s6339 + $0x10] sm:$0xff]
        %v6343 = vld [vmem:[%s6339 + $0x18] sm:$0xff]
        %v6344 = vld [vmem:[%s6339 + $0x20] sm:$0xff]
        %v6345 = vld [vmem:[%s6339 + $0x28] sm:$0xff]
        %v6346 = vld [vmem:[%s6339 + $0x30] sm:$0xff]
        %v6347 = vld [vmem:[%s6339 + $0x38] sm:$0xff]
        %v6348 = vld [vmem:[%s6339 + $0x40] sm:$0xff]
        %v6349 = vld [vmem:[%s6339 + $0x48] sm:$0xff]
        %v6350 = vld [vmem:[%s6339 + $0x50] sm:$0xff]
        %v6351 = vld [vmem:[%s6339 + $0x58] sm:$0xff]
        %v6352 = vld [vmem:[%s6339 + $0x60] sm:$0xf]
        %6353 = vrot.lane.b32.xlu0 %v6254, 118
        %v6354 = vpop.permute.xlu0 %6353
        %6355 = vrot.lane.b32.xlu0 %v6253, 118
        %v6356 = vpop.permute.xlu0 %6355
        %v6357 = vsel %vm5665, %v6354, 0
        %v6359 = vsel %vm5665, %v6356, 0
        %v6362 = vsel %vm5670, %v6352, 0
        %6364 = vmatprep.subr.mxu0 0.0
        %6365 = vmatpush1.msra.mxu0 %v6340
        %6366 = vmatprep.subr.mxu0 0.0
        %6367 = vmatpush1.msra.mxu0 %v6341
        %6368 = vmatprep.subr.mxu0 0.0
        %6369 = vmatpush1.msra.mxu0 %v6342
        %6370 = vmatprep.subr.mxu0 0.0
        %6371 = vmatpush1.msra.mxu0 %v6343
        %6372 = vmatprep.subr.mxu0 0.0
        %6373 = vmatpush1.msra.mxu0 %v6344
        %6374 = vmatprep.subr.mxu0 0.0
        %6375 = vmatpush1.msra.mxu0 %v6345
        %6376 = vmatprep.subr.mxu0 0.0
        %6377 = vmatpush1.msra.mxu0 %v6346
        %6378 = vmatprep.subr.mxu0 0.0
        %6379 = vmatpush1.msra.mxu0 %v6347
        %6380 = vmatprep.subr.mxu0 0.0
        %6381 = vmatpush1.msra.mxu0 %v6348
        %6382 = vmatprep.subr.mxu0 0.0
        %6383 = vmatpush1.msra.mxu0 %v6349
        %6384 = vmatprep.subr.mxu0 0.0
        %6385 = vmatpush1.msra.mxu0 %v6350
        %6386 = vmatprep.subr.mxu0 0.0
        %6387 = vmatpush1.msra.mxu0 %v6351
        %6388 = vmatprep.subr.mxu0 0.0
        %6389 = vmatpush1.msra.mxu0 %v6362
        %6390 = vmatprep.subr.mxu0 0.0
        %6391 = vmatpush1.msra.mxu0 0.0
        %6392 = vmatprep.subr.mxu0 0.0
        %6393 = vmatpush1.msra.mxu0 0.0
        %6394 = vmatprep.subr.mxu0 0.0
        %6395 = vmatpush1.msra.mxu0 0.0
        %6396 = vmatprep.subr.mxu0 0.0
        %6397 = vmatpush1.msra.mxu0 0.0
        %6398 = vmatprep.subr.mxu0 0.0
        %6399 = vmatpush1.msra.mxu0 0.0
        %6400 = vmatprep.subr.mxu0 0.0
        %6401 = vmatpush1.msra.mxu0 0.0
        %6402 = vmatprep.subr.mxu0 0.0
        %6403 = vmatpush1.msra.mxu0 0.0
        %6404 = vmatprep.subr.mxu0 0.0
        %6405 = vmatpush1.msra.mxu0 0.0
        %6406 = vmatprep.subr.mxu0 0.0
        %6407 = vmatpush1.msra.mxu0 0.0
        %6408 = vmatprep.subr.mxu0 0.0
        %6409 = vmatpush1.msra.mxu0 0.0
        %6410 = vmatprep.subr.mxu0 0.0
        %6411 = vmatpush1.msra.mxu0 0.0
        %6412 = vmatprep.subr.mxu0 0.0
        %6413 = vmatpush1.msra.mxu0 0.0
        %6414 = vmatprep.subr.mxu0 0.0
        %6415 = vmatpush1.msra.mxu0 0.0
        %6416 = vmatprep.subr.mxu0 0.0
        %6417 = vmatpush1.msra.mxu0 0.0
        %6418 = vmatprep.subr.mxu0 0.0
        %6419 = vmatpush1.msra.mxu0 0.0
        %6420 = vmatprep.subr.mxu0 0.0
        %6421 = vmatpush1.msra.mxu0 0.0
        %6422 = vmatprep.subr.mxu0 0.0
        %6423 = vmatpush1.msra.mxu0 0.0
        %6424 = vmatprep.subr.mxu0 0.0
        %6425 = vmatpush1.msra.mxu0 0.0
        %6426 = vmatprep.subr.mxu0 0.0
        %6427 = vmatpush1.msra.mxu0 0.0
        %6428 = vmatprep.mubr.f32.mxu0 0.0
        %6429 = vmatmul.mubr.f32.gmra.mrb[0].mxu0 %v6357
        %v6430 = vpop.f32.mrb[0].mxu0
        %v6431 = vadd.f32 0.0, %v6430
        %v6432 = vpop.f32.mrb[0].mxu0
        %6433 = vmatprep.mubr.f32.mxu0 0.0
        %6434 = vmatmul.mubr.f32.gmra.mrb[0].mxu0 %v6359
        %v6435 = vpop.f32.mrb[0].mxu0
        %v6436 = vadd.f32 0.0, %v6435
        %v6437 = vpop.f32.mrb[0].mxu0
        %6438 = vdwg.mxu0
        %v6439 = vadd.f32 %v6337, %v6431
        %v6440 = vadd.f32 %v6338, %v6436
        %s6441 = scalar_lea.vmem %s9, 832
        %v6442 = vld [vmem:[%s6441] sm:$0xff]
        %v6443 = vld [vmem:[%s6441 + $0x8] sm:$0xff]
        %v6444 = vld [vmem:[%s6441 + $0x10] sm:$0xff]
        %v6445 = vld [vmem:[%s6441 + $0x18] sm:$0xff]
        %v6446 = vld [vmem:[%s6441 + $0x20] sm:$0xff]
        %v6447 = vld [vmem:[%s6441 + $0x28] sm:$0xff]
        %v6448 = vld [vmem:[%s6441 + $0x30] sm:$0xff]
        %v6449 = vld [vmem:[%s6441 + $0x38] sm:$0xff]
        %v6450 = vld [vmem:[%s6441 + $0x40] sm:$0xff]
        %v6451 = vld [vmem:[%s6441 + $0x48] sm:$0xff]
        %v6452 = vld [vmem:[%s6441 + $0x50] sm:$0xff]
        %v6453 = vld [vmem:[%s6441 + $0x58] sm:$0xff]
        %v6454 = vld [vmem:[%s6441 + $0x60] sm:$0xf]
        %6455 = vrot.lane.b32.xlu0 %v6254, 108
        %v6456 = vpop.permute.xlu0 %6455
        %6457 = vrot.lane.b32.xlu0 %v6253, 108
        %v6458 = vpop.permute.xlu0 %6457
        %v6459 = vsel %vm5665, %v6456, 0
        %v6461 = vsel %vm5665, %v6458, 0
        %v6464 = vsel %vm5670, %v6454, 0
        %6466 = vmatprep.subr.mxu0 0.0
        %6467 = vmatpush1.msra.mxu0 %v6442
        %6468 = vmatprep.subr.mxu0 0.0
        %6469 = vmatpush1.msra.mxu0 %v6443
        %6470 = vmatprep.subr.mxu0 0.0
        %6471 = vmatpush1.msra.mxu0 %v6444
        %6472 = vmatprep.subr.mxu0 0.0
        %6473 = vmatpush1.msra.mxu0 %v6445
        %6474 = vmatprep.subr.mxu0 0.0
        %6475 = vmatpush1.msra.mxu0 %v6446
        %6476 = vmatprep.subr.mxu0 0.0
        %6477 = vmatpush1.msra.mxu0 %v6447
        %6478 = vmatprep.subr.mxu0 0.0
        %6479 = vmatpush1.msra.mxu0 %v6448
        %6480 = vmatprep.subr.mxu0 0.0
        %6481 = vmatpush1.msra.mxu0 %v6449
        %6482 = vmatprep.subr.mxu0 0.0
        %6483 = vmatpush1.msra.mxu0 %v6450
        %6484 = vmatprep.subr.mxu0 0.0
        %6485 = vmatpush1.msra.mxu0 %v6451
        %6486 = vmatprep.subr.mxu0 0.0
        %6487 = vmatpush1.msra.mxu0 %v6452
        %6488 = vmatprep.subr.mxu0 0.0
        %6489 = vmatpush1.msra.mxu0 %v6453
        %6490 = vmatprep.subr.mxu0 0.0
        %6491 = vmatpush1.msra.mxu0 %v6464
        %6492 = vmatprep.subr.mxu0 0.0
        %6493 = vmatpush1.msra.mxu0 0.0
        %6494 = vmatprep.subr.mxu0 0.0
        %6495 = vmatpush1.msra.mxu0 0.0
        %6496 = vmatprep.subr.mxu0 0.0
        %6497 = vmatpush1.msra.mxu0 0.0
        %6498 = vmatprep.subr.mxu0 0.0
        %6499 = vmatpush1.msra.mxu0 0.0
        %6500 = vmatprep.subr.mxu0 0.0
        %6501 = vmatpush1.msra.mxu0 0.0
        %6502 = vmatprep.subr.mxu0 0.0
        %6503 = vmatpush1.msra.mxu0 0.0
        %6504 = vmatprep.subr.mxu0 0.0
        %6505 = vmatpush1.msra.mxu0 0.0
        %6506 = vmatprep.subr.mxu0 0.0
        %6507 = vmatpush1.msra.mxu0 0.0
        %6508 = vmatprep.subr.mxu0 0.0
        %6509 = vmatpush1.msra.mxu0 0.0
        %6510 = vmatprep.subr.mxu0 0.0
        %6511 = vmatpush1.msra.mxu0 0.0
        %6512 = vmatprep.subr.mxu0 0.0
        %6513 = vmatpush1.msra.mxu0 0.0
        %6514 = vmatprep.subr.mxu0 0.0
        %6515 = vmatpush1.msra.mxu0 0.0
        %6516 = vmatprep.subr.mxu0 0.0
        %6517 = vmatpush1.msra.mxu0 0.0
        %6518 = vmatprep.subr.mxu0 0.0
        %6519 = vmatpush1.msra.mxu0 0.0
        %6520 = vmatprep.subr.mxu0 0.0
        %6521 = vmatpush1.msra.mxu0 0.0
        %6522 = vmatprep.subr.mxu0 0.0
        %6523 = vmatpush1.msra.mxu0 0.0
        %6524 = vmatprep.subr.mxu0 0.0
        %6525 = vmatpush1.msra.mxu0 0.0
        %6526 = vmatprep.subr.mxu0 0.0
        %6527 = vmatpush1.msra.mxu0 0.0
        %6528 = vmatprep.subr.mxu0 0.0
        %6529 = vmatpush1.msra.mxu0 0.0
        %6530 = vmatprep.mubr.f32.mxu0 0.0
        %6531 = vmatmul.mubr.f32.gmra.mrb[0].mxu0 %v6459
        %v6532 = vpop.f32.mrb[0].mxu0
        %v6533 = vadd.f32 0.0, %v6532
        %v6534 = vpop.f32.mrb[0].mxu0
        %6535 = vmatprep.mubr.f32.mxu0 0.0
        %6536 = vmatmul.mubr.f32.gmra.mrb[0].mxu0 %v6461
        %v6537 = vpop.f32.mrb[0].mxu0
        %v6538 = vadd.f32 0.0, %v6537
        %v6539 = vpop.f32.mrb[0].mxu0
        %6540 = vdwg.mxu0
        %v6541 = vadd.f32 %v6439, %v6533
        %v6542 = vadd.f32 %v6440, %v6538
        %v6543 = vld [vmem:[#allocation14] sm:$0x1]
        %v6545 = vlaneseq
        %v6546 = vshrl.u32 %v6545, 7
        %v6547 = vsub.s32 0, %v6546
        %v6548 = vrot.slane %v6543, %v6547
        %v6550 = vadd.f32 %v6541, %v6548
        %v6551 = vadd.f32 %v6542, %v6548
        %v6552 = vmax.f32 %v6550, 0.0
        %v6553 = vmax.f32 %v6551, 0.0
        %v6554 = vld [vmem:[#allocation16] sm:$0xff]
        %v6555 = vld [vmem:[#allocation16 + $0x8] sm:$0xff]
        %v6556 = vld [vmem:[#allocation16 + $0x10] sm:$0xff]
        %v6557 = vld [vmem:[#allocation16 + $0x18] sm:$0xff]
        %v6558 = vld [vmem:[#allocation16 + $0x20] sm:$0xff]
        %v6559 = vld [vmem:[#allocation16 + $0x28] sm:$0xff]
        %v6560 = vld [vmem:[#allocation16 + $0x30] sm:$0xff]
        %v6561 = vld [vmem:[#allocation16 + $0x38] sm:$0xff]
        %v6562 = vld [vmem:[#allocation16 + $0x40] sm:$0xff]
        %v6563 = vld [vmem:[#allocation16 + $0x48] sm:$0xff]
        %v6564 = vld [vmem:[#allocation16 + $0x50] sm:$0xff]
        %v6565 = vld [vmem:[#allocation16 + $0x58] sm:$0xff]
        %v6566 = vld [vmem:[#allocation16 + $0x60] sm:$0xff]
        %v6567 = vld [vmem:[#allocation16 + $0x68] sm:$0xff]
        %v6568 = vld [vmem:[#allocation16 + $0x70] sm:$0xff]
        %v6569 = vld [vmem:[#allocation16 + $0x78] sm:$0xff]
        %s6570 = scalar_lea.vmem [#allocation16], 128
        %v6571 = vld [vmem:[%s6570] sm:$0xff]
        %v6572 = vld [vmem:[%s6570 + $0x8] sm:$0xff]
        %v6573 = vld [vmem:[%s6570 + $0x10] sm:$0xff]
        %v6574 = vld [vmem:[%s6570 + $0x18] sm:$0xff]
        %v6575 = vld [vmem:[%s6570 + $0x20] sm:$0xff]
        %v6576 = vld [vmem:[%s6570 + $0x28] sm:$0xff]
        %v6577 = vld [vmem:[%s6570 + $0x30] sm:$0xff]
        %v6578 = vld [vmem:[%s6570 + $0x38] sm:$0xff]
        %v6579 = vld [vmem:[%s6570 + $0x40] sm:$0xff]
        %v6580 = vld [vmem:[%s6570 + $0x48] sm:$0xff]
        %v6581 = vld [vmem:[%s6570 + $0x50] sm:$0xff]
        %v6582 = vld [vmem:[%s6570 + $0x58] sm:$0xff]
        %v6583 = vld [vmem:[%s6570 + $0x60] sm:$0xff]
        %v6584 = vld [vmem:[%s6570 + $0x68] sm:$0xff]
        %v6585 = vld [vmem:[%s6570 + $0x70] sm:$0xff]
        %v6586 = vld [vmem:[%s6570 + $0x78] sm:$0xff]
        %6588 = vrot.lane.b32.xlu0 %v6552, 120
        %v6589 = vpop.permute.xlu0 %6588
        %v6590 = vsel %vm2133, %v6589, 0
        %6592 = vmatprep.subr.mxu0 %v6572
        %6593 = vmatpush1.msra.mxu0 %v6571
        %6594 = vmatprep.subr.mxu0 %v6574
        %6595 = vmatpush1.msra.mxu0 %v6573
        %6596 = vmatprep.subr.mxu0 %v6576
        %6597 = vmatpush1.msra.mxu0 %v6575
        %6598 = vmatprep.subr.mxu0 %v6578
        %6599 = vmatpush1.msra.mxu0 %v6577
        %6600 = vmatprep.subr.mxu0 %v6580
        %6601 = vmatpush1.msra.mxu0 %v6579
        %6602 = vmatprep.subr.mxu0 %v6582
        %6603 = vmatpush1.msra.mxu0 %v6581
        %6604 = vmatprep.subr.mxu0 %v6584
        %6605 = vmatpush1.msra.mxu0 %v6583
        %6606 = vmatprep.subr.mxu0 %v6586
        %6607 = vmatpush1.msra.mxu0 %v6585
        %6608 = vmatprep.subr.mxu0 0.0
        %6609 = vmatpush1.msra.mxu0 0.0
        %6610 = vmatprep.subr.mxu0 0.0
        %6611 = vmatpush1.msra.mxu0 0.0
        %6612 = vmatprep.subr.mxu0 0.0
        %6613 = vmatpush1.msra.mxu0 0.0
        %6614 = vmatprep.subr.mxu0 0.0
        %6615 = vmatpush1.msra.mxu0 0.0
        %6616 = vmatprep.subr.mxu0 0.0
        %6617 = vmatpush1.msra.mxu0 0.0
        %6618 = vmatprep.subr.mxu0 0.0
        %6619 = vmatpush1.msra.mxu0 0.0
        %6620 = vmatprep.subr.mxu0 0.0
        %6621 = vmatpush1.msra.mxu0 0.0
        %6622 = vmatprep.subr.mxu0 0.0
        %6623 = vmatpush1.msra.mxu0 0.0
        %6624 = vmatprep.subr.mxu0 0.0
        %6625 = vmatpush1.msra.mxu0 0.0
        %6626 = vmatprep.subr.mxu0 0.0
        %6627 = vmatpush1.msra.mxu0 0.0
        %6628 = vmatprep.subr.mxu0 0.0
        %6629 = vmatpush1.msra.mxu0 0.0
        %6630 = vmatprep.subr.mxu0 0.0
        %6631 = vmatpush1.msra.mxu0 0.0
        %6632 = vmatprep.subr.mxu0 0.0
        %6633 = vmatpush1.msra.mxu0 0.0
        %6634 = vmatprep.subr.mxu0 0.0
        %6635 = vmatpush1.msra.mxu0 0.0
        %6636 = vmatprep.subr.mxu0 0.0
        %6637 = vmatpush1.msra.mxu0 0.0
        %6638 = vmatprep.subr.mxu0 0.0
        %6639 = vmatpush1.msra.mxu0 0.0
        %6640 = vmatprep.subr.mxu0 0.0
        %6641 = vmatpush1.msra.mxu0 0.0
        %6642 = vmatprep.subr.mxu0 0.0
        %6643 = vmatpush1.msra.mxu0 0.0
        %6644 = vmatprep.subr.mxu0 0.0
        %6645 = vmatpush1.msra.mxu0 0.0
        %6646 = vmatprep.subr.mxu0 0.0
        %6647 = vmatpush1.msra.mxu0 0.0
        %6648 = vmatprep.subr.mxu0 0.0
        %6649 = vmatpush1.msra.mxu0 0.0
        %6650 = vmatprep.subr.mxu0 0.0
        %6651 = vmatpush1.msra.mxu0 0.0
        %6652 = vmatprep.subr.mxu0 0.0
        %6653 = vmatpush1.msra.mxu0 0.0
        %6654 = vmatprep.subr.mxu0 0.0
        %6655 = vmatpush1.msra.mxu0 0.0
        %6656 = vmatprep.mubr.f32.mxu0 0.0
        %6657 = vmatmul.mubr.f32.gmra.mrb[0].mxu0 %v6590
        %v6658 = vpop.f32.mrb[0].mxu0
        %v6659 = vadd.f32 0.0, %v6658
        %v6660 = vpop.f32.mrb[0].mxu0
        %v6661 = vadd.f32 0.0, %v6660
        %6662 = vdwg.mxu0
        %v6663 = vsel %vm2133, %v6552, 0
        %6665 = vmatprep.subr.mxu0 %v6555
        %6666 = vmatpush1.msra.mxu0 %v6554
        %6667 = vmatprep.subr.mxu0 %v6557
        %6668 = vmatpush1.msra.mxu0 %v6556
        %6669 = vmatprep.subr.mxu0 %v6559
        %6670 = vmatpush1.msra.mxu0 %v6558
        %6671 = vmatprep.subr.mxu0 %v6561
        %6672 = vmatpush1.msra.mxu0 %v6560
        %6673 = vmatprep.subr.mxu0 %v6563
        %6674 = vmatpush1.msra.mxu0 %v6562
        %6675 = vmatprep.subr.mxu0 %v6565
        %6676 = vmatpush1.msra.mxu0 %v6564
        %6677 = vmatprep.subr.mxu0 %v6567
        %6678 = vmatpush1.msra.mxu0 %v6566
        %6679 = vmatprep.subr.mxu0 %v6569
        %6680 = vmatpush1.msra.mxu0 %v6568
        %6681 = vmatprep.subr.mxu0 0.0
        %6682 = vmatpush1.msra.mxu0 0.0
        %6683 = vmatprep.subr.mxu0 0.0
        %6684 = vmatpush1.msra.mxu0 0.0
        %6685 = vmatprep.subr.mxu0 0.0
        %6686 = vmatpush1.msra.mxu0 0.0
        %6687 = vmatprep.subr.mxu0 0.0
        %6688 = vmatpush1.msra.mxu0 0.0
        %6689 = vmatprep.subr.mxu0 0.0
        %6690 = vmatpush1.msra.mxu0 0.0
        %6691 = vmatprep.subr.mxu0 0.0
        %6692 = vmatpush1.msra.mxu0 0.0
        %6693 = vmatprep.subr.mxu0 0.0
        %6694 = vmatpush1.msra.mxu0 0.0
        %6695 = vmatprep.subr.mxu0 0.0
        %6696 = vmatpush1.msra.mxu0 0.0
        %6697 = vmatprep.subr.mxu0 0.0
        %6698 = vmatpush1.msra.mxu0 0.0
        %6699 = vmatprep.subr.mxu0 0.0
        %6700 = vmatpush1.msra.mxu0 0.0
        %6701 = vmatprep.subr.mxu0 0.0
        %6702 = vmatpush1.msra.mxu0 0.0
        %6703 = vmatprep.subr.mxu0 0.0
        %6704 = vmatpush1.msra.mxu0 0.0
        %6705 = vmatprep.subr.mxu0 0.0
        %6706 = vmatpush1.msra.mxu0 0.0
        %6707 = vmatprep.subr.mxu0 0.0
        %6708 = vmatpush1.msra.mxu0 0.0
        %6709 = vmatprep.subr.mxu0 0.0
        %6710 = vmatpush1.msra.mxu0 0.0
        %6711 = vmatprep.subr.mxu0 0.0
        %6712 = vmatpush1.msra.mxu0 0.0
        %6713 = vmatprep.subr.mxu0 0.0
        %6714 = vmatpush1.msra.mxu0 0.0
        %6715 = vmatprep.subr.mxu0 0.0
        %6716 = vmatpush1.msra.mxu0 0.0
        %6717 = vmatprep.subr.mxu0 0.0
        %6718 = vmatpush1.msra.mxu0 0.0
        %6719 = vmatprep.subr.mxu0 0.0
        %6720 = vmatpush1.msra.mxu0 0.0
        %6721 = vmatprep.subr.mxu0 0.0
        %6722 = vmatpush1.msra.mxu0 0.0
        %6723 = vmatprep.subr.mxu0 0.0
        %6724 = vmatpush1.msra.mxu0 0.0
        %6725 = vmatprep.subr.mxu0 0.0
        %6726 = vmatpush1.msra.mxu0 0.0
        %6727 = vmatprep.subr.mxu0 0.0
        %6728 = vmatpush1.msra.mxu0 0.0
        %6729 = vmatprep.mubr.f32.mxu0 0.0
        %6730 = vmatmul.mubr.f32.gmra.mrb[0].mxu0 %v6663
        %v6731 = vpop.f32.mrb[0].mxu0
        %v6732 = vadd.f32 %v6659, %v6731
        %v6733 = vpop.f32.mrb[0].mxu0
        %v6734 = vadd.f32 %v6661, %v6733
        %6735 = vdwg.mxu0
        %s6736 = scalar_lea.vmem [#allocation16], 256
        %v6737 = vld [vmem:[%s6736] sm:$0xff]
        %v6738 = vld [vmem:[%s6736 + $0x8] sm:$0xff]
        %v6739 = vld [vmem:[%s6736 + $0x10] sm:$0xff]
        %v6740 = vld [vmem:[%s6736 + $0x18] sm:$0xff]
        %v6741 = vld [vmem:[%s6736 + $0x20] sm:$0xff]
        %v6742 = vld [vmem:[%s6736 + $0x28] sm:$0xff]
        %v6743 = vld [vmem:[%s6736 + $0x30] sm:$0xff]
        %v6744 = vld [vmem:[%s6736 + $0x38] sm:$0xff]
        %v6745 = vld [vmem:[%s6736 + $0x40] sm:$0xff]
        %v6746 = vld [vmem:[%s6736 + $0x48] sm:$0xff]
        %v6747 = vld [vmem:[%s6736 + $0x50] sm:$0xff]
        %v6748 = vld [vmem:[%s6736 + $0x58] sm:$0xff]
        %v6749 = vld [vmem:[%s6736 + $0x60] sm:$0xff]
        %v6750 = vld [vmem:[%s6736 + $0x68] sm:$0xff]
        %v6751 = vld [vmem:[%s6736 + $0x70] sm:$0xff]
        %v6752 = vld [vmem:[%s6736 + $0x78] sm:$0xff]
        %6753 = vrot.lane.b32.xlu0 %v6552, 112
        %v6754 = vpop.permute.xlu0 %6753
        %v6755 = vsel %vm2133, %v6754, 0
        %6757 = vmatprep.subr.mxu0 %v6738
        %6758 = vmatpush1.msra.mxu0 %v6737
        %6759 = vmatprep.subr.mxu0 %v6740
        %6760 = vmatpush1.msra.mxu0 %v6739
        %6761 = vmatprep.subr.mxu0 %v6742
        %6762 = vmatpush1.msra.mxu0 %v6741
        %6763 = vmatprep.subr.mxu0 %v6744
        %6764 = vmatpush1.msra.mxu0 %v6743
        %6765 = vmatprep.subr.mxu0 %v6746
        %6766 = vmatpush1.msra.mxu0 %v6745
        %6767 = vmatprep.subr.mxu0 %v6748
        %6768 = vmatpush1.msra.mxu0 %v6747
        %6769 = vmatprep.subr.mxu0 %v6750
        %6770 = vmatpush1.msra.mxu0 %v6749
        %6771 = vmatprep.subr.mxu0 %v6752
        %6772 = vmatpush1.msra.mxu0 %v6751
        %6773 = vmatprep.subr.mxu0 0.0
        %6774 = vmatpush1.msra.mxu0 0.0
        %6775 = vmatprep.subr.mxu0 0.0
        %6776 = vmatpush1.msra.mxu0 0.0
        %6777 = vmatprep.subr.mxu0 0.0
        %6778 = vmatpush1.msra.mxu0 0.0
        %6779 = vmatprep.subr.mxu0 0.0
        %6780 = vmatpush1.msra.mxu0 0.0
        %6781 = vmatprep.subr.mxu0 0.0
        %6782 = vmatpush1.msra.mxu0 0.0
        %6783 = vmatprep.subr.mxu0 0.0
        %6784 = vmatpush1.msra.mxu0 0.0
        %6785 = vmatprep.subr.mxu0 0.0
        %6786 = vmatpush1.msra.mxu0 0.0
        %6787 = vmatprep.subr.mxu0 0.0
        %6788 = vmatpush1.msra.mxu0 0.0
        %6789 = vmatprep.subr.mxu0 0.0
        %6790 = vmatpush1.msra.mxu0 0.0
        %6791 = vmatprep.subr.mxu0 0.0
        %6792 = vmatpush1.msra.mxu0 0.0
        %6793 = vmatprep.subr.mxu0 0.0
        %6794 = vmatpush1.msra.mxu0 0.0
        %6795 = vmatprep.subr.mxu0 0.0
        %6796 = vmatpush1.msra.mxu0 0.0
        %6797 = vmatprep.subr.mxu0 0.0
        %6798 = vmatpush1.msra.mxu0 0.0
        %6799 = vmatprep.subr.mxu0 0.0
        %6800 = vmatpush1.msra.mxu0 0.0
        %6801 = vmatprep.subr.mxu0 0.0
        %6802 = vmatpush1.msra.mxu0 0.0
        %6803 = vmatprep.subr.mxu0 0.0
        %6804 = vmatpush1.msra.mxu0 0.0
        %6805 = vmatprep.subr.mxu0 0.0
        %6806 = vmatpush1.msra.mxu0 0.0
        %6807 = vmatprep.subr.mxu0 0.0
        %6808 = vmatpush1.msra.mxu0 0.0
        %6809 = vmatprep.subr.mxu0 0.0
        %6810 = vmatpush1.msra.mxu0 0.0
        %6811 = vmatprep.subr.mxu0 0.0
        %6812 = vmatpush1.msra.mxu0 0.0
        %6813 = vmatprep.subr.mxu0 0.0
        %6814 = vmatpush1.msra.mxu0 0.0
        %6815 = vmatprep.subr.mxu0 0.0
        %6816 = vmatpush1.msra.mxu0 0.0
        %6817 = vmatprep.subr.mxu0 0.0
        %6818 = vmatpush1.msra.mxu0 0.0
        %6819 = vmatprep.subr.mxu0 0.0
        %6820 = vmatpush1.msra.mxu0 0.0
        %6821 = vmatprep.mubr.f32.mxu0 0.0
        %6822 = vmatmul.mubr.f32.gmra.mrb[0].mxu0 %v6755
        %v6823 = vpop.f32.mrb[0].mxu0
        %v6824 = vadd.f32 0.0, %v6823
        %v6825 = vpop.f32.mrb[0].mxu0
        %v6826 = vadd.f32 0.0, %v6825
        %6827 = vdwg.mxu0
        %v6828 = vadd.f32 %v6732, %v6824
        %v6829 = vadd.f32 %v6734, %v6826
        %s6830 = scalar_lea.vmem [#allocation16], 384
        %v6831 = vld [vmem:[%s6830] sm:$0xff]
        %v6832 = vld [vmem:[%s6830 + $0x8] sm:$0xff]
        %v6833 = vld [vmem:[%s6830 + $0x10] sm:$0xff]
        %v6834 = vld [vmem:[%s6830 + $0x18] sm:$0xff]
        %v6835 = vld [vmem:[%s6830 + $0x20] sm:$0xff]
        %v6836 = vld [vmem:[%s6830 + $0x28] sm:$0xff]
        %v6837 = vld [vmem:[%s6830 + $0x30] sm:$0xff]
        %v6838 = vld [vmem:[%s6830 + $0x38] sm:$0xff]
        %v6839 = vld [vmem:[%s6830 + $0x40] sm:$0xff]
        %v6840 = vld [vmem:[%s6830 + $0x48] sm:$0xff]
        %v6841 = vld [vmem:[%s6830 + $0x50] sm:$0xff]
        %v6842 = vld [vmem:[%s6830 + $0x58] sm:$0xff]
        %v6843 = vld [vmem:[%s6830 + $0x60] sm:$0xff]
        %v6844 = vld [vmem:[%s6830 + $0x68] sm:$0xff]
        %v6845 = vld [vmem:[%s6830 + $0x70] sm:$0xff]
        %v6846 = vld [vmem:[%s6830 + $0x78] sm:$0xff]
        %v6848 = vrot.slane %v6552, 1
        %v6849 = vrot.slane %v6553, 1
        %v6850 = vsel %vm1128, %v6848, %v6849
        %v6851 = vsel %vm2133, %v6850, 0
        %6853 = vmatprep.subr.mxu0 %v6832
        %6854 = vmatpush1.msra.mxu0 %v6831
        %6855 = vmatprep.subr.mxu0 %v6834
        %6856 = vmatpush1.msra.mxu0 %v6833
        %6857 = vmatprep.subr.mxu0 %v6836
        %6858 = vmatpush1.msra.mxu0 %v6835
        %6859 = vmatprep.subr.mxu0 %v6838
        %6860 = vmatpush1.msra.mxu0 %v6837
        %6861 = vmatprep.subr.mxu0 %v6840
        %6862 = vmatpush1.msra.mxu0 %v6839
        %6863 = vmatprep.subr.mxu0 %v6842
        %6864 = vmatpush1.msra.mxu0 %v6841
        %6865 = vmatprep.subr.mxu0 %v6844
        %6866 = vmatpush1.msra.mxu0 %v6843
        %6867 = vmatprep.subr.mxu0 %v6846
        %6868 = vmatpush1.msra.mxu0 %v6845
        %6869 = vmatprep.subr.mxu0 0.0
        %6870 = vmatpush1.msra.mxu0 0.0
        %6871 = vmatprep.subr.mxu0 0.0
        %6872 = vmatpush1.msra.mxu0 0.0
        %6873 = vmatprep.subr.mxu0 0.0
        %6874 = vmatpush1.msra.mxu0 0.0
        %6875 = vmatprep.subr.mxu0 0.0
        %6876 = vmatpush1.msra.mxu0 0.0
        %6877 = vmatprep.subr.mxu0 0.0
        %6878 = vmatpush1.msra.mxu0 0.0
        %6879 = vmatprep.subr.mxu0 0.0
        %6880 = vmatpush1.msra.mxu0 0.0
        %6881 = vmatprep.subr.mxu0 0.0
        %6882 = vmatpush1.msra.mxu0 0.0
        %6883 = vmatprep.subr.mxu0 0.0
        %6884 = vmatpush1.msra.mxu0 0.0
        %6885 = vmatprep.subr.mxu0 0.0
        %6886 = vmatpush1.msra.mxu0 0.0
        %6887 = vmatprep.subr.mxu0 0.0
        %6888 = vmatpush1.msra.mxu0 0.0
        %6889 = vmatprep.subr.mxu0 0.0
        %6890 = vmatpush1.msra.mxu0 0.0
        %6891 = vmatprep.subr.mxu0 0.0
        %6892 = vmatpush1.msra.mxu0 0.0
        %6893 = vmatprep.subr.mxu0 0.0
        %6894 = vmatpush1.msra.mxu0 0.0
        %6895 = vmatprep.subr.mxu0 0.0
        %6896 = vmatpush1.msra.mxu0 0.0
        %6897 = vmatprep.subr.mxu0 0.0
        %6898 = vmatpush1.msra.mxu0 0.0
        %6899 = vmatprep.subr.mxu0 0.0
        %6900 = vmatpush1.msra.mxu0 0.0
        %6901 = vmatprep.subr.mxu0 0.0
        %6902 = vmatpush1.msra.mxu0 0.0
        %6903 = vmatprep.subr.mxu0 0.0
        %6904 = vmatpush1.msra.mxu0 0.0
        %6905 = vmatprep.subr.mxu0 0.0
        %6906 = vmatpush1.msra.mxu0 0.0
        %6907 = vmatprep.subr.mxu0 0.0
        %6908 = vmatpush1.msra.mxu0 0.0
        %6909 = vmatprep.subr.mxu0 0.0
        %6910 = vmatpush1.msra.mxu0 0.0
        %6911 = vmatprep.subr.mxu0 0.0
        %6912 = vmatpush1.msra.mxu0 0.0
        %6913 = vmatprep.subr.mxu0 0.0
        %6914 = vmatpush1.msra.mxu0 0.0
        %6915 = vmatprep.subr.mxu0 0.0
        %6916 = vmatpush1.msra.mxu0 0.0
        %6917 = vmatprep.mubr.f32.mxu0 0.0
        %6918 = vmatmul.mubr.f32.gmra.mrb[0].mxu0 %v6851
        %v6919 = vpop.f32.mrb[0].mxu0
        %v6920 = vadd.f32 0.0, %v6919
        %v6921 = vpop.f32.mrb[0].mxu0
        %v6922 = vadd.f32 0.0, %v6921
        %6923 = vdwg.mxu0
        %v6924 = vadd.f32 %v6828, %v6920
        %v6925 = vadd.f32 %v6829, %v6922
        %s6926 = scalar_lea.vmem [#allocation16], 512
        %v6927 = vld [vmem:[%s6926] sm:$0xff]
        %v6928 = vld [vmem:[%s6926 + $0x8] sm:$0xff]
        %v6929 = vld [vmem:[%s6926 + $0x10] sm:$0xff]
        %v6930 = vld [vmem:[%s6926 + $0x18] sm:$0xff]
        %v6931 = vld [vmem:[%s6926 + $0x20] sm:$0xff]
        %v6932 = vld [vmem:[%s6926 + $0x28] sm:$0xff]
        %v6933 = vld [vmem:[%s6926 + $0x30] sm:$0xff]
        %v6934 = vld [vmem:[%s6926 + $0x38] sm:$0xff]
        %v6935 = vld [vmem:[%s6926 + $0x40] sm:$0xff]
        %v6936 = vld [vmem:[%s6926 + $0x48] sm:$0xff]
        %v6937 = vld [vmem:[%s6926 + $0x50] sm:$0xff]
        %v6938 = vld [vmem:[%s6926 + $0x58] sm:$0xff]
        %v6939 = vld [vmem:[%s6926 + $0x60] sm:$0xff]
        %v6940 = vld [vmem:[%s6926 + $0x68] sm:$0xff]
        %v6941 = vld [vmem:[%s6926 + $0x70] sm:$0xff]
        %v6942 = vld [vmem:[%s6926 + $0x78] sm:$0xff]
        %6943 = vrot.lane.b32.xlu0 %v6850, 120
        %v6944 = vpop.permute.xlu0 %6943
        %v6945 = vsel %vm2133, %v6944, 0
        %6947 = vmatprep.subr.mxu0 %v6928
        %6948 = vmatpush1.msra.mxu0 %v6927
        %6949 = vmatprep.subr.mxu0 %v6930
        %6950 = vmatpush1.msra.mxu0 %v6929
        %6951 = vmatprep.subr.mxu0 %v6932
        %6952 = vmatpush1.msra.mxu0 %v6931
        %6953 = vmatprep.subr.mxu0 %v6934
        %6954 = vmatpush1.msra.mxu0 %v6933
        %6955 = vmatprep.subr.mxu0 %v6936
        %6956 = vmatpush1.msra.mxu0 %v6935
        %6957 = vmatprep.subr.mxu0 %v6938
        %6958 = vmatpush1.msra.mxu0 %v6937
        %6959 = vmatprep.subr.mxu0 %v6940
        %6960 = vmatpush1.msra.mxu0 %v6939
        %6961 = vmatprep.subr.mxu0 %v6942
        %6962 = vmatpush1.msra.mxu0 %v6941
        %6963 = vmatprep.subr.mxu0 0.0
        %6964 = vmatpush1.msra.mxu0 0.0
        %6965 = vmatprep.subr.mxu0 0.0
        %6966 = vmatpush1.msra.mxu0 0.0
        %6967 = vmatprep.subr.mxu0 0.0
        %6968 = vmatpush1.msra.mxu0 0.0
        %6969 = vmatprep.subr.mxu0 0.0
        %6970 = vmatpush1.msra.mxu0 0.0
        %6971 = vmatprep.subr.mxu0 0.0
        %6972 = vmatpush1.msra.mxu0 0.0
        %6973 = vmatprep.subr.mxu0 0.0
        %6974 = vmatpush1.msra.mxu0 0.0
        %6975 = vmatprep.subr.mxu0 0.0
        %6976 = vmatpush1.msra.mxu0 0.0
        %6977 = vmatprep.subr.mxu0 0.0
        %6978 = vmatpush1.msra.mxu0 0.0
        %6979 = vmatprep.subr.mxu0 0.0
        %6980 = vmatpush1.msra.mxu0 0.0
        %6981 = vmatprep.subr.mxu0 0.0
        %6982 = vmatpush1.msra.mxu0 0.0
        %6983 = vmatprep.subr.mxu0 0.0
        %6984 = vmatpush1.msra.mxu0 0.0
        %6985 = vmatprep.subr.mxu0 0.0
        %6986 = vmatpush1.msra.mxu0 0.0
        %6987 = vmatprep.subr.mxu0 0.0
        %6988 = vmatpush1.msra.mxu0 0.0
        %6989 = vmatprep.subr.mxu0 0.0
        %6990 = vmatpush1.msra.mxu0 0.0
        %6991 = vmatprep.subr.mxu0 0.0
        %6992 = vmatpush1.msra.mxu0 0.0
        %6993 = vmatprep.subr.mxu0 0.0
        %6994 = vmatpush1.msra.mxu0 0.0
        %6995 = vmatprep.subr.mxu0 0.0
        %6996 = vmatpush1.msra.mxu0 0.0
        %6997 = vmatprep.subr.mxu0 0.0
        %6998 = vmatpush1.msra.mxu0 0.0
        %6999 = vmatprep.subr.mxu0 0.0
        %7000 = vmatpush1.msra.mxu0 0.0
        %7001 = vmatprep.subr.mxu0 0.0
        %7002 = vmatpush1.msra.mxu0 0.0
        %7003 = vmatprep.subr.mxu0 0.0
        %7004 = vmatpush1.msra.mxu0 0.0
        %7005 = vmatprep.subr.mxu0 0.0
        %7006 = vmatpush1.msra.mxu0 0.0
        %7007 = vmatprep.subr.mxu0 0.0
        %7008 = vmatpush1.msra.mxu0 0.0
        %7009 = vmatprep.subr.mxu0 0.0
        %7010 = vmatpush1.msra.mxu0 0.0
        %7011 = vmatprep.mubr.f32.mxu0 0.0
        %7012 = vmatmul.mubr.f32.gmra.mrb[0].mxu0 %v6945
        %v7013 = vpop.f32.mrb[0].mxu0
        %v7014 = vadd.f32 0.0, %v7013
        %v7015 = vpop.f32.mrb[0].mxu0
        %v7016 = vadd.f32 0.0, %v7015
        %7017 = vdwg.mxu0
        %v7018 = vadd.f32 %v6924, %v7014
        %v7019 = vadd.f32 %v6925, %v7016
        %s7020 = scalar_lea.vmem [#allocation16], 640
        %v7021 = vld [vmem:[%s7020] sm:$0xff]
        %v7022 = vld [vmem:[%s7020 + $0x8] sm:$0xff]
        %v7023 = vld [vmem:[%s7020 + $0x10] sm:$0xff]
        %v7024 = vld [vmem:[%s7020 + $0x18] sm:$0xff]
        %v7025 = vld [vmem:[%s7020 + $0x20] sm:$0xff]
        %v7026 = vld [vmem:[%s7020 + $0x28] sm:$0xff]
        %v7027 = vld [vmem:[%s7020 + $0x30] sm:$0xff]
        %v7028 = vld [vmem:[%s7020 + $0x38] sm:$0xff]
        %v7029 = vld [vmem:[%s7020 + $0x40] sm:$0xff]
        %v7030 = vld [vmem:[%s7020 + $0x48] sm:$0xff]
        %v7031 = vld [vmem:[%s7020 + $0x50] sm:$0xff]
        %v7032 = vld [vmem:[%s7020 + $0x58] sm:$0xff]
        %v7033 = vld [vmem:[%s7020 + $0x60] sm:$0xff]
        %v7034 = vld [vmem:[%s7020 + $0x68] sm:$0xff]
        %v7035 = vld [vmem:[%s7020 + $0x70] sm:$0xff]
        %v7036 = vld [vmem:[%s7020 + $0x78] sm:$0xff]
        %7037 = vrot.lane.b32.xlu0 %v6850, 112
        %v7038 = vpop.permute.xlu0 %7037
        %v7039 = vsel %vm2133, %v7038, 0
        %7041 = vmatprep.subr.mxu0 %v7022
        %7042 = vmatpush1.msra.mxu0 %v7021
        %7043 = vmatprep.subr.mxu0 %v7024
        %7044 = vmatpush1.msra.mxu0 %v7023
        %7045 = vmatprep.subr.mxu0 %v7026
        %7046 = vmatpush1.msra.mxu0 %v7025
        %7047 = vmatprep.subr.mxu0 %v7028
        %7048 = vmatpush1.msra.mxu0 %v7027
        %7049 = vmatprep.subr.mxu0 %v7030
        %7050 = vmatpush1.msra.mxu0 %v7029
        %7051 = vmatprep.subr.mxu0 %v7032
        %7052 = vmatpush1.msra.mxu0 %v7031
        %7053 = vmatprep.subr.mxu0 %v7034
        %7054 = vmatpush1.msra.mxu0 %v7033
        %7055 = vmatprep.subr.mxu0 %v7036
        %7056 = vmatpush1.msra.mxu0 %v7035
        %7057 = vmatprep.subr.mxu0 0.0
        %7058 = vmatpush1.msra.mxu0 0.0
        %7059 = vmatprep.subr.mxu0 0.0
        %7060 = vmatpush1.msra.mxu0 0.0
        %7061 = vmatprep.subr.mxu0 0.0
        %7062 = vmatpush1.msra.mxu0 0.0
        %7063 = vmatprep.subr.mxu0 0.0
        %7064 = vmatpush1.msra.mxu0 0.0
        %7065 = vmatprep.subr.mxu0 0.0
        %7066 = vmatpush1.msra.mxu0 0.0
        %7067 = vmatprep.subr.mxu0 0.0
        %7068 = vmatpush1.msra.mxu0 0.0
        %7069 = vmatprep.subr.mxu0 0.0
        %7070 = vmatpush1.msra.mxu0 0.0
        %7071 = vmatprep.subr.mxu0 0.0
        %7072 = vmatpush1.msra.mxu0 0.0
        %7073 = vmatprep.subr.mxu0 0.0
        %7074 = vmatpush1.msra.mxu0 0.0
        %7075 = vmatprep.subr.mxu0 0.0
        %7076 = vmatpush1.msra.mxu0 0.0
        %7077 = vmatprep.subr.mxu0 0.0
        %7078 = vmatpush1.msra.mxu0 0.0
        %7079 = vmatprep.subr.mxu0 0.0
        %7080 = vmatpush1.msra.mxu0 0.0
        %7081 = vmatprep.subr.mxu0 0.0
        %7082 = vmatpush1.msra.mxu0 0.0
        %7083 = vmatprep.subr.mxu0 0.0
        %7084 = vmatpush1.msra.mxu0 0.0
        %7085 = vmatprep.subr.mxu0 0.0
        %7086 = vmatpush1.msra.mxu0 0.0
        %7087 = vmatprep.subr.mxu0 0.0
        %7088 = vmatpush1.msra.mxu0 0.0
        %7089 = vmatprep.subr.mxu0 0.0
        %7090 = vmatpush1.msra.mxu0 0.0
        %7091 = vmatprep.subr.mxu0 0.0
        %7092 = vmatpush1.msra.mxu0 0.0
        %7093 = vmatprep.subr.mxu0 0.0
        %7094 = vmatpush1.msra.mxu0 0.0
        %7095 = vmatprep.subr.mxu0 0.0
        %7096 = vmatpush1.msra.mxu0 0.0
        %7097 = vmatprep.subr.mxu0 0.0
        %7098 = vmatpush1.msra.mxu0 0.0
        %7099 = vmatprep.subr.mxu0 0.0
        %7100 = vmatpush1.msra.mxu0 0.0
        %7101 = vmatprep.subr.mxu0 0.0
        %7102 = vmatpush1.msra.mxu0 0.0
        %7103 = vmatprep.subr.mxu0 0.0
        %7104 = vmatpush1.msra.mxu0 0.0
        %7105 = vmatprep.mubr.f32.mxu0 0.0
        %7106 = vmatmul.mubr.f32.gmra.mrb[0].mxu0 %v7039
        %v7107 = vpop.f32.mrb[0].mxu0
        %v7108 = vadd.f32 0.0, %v7107
        %v7109 = vpop.f32.mrb[0].mxu0
        %v7110 = vadd.f32 0.0, %v7109
        %7111 = vdwg.mxu0
        %v7112 = vadd.f32 %v7018, %v7108
        %v7113 = vadd.f32 %v7019, %v7110
        %s7114 = scalar_lea.vmem [#allocation16], 768
        %v7115 = vld [vmem:[%s7114] sm:$0xff]
        %v7116 = vld [vmem:[%s7114 + $0x8] sm:$0xff]
        %v7117 = vld [vmem:[%s7114 + $0x10] sm:$0xff]
        %v7118 = vld [vmem:[%s7114 + $0x18] sm:$0xff]
        %v7119 = vld [vmem:[%s7114 + $0x20] sm:$0xff]
        %v7120 = vld [vmem:[%s7114 + $0x28] sm:$0xff]
        %v7121 = vld [vmem:[%s7114 + $0x30] sm:$0xff]
        %v7122 = vld [vmem:[%s7114 + $0x38] sm:$0xff]
        %v7123 = vld [vmem:[%s7114 + $0x40] sm:$0xff]
        %v7124 = vld [vmem:[%s7114 + $0x48] sm:$0xff]
        %v7125 = vld [vmem:[%s7114 + $0x50] sm:$0xff]
        %v7126 = vld [vmem:[%s7114 + $0x58] sm:$0xff]
        %v7127 = vld [vmem:[%s7114 + $0x60] sm:$0xff]
        %v7128 = vld [vmem:[%s7114 + $0x68] sm:$0xff]
        %v7129 = vld [vmem:[%s7114 + $0x70] sm:$0xff]
        %v7130 = vld [vmem:[%s7114 + $0x78] sm:$0xff]
        %v7131 = vrot.slane %v6552, 2
        %v7132 = vrot.slane %v6553, 2
        %v7133 = vsel %vm1512, %v7131, %v7132
        %v7134 = vsel %vm2133, %v7133, 0
        %7136 = vmatprep.subr.mxu0 %v7116
        %7137 = vmatpush1.msra.mxu0 %v7115
        %7138 = vmatprep.subr.mxu0 %v7118
        %7139 = vmatpush1.msra.mxu0 %v7117
        %7140 = vmatprep.subr.mxu0 %v7120
        %7141 = vmatpush1.msra.mxu0 %v7119
        %7142 = vmatprep.subr.mxu0 %v7122
        %7143 = vmatpush1.msra.mxu0 %v7121
        %7144 = vmatprep.subr.mxu0 %v7124
        %7145 = vmatpush1.msra.mxu0 %v7123
        %7146 = vmatprep.subr.mxu0 %v7126
        %7147 = vmatpush1.msra.mxu0 %v7125
        %7148 = vmatprep.subr.mxu0 %v7128
        %7149 = vmatpush1.msra.mxu0 %v7127
        %7150 = vmatprep.subr.mxu0 %v7130
        %7151 = vmatpush1.msra.mxu0 %v7129
        %7152 = vmatprep.subr.mxu0 0.0
        %7153 = vmatpush1.msra.mxu0 0.0
        %7154 = vmatprep.subr.mxu0 0.0
        %7155 = vmatpush1.msra.mxu0 0.0
        %7156 = vmatprep.subr.mxu0 0.0
        %7157 = vmatpush1.msra.mxu0 0.0
        %7158 = vmatprep.subr.mxu0 0.0
        %7159 = vmatpush1.msra.mxu0 0.0
        %7160 = vmatprep.subr.mxu0 0.0
        %7161 = vmatpush1.msra.mxu0 0.0
        %7162 = vmatprep.subr.mxu0 0.0
        %7163 = vmatpush1.msra.mxu0 0.0
        %7164 = vmatprep.subr.mxu0 0.0
        %7165 = vmatpush1.msra.mxu0 0.0
        %7166 = vmatprep.subr.mxu0 0.0
        %7167 = vmatpush1.msra.mxu0 0.0
        %7168 = vmatprep.subr.mxu0 0.0
        %7169 = vmatpush1.msra.mxu0 0.0
        %7170 = vmatprep.subr.mxu0 0.0
        %7171 = vmatpush1.msra.mxu0 0.0
        %7172 = vmatprep.subr.mxu0 0.0
        %7173 = vmatpush1.msra.mxu0 0.0
        %7174 = vmatprep.subr.mxu0 0.0
        %7175 = vmatpush1.msra.mxu0 0.0
        %7176 = vmatprep.subr.mxu0 0.0
        %7177 = vmatpush1.msra.mxu0 0.0
        %7178 = vmatprep.subr.mxu0 0.0
        %7179 = vmatpush1.msra.mxu0 0.0
        %7180 = vmatprep.subr.mxu0 0.0
        %7181 = vmatpush1.msra.mxu0 0.0
        %7182 = vmatprep.subr.mxu0 0.0
        %7183 = vmatpush1.msra.mxu0 0.0
        %7184 = vmatprep.subr.mxu0 0.0
        %7185 = vmatpush1.msra.mxu0 0.0
        %7186 = vmatprep.subr.mxu0 0.0
        %7187 = vmatpush1.msra.mxu0 0.0
        %7188 = vmatprep.subr.mxu0 0.0
        %7189 = vmatpush1.msra.mxu0 0.0
        %7190 = vmatprep.subr.mxu0 0.0
        %7191 = vmatpush1.msra.mxu0 0.0
        %7192 = vmatprep.subr.mxu0 0.0
        %7193 = vmatpush1.msra.mxu0 0.0
        %7194 = vmatprep.subr.mxu0 0.0
        %7195 = vmatpush1.msra.mxu0 0.0
        %7196 = vmatprep.subr.mxu0 0.0
        %7197 = vmatpush1.msra.mxu0 0.0
        %7198 = vmatprep.subr.mxu0 0.0
        %7199 = vmatpush1.msra.mxu0 0.0
        %7200 = vmatprep.mubr.f32.mxu0 0.0
        %7201 = vmatmul.mubr.f32.gmra.mrb[0].mxu0 %v7134
        %v7202 = vpop.f32.mrb[0].mxu0
        %v7203 = vadd.f32 0.0, %v7202
        %v7204 = vpop.f32.mrb[0].mxu0
        %v7205 = vadd.f32 0.0, %v7204
        %7206 = vdwg.mxu0
        %v7207 = vadd.f32 %v7112, %v7203
        %v7208 = vadd.f32 %v7113, %v7205
        %s7209 = scalar_lea.vmem [#allocation16], 896
        %v7210 = vld [vmem:[%s7209] sm:$0xff]
        %v7211 = vld [vmem:[%s7209 + $0x8] sm:$0xff]
        %v7212 = vld [vmem:[%s7209 + $0x10] sm:$0xff]
        %v7213 = vld [vmem:[%s7209 + $0x18] sm:$0xff]
        %v7214 = vld [vmem:[%s7209 + $0x20] sm:$0xff]
        %v7215 = vld [vmem:[%s7209 + $0x28] sm:$0xff]
        %v7216 = vld [vmem:[%s7209 + $0x30] sm:$0xff]
        %v7217 = vld [vmem:[%s7209 + $0x38] sm:$0xff]
        %v7218 = vld [vmem:[%s7209 + $0x40] sm:$0xff]
        %v7219 = vld [vmem:[%s7209 + $0x48] sm:$0xff]
        %v7220 = vld [vmem:[%s7209 + $0x50] sm:$0xff]
        %v7221 = vld [vmem:[%s7209 + $0x58] sm:$0xff]
        %v7222 = vld [vmem:[%s7209 + $0x60] sm:$0xff]
        %v7223 = vld [vmem:[%s7209 + $0x68] sm:$0xff]
        %v7224 = vld [vmem:[%s7209 + $0x70] sm:$0xff]
        %v7225 = vld [vmem:[%s7209 + $0x78] sm:$0xff]
        %7226 = vrot.lane.b32.xlu0 %v7133, 120
        %v7227 = vpop.permute.xlu0 %7226
        %v7228 = vsel %vm2133, %v7227, 0
        %7230 = vmatprep.subr.mxu0 %v7211
        %7231 = vmatpush1.msra.mxu0 %v7210
        %7232 = vmatprep.subr.mxu0 %v7213
        %7233 = vmatpush1.msra.mxu0 %v7212
        %7234 = vmatprep.subr.mxu0 %v7215
        %7235 = vmatpush1.msra.mxu0 %v7214
        %7236 = vmatprep.subr.mxu0 %v7217
        %7237 = vmatpush1.msra.mxu0 %v7216
        %7238 = vmatprep.subr.mxu0 %v7219
        %7239 = vmatpush1.msra.mxu0 %v7218
        %7240 = vmatprep.subr.mxu0 %v7221
        %7241 = vmatpush1.msra.mxu0 %v7220
        %7242 = vmatprep.subr.mxu0 %v7223
        %7243 = vmatpush1.msra.mxu0 %v7222
        %7244 = vmatprep.subr.mxu0 %v7225
        %7245 = vmatpush1.msra.mxu0 %v7224
        %7246 = vmatprep.subr.mxu0 0.0
        %7247 = vmatpush1.msra.mxu0 0.0
        %7248 = vmatprep.subr.mxu0 0.0
        %7249 = vmatpush1.msra.mxu0 0.0
        %7250 = vmatprep.subr.mxu0 0.0
        %7251 = vmatpush1.msra.mxu0 0.0
        %7252 = vmatprep.subr.mxu0 0.0
        %7253 = vmatpush1.msra.mxu0 0.0
        %7254 = vmatprep.subr.mxu0 0.0
        %7255 = vmatpush1.msra.mxu0 0.0
        %7256 = vmatprep.subr.mxu0 0.0
        %7257 = vmatpush1.msra.mxu0 0.0
        %7258 = vmatprep.subr.mxu0 0.0
        %7259 = vmatpush1.msra.mxu0 0.0
        %7260 = vmatprep.subr.mxu0 0.0
        %7261 = vmatpush1.msra.mxu0 0.0
        %7262 = vmatprep.subr.mxu0 0.0
        %7263 = vmatpush1.msra.mxu0 0.0
        %7264 = vmatprep.subr.mxu0 0.0
        %7265 = vmatpush1.msra.mxu0 0.0
        %7266 = vmatprep.subr.mxu0 0.0
        %7267 = vmatpush1.msra.mxu0 0.0
        %7268 = vmatprep.subr.mxu0 0.0
        %7269 = vmatpush1.msra.mxu0 0.0
        %7270 = vmatprep.subr.mxu0 0.0
        %7271 = vmatpush1.msra.mxu0 0.0
        %7272 = vmatprep.subr.mxu0 0.0
        %7273 = vmatpush1.msra.mxu0 0.0
        %7274 = vmatprep.subr.mxu0 0.0
        %7275 = vmatpush1.msra.mxu0 0.0
        %7276 = vmatprep.subr.mxu0 0.0
        %7277 = vmatpush1.msra.mxu0 0.0
        %7278 = vmatprep.subr.mxu0 0.0
        %7279 = vmatpush1.msra.mxu0 0.0
        %7280 = vmatprep.subr.mxu0 0.0
        %7281 = vmatpush1.msra.mxu0 0.0
        %7282 = vmatprep.subr.mxu0 0.0
        %7283 = vmatpush1.msra.mxu0 0.0
        %7284 = vmatprep.subr.mxu0 0.0
        %7285 = vmatpush1.msra.mxu0 0.0
        %7286 = vmatprep.subr.mxu0 0.0
        %7287 = vmatpush1.msra.mxu0 0.0
        %7288 = vmatprep.subr.mxu0 0.0
        %7289 = vmatpush1.msra.mxu0 0.0
        %7290 = vmatprep.subr.mxu0 0.0
        %7291 = vmatpush1.msra.mxu0 0.0
        %7292 = vmatprep.subr.mxu0 0.0
        %7293 = vmatpush1.msra.mxu0 0.0
        %7294 = vmatprep.mubr.f32.mxu0 0.0
        %7295 = vmatmul.mubr.f32.gmra.mrb[0].mxu0 %v7228
        %v7296 = vpop.f32.mrb[0].mxu0
        %v7297 = vadd.f32 0.0, %v7296
        %v7298 = vpop.f32.mrb[0].mxu0
        %v7299 = vadd.f32 0.0, %v7298
        %7300 = vdwg.mxu0
        %v7301 = vadd.f32 %v7207, %v7297
        %v7302 = vadd.f32 %v7208, %v7299
        %s7303 = scalar_lea.vmem [#allocation16], 1024
        %v7304 = vld [vmem:[%s7303] sm:$0xff]
        %v7305 = vld [vmem:[%s7303 + $0x8] sm:$0xff]
        %v7306 = vld [vmem:[%s7303 + $0x10] sm:$0xff]
        %v7307 = vld [vmem:[%s7303 + $0x18] sm:$0xff]
        %v7308 = vld [vmem:[%s7303 + $0x20] sm:$0xff]
        %v7309 = vld [vmem:[%s7303 + $0x28] sm:$0xff]
        %v7310 = vld [vmem:[%s7303 + $0x30] sm:$0xff]
        %v7311 = vld [vmem:[%s7303 + $0x38] sm:$0xff]
        %v7312 = vld [vmem:[%s7303 + $0x40] sm:$0xff]
        %v7313 = vld [vmem:[%s7303 + $0x48] sm:$0xff]
        %v7314 = vld [vmem:[%s7303 + $0x50] sm:$0xff]
        %v7315 = vld [vmem:[%s7303 + $0x58] sm:$0xff]
        %v7316 = vld [vmem:[%s7303 + $0x60] sm:$0xff]
        %v7317 = vld [vmem:[%s7303 + $0x68] sm:$0xff]
        %v7318 = vld [vmem:[%s7303 + $0x70] sm:$0xff]
        %v7319 = vld [vmem:[%s7303 + $0x78] sm:$0xff]
        %7320 = vrot.lane.b32.xlu0 %v7133, 112
        %v7321 = vpop.permute.xlu0 %7320
        %v7322 = vsel %vm2133, %v7321, 0
        %7324 = vmatprep.subr.mxu0 %v7305
        %7325 = vmatpush1.msra.mxu0 %v7304
        %7326 = vmatprep.subr.mxu0 %v7307
        %7327 = vmatpush1.msra.mxu0 %v7306
        %7328 = vmatprep.subr.mxu0 %v7309
        %7329 = vmatpush1.msra.mxu0 %v7308
        %7330 = vmatprep.subr.mxu0 %v7311
        %7331 = vmatpush1.msra.mxu0 %v7310
        %7332 = vmatprep.subr.mxu0 %v7313
        %7333 = vmatpush1.msra.mxu0 %v7312
        %7334 = vmatprep.subr.mxu0 %v7315
        %7335 = vmatpush1.msra.mxu0 %v7314
        %7336 = vmatprep.subr.mxu0 %v7317
        %7337 = vmatpush1.msra.mxu0 %v7316
        %7338 = vmatprep.subr.mxu0 %v7319
        %7339 = vmatpush1.msra.mxu0 %v7318
        %7340 = vmatprep.subr.mxu0 0.0
        %7341 = vmatpush1.msra.mxu0 0.0
        %7342 = vmatprep.subr.mxu0 0.0
        %7343 = vmatpush1.msra.mxu0 0.0
        %7344 = vmatprep.subr.mxu0 0.0
        %7345 = vmatpush1.msra.mxu0 0.0
        %7346 = vmatprep.subr.mxu0 0.0
        %7347 = vmatpush1.msra.mxu0 0.0
        %7348 = vmatprep.subr.mxu0 0.0
        %7349 = vmatpush1.msra.mxu0 0.0
        %7350 = vmatprep.subr.mxu0 0.0
        %7351 = vmatpush1.msra.mxu0 0.0
        %7352 = vmatprep.subr.mxu0 0.0
        %7353 = vmatpush1.msra.mxu0 0.0
        %7354 = vmatprep.subr.mxu0 0.0
        %7355 = vmatpush1.msra.mxu0 0.0
        %7356 = vmatprep.subr.mxu0 0.0
        %7357 = vmatpush1.msra.mxu0 0.0
        %7358 = vmatprep.subr.mxu0 0.0
        %7359 = vmatpush1.msra.mxu0 0.0
        %7360 = vmatprep.subr.mxu0 0.0
        %7361 = vmatpush1.msra.mxu0 0.0
        %7362 = vmatprep.subr.mxu0 0.0
        %7363 = vmatpush1.msra.mxu0 0.0
        %7364 = vmatprep.subr.mxu0 0.0
        %7365 = vmatpush1.msra.mxu0 0.0
        %7366 = vmatprep.subr.mxu0 0.0
        %7367 = vmatpush1.msra.mxu0 0.0
        %7368 = vmatprep.subr.mxu0 0.0
        %7369 = vmatpush1.msra.mxu0 0.0
        %7370 = vmatprep.subr.mxu0 0.0
        %7371 = vmatpush1.msra.mxu0 0.0
        %7372 = vmatprep.subr.mxu0 0.0
        %7373 = vmatpush1.msra.mxu0 0.0
        %7374 = vmatprep.subr.mxu0 0.0
        %7375 = vmatpush1.msra.mxu0 0.0
        %7376 = vmatprep.subr.mxu0 0.0
        %7377 = vmatpush1.msra.mxu0 0.0
        %7378 = vmatprep.subr.mxu0 0.0
        %7379 = vmatpush1.msra.mxu0 0.0
        %7380 = vmatprep.subr.mxu0 0.0
        %7381 = vmatpush1.msra.mxu0 0.0
        %7382 = vmatprep.subr.mxu0 0.0
        %7383 = vmatpush1.msra.mxu0 0.0
        %7384 = vmatprep.subr.mxu0 0.0
        %7385 = vmatpush1.msra.mxu0 0.0
        %7386 = vmatprep.subr.mxu0 0.0
        %7387 = vmatpush1.msra.mxu0 0.0
        %7388 = vmatprep.mubr.f32.mxu0 0.0
        %7389 = vmatmul.mubr.f32.gmra.mrb[0].mxu0 %v7322
        %v7390 = vpop.f32.mrb[0].mxu0
        %v7391 = vadd.f32 0.0, %v7390
        %v7392 = vpop.f32.mrb[0].mxu0
        %v7393 = vadd.f32 0.0, %v7392
        %7394 = vdwg.mxu0
        %v7395 = vadd.f32 %v7301, %v7391
        %v7396 = vadd.f32 %v7302, %v7393
        %v7397 = vld [vmem:[#allocation17] sm:$0x3]
        %v7399 = vlaneseq
        %v7400 = vshrl.u32 %v7399, 7
        %v7401 = vsub.s32 0, %v7400
        %v7402 = vrot.slane %v7397, %v7401
        %v7403 = vlaneseq
        %v7404 = vshrl.u32 %v7403, 7
        %v7405 = vsub.s32 1, %v7404
        %v7406 = vrot.slane %v7397, %v7405
        %v7409 = vadd.f32 %v7395, %v7402
        %v7410 = vadd.f32 %v7396, %v7406
        %v7411 = vmax.f32 %v7409, 0.0
        %v7412 = vmax.f32 %v7410, 0.0
        %v7413 = vld [vmem:[#allocation19] sm:$0xf]
        %vm7414 = vcmask 64512
        %v7416 = vsel %vm7414, %v7413, 0
        %7418 = vmatprep.subr.mxu0 %v7412
        %7419 = vmatpush1.msra.mxu0 %v7411
        %7420 = vmatprep.subr.mxu0 0.0
        %7421 = vmatpush1.msra.mxu0 0.0
        %7422 = vmatprep.subr.mxu0 0.0
        %7423 = vmatpush1.msra.mxu0 0.0
        %7424 = vmatprep.subr.mxu0 0.0
        %7425 = vmatpush1.msra.mxu0 0.0
        %7426 = vmatprep.subr.mxu0 0.0
        %7427 = vmatpush1.msra.mxu0 0.0
        %7428 = vmatprep.subr.mxu0 0.0
        %7429 = vmatpush1.msra.mxu0 0.0
        %7430 = vmatprep.subr.mxu0 0.0
        %7431 = vmatpush1.msra.mxu0 0.0
        %7432 = vmatprep.subr.mxu0 0.0
        %7433 = vmatpush1.msra.mxu0 0.0
        %7434 = vmatprep.subr.mxu0 0.0
        %7435 = vmatpush1.msra.mxu0 0.0
        %7436 = vmatprep.subr.mxu0 0.0
        %7437 = vmatpush1.msra.mxu0 0.0
        %7438 = vmatprep.subr.mxu0 0.0
        %7439 = vmatpush1.msra.mxu0 0.0
        %7440 = vmatprep.subr.mxu0 0.0
        %7441 = vmatpush1.msra.mxu0 0.0
        %7442 = vmatprep.subr.mxu0 0.0
        %7443 = vmatpush1.msra.mxu0 0.0
        %7444 = vmatprep.subr.mxu0 0.0
        %7445 = vmatpush1.msra.mxu0 0.0
        %7446 = vmatprep.subr.mxu0 0.0
        %7447 = vmatpush1.msra.mxu0 0.0
        %7448 = vmatprep.subr.mxu0 0.0
        %7449 = vmatpush1.msra.mxu0 0.0
        %7450 = vmatprep.subr.mxu0 0.0
        %7451 = vmatpush1.msra.mxu0 0.0
        %7452 = vmatprep.subr.mxu0 0.0
        %7453 = vmatpush1.msra.mxu0 0.0
        %7454 = vmatprep.subr.mxu0 0.0
        %7455 = vmatpush1.msra.mxu0 0.0
        %7456 = vmatprep.subr.mxu0 0.0
        %7457 = vmatpush1.msra.mxu0 0.0
        %7458 = vmatprep.subr.mxu0 0.0
        %7459 = vmatpush1.msra.mxu0 0.0
        %7460 = vmatprep.subr.mxu0 0.0
        %7461 = vmatpush1.msra.mxu0 0.0
        %7462 = vmatprep.subr.mxu0 0.0
        %7463 = vmatpush1.msra.mxu0 0.0
        %7464 = vmatprep.subr.mxu0 0.0
        %7465 = vmatpush1.msra.mxu0 0.0
        %7466 = vmatprep.subr.mxu0 0.0
        %7467 = vmatpush1.msra.mxu0 0.0
        %7468 = vmatprep.subr.mxu0 0.0
        %7469 = vmatpush1.msra.mxu0 0.0
        %7470 = vmatprep.subr.mxu0 0.0
        %7471 = vmatpush1.msra.mxu0 0.0
        %7472 = vmatprep.subr.mxu0 0.0
        %7473 = vmatpush1.msra.mxu0 0.0
        %7474 = vmatprep.subr.mxu0 0.0
        %7475 = vmatpush1.msra.mxu0 0.0
        %7476 = vmatprep.subr.mxu0 0.0
        %7477 = vmatpush1.msra.mxu0 0.0
        %7478 = vmatprep.subr.mxu0 0.0
        %7479 = vmatpush1.msra.mxu0 0.0
        %7480 = vmatprep.subr.mxu0 0.0
        %7481 = vmatpush1.msra.mxu0 0.0
        %7482 = vmatprep.mubr.f32.mxu0 0.0
        %7483 = vmatmul.mubr.f32.gmra.mrb[0].mxu0 %v7416
        %v7484 = vpop.f32.mrb[0].mxu0
        %v7485 = vadd.f32 0.0, %v7484
        %v7486 = vpop.f32.mrb[0].mxu0
        %v7487 = vadd.f32 0.0, %v7486
        %7488 = vdwg.mxu0
        %s7489 = scalar_lea.vmem [#allocation19], 4
        %v7490 = vld [vmem:[%s7489] sm:$0xf]
        %v7492 = vsel %vm7414, %v7490, 0
        %7494 = vmatprep.subr.mxu0 %v7412
        %7495 = vmatpush1.msra.mxu0 %v7411
        %7496 = vmatprep.subr.mxu0 0.0
        %7497 = vmatpush1.msra.mxu0 0.0
        %7498 = vmatprep.subr.mxu0 0.0
        %7499 = vmatpush1.msra.mxu0 0.0
        %7500 = vmatprep.subr.mxu0 0.0
        %7501 = vmatpush1.msra.mxu0 0.0
        %7502 = vmatprep.subr.mxu0 0.0
        %7503 = vmatpush1.msra.mxu0 0.0
        %7504 = vmatprep.subr.mxu0 0.0
        %7505 = vmatpush1.msra.mxu0 0.0
        %7506 = vmatprep.subr.mxu0 0.0
        %7507 = vmatpush1.msra.mxu0 0.0
        %7508 = vmatprep.subr.mxu0 0.0
        %7509 = vmatpush1.msra.mxu0 0.0
        %7510 = vmatprep.subr.mxu0 0.0
        %7511 = vmatpush1.msra.mxu0 0.0
        %7512 = vmatprep.subr.mxu0 0.0
        %7513 = vmatpush1.msra.mxu0 0.0
        %7514 = vmatprep.subr.mxu0 0.0
        %7515 = vmatpush1.msra.mxu0 0.0
        %7516 = vmatprep.subr.mxu0 0.0
        %7517 = vmatpush1.msra.mxu0 0.0
        %7518 = vmatprep.subr.mxu0 0.0
        %7519 = vmatpush1.msra.mxu0 0.0
        %7520 = vmatprep.subr.mxu0 0.0
        %7521 = vmatpush1.msra.mxu0 0.0
        %7522 = vmatprep.subr.mxu0 0.0
        %7523 = vmatpush1.msra.mxu0 0.0
        %7524 = vmatprep.subr.mxu0 0.0
        %7525 = vmatpush1.msra.mxu0 0.0
        %7526 = vmatprep.subr.mxu0 0.0
        %7527 = vmatpush1.msra.mxu0 0.0
        %7528 = vmatprep.subr.mxu0 0.0
        %7529 = vmatpush1.msra.mxu0 0.0
        %7530 = vmatprep.subr.mxu0 0.0
        %7531 = vmatpush1.msra.mxu0 0.0
        %7532 = vmatprep.subr.mxu0 0.0
        %7533 = vmatpush1.msra.mxu0 0.0
        %7534 = vmatprep.subr.mxu0 0.0
        %7535 = vmatpush1.msra.mxu0 0.0
        %7536 = vmatprep.subr.mxu0 0.0
        %7537 = vmatpush1.msra.mxu0 0.0
        %7538 = vmatprep.subr.mxu0 0.0
        %7539 = vmatpush1.msra.mxu0 0.0
        %7540 = vmatprep.subr.mxu0 0.0
        %7541 = vmatpush1.msra.mxu0 0.0
        %7542 = vmatprep.subr.mxu0 0.0
        %7543 = vmatpush1.msra.mxu0 0.0
        %7544 = vmatprep.subr.mxu0 0.0
        %7545 = vmatpush1.msra.mxu0 0.0
        %7546 = vmatprep.subr.mxu0 0.0
        %7547 = vmatpush1.msra.mxu0 0.0
        %7548 = vmatprep.subr.mxu0 0.0
        %7549 = vmatpush1.msra.mxu0 0.0
        %7550 = vmatprep.subr.mxu0 0.0
        %7551 = vmatpush1.msra.mxu0 0.0
        %7552 = vmatprep.subr.mxu0 0.0
        %7553 = vmatpush1.msra.mxu0 0.0
        %7554 = vmatprep.subr.mxu0 0.0
        %7555 = vmatpush1.msra.mxu0 0.0
        %7556 = vmatprep.subr.mxu0 0.0
        %7557 = vmatpush1.msra.mxu0 0.0
        %7558 = vmatprep.mubr.f32.mxu0 0.0
        %7559 = vmatmul.mubr.f32.gmra.mrb[0].mxu0 %v7492
        %v7560 = vpop.f32.mrb[0].mxu0
        %v7561 = vadd.f32 0.0, %v7560
        %v7562 = vpop.f32.mrb[0].mxu0
        %v7563 = vadd.f32 0.0, %v7562
        %7564 = vdwg.mxu0
        %v7565 = vmax.f32 %v7485, %v7561
        %v7566 = vmax.f32 %v7487, %v7563
        %v7567 = vld [vmem:[#allocation20] sm:$0xff]
        %v7568 = vld [vmem:[#allocation20 + $0x8] sm:$0xff]
        %v7569 = vld [vmem:[#allocation20 + $0x10] sm:$0xff]
        %v7570 = vld [vmem:[#allocation20 + $0x18] sm:$0xff]
        %v7571 = vld [vmem:[#allocation20 + $0x20] sm:$0xff]
        %v7572 = vld [vmem:[#allocation20 + $0x28] sm:$0xff]
        %v7573 = vld [vmem:[#allocation20 + $0x30] sm:$0xff]
        %v7574 = vld [vmem:[#allocation20 + $0x38] sm:$0xff]
        %v7575 = vld [vmem:[#allocation20 + $0x40] sm:$0xff]
        %v7576 = vld [vmem:[#allocation20 + $0x48] sm:$0xff]
        %v7577 = vld [vmem:[#allocation20 + $0x50] sm:$0xff]
        %v7578 = vld [vmem:[#allocation20 + $0x58] sm:$0xff]
        %v7579 = vld [vmem:[#allocation20 + $0x60] sm:$0xff]
        %v7580 = vld [vmem:[#allocation20 + $0x68] sm:$0xff]
        %v7581 = vld [vmem:[#allocation20 + $0x70] sm:$0xff]
        %v7582 = vld [vmem:[#allocation20 + $0x78] sm:$0xff]
        %v7583 = vld [vmem:[#allocation20 + $0x80] sm:$0xff]
        %v7584 = vld [vmem:[#allocation20 + $0x88] sm:$0xff]
        %v7585 = vld [vmem:[#allocation20 + $0x90] sm:$0xff]
        %v7586 = vld [vmem:[#allocation20 + $0x98] sm:$0xff]
        %vm7587 = vcmask 261120
        %v7589 = vsel %vm7587, %v7566, 0
        %7591 = vmatprep.subr.mxu0 0.0
        %7592 = vmatpush1.msra.mxu0 %v7567
        %7593 = vmatprep.subr.mxu0 0.0
        %7594 = vmatpush1.msra.mxu0 %v7568
        %7595 = vmatprep.subr.mxu0 0.0
        %7596 = vmatpush1.msra.mxu0 %v7569
        %7597 = vmatprep.subr.mxu0 0.0
        %7598 = vmatpush1.msra.mxu0 %v7570
        %7599 = vmatprep.subr.mxu0 0.0
        %7600 = vmatpush1.msra.mxu0 %v7571
        %7601 = vmatprep.subr.mxu0 0.0
        %7602 = vmatpush1.msra.mxu0 %v7572
        %7603 = vmatprep.subr.mxu0 0.0
        %7604 = vmatpush1.msra.mxu0 %v7573
        %7605 = vmatprep.subr.mxu0 0.0
        %7606 = vmatpush1.msra.mxu0 %v7574
        %7607 = vmatprep.subr.mxu0 0.0
        %7608 = vmatpush1.msra.mxu0 %v7575
        %7609 = vmatprep.subr.mxu0 0.0
        %7610 = vmatpush1.msra.mxu0 %v7576
        %7611 = vmatprep.subr.mxu0 0.0
        %7612 = vmatpush1.msra.mxu0 %v7577
        %7613 = vmatprep.subr.mxu0 0.0
        %7614 = vmatpush1.msra.mxu0 %v7578
        %7615 = vmatprep.subr.mxu0 0.0
        %7616 = vmatpush1.msra.mxu0 %v7579
        %7617 = vmatprep.subr.mxu0 0.0
        %7618 = vmatpush1.msra.mxu0 %v7580
        %7619 = vmatprep.subr.mxu0 0.0
        %7620 = vmatpush1.msra.mxu0 %v7581
        %7621 = vmatprep.subr.mxu0 0.0
        %7622 = vmatpush1.msra.mxu0 %v7582
        %7623 = vmatprep.subr.mxu0 0.0
        %7624 = vmatpush1.msra.mxu0 %v7583
        %7625 = vmatprep.subr.mxu0 0.0
        %7626 = vmatpush1.msra.mxu0 %v7584
        %7627 = vmatprep.subr.mxu0 0.0
        %7628 = vmatpush1.msra.mxu0 %v7585
        %7629 = vmatprep.subr.mxu0 0.0
        %7630 = vmatpush1.msra.mxu0 %v7586
        %7631 = vmatprep.subr.mxu0 0.0
        %7632 = vmatpush1.msra.mxu0 0.0
        %7633 = vmatprep.subr.mxu0 0.0
        %7634 = vmatpush1.msra.mxu0 0.0
        %7635 = vmatprep.subr.mxu0 0.0
        %7636 = vmatpush1.msra.mxu0 0.0
        %7637 = vmatprep.subr.mxu0 0.0
        %7638 = vmatpush1.msra.mxu0 0.0
        %7639 = vmatprep.subr.mxu0 0.0
        %7640 = vmatpush1.msra.mxu0 0.0
        %7641 = vmatprep.subr.mxu0 0.0
        %7642 = vmatpush1.msra.mxu0 0.0
        %7643 = vmatprep.subr.mxu0 0.0
        %7644 = vmatpush1.msra.mxu0 0.0
        %7645 = vmatprep.subr.mxu0 0.0
        %7646 = vmatpush1.msra.mxu0 0.0
        %7647 = vmatprep.subr.mxu0 0.0
        %7648 = vmatpush1.msra.mxu0 0.0
        %7649 = vmatprep.subr.mxu0 0.0
        %7650 = vmatpush1.msra.mxu0 0.0
        %7651 = vmatprep.subr.mxu0 0.0
        %7652 = vmatpush1.msra.mxu0 0.0
        %7653 = vmatprep.subr.mxu0 0.0
        %7654 = vmatpush1.msra.mxu0 0.0
        %7655 = vmatprep.mubr.f32.mxu0 %v7589
        %7656 = vmatmul.mubr.f32.gmra.mrb[0].mxu0 %v7565
        %v7657 = vpop.f32.mrb[0].mxu0
        %v7658 = vadd.f32 0.0, %v7657
        %v7659 = vpop.f32.mrb[0].mxu0
        %7660 = vdwg.mxu0
        %s7661 = scalar_lea.vmem [#allocation20], 160
        %v7662 = vld [vmem:[%s7661] sm:$0xff]
        %v7663 = vld [vmem:[%s7661 + $0x8] sm:$0xff]
        %v7664 = vld [vmem:[%s7661 + $0x10] sm:$0xff]
        %v7665 = vld [vmem:[%s7661 + $0x18] sm:$0xff]
        %v7666 = vld [vmem:[%s7661 + $0x20] sm:$0xff]
        %v7667 = vld [vmem:[%s7661 + $0x28] sm:$0xff]
        %v7668 = vld [vmem:[%s7661 + $0x30] sm:$0xff]
        %v7669 = vld [vmem:[%s7661 + $0x38] sm:$0xff]
        %v7670 = vld [vmem:[%s7661 + $0x40] sm:$0xff]
        %v7671 = vld [vmem:[%s7661 + $0x48] sm:$0xff]
        %v7672 = vld [vmem:[%s7661 + $0x50] sm:$0xff]
        %v7673 = vld [vmem:[%s7661 + $0x58] sm:$0xff]
        %v7674 = vld [vmem:[%s7661 + $0x60] sm:$0xff]
        %v7675 = vld [vmem:[%s7661 + $0x68] sm:$0xff]
        %v7676 = vld [vmem:[%s7661 + $0x70] sm:$0xff]
        %v7677 = vld [vmem:[%s7661 + $0x78] sm:$0xff]
        %v7678 = vld [vmem:[%s7661 + $0x80] sm:$0xff]
        %v7679 = vld [vmem:[%s7661 + $0x88] sm:$0xff]
        %v7680 = vld [vmem:[%s7661 + $0x90] sm:$0xff]
        %v7681 = vld [vmem:[%s7661 + $0x98] sm:$0xff]
        %7682 = vmatprep.subr.mxu0 0.0
        %7683 = vmatpush1.msra.mxu0 %v7662
        %7684 = vmatprep.subr.mxu0 0.0
        %7685 = vmatpush1.msra.mxu0 %v7663
        %7686 = vmatprep.subr.mxu0 0.0
        %7687 = vmatpush1.msra.mxu0 %v7664
        %7688 = vmatprep.subr.mxu0 0.0
        %7689 = vmatpush1.msra.mxu0 %v7665
        %7690 = vmatprep.subr.mxu0 0.0
        %7691 = vmatpush1.msra.mxu0 %v7666
        %7692 = vmatprep.subr.mxu0 0.0
        %7693 = vmatpush1.msra.mxu0 %v7667
        %7694 = vmatprep.subr.mxu0 0.0
        %7695 = vmatpush1.msra.mxu0 %v7668
        %7696 = vmatprep.subr.mxu0 0.0
        %7697 = vmatpush1.msra.mxu0 %v7669
        %7698 = vmatprep.subr.mxu0 0.0
        %7699 = vmatpush1.msra.mxu0 %v7670
        %7700 = vmatprep.subr.mxu0 0.0
        %7701 = vmatpush1.msra.mxu0 %v7671
        %7702 = vmatprep.subr.mxu0 0.0
        %7703 = vmatpush1.msra.mxu0 %v7672
        %7704 = vmatprep.subr.mxu0 0.0
        %7705 = vmatpush1.msra.mxu0 %v7673
        %7706 = vmatprep.subr.mxu0 0.0
        %7707 = vmatpush1.msra.mxu0 %v7674
        %7708 = vmatprep.subr.mxu0 0.0
        %7709 = vmatpush1.msra.mxu0 %v7675
        %7710 = vmatprep.subr.mxu0 0.0
        %7711 = vmatpush1.msra.mxu0 %v7676
        %7712 = vmatprep.subr.mxu0 0.0
        %7713 = vmatpush1.msra.mxu0 %v7677
        %7714 = vmatprep.subr.mxu0 0.0
        %7715 = vmatpush1.msra.mxu0 %v7678
        %7716 = vmatprep.subr.mxu0 0.0
        %7717 = vmatpush1.msra.mxu0 %v7679
        %7718 = vmatprep.subr.mxu0 0.0
        %7719 = vmatpush1.msra.mxu0 %v7680
        %7720 = vmatprep.subr.mxu0 0.0
        %7721 = vmatpush1.msra.mxu0 %v7681
        %7722 = vmatprep.subr.mxu0 0.0
        %7723 = vmatpush1.msra.mxu0 0.0
        %7724 = vmatprep.subr.mxu0 0.0
        %7725 = vmatpush1.msra.mxu0 0.0
        %7726 = vmatprep.subr.mxu0 0.0
        %7727 = vmatpush1.msra.mxu0 0.0
        %7728 = vmatprep.subr.mxu0 0.0
        %7729 = vmatpush1.msra.mxu0 0.0
        %7730 = vmatprep.subr.mxu0 0.0
        %7731 = vmatpush1.msra.mxu0 0.0
        %7732 = vmatprep.subr.mxu0 0.0
        %7733 = vmatpush1.msra.mxu0 0.0
        %7734 = vmatprep.subr.mxu0 0.0
        %7735 = vmatpush1.msra.mxu0 0.0
        %7736 = vmatprep.subr.mxu0 0.0
        %7737 = vmatpush1.msra.mxu0 0.0
        %7738 = vmatprep.subr.mxu0 0.0
        %7739 = vmatpush1.msra.mxu0 0.0
        %7740 = vmatprep.subr.mxu0 0.0
        %7741 = vmatpush1.msra.mxu0 0.0
        %7742 = vmatprep.subr.mxu0 0.0
        %7743 = vmatpush1.msra.mxu0 0.0
        %7744 = vmatprep.subr.mxu0 0.0
        %7745 = vmatpush1.msra.mxu0 0.0
        %7746 = vmatprep.mubr.f32.mxu0 %v7589
        %7747 = vmatmul.mubr.f32.gmra.mrb[0].mxu0 %v7565
        %v7748 = vpop.f32.mrb[0].mxu0
        %v7749 = vadd.f32 0.0, %v7748
        %v7750 = vpop.f32.mrb[0].mxu0
        %7751 = vdwg.mxu0
        %v7752 = vmax.f32 %v7658, %v7749
        %v7753 = vld [vmem:[%s15] sm:$0xff]
        %v7754 = vld [vmem:[%s15 + $0x8] sm:$0xff]
        %v7755 = vld [vmem:[%s15 + $0x10] sm:$0xff]
        %v7756 = vld [vmem:[%s15 + $0x18] sm:$0xff]
        %v7757 = vld [vmem:[%s15 + $0x20] sm:$0xff]
        %s7758 = scalar_lea.vmem %s15, 40
        %v7759 = vld [vmem:[%s7758] sm:$0xff]
        %v7760 = vld [vmem:[%s7758 + $0x8] sm:$0xff]
        %v7761 = vld [vmem:[%s7758 + $0x10] sm:$0xff]
        %v7762 = vld [vmem:[%s7758 + $0x18] sm:$0xff]
        %v7763 = vld [vmem:[%s7758 + $0x20] sm:$0xff]
        %7765 = vrot.lane.b32.xlu0 %v7752, 108
        %v7766 = vpop.permute.xlu0 %7765
        %vm7767 = vcmask 326656
        %v7768 = vsel %vm7767, %v7766, 0
        %7770 = vmatprep.subr.mxu0 0.0
        %7771 = vmatpush1.msra.mxu0 %v7759
        %7772 = vmatprep.subr.mxu0 0.0
        %7773 = vmatpush1.msra.mxu0 %v7760
        %7774 = vmatprep.subr.mxu0 0.0
        %7775 = vmatpush1.msra.mxu0 %v7761
        %7776 = vmatprep.subr.mxu0 0.0
        %7777 = vmatpush1.msra.mxu0 %v7762
        %7778 = vmatprep.subr.mxu0 0.0
        %7779 = vmatpush1.msra.mxu0 %v7763
        %7780 = vmatprep.subr.mxu0 0.0
        %7781 = vmatpush1.msra.mxu0 0.0
        %7782 = vmatprep.subr.mxu0 0.0
        %7783 = vmatpush1.msra.mxu0 0.0
        %7784 = vmatprep.subr.mxu0 0.0
        %7785 = vmatpush1.msra.mxu0 0.0
        %7786 = vmatprep.subr.mxu0 0.0
        %7787 = vmatpush1.msra.mxu0 0.0
        %7788 = vmatprep.subr.mxu0 0.0
        %7789 = vmatpush1.msra.mxu0 0.0
        %7790 = vmatprep.subr.mxu0 0.0
        %7791 = vmatpush1.msra.mxu0 0.0
        %7792 = vmatprep.subr.mxu0 0.0
        %7793 = vmatpush1.msra.mxu0 0.0
        %7794 = vmatprep.subr.mxu0 0.0
        %7795 = vmatpush1.msra.mxu0 0.0
        %7796 = vmatprep.subr.mxu0 0.0
        %7797 = vmatpush1.msra.mxu0 0.0
        %7798 = vmatprep.subr.mxu0 0.0
        %7799 = vmatpush1.msra.mxu0 0.0
        %7800 = vmatprep.subr.mxu0 0.0
        %7801 = vmatpush1.msra.mxu0 0.0
        %7802 = vmatprep.subr.mxu0 0.0
        %7803 = vmatpush1.msra.mxu0 0.0
        %7804 = vmatprep.subr.mxu0 0.0
        %7805 = vmatpush1.msra.mxu0 0.0
        %7806 = vmatprep.subr.mxu0 0.0
        %7807 = vmatpush1.msra.mxu0 0.0
        %7808 = vmatprep.subr.mxu0 0.0
        %7809 = vmatpush1.msra.mxu0 0.0
        %7810 = vmatprep.subr.mxu0 0.0
        %7811 = vmatpush1.msra.mxu0 0.0
        %7812 = vmatprep.subr.mxu0 0.0
        %7813 = vmatpush1.msra.mxu0 0.0
        %7814 = vmatprep.subr.mxu0 0.0
        %7815 = vmatpush1.msra.mxu0 0.0
        %7816 = vmatprep.subr.mxu0 0.0
        %7817 = vmatpush1.msra.mxu0 0.0
        %7818 = vmatprep.subr.mxu0 0.0
        %7819 = vmatpush1.msra.mxu0 0.0
        %7820 = vmatprep.subr.mxu0 0.0
        %7821 = vmatpush1.msra.mxu0 0.0
        %7822 = vmatprep.subr.mxu0 0.0
        %7823 = vmatpush1.msra.mxu0 0.0
        %7824 = vmatprep.subr.mxu0 0.0
        %7825 = vmatpush1.msra.mxu0 0.0
        %7826 = vmatprep.subr.mxu0 0.0
        %7827 = vmatpush1.msra.mxu0 0.0
        %7828 = vmatprep.subr.mxu0 0.0
        %7829 = vmatpush1.msra.mxu0 0.0
        %7830 = vmatprep.subr.mxu0 0.0
        %7831 = vmatpush1.msra.mxu0 0.0
        %7832 = vmatprep.subr.mxu0 0.0
        %7833 = vmatpush1.msra.mxu0 0.0
        %7834 = vmatprep.mubr.f32.mxu0 0.0
        %7835 = vmatmul.mubr.f32.gmra.mrb[0].mxu0 %v7768
        %v7836 = vpop.f32.mrb[0].mxu0
        %v7837 = vadd.f32 0.0, %v7836
        %v7838 = vpop.f32.mrb[0].mxu0
        %7839 = vdwg.mxu0
        %v7840 = vsel %vm7767, %v7752, 0
        %7842 = vmatprep.subr.mxu0 0.0
        %7843 = vmatpush1.msra.mxu0 %v7753
        %7844 = vmatprep.subr.mxu0 0.0
        %7845 = vmatpush1.msra.mxu0 %v7754
        %7846 = vmatprep.subr.mxu0 0.0
        %7847 = vmatpush1.msra.mxu0 %v7755
        %7848 = vmatprep.subr.mxu0 0.0
        %7849 = vmatpush1.msra.mxu0 %v7756
        %7850 = vmatprep.subr.mxu0 0.0
        %7851 = vmatpush1.msra.mxu0 %v7757
        %7852 = vmatprep.subr.mxu0 0.0
        %7853 = vmatpush1.msra.mxu0 0.0
        %7854 = vmatprep.subr.mxu0 0.0
        %7855 = vmatpush1.msra.mxu0 0.0
        %7856 = vmatprep.subr.mxu0 0.0
        %7857 = vmatpush1.msra.mxu0 0.0
        %7858 = vmatprep.subr.mxu0 0.0
        %7859 = vmatpush1.msra.mxu0 0.0
        %7860 = vmatprep.subr.mxu0 0.0
        %7861 = vmatpush1.msra.mxu0 0.0
        %7862 = vmatprep.subr.mxu0 0.0
        %7863 = vmatpush1.msra.mxu0 0.0
        %7864 = vmatprep.subr.mxu0 0.0
        %7865 = vmatpush1.msra.mxu0 0.0
        %7866 = vmatprep.subr.mxu0 0.0
        %7867 = vmatpush1.msra.mxu0 0.0
        %7868 = vmatprep.subr.mxu0 0.0
        %7869 = vmatpush1.msra.mxu0 0.0
        %7870 = vmatprep.subr.mxu0 0.0
        %7871 = vmatpush1.msra.mxu0 0.0
        %7872 = vmatprep.subr.mxu0 0.0
        %7873 = vmatpush1.msra.mxu0 0.0
        %7874 = vmatprep.subr.mxu0 0.0
        %7875 = vmatpush1.msra.mxu0 0.0
        %7876 = vmatprep.subr.mxu0 0.0
        %7877 = vmatpush1.msra.mxu0 0.0
        %7878 = vmatprep.subr.mxu0 0.0
        %7879 = vmatpush1.msra.mxu0 0.0
        %7880 = vmatprep.subr.mxu0 0.0
        %7881 = vmatpush1.msra.mxu0 0.0
        %7882 = vmatprep.subr.mxu0 0.0
        %7883 = vmatpush1.msra.mxu0 0.0
        %7884 = vmatprep.subr.mxu0 0.0
        %7885 = vmatpush1.msra.mxu0 0.0
        %7886 = vmatprep.subr.mxu0 0.0
        %7887 = vmatpush1.msra.mxu0 0.0
        %7888 = vmatprep.subr.mxu0 0.0
        %7889 = vmatpush1.msra.mxu0 0.0
        %7890 = vmatprep.subr.mxu0 0.0
        %7891 = vmatpush1.msra.mxu0 0.0
        %7892 = vmatprep.subr.mxu0 0.0
        %7893 = vmatpush1.msra.mxu0 0.0
        %7894 = vmatprep.subr.mxu0 0.0
        %7895 = vmatpush1.msra.mxu0 0.0
        %7896 = vmatprep.subr.mxu0 0.0
        %7897 = vmatpush1.msra.mxu0 0.0
        %7898 = vmatprep.subr.mxu0 0.0
        %7899 = vmatpush1.msra.mxu0 0.0
        %7900 = vmatprep.subr.mxu0 0.0
        %7901 = vmatpush1.msra.mxu0 0.0
        %7902 = vmatprep.subr.mxu0 0.0
        %7903 = vmatpush1.msra.mxu0 0.0
        %7904 = vmatprep.subr.mxu0 0.0
        %7905 = vmatpush1.msra.mxu0 0.0
        %7906 = vmatprep.mubr.f32.mxu0 0.0
        %7907 = vmatmul.mubr.f32.gmra.mrb[0].mxu0 %v7840
        %v7908 = vpop.f32.mrb[0].mxu0
        %v7909 = vadd.f32 %v7837, %v7908
        %v7910 = vpop.f32.mrb[0].mxu0
        %7911 = vdwg.mxu0
        %s7912 = scalar_lea.vmem %s15, 80
        %v7913 = vld [vmem:[%s7912] sm:$0xff]
        %v7914 = vld [vmem:[%s7912 + $0x8] sm:$0xff]
        %v7915 = vld [vmem:[%s7912 + $0x10] sm:$0xff]
        %v7916 = vld [vmem:[%s7912 + $0x18] sm:$0xff]
        %v7917 = vld [vmem:[%s7912 + $0x20] sm:$0xff]
        %7918 = vrot.lane.b32.xlu0 %v7752, 88
        %v7919 = vpop.permute.xlu0 %7918
        %v7920 = vsel %vm7767, %v7919, 0
        %7922 = vmatprep.subr.mxu0 0.0
        %7923 = vmatpush1.msra.mxu0 %v7913
        %7924 = vmatprep.subr.mxu0 0.0
        %7925 = vmatpush1.msra.mxu0 %v7914
        %7926 = vmatprep.subr.mxu0 0.0
        %7927 = vmatpush1.msra.mxu0 %v7915
        %7928 = vmatprep.subr.mxu0 0.0
        %7929 = vmatpush1.msra.mxu0 %v7916
        %7930 = vmatprep.subr.mxu0 0.0
        %7931 = vmatpush1.msra.mxu0 %v7917
        %7932 = vmatprep.subr.mxu0 0.0
        %7933 = vmatpush1.msra.mxu0 0.0
        %7934 = vmatprep.subr.mxu0 0.0
        %7935 = vmatpush1.msra.mxu0 0.0
        %7936 = vmatprep.subr.mxu0 0.0
        %7937 = vmatpush1.msra.mxu0 0.0
        %7938 = vmatprep.subr.mxu0 0.0
        %7939 = vmatpush1.msra.mxu0 0.0
        %7940 = vmatprep.subr.mxu0 0.0
        %7941 = vmatpush1.msra.mxu0 0.0
        %7942 = vmatprep.subr.mxu0 0.0
        %7943 = vmatpush1.msra.mxu0 0.0
        %7944 = vmatprep.subr.mxu0 0.0
        %7945 = vmatpush1.msra.mxu0 0.0
        %7946 = vmatprep.subr.mxu0 0.0
        %7947 = vmatpush1.msra.mxu0 0.0
        %7948 = vmatprep.subr.mxu0 0.0
        %7949 = vmatpush1.msra.mxu0 0.0
        %7950 = vmatprep.subr.mxu0 0.0
        %7951 = vmatpush1.msra.mxu0 0.0
        %7952 = vmatprep.subr.mxu0 0.0
        %7953 = vmatpush1.msra.mxu0 0.0
        %7954 = vmatprep.subr.mxu0 0.0
        %7955 = vmatpush1.msra.mxu0 0.0
        %7956 = vmatprep.subr.mxu0 0.0
        %7957 = vmatpush1.msra.mxu0 0.0
        %7958 = vmatprep.subr.mxu0 0.0
        %7959 = vmatpush1.msra.mxu0 0.0
        %7960 = vmatprep.subr.mxu0 0.0
        %7961 = vmatpush1.msra.mxu0 0.0
        %7962 = vmatprep.subr.mxu0 0.0
        %7963 = vmatpush1.msra.mxu0 0.0
        %7964 = vmatprep.subr.mxu0 0.0
        %7965 = vmatpush1.msra.mxu0 0.0
        %7966 = vmatprep.subr.mxu0 0.0
        %7967 = vmatpush1.msra.mxu0 0.0
        %7968 = vmatprep.subr.mxu0 0.0
        %7969 = vmatpush1.msra.mxu0 0.0
        %7970 = vmatprep.subr.mxu0 0.0
        %7971 = vmatpush1.msra.mxu0 0.0
        %7972 = vmatprep.subr.mxu0 0.0
        %7973 = vmatpush1.msra.mxu0 0.0
        %7974 = vmatprep.subr.mxu0 0.0
        %7975 = vmatpush1.msra.mxu0 0.0
        %7976 = vmatprep.subr.mxu0 0.0
        %7977 = vmatpush1.msra.mxu0 0.0
        %7978 = vmatprep.subr.mxu0 0.0
        %7979 = vmatpush1.msra.mxu0 0.0
        %7980 = vmatprep.subr.mxu0 0.0
        %7981 = vmatpush1.msra.mxu0 0.0
        %7982 = vmatprep.subr.mxu0 0.0
        %7983 = vmatpush1.msra.mxu0 0.0
        %7984 = vmatprep.subr.mxu0 0.0
        %7985 = vmatpush1.msra.mxu0 0.0
        %7986 = vmatprep.mubr.f32.mxu0 0.0
        %7987 = vmatmul.mubr.f32.gmra.mrb[0].mxu0 %v7920
        %v7988 = vpop.f32.mrb[0].mxu0
        %v7989 = vadd.f32 0.0, %v7988
        %v7990 = vpop.f32.mrb[0].mxu0
        %7991 = vdwg.mxu0
        %v7992 = vadd.f32 %v7909, %v7989
        %s7993 = scalar_lea.vmem %s15, 120
        %v7994 = vld [vmem:[%s7993] sm:$0xff]
        %v7995 = vld [vmem:[%s7993 + $0x8] sm:$0xff]
        %v7996 = vld [vmem:[%s7993 + $0x10] sm:$0xff]
        %v7997 = vld [vmem:[%s7993 + $0x18] sm:$0xff]
        %v7998 = vld [vmem:[%s7993 + $0x20] sm:$0xff]
        %v7999 = vrot.slane %v7752, 1
        %v8000 = vsel %vm7767, %v7999, 0
        %8002 = vmatprep.subr.mxu0 0.0
        %8003 = vmatpush1.msra.mxu0 %v7994
        %8004 = vmatprep.subr.mxu0 0.0
        %8005 = vmatpush1.msra.mxu0 %v7995
        %8006 = vmatprep.subr.mxu0 0.0
        %8007 = vmatpush1.msra.mxu0 %v7996
        %8008 = vmatprep.subr.mxu0 0.0
        %8009 = vmatpush1.msra.mxu0 %v7997
        %8010 = vmatprep.subr.mxu0 0.0
        %8011 = vmatpush1.msra.mxu0 %v7998
        %8012 = vmatprep.subr.mxu0 0.0
        %8013 = vmatpush1.msra.mxu0 0.0
        %8014 = vmatprep.subr.mxu0 0.0
        %8015 = vmatpush1.msra.mxu0 0.0
        %8016 = vmatprep.subr.mxu0 0.0
        %8017 = vmatpush1.msra.mxu0 0.0
        %8018 = vmatprep.subr.mxu0 0.0
        %8019 = vmatpush1.msra.mxu0 0.0
        %8020 = vmatprep.subr.mxu0 0.0
        %8021 = vmatpush1.msra.mxu0 0.0
        %8022 = vmatprep.subr.mxu0 0.0
        %8023 = vmatpush1.msra.mxu0 0.0
        %8024 = vmatprep.subr.mxu0 0.0
        %8025 = vmatpush1.msra.mxu0 0.0
        %8026 = vmatprep.subr.mxu0 0.0
        %8027 = vmatpush1.msra.mxu0 0.0
        %8028 = vmatprep.subr.mxu0 0.0
        %8029 = vmatpush1.msra.mxu0 0.0
        %8030 = vmatprep.subr.mxu0 0.0
        %8031 = vmatpush1.msra.mxu0 0.0
        %8032 = vmatprep.subr.mxu0 0.0
        %8033 = vmatpush1.msra.mxu0 0.0
        %8034 = vmatprep.subr.mxu0 0.0
        %8035 = vmatpush1.msra.mxu0 0.0
        %8036 = vmatprep.subr.mxu0 0.0
        %8037 = vmatpush1.msra.mxu0 0.0
        %8038 = vmatprep.subr.mxu0 0.0
        %8039 = vmatpush1.msra.mxu0 0.0
        %8040 = vmatprep.subr.mxu0 0.0
        %8041 = vmatpush1.msra.mxu0 0.0
        %8042 = vmatprep.subr.mxu0 0.0
        %8043 = vmatpush1.msra.mxu0 0.0
        %8044 = vmatprep.subr.mxu0 0.0
        %8045 = vmatpush1.msra.mxu0 0.0
        %8046 = vmatprep.subr.mxu0 0.0
        %8047 = vmatpush1.msra.mxu0 0.0
        %8048 = vmatprep.subr.mxu0 0.0
        %8049 = vmatpush1.msra.mxu0 0.0
        %8050 = vmatprep.subr.mxu0 0.0
        %8051 = vmatpush1.msra.mxu0 0.0
        %8052 = vmatprep.subr.mxu0 0.0
        %8053 = vmatpush1.msra.mxu0 0.0
        %8054 = vmatprep.subr.mxu0 0.0
        %8055 = vmatpush1.msra.mxu0 0.0
        %8056 = vmatprep.subr.mxu0 0.0
        %8057 = vmatpush1.msra.mxu0 0.0
        %8058 = vmatprep.subr.mxu0 0.0
        %8059 = vmatpush1.msra.mxu0 0.0
        %8060 = vmatprep.subr.mxu0 0.0
        %8061 = vmatpush1.msra.mxu0 0.0
        %8062 = vmatprep.subr.mxu0 0.0
        %8063 = vmatpush1.msra.mxu0 0.0
        %8064 = vmatprep.subr.mxu0 0.0
        %8065 = vmatpush1.msra.mxu0 0.0
        %8066 = vmatprep.mubr.f32.mxu0 0.0
        %8067 = vmatmul.mubr.f32.gmra.mrb[0].mxu0 %v8000
        %v8068 = vpop.f32.mrb[0].mxu0
        %v8069 = vadd.f32 0.0, %v8068
        %v8070 = vpop.f32.mrb[0].mxu0
        %8071 = vdwg.mxu0
        %v8072 = vadd.f32 %v7992, %v8069
        %s8073 = scalar_lea.vmem %s15, 160
        %v8074 = vld [vmem:[%s8073] sm:$0xff]
        %v8075 = vld [vmem:[%s8073 + $0x8] sm:$0xff]
        %v8076 = vld [vmem:[%s8073 + $0x10] sm:$0xff]
        %v8077 = vld [vmem:[%s8073 + $0x18] sm:$0xff]
        %v8078 = vld [vmem:[%s8073 + $0x20] sm:$0xff]
        %8079 = vrot.lane.b32.xlu0 %v7999, 108
        %v8080 = vpop.permute.xlu0 %8079
        %v8081 = vsel %vm7767, %v8080, 0
        %8083 = vmatprep.subr.mxu0 0.0
        %8084 = vmatpush1.msra.mxu0 %v8074
        %8085 = vmatprep.subr.mxu0 0.0
        %8086 = vmatpush1.msra.mxu0 %v8075
        %8087 = vmatprep.subr.mxu0 0.0
        %8088 = vmatpush1.msra.mxu0 %v8076
        %8089 = vmatprep.subr.mxu0 0.0
        %8090 = vmatpush1.msra.mxu0 %v8077
        %8091 = vmatprep.subr.mxu0 0.0
        %8092 = vmatpush1.msra.mxu0 %v8078
        %8093 = vmatprep.subr.mxu0 0.0
        %8094 = vmatpush1.msra.mxu0 0.0
        %8095 = vmatprep.subr.mxu0 0.0
        %8096 = vmatpush1.msra.mxu0 0.0
        %8097 = vmatprep.subr.mxu0 0.0
        %8098 = vmatpush1.msra.mxu0 0.0
        %8099 = vmatprep.subr.mxu0 0.0
        %8100 = vmatpush1.msra.mxu0 0.0
        %8101 = vmatprep.subr.mxu0 0.0
        %8102 = vmatpush1.msra.mxu0 0.0
        %8103 = vmatprep.subr.mxu0 0.0
        %8104 = vmatpush1.msra.mxu0 0.0
        %8105 = vmatprep.subr.mxu0 0.0
        %8106 = vmatpush1.msra.mxu0 0.0
        %8107 = vmatprep.subr.mxu0 0.0
        %8108 = vmatpush1.msra.mxu0 0.0
        %8109 = vmatprep.subr.mxu0 0.0
        %8110 = vmatpush1.msra.mxu0 0.0
        %8111 = vmatprep.subr.mxu0 0.0
        %8112 = vmatpush1.msra.mxu0 0.0
        %8113 = vmatprep.subr.mxu0 0.0
        %8114 = vmatpush1.msra.mxu0 0.0
        %8115 = vmatprep.subr.mxu0 0.0
        %8116 = vmatpush1.msra.mxu0 0.0
        %8117 = vmatprep.subr.mxu0 0.0
        %8118 = vmatpush1.msra.mxu0 0.0
        %8119 = vmatprep.subr.mxu0 0.0
        %8120 = vmatpush1.msra.mxu0 0.0
        %8121 = vmatprep.subr.mxu0 0.0
        %8122 = vmatpush1.msra.mxu0 0.0
        %8123 = vmatprep.subr.mxu0 0.0
        %8124 = vmatpush1.msra.mxu0 0.0
        %8125 = vmatprep.subr.mxu0 0.0
        %8126 = vmatpush1.msra.mxu0 0.0
        %8127 = vmatprep.subr.mxu0 0.0
        %8128 = vmatpush1.msra.mxu0 0.0
        %8129 = vmatprep.subr.mxu0 0.0
        %8130 = vmatpush1.msra.mxu0 0.0
        %8131 = vmatprep.subr.mxu0 0.0
        %8132 = vmatpush1.msra.mxu0 0.0
        %8133 = vmatprep.subr.mxu0 0.0
        %8134 = vmatpush1.msra.mxu0 0.0
        %8135 = vmatprep.subr.mxu0 0.0
        %8136 = vmatpush1.msra.mxu0 0.0
        %8137 = vmatprep.subr.mxu0 0.0
        %8138 = vmatpush1.msra.mxu0 0.0
        %8139 = vmatprep.subr.mxu0 0.0
        %8140 = vmatpush1.msra.mxu0 0.0
        %8141 = vmatprep.subr.mxu0 0.0
        %8142 = vmatpush1.msra.mxu0 0.0
        %8143 = vmatprep.subr.mxu0 0.0
        %8144 = vmatpush1.msra.mxu0 0.0
        %8145 = vmatprep.subr.mxu0 0.0
        %8146 = vmatpush1.msra.mxu0 0.0
        %8147 = vmatprep.mubr.f32.mxu0 0.0
        %8148 = vmatmul.mubr.f32.gmra.mrb[0].mxu0 %v8081
        %v8149 = vpop.f32.mrb[0].mxu0
        %v8150 = vadd.f32 0.0, %v8149
        %v8151 = vpop.f32.mrb[0].mxu0
        %8152 = vdwg.mxu0
        %v8153 = vadd.f32 %v8072, %v8150
        %s8154 = scalar_lea.vmem %s15, 200
        %v8155 = vld [vmem:[%s8154] sm:$0xff]
        %v8156 = vld [vmem:[%s8154 + $0x8] sm:$0xff]
        %v8157 = vld [vmem:[%s8154 + $0x10] sm:$0xff]
        %v8158 = vld [vmem:[%s8154 + $0x18] sm:$0xff]
        %v8159 = vld [vmem:[%s8154 + $0x20] sm:$0xff]
        %8160 = vrot.lane.b32.xlu0 %v7999, 88
        %v8161 = vpop.permute.xlu0 %8160
        %v8162 = vsel %vm7767, %v8161, 0
        %8164 = vmatprep.subr.mxu0 0.0
        %8165 = vmatpush1.msra.mxu0 %v8155
        %8166 = vmatprep.subr.mxu0 0.0
        %8167 = vmatpush1.msra.mxu0 %v8156
        %8168 = vmatprep.subr.mxu0 0.0
        %8169 = vmatpush1.msra.mxu0 %v8157
        %8170 = vmatprep.subr.mxu0 0.0
        %8171 = vmatpush1.msra.mxu0 %v8158
        %8172 = vmatprep.subr.mxu0 0.0
        %8173 = vmatpush1.msra.mxu0 %v8159
        %8174 = vmatprep.subr.mxu0 0.0
        %8175 = vmatpush1.msra.mxu0 0.0
        %8176 = vmatprep.subr.mxu0 0.0
        %8177 = vmatpush1.msra.mxu0 0.0
        %8178 = vmatprep.subr.mxu0 0.0
        %8179 = vmatpush1.msra.mxu0 0.0
        %8180 = vmatprep.subr.mxu0 0.0
        %8181 = vmatpush1.msra.mxu0 0.0
        %8182 = vmatprep.subr.mxu0 0.0
        %8183 = vmatpush1.msra.mxu0 0.0
        %8184 = vmatprep.subr.mxu0 0.0
        %8185 = vmatpush1.msra.mxu0 0.0
        %8186 = vmatprep.subr.mxu0 0.0
        %8187 = vmatpush1.msra.mxu0 0.0
        %8188 = vmatprep.subr.mxu0 0.0
        %8189 = vmatpush1.msra.mxu0 0.0
        %8190 = vmatprep.subr.mxu0 0.0
        %8191 = vmatpush1.msra.mxu0 0.0
        %8192 = vmatprep.subr.mxu0 0.0
        %8193 = vmatpush1.msra.mxu0 0.0
        %8194 = vmatprep.subr.mxu0 0.0
        %8195 = vmatpush1.msra.mxu0 0.0
        %8196 = vmatprep.subr.mxu0 0.0
        %8197 = vmatpush1.msra.mxu0 0.0
        %8198 = vmatprep.subr.mxu0 0.0
        %8199 = vmatpush1.msra.mxu0 0.0
        %8200 = vmatprep.subr.mxu0 0.0
        %8201 = vmatpush1.msra.mxu0 0.0
        %8202 = vmatprep.subr.mxu0 0.0
        %8203 = vmatpush1.msra.mxu0 0.0
        %8204 = vmatprep.subr.mxu0 0.0
        %8205 = vmatpush1.msra.mxu0 0.0
        %8206 = vmatprep.subr.mxu0 0.0
        %8207 = vmatpush1.msra.mxu0 0.0
        %8208 = vmatprep.subr.mxu0 0.0
        %8209 = vmatpush1.msra.mxu0 0.0
        %8210 = vmatprep.subr.mxu0 0.0
        %8211 = vmatpush1.msra.mxu0 0.0
        %8212 = vmatprep.subr.mxu0 0.0
        %8213 = vmatpush1.msra.mxu0 0.0
        %8214 = vmatprep.subr.mxu0 0.0
        %8215 = vmatpush1.msra.mxu0 0.0
        %8216 = vmatprep.subr.mxu0 0.0
        %8217 = vmatpush1.msra.mxu0 0.0
        %8218 = vmatprep.subr.mxu0 0.0
        %8219 = vmatpush1.msra.mxu0 0.0
        %8220 = vmatprep.subr.mxu0 0.0
        %8221 = vmatpush1.msra.mxu0 0.0
        %8222 = vmatprep.subr.mxu0 0.0
        %8223 = vmatpush1.msra.mxu0 0.0
        %8224 = vmatprep.subr.mxu0 0.0
        %8225 = vmatpush1.msra.mxu0 0.0
        %8226 = vmatprep.subr.mxu0 0.0
        %8227 = vmatpush1.msra.mxu0 0.0
        %8228 = vmatprep.mubr.f32.mxu0 0.0
        %8229 = vmatmul.mubr.f32.gmra.mrb[0].mxu0 %v8162
        %v8230 = vpop.f32.mrb[0].mxu0
        %v8231 = vadd.f32 0.0, %v8230
        %v8232 = vpop.f32.mrb[0].mxu0
        %8233 = vdwg.mxu0
        %v8234 = vadd.f32 %v8153, %v8231
        %s8235 = scalar_lea.vmem %s15, 240
        %v8236 = vld [vmem:[%s8235] sm:$0xff]
        %v8237 = vld [vmem:[%s8235 + $0x8] sm:$0xff]
        %v8238 = vld [vmem:[%s8235 + $0x10] sm:$0xff]
        %v8239 = vld [vmem:[%s8235 + $0x18] sm:$0xff]
        %v8240 = vld [vmem:[%s8235 + $0x20] sm:$0xff]
        %v8241 = vrot.slane %v7752, 2
        %v8242 = vsel %vm7767, %v8241, 0
        %8244 = vmatprep.subr.mxu0 0.0
        %8245 = vmatpush1.msra.mxu0 %v8236
        %8246 = vmatprep.subr.mxu0 0.0
        %8247 = vmatpush1.msra.mxu0 %v8237
        %8248 = vmatprep.subr.mxu0 0.0
        %8249 = vmatpush1.msra.mxu0 %v8238
        %8250 = vmatprep.subr.mxu0 0.0
        %8251 = vmatpush1.msra.mxu0 %v8239
        %8252 = vmatprep.subr.mxu0 0.0
        %8253 = vmatpush1.msra.mxu0 %v8240
        %8254 = vmatprep.subr.mxu0 0.0
        %8255 = vmatpush1.msra.mxu0 0.0
        %8256 = vmatprep.subr.mxu0 0.0
        %8257 = vmatpush1.msra.mxu0 0.0
        %8258 = vmatprep.subr.mxu0 0.0
        %8259 = vmatpush1.msra.mxu0 0.0
        %8260 = vmatprep.subr.mxu0 0.0
        %8261 = vmatpush1.msra.mxu0 0.0
        %8262 = vmatprep.subr.mxu0 0.0
        %8263 = vmatpush1.msra.mxu0 0.0
        %8264 = vmatprep.subr.mxu0 0.0
        %8265 = vmatpush1.msra.mxu0 0.0
        %8266 = vmatprep.subr.mxu0 0.0
        %8267 = vmatpush1.msra.mxu0 0.0
        %8268 = vmatprep.subr.mxu0 0.0
        %8269 = vmatpush1.msra.mxu0 0.0
        %8270 = vmatprep.subr.mxu0 0.0
        %8271 = vmatpush1.msra.mxu0 0.0
        %8272 = vmatprep.subr.mxu0 0.0
        %8273 = vmatpush1.msra.mxu0 0.0
        %8274 = vmatprep.subr.mxu0 0.0
        %8275 = vmatpush1.msra.mxu0 0.0
        %8276 = vmatprep.subr.mxu0 0.0
        %8277 = vmatpush1.msra.mxu0 0.0
        %8278 = vmatprep.subr.mxu0 0.0
        %8279 = vmatpush1.msra.mxu0 0.0
        %8280 = vmatprep.subr.mxu0 0.0
        %8281 = vmatpush1.msra.mxu0 0.0
        %8282 = vmatprep.subr.mxu0 0.0
        %8283 = vmatpush1.msra.mxu0 0.0
        %8284 = vmatprep.subr.mxu0 0.0
        %8285 = vmatpush1.msra.mxu0 0.0
        %8286 = vmatprep.subr.mxu0 0.0
        %8287 = vmatpush1.msra.mxu0 0.0
        %8288 = vmatprep.subr.mxu0 0.0
        %8289 = vmatpush1.msra.mxu0 0.0
        %8290 = vmatprep.subr.mxu0 0.0
        %8291 = vmatpush1.msra.mxu0 0.0
        %8292 = vmatprep.subr.mxu0 0.0
        %8293 = vmatpush1.msra.mxu0 0.0
        %8294 = vmatprep.subr.mxu0 0.0
        %8295 = vmatpush1.msra.mxu0 0.0
        %8296 = vmatprep.subr.mxu0 0.0
        %8297 = vmatpush1.msra.mxu0 0.0
        %8298 = vmatprep.subr.mxu0 0.0
        %8299 = vmatpush1.msra.mxu0 0.0
        %8300 = vmatprep.subr.mxu0 0.0
        %8301 = vmatpush1.msra.mxu0 0.0
        %8302 = vmatprep.subr.mxu0 0.0
        %8303 = vmatpush1.msra.mxu0 0.0
        %8304 = vmatprep.subr.mxu0 0.0
        %8305 = vmatpush1.msra.mxu0 0.0
        %8306 = vmatprep.subr.mxu0 0.0
        %8307 = vmatpush1.msra.mxu0 0.0
        %8308 = vmatprep.mubr.f32.mxu0 0.0
        %8309 = vmatmul.mubr.f32.gmra.mrb[0].mxu0 %v8242
        %v8310 = vpop.f32.mrb[0].mxu0
        %v8311 = vadd.f32 0.0, %v8310
        %v8312 = vpop.f32.mrb[0].mxu0
        %8313 = vdwg.mxu0
        %v8314 = vadd.f32 %v8234, %v8311
        %s8315 = scalar_lea.vmem %s15, 280
        %v8316 = vld [vmem:[%s8315] sm:$0xff]
        %v8317 = vld [vmem:[%s8315 + $0x8] sm:$0xff]
        %v8318 = vld [vmem:[%s8315 + $0x10] sm:$0xff]
        %v8319 = vld [vmem:[%s8315 + $0x18] sm:$0xff]
        %v8320 = vld [vmem:[%s8315 + $0x20] sm:$0xff]
        %8321 = vrot.lane.b32.xlu0 %v8241, 108
        %v8322 = vpop.permute.xlu0 %8321
        %v8323 = vsel %vm7767, %v8322, 0
        %8325 = vmatprep.subr.mxu0 0.0
        %8326 = vmatpush1.msra.mxu0 %v8316
        %8327 = vmatprep.subr.mxu0 0.0
        %8328 = vmatpush1.msra.mxu0 %v8317
        %8329 = vmatprep.subr.mxu0 0.0
        %8330 = vmatpush1.msra.mxu0 %v8318
        %8331 = vmatprep.subr.mxu0 0.0
        %8332 = vmatpush1.msra.mxu0 %v8319
        %8333 = vmatprep.subr.mxu0 0.0
        %8334 = vmatpush1.msra.mxu0 %v8320
        %8335 = vmatprep.subr.mxu0 0.0
        %8336 = vmatpush1.msra.mxu0 0.0
        %8337 = vmatprep.subr.mxu0 0.0
        %8338 = vmatpush1.msra.mxu0 0.0
        %8339 = vmatprep.subr.mxu0 0.0
        %8340 = vmatpush1.msra.mxu0 0.0
        %8341 = vmatprep.subr.mxu0 0.0
        %8342 = vmatpush1.msra.mxu0 0.0
        %8343 = vmatprep.subr.mxu0 0.0
        %8344 = vmatpush1.msra.mxu0 0.0
        %8345 = vmatprep.subr.mxu0 0.0
        %8346 = vmatpush1.msra.mxu0 0.0
        %8347 = vmatprep.subr.mxu0 0.0
        %8348 = vmatpush1.msra.mxu0 0.0
        %8349 = vmatprep.subr.mxu0 0.0
        %8350 = vmatpush1.msra.mxu0 0.0
        %8351 = vmatprep.subr.mxu0 0.0
        %8352 = vmatpush1.msra.mxu0 0.0
        %8353 = vmatprep.subr.mxu0 0.0
        %8354 = vmatpush1.msra.mxu0 0.0
        %8355 = vmatprep.subr.mxu0 0.0
        %8356 = vmatpush1.msra.mxu0 0.0
        %8357 = vmatprep.subr.mxu0 0.0
        %8358 = vmatpush1.msra.mxu0 0.0
        %8359 = vmatprep.subr.mxu0 0.0
        %8360 = vmatpush1.msra.mxu0 0.0
        %8361 = vmatprep.subr.mxu0 0.0
        %8362 = vmatpush1.msra.mxu0 0.0
        %8363 = vmatprep.subr.mxu0 0.0
        %8364 = vmatpush1.msra.mxu0 0.0
        %8365 = vmatprep.subr.mxu0 0.0
        %8366 = vmatpush1.msra.mxu0 0.0
        %8367 = vmatprep.subr.mxu0 0.0
        %8368 = vmatpush1.msra.mxu0 0.0
        %8369 = vmatprep.subr.mxu0 0.0
        %8370 = vmatpush1.msra.mxu0 0.0
        %8371 = vmatprep.subr.mxu0 0.0
        %8372 = vmatpush1.msra.mxu0 0.0
        %8373 = vmatprep.subr.mxu0 0.0
        %8374 = vmatpush1.msra.mxu0 0.0
        %8375 = vmatprep.subr.mxu0 0.0
        %8376 = vmatpush1.msra.mxu0 0.0
        %8377 = vmatprep.subr.mxu0 0.0
        %8378 = vmatpush1.msra.mxu0 0.0
        %8379 = vmatprep.subr.mxu0 0.0
        %8380 = vmatpush1.msra.mxu0 0.0
        %8381 = vmatprep.subr.mxu0 0.0
        %8382 = vmatpush1.msra.mxu0 0.0
        %8383 = vmatprep.subr.mxu0 0.0
        %8384 = vmatpush1.msra.mxu0 0.0
        %8385 = vmatprep.subr.mxu0 0.0
        %8386 = vmatpush1.msra.mxu0 0.0
        %8387 = vmatprep.subr.mxu0 0.0
        %8388 = vmatpush1.msra.mxu0 0.0
        %8389 = vmatprep.mubr.f32.mxu0 0.0
        %8390 = vmatmul.mubr.f32.gmra.mrb[0].mxu0 %v8323
        %v8391 = vpop.f32.mrb[0].mxu0
        %v8392 = vadd.f32 0.0, %v8391
        %v8393 = vpop.f32.mrb[0].mxu0
        %8394 = vdwg.mxu0
        %v8395 = vadd.f32 %v8314, %v8392
        %s8396 = scalar_lea.vmem %s15, 320
        %v8397 = vld [vmem:[%s8396] sm:$0xff]
        %v8398 = vld [vmem:[%s8396 + $0x8] sm:$0xff]
        %v8399 = vld [vmem:[%s8396 + $0x10] sm:$0xff]
        %v8400 = vld [vmem:[%s8396 + $0x18] sm:$0xff]
        %v8401 = vld [vmem:[%s8396 + $0x20] sm:$0xff]
        %8402 = vrot.lane.b32.xlu0 %v8241, 88
        %v8403 = vpop.permute.xlu0 %8402
        %v8404 = vsel %vm7767, %v8403, 0
        %8406 = vmatprep.subr.mxu0 0.0
        %8407 = vmatpush1.msra.mxu0 %v8397
        %8408 = vmatprep.subr.mxu0 0.0
        %8409 = vmatpush1.msra.mxu0 %v8398
        %8410 = vmatprep.subr.mxu0 0.0
        %8411 = vmatpush1.msra.mxu0 %v8399
        %8412 = vmatprep.subr.mxu0 0.0
        %8413 = vmatpush1.msra.mxu0 %v8400
        %8414 = vmatprep.subr.mxu0 0.0
        %8415 = vmatpush1.msra.mxu0 %v8401
        %8416 = vmatprep.subr.mxu0 0.0
        %8417 = vmatpush1.msra.mxu0 0.0
        %8418 = vmatprep.subr.mxu0 0.0
        %8419 = vmatpush1.msra.mxu0 0.0
        %8420 = vmatprep.subr.mxu0 0.0
        %8421 = vmatpush1.msra.mxu0 0.0
        %8422 = vmatprep.subr.mxu0 0.0
        %8423 = vmatpush1.msra.mxu0 0.0
        %8424 = vmatprep.subr.mxu0 0.0
        %8425 = vmatpush1.msra.mxu0 0.0
        %8426 = vmatprep.subr.mxu0 0.0
        %8427 = vmatpush1.msra.mxu0 0.0
        %8428 = vmatprep.subr.mxu0 0.0
        %8429 = vmatpush1.msra.mxu0 0.0
        %8430 = vmatprep.subr.mxu0 0.0
        %8431 = vmatpush1.msra.mxu0 0.0
        %8432 = vmatprep.subr.mxu0 0.0
        %8433 = vmatpush1.msra.mxu0 0.0
        %8434 = vmatprep.subr.mxu0 0.0
        %8435 = vmatpush1.msra.mxu0 0.0
        %8436 = vmatprep.subr.mxu0 0.0
        %8437 = vmatpush1.msra.mxu0 0.0
        %8438 = vmatprep.subr.mxu0 0.0
        %8439 = vmatpush1.msra.mxu0 0.0
        %8440 = vmatprep.subr.mxu0 0.0
        %8441 = vmatpush1.msra.mxu0 0.0
        %8442 = vmatprep.subr.mxu0 0.0
        %8443 = vmatpush1.msra.mxu0 0.0
        %8444 = vmatprep.subr.mxu0 0.0
        %8445 = vmatpush1.msra.mxu0 0.0
        %8446 = vmatprep.subr.mxu0 0.0
        %8447 = vmatpush1.msra.mxu0 0.0
        %8448 = vmatprep.subr.mxu0 0.0
        %8449 = vmatpush1.msra.mxu0 0.0
        %8450 = vmatprep.subr.mxu0 0.0
        %8451 = vmatpush1.msra.mxu0 0.0
        %8452 = vmatprep.subr.mxu0 0.0
        %8453 = vmatpush1.msra.mxu0 0.0
        %8454 = vmatprep.subr.mxu0 0.0
        %8455 = vmatpush1.msra.mxu0 0.0
        %8456 = vmatprep.subr.mxu0 0.0
        %8457 = vmatpush1.msra.mxu0 0.0
        %8458 = vmatprep.subr.mxu0 0.0
        %8459 = vmatpush1.msra.mxu0 0.0
        %8460 = vmatprep.subr.mxu0 0.0
        %8461 = vmatpush1.msra.mxu0 0.0
        %8462 = vmatprep.subr.mxu0 0.0
        %8463 = vmatpush1.msra.mxu0 0.0
        %8464 = vmatprep.subr.mxu0 0.0
        %8465 = vmatpush1.msra.mxu0 0.0
        %8466 = vmatprep.subr.mxu0 0.0
        %8467 = vmatpush1.msra.mxu0 0.0
        %8468 = vmatprep.subr.mxu0 0.0
        %8469 = vmatpush1.msra.mxu0 0.0
        %8470 = vmatprep.mubr.f32.mxu0 0.0
        %8471 = vmatmul.mubr.f32.gmra.mrb[0].mxu0 %v8404
        %v8472 = vpop.f32.mrb[0].mxu0
        %v8473 = vadd.f32 0.0, %v8472
        %v8474 = vpop.f32.mrb[0].mxu0
        %8475 = vdwg.mxu0
        %v8476 = vadd.f32 %v8395, %v8473
        %v8477 = vld [vmem:[#allocation22] sm:$0x1]
        %v8479 = vlaneseq
        %v8480 = vshrl.u32 %v8479, 7
        %v8481 = vsub.s32 0, %v8480
        %v8482 = vrot.slane %v8477, %v8481
        %v8484 = vadd.f32 %v8476, %v8482
        %v8485 = vmax.f32 %v8484, 0.0
        %v8486 = vld [vmem:[%s17] sm:$0xff]
        %v8487 = vld [vmem:[%s17 + $0x8] sm:$0xff]
        %v8488 = vld [vmem:[%s17 + $0x10] sm:$0xff]
        %v8489 = vld [vmem:[%s17 + $0x18] sm:$0xff]
        %v8490 = vld [vmem:[%s17 + $0x20] sm:$0xff]
        %v8491 = vld [vmem:[%s17 + $0x28] sm:$0xff]
        %v8492 = vld [vmem:[%s17 + $0x30] sm:$0xff]
        %v8493 = vld [vmem:[%s17 + $0x38] sm:$0xff]
        %v8495 = vrot.slane %v8485, 1
        %v8496 = vsel %vm7587, %v8495, 0
        %8498 = vmatprep.subr.mxu0 0.0
        %8499 = vmatpush1.msra.mxu0 %v8490
        %8500 = vmatprep.subr.mxu0 0.0
        %8501 = vmatpush1.msra.mxu0 %v8491
        %8502 = vmatprep.subr.mxu0 0.0
        %8503 = vmatpush1.msra.mxu0 %v8492
        %8504 = vmatprep.subr.mxu0 0.0
        %8505 = vmatpush1.msra.mxu0 %v8493
        %8506 = vmatprep.subr.mxu0 0.0
        %8507 = vmatpush1.msra.mxu0 0.0
        %8508 = vmatprep.subr.mxu0 0.0
        %8509 = vmatpush1.msra.mxu0 0.0
        %8510 = vmatprep.subr.mxu0 0.0
        %8511 = vmatpush1.msra.mxu0 0.0
        %8512 = vmatprep.subr.mxu0 0.0
        %8513 = vmatpush1.msra.mxu0 0.0
        %8514 = vmatprep.subr.mxu0 0.0
        %8515 = vmatpush1.msra.mxu0 0.0
        %8516 = vmatprep.subr.mxu0 0.0
        %8517 = vmatpush1.msra.mxu0 0.0
        %8518 = vmatprep.subr.mxu0 0.0
        %8519 = vmatpush1.msra.mxu0 0.0
        %8520 = vmatprep.subr.mxu0 0.0
        %8521 = vmatpush1.msra.mxu0 0.0
        %8522 = vmatprep.subr.mxu0 0.0
        %8523 = vmatpush1.msra.mxu0 0.0
        %8524 = vmatprep.subr.mxu0 0.0
        %8525 = vmatpush1.msra.mxu0 0.0
        %8526 = vmatprep.subr.mxu0 0.0
        %8527 = vmatpush1.msra.mxu0 0.0
        %8528 = vmatprep.subr.mxu0 0.0
        %8529 = vmatpush1.msra.mxu0 0.0
        %8530 = vmatprep.subr.mxu0 0.0
        %8531 = vmatpush1.msra.mxu0 0.0
        %8532 = vmatprep.subr.mxu0 0.0
        %8533 = vmatpush1.msra.mxu0 0.0
        %8534 = vmatprep.subr.mxu0 0.0
        %8535 = vmatpush1.msra.mxu0 0.0
        %8536 = vmatprep.subr.mxu0 0.0
        %8537 = vmatpush1.msra.mxu0 0.0
        %8538 = vmatprep.subr.mxu0 0.0
        %8539 = vmatpush1.msra.mxu0 0.0
        %8540 = vmatprep.subr.mxu0 0.0
        %8541 = vmatpush1.msra.mxu0 0.0
        %8542 = vmatprep.subr.mxu0 0.0
        %8543 = vmatpush1.msra.mxu0 0.0
        %8544 = vmatprep.subr.mxu0 0.0
        %8545 = vmatpush1.msra.mxu0 0.0
        %8546 = vmatprep.subr.mxu0 0.0
        %8547 = vmatpush1.msra.mxu0 0.0
        %8548 = vmatprep.subr.mxu0 0.0
        %8549 = vmatpush1.msra.mxu0 0.0
        %8550 = vmatprep.subr.mxu0 0.0
        %8551 = vmatpush1.msra.mxu0 0.0
        %8552 = vmatprep.subr.mxu0 0.0
        %8553 = vmatpush1.msra.mxu0 0.0
        %8554 = vmatprep.subr.mxu0 0.0
        %8555 = vmatpush1.msra.mxu0 0.0
        %8556 = vmatprep.subr.mxu0 0.0
        %8557 = vmatpush1.msra.mxu0 0.0
        %8558 = vmatprep.subr.mxu0 0.0
        %8559 = vmatpush1.msra.mxu0 0.0
        %8560 = vmatprep.subr.mxu0 0.0
        %8561 = vmatpush1.msra.mxu0 0.0
        %8562 = vmatprep.mubr.f32.mxu0 0.0
        %8563 = vmatmul.mubr.f32.gmra.mrb[0].mxu0 %v8496
        %v8564 = vpop.f32.mrb[0].mxu0
        %v8565 = vadd.f32 0.0, %v8564
        %v8566 = vpop.f32.mrb[0].mxu0
        %8567 = vdwg.mxu0
        %v8568 = vsel %vm7587, %v8485, 0
        %8570 = vmatprep.subr.mxu0 0.0
        %8571 = vmatpush1.msra.mxu0 %v8486
        %8572 = vmatprep.subr.mxu0 0.0
        %8573 = vmatpush1.msra.mxu0 %v8487
        %8574 = vmatprep.subr.mxu0 0.0
        %8575 = vmatpush1.msra.mxu0 %v8488
        %8576 = vmatprep.subr.mxu0 0.0
        %8577 = vmatpush1.msra.mxu0 %v8489
        %8578 = vmatprep.subr.mxu0 0.0
        %8579 = vmatpush1.msra.mxu0 0.0
        %8580 = vmatprep.subr.mxu0 0.0
        %8581 = vmatpush1.msra.mxu0 0.0
        %8582 = vmatprep.subr.mxu0 0.0
        %8583 = vmatpush1.msra.mxu0 0.0
        %8584 = vmatprep.subr.mxu0 0.0
        %8585 = vmatpush1.msra.mxu0 0.0
        %8586 = vmatprep.subr.mxu0 0.0
        %8587 = vmatpush1.msra.mxu0 0.0
        %8588 = vmatprep.subr.mxu0 0.0
        %8589 = vmatpush1.msra.mxu0 0.0
        %8590 = vmatprep.subr.mxu0 0.0
        %8591 = vmatpush1.msra.mxu0 0.0
        %8592 = vmatprep.subr.mxu0 0.0
        %8593 = vmatpush1.msra.mxu0 0.0
        %8594 = vmatprep.subr.mxu0 0.0
        %8595 = vmatpush1.msra.mxu0 0.0
        %8596 = vmatprep.subr.mxu0 0.0
        %8597 = vmatpush1.msra.mxu0 0.0
        %8598 = vmatprep.subr.mxu0 0.0
        %8599 = vmatpush1.msra.mxu0 0.0
        %8600 = vmatprep.subr.mxu0 0.0
        %8601 = vmatpush1.msra.mxu0 0.0
        %8602 = vmatprep.subr.mxu0 0.0
        %8603 = vmatpush1.msra.mxu0 0.0
        %8604 = vmatprep.subr.mxu0 0.0
        %8605 = vmatpush1.msra.mxu0 0.0
        %8606 = vmatprep.subr.mxu0 0.0
        %8607 = vmatpush1.msra.mxu0 0.0
        %8608 = vmatprep.subr.mxu0 0.0
        %8609 = vmatpush1.msra.mxu0 0.0
        %8610 = vmatprep.subr.mxu0 0.0
        %8611 = vmatpush1.msra.mxu0 0.0
        %8612 = vmatprep.subr.mxu0 0.0
        %8613 = vmatpush1.msra.mxu0 0.0
        %8614 = vmatprep.subr.mxu0 0.0
        %8615 = vmatpush1.msra.mxu0 0.0
        %8616 = vmatprep.subr.mxu0 0.0
        %8617 = vmatpush1.msra.mxu0 0.0
        %8618 = vmatprep.subr.mxu0 0.0
        %8619 = vmatpush1.msra.mxu0 0.0
        %8620 = vmatprep.subr.mxu0 0.0
        %8621 = vmatpush1.msra.mxu0 0.0
        %8622 = vmatprep.subr.mxu0 0.0
        %8623 = vmatpush1.msra.mxu0 0.0
        %8624 = vmatprep.subr.mxu0 0.0
        %8625 = vmatpush1.msra.mxu0 0.0
        %8626 = vmatprep.subr.mxu0 0.0
        %8627 = vmatpush1.msra.mxu0 0.0
        %8628 = vmatprep.subr.mxu0 0.0
        %8629 = vmatpush1.msra.mxu0 0.0
        %8630 = vmatprep.subr.mxu0 0.0
        %8631 = vmatpush1.msra.mxu0 0.0
        %8632 = vmatprep.subr.mxu0 0.0
        %8633 = vmatpush1.msra.mxu0 0.0
        %8634 = vmatprep.mubr.f32.mxu0 0.0
        %8635 = vmatmul.mubr.f32.gmra.mrb[0].mxu0 %v8568
        %v8636 = vpop.f32.mrb[0].mxu0
        %v8637 = vadd.f32 %v8565, %v8636
        %v8638 = vpop.f32.mrb[0].mxu0
        %8639 = vdwg.mxu0
        %vm8640 = vcmask 73728
        %v8641 = vsel %vm8640, %v8637, -inf
        %8642 = vmax.xlane.f32.xlu0 %v8641
        %v8643 = vpop.xlane.xlu0 %8642
        %v8644 = vsub.f32 %v8637, %v8643
        %v8645 = vmul.f32 %v8644, 1.442695
        %v8646 = vpow.pop %v8645
        %v8647 = vsel %vm8640, %v8646, 0.0
        %8648 = vadd.xlane.f32.xlu0 %v8647
        %v8649 = vpop.xlane.xlu0 %8648
        %v8650 = vlog2.pop %v8649
        %v8651 = vmul.f32 %v8650, 0.6931472
        %v8652 = vsub.f32 %v8644, %v8651
        %8653 = vst.msk [vmem:[%s744] sm:$0x1] %vm8640, %v8652
        %s8654 = sand.u32 %s430, 1
        %s8655 = scalar_lea.sflag [#allocation4], %s8654
        %s8656 = sand.u32 %s430, 1
        %s8657 = scalar_lea.vmem [#allocation23], %s8656
        // Predicated region
        $region145: #{model4_forward.1} parent=91 // pred_check
          %p8658 = pneg %p440
        $region146: #{model4_forward.1} parent=91 // pred_check_branch
          %8660 = sbr.rel (%p8658) target = $region148
        $region147: #{model4_forward.1} parent=91 // pred_region
          %s8662 = ssub.s32 16, 16
          %8663 = vsyncadd %s8655, %s8662
          %s8664 = smul.addr %s39, 16
          %s8665 = scalar_lea.hbm %s18, %s8664
          %s8667 = sshll.u32 %s8657, 4
          %s8668 = int_to_ptr.vmem [resolvable:$true] %s8667
          %8670 = dma.vmem_to_hbm [thread:$0]  %s8668, 16, %s8665, %s8655
        $region148: #{model4_forward.1} parent=91 // pred_fallthru
          _
      $region92: #{model4_forward.1} parent=5 // pred_fallthru
        _
      %p8671 = scmp.le.s32.totalorder 2, %s34
      // Predicated region
      $region149: #{model4_forward.1} parent=5 // pred_check
        %p8672 = pneg %p8671
      $region150: #{model4_forward.1} parent=5 // pred_check_branch
        %8674 = sbr.rel (%p8672) target = $region152
      $region151: #{model4_forward.1} parent=5 // pred_region
        %s8675 = ssub.s32 %s34, 2
        // Predicated region
        $region153: #{model4_forward.1} parent=151 // pred_check
          %p8676 = pneg %p446
        $region154: #{model4_forward.1} parent=151 // pred_check_branch
          %8678 = sbr.rel (%p8676) target = $region156
        $region155: #{model4_forward.1} parent=151 // pred_region
          %s8679 = sand.u32 %s431, 1
          %s8680 = scalar_lea.sflag [#allocation4], %s8679
          %s8681 = sand.u32 %s431, 1
          %s8682 = scalar_lea.vmem [#allocation23], %s8681
          %8683 = dma.done %s8680, 16
        $region156: #{model4_forward.1} parent=151 // pred_fallthru
          _
      $region152: #{model4_forward.1} parent=5 // pred_fallthru
        _
    $region6: #{model4_forward.1} parent=1 // loop_footer
      %s38 = sadd.s32 1, %s34
    $region7: #{model4_forward.1} parent=1 // loop_footer_branch
      %33 = sbr.rel target = $region3
    $region8: #{model4_forward.1} parent=1 // loop_exit
      _
    %8684 = vsyncpa [#allocation3], 1
    %s8685 = scalar_lea.sflag [#allocation3], 1
    %8686 = vsyncpa %s8685, 1
    %8687 = vsyncpa [#allocation6], 1
    %8688 = vsyncpa [#allocation9], 1
    %8689 = vsyncpa [#allocation12], 1
    %8690 = vsyncpa [#allocation15], 1
    %8691 = vsyncpa [#allocation18], 1
    %8692 = vsyncpa [#allocation21], 1
    %8693 = vsyncpa [#allocation4], 1
    %s8694 = scalar_lea.sflag [#allocation4], 1
    %8695 = vsyncpa %s8694, 1

</llo_original>
